<compile_context>
chip_gen: v5e
topology: v5e:2x2
jax: 0.10.0
libtpu: 0.0.40
codegen_flags: <defaults>
</compile_context>

<pallas_src>
import math

import jax
import jax.numpy as jnp
from jax.experimental import pallas as pl
from jax.experimental.pallas import tpu as pltpu

_LANES = 128
_BLOCK_ELEMS = 1024 * 1024          # elements / grid step (4 MiB of f32 compute);
                                    # multiple of 8*128, measured ~85% of HBM roofline
_TINY = 64 * 1024                   # below this, XLA fused elementwise beats pallas_call
_VMEM_LIMIT = 48 * 1024 * 1024      # I/O double-buffer (16 MiB) + elementwise temps,
                                    # safe on v5e/v6e (128 MiB) and v7x (64 MiB)

_INV_12_92 = 1.0 / 12.92
_INV_1_055 = 1.0 / 1.055


# ---------------------------------------------------------------------------
# Elementwise math (shared between the Pallas kernel body and the jnp fallback)
# ---------------------------------------------------------------------------
def _linear_to_srgb_math(x):
    # torch.where(x < 0.0031308, 12.92 * x, 1.055 * x ** 0.41666 - 0.055)
    return jnp.where(
        x < 0.0031308,
        12.92 * x,
        1.055 * jnp.power(jnp.maximum(x, 0.0), 0.41666) - 0.055,
    )


def _srgb_to_linear_math(x):
    # torch.where(x < 0.04045, x / 12.92, ((x + 0.055) / 1.055) ** 2.4)
    return jnp.where(
        x < 0.04045,
        x * _INV_12_92,
        jnp.power(jnp.maximum((x + 0.055) * _INV_1_055, 0.0), 2.4),
    )


def _make_elementwise_kernel(math_fn):
    def kernel(x_ref, o_ref):
        x = x_ref[...].astype(jnp.float32)      # compute in f32 even for bf16 input
        o_ref[...] = math_fn(x).astype(o_ref.dtype)
    return kernel


_LINEAR_TO_SRGB_KERNEL = _make_elementwise_kernel(_linear_to_srgb_math)
_SRGB_TO_LINEAR_KERNEL = _make_elementwise_kernel(_srgb_to_linear_math)


# ---------------------------------------------------------------------------
# Pallas wrapper
# ---------------------------------------------------------------------------
def _elementwise_pallas(kernel, math_fn, x):
    """Run a purely-elementwise kernel over an arbitrarily-shaped float array."""
    orig_shape = x.shape
    total = int(math.prod(orig_shape)) if orig_shape else 1

    if total == 0:
        return x
    if total < _TINY:
        # pallas_call launch overhead dominates at this size; plain jnp is faster.
        return math_fn(x.astype(jnp.float32)).astype(x.dtype)

    itemsize = jnp.dtype(x.dtype).itemsize
    cost = pl.CostEstimate(
        flops=5 * total,
        transcendentals=2 * total,          # pow -> log + exp per element
        bytes_accessed=2 * total * itemsize,
    )
    cparams = pltpu.CompilerParams(
        dimension_semantics=("parallel",),  # allow dual-TC sharding where supported
        vmem_limit_bytes=_VMEM_LIMIT,
    )

    if total % _LANES == 0:
        # Canonical lane-dense (rows, 128) layout: row-major reshape is a bitcast,
        # blocks are dense (8,128) tiles with unmasked stores.
        rows = total // _LANES
        flat2d = x.reshape(rows, _LANES)
        block_rows = min(rows, _BLOCK_ELEMS // _LANES)   # 8192 rows (mult. of 8) or full
        out = pl.pallas_call(
            kernel,
            out_shape=jax.ShapeDtypeStruct((rows, _LANES), x.dtype),
            grid=(pl.cdiv(rows, block_rows),),
            in_specs=[pl.BlockSpec((block_rows, _LANES), lambda i: (i, 0))],
            out_specs=pl.BlockSpec((block_rows, _LANES), lambda i: (i, 0)),
            compiler_params=cparams,
            cost_estimate=cost,
        )(flat2d)
        return out.reshape(orig_shape)

    # 1-D fallback for totals not divisible by 128 (no padding / slicing copies;
    # Pallas masks the ragged final block's writes).
    flat = x.reshape(-1)
    block = total if total <= _BLOCK_ELEMS else _BLOCK_ELEMS
    out = pl.pallas_call(
        kernel,
        out_shape=jax.ShapeDtypeStruct((total,), x.dtype),
        grid=(pl.cdiv(total, block),),
        in_specs=[pl.BlockSpec((block,), lambda i: (i,))],
        out_specs=pl.BlockSpec((block,), lambda i: (i,)),
        compiler_params=cparams,
        cost_estimate=cost,
    )(flat)
    return out.reshape(orig_shape)


# ---------------------------------------------------------------------------
# Module port
# ---------------------------------------------------------------------------
class BaseBackground:
    """JAX/Pallas port of threedgrut BaseBackground (abstract base class)."""

    def __init__(self, config=None, **kwargs):
        self.config = config
        self.setup(**kwargs)

    def setup(self, **kwargs):
        # TODO(synk): setup() is abstract in the PyTorch module; concrete subclasses define it.
        pass

    def forward(self, ray_to_world, rays_d, rgb, opacity):
        # TODO(synk): forward() is abstract in the PyTorch module (NotImplementedError);
        # no concrete semantics exist to translate at this level.
        raise NotImplementedError("Must override in the child class")

    def linear_to_srgb(self, x):
        return _elementwise_pallas(_LINEAR_TO_SRGB_KERNEL, _linear_to_srgb_math, x)

    def srgb_to_linear(self, x):
        return _elementwise_pallas(_SRGB_TO_LINEAR_KERNEL, _srgb_to_linear_math, x)


# ---------------------------------------------------------------------------
# Pure-JAX references of the exact PyTorch math (with divides) for testing
# ---------------------------------------------------------------------------
def _ref_linear_to_srgb(x):
    return jnp.where(x < 0.0031308, 12.92 * x, 1.055 * jnp.power(x, 0.41666) - 0.055)


def _ref_srgb_to_linear(x):
    return jnp.where(x < 0.04045, x / 12.92, jnp.power((x + 0.055) / 1.055, 2.4))


if __name__ == "__main__":
    bg = BaseBackground(config=None)

    # 1) Small "rendered rgb" input (jnp fast path): batch=2, 16x16 rays, 3 channels.
    rgb = jax.random.uniform(jax.random.PRNGKey(0), (2, 16, 16, 3), dtype=jnp.float32)
    srgb = bg.linear_to_srgb(rgb)
    lin = bg.srgb_to_linear(rgb)
    jax.block_until_ready(srgb)
    jax.block_until_ready(lin)
    assert jnp.allclose(srgb, _ref_linear_to_srgb(rgb), atol=1e-5, rtol=1e-5)
    assert jnp.allclose(lin, _ref_srgb_to_linear(rgb), atol=1e-5, rtol=1e-5)
    assert srgb.shape == rgb.shape and srgb.dtype == rgb.dtype
    assert lin.shape == rgb.shape and lin.dtype == rgb.dtype

    # 2) Lane-dense 2-D Pallas path with a ragged final row-block:
    #    total = 1,280,000 elements -> rows = 10,000 -> 2 blocks of 8192 rows (last partial).
    x2d = jax.random.uniform(jax.random.PRNGKey(1), (100, 100, 128), dtype=jnp.float32)
    srgb_2d = bg.linear_to_srgb(x2d)
    lin_2d = bg.srgb_to_linear(x2d)
    jax.block_until_ready(srgb_2d)
    jax.block_until_ready(lin_2d)
    assert jnp.allclose(srgb_2d, _ref_linear_to_srgb(x2d), atol=1e-5, rtol=1e-5)
    assert jnp.allclose(lin_2d, _ref_srgb_to_linear(x2d), atol=1e-5, rtol=1e-5)
    assert srgb_2d.shape == x2d.shape and srgb_2d.dtype == x2d.dtype

    # 3) 1-D fallback Pallas path (total = 783,882, not a multiple of 128),
    #    single full-array block since total <= block size.
    x1d = jax.random.uniform(jax.random.PRNGKey(2), (2, 321, 407, 3), dtype=jnp.float32)
    srgb_1d = bg.linear_to_srgb(x1d)
    lin_1d = bg.srgb_to_linear(x1d)
    jax.block_until_ready(srgb_1d)
    jax.block_until_ready(lin_1d)
    assert jnp.allclose(srgb_1d, _ref_linear_to_srgb(x1d), atol=1e-5, rtol=1e-5)
    assert jnp.allclose(lin_1d, _ref_srgb_to_linear(x1d), atol=1e-5, rtol=1e-5)
    assert srgb_1d.shape == x1d.shape and srgb_1d.dtype == x1d.dtype

    print("KERNEL_OK")
</pallas_src>

<mosaic_0001>
module attributes {stable_mosaic.version = 11 : i64} {
  func.func @kernel(%arg0: i32, %arg1: memref<8192x128xf32, #tpu.memory_space<vmem>>, %arg2: memref<8192x128xf32, #tpu.memory_space<vmem>>) attributes {dimension_semantics = [#tpu.dimension_semantics<parallel>], iteration_bounds = array<i64: 2>, scalar_prefetch = 0 : i64, scratch_operands = 0 : i64, tpu.core_type = #tpu.core_type<tc>, window_params = [{transform_indices = @transform_0, window_bounds = array<i64: 8192, 128>}, {transform_indices = @transform_1, window_bounds = array<i64: 8192, 128>}]} {
    %c0 = arith.constant 0 : index
    %c0_0 = arith.constant 0 : index
    %0 = vector.load %arg1[%c0, %c0_0] : memref<8192x128xf32, #tpu.memory_space<vmem>>, vector<8192x128xf32>
    %cst = arith.constant 3.130800e-03 : f32
    %1 = vector.broadcast %cst : f32 to vector<8192x128xf32>
    %2 = arith.cmpf olt, %0, %1 : vector<8192x128xf32>
    %cst_1 = arith.constant 1.292000e+01 : f32
    %3 = vector.broadcast %cst_1 : f32 to vector<8192x128xf32>
    %4 = arith.mulf %3, %0 : vector<8192x128xf32>
    %cst_2 = arith.constant 0.000000e+00 : f32
    %5 = vector.broadcast %cst_2 : f32 to vector<8192x128xf32>
    %6 = arith.maximumf %0, %5 : vector<8192x128xf32>
    %cst_3 = arith.constant 4.166600e-01 : f32
    %7 = vector.broadcast %cst_3 : f32 to vector<8192x128xf32>
    %8 = math.powf %6, %7 : vector<8192x128xf32>
    %cst_4 = arith.constant 1.055000e+00 : f32
    %9 = vector.broadcast %cst_4 : f32 to vector<8192x128xf32>
    %10 = arith.mulf %9, %8 : vector<8192x128xf32>
    %cst_5 = arith.constant 5.500000e-02 : f32
    %11 = vector.broadcast %cst_5 : f32 to vector<8192x128xf32>
    %12 = arith.subf %10, %11 : vector<8192x128xf32>
    %13 = arith.select %2, %4, %12 : vector<8192x128xi1>, vector<8192x128xf32>
    %c0_6 = arith.constant 0 : index
    %c0_7 = arith.constant 0 : index
    %14 = vector.load %arg2[%c0_6, %c0_7] : memref<8192x128xf32, #tpu.memory_space<vmem>>, vector<8192x128xf32>
    tpu.vector_store %arg2[%c0_6, %c0_7], %13 {strides = array<i32>} : memref<8192x128xf32, #tpu.memory_space<vmem>>, vector<8192x128xf32>,
    return
  }
  func.func @transform_0(%arg0: i32) -> (i32, i32) {
    %c0_i32 = arith.constant 0 : i32
    %c0_i32_0 = arith.constant 0 : i32
    return %arg0, %c0_i32 : i32, i32
  }
  func.func @transform_1(%arg0: i32) -> (i32, i32) {
    %c0_i32 = arith.constant 0 : i32
    %c0_i32_0 = arith.constant 0 : i32
    return %arg0, %c0_i32 : i32, i32
  }
}

</mosaic_0001>

<llo_original>
// kernel: tpu_custom_call.1
$region0: #{tpu_custom_call.1}
  #allocation0 [shape = 'u32[]', space=smem, size = 0x4, offset = 0x4, fixed_abs, tag = 'smem constant byte address 0x4 - core index']
  #allocation1 [shape = 'u32[72,128]{1,0:T(1,128)}', space=vmem, size = 0x9000, scoped, tag = 'internal scratch']
  %s0 = inlined_call_operand.hbm [shape: f32[10000,128], index: 0, kind: input, shape index: {}]
  %s1 = inlined_call_operand.hbm [shape: f32[10000,128], index: 1, kind: output, shape index: {}]
  %s2 = sld [smem:[#allocation0]]
  $region41: #{tpu_custom_call.1} parent=0
    _
  %s4 = ssub.s32 1, %s2
  %s5 = scalar_select 0, %s4, %s2
  $region1: #{tpu_custom_call.1} parent=0
    #allocation2 [shape = 'u8[8388608]{0}', space=vmem, size = 0x800000, scoped, tag = 'input window, operand 0']
    #allocation3 [shape = 's32[2]{0}', space=sflag, size = 0x8, scoped, tag = 'scoped memory for tpu_custom_call.1']
    #allocation4 [shape = 's32[2]{0}', space=sflag, size = 0x8, scoped, tag = 'scoped memory for tpu_custom_call.1']
    #allocation5 [shape = 'u8[8388608]{0}', space=vmem, size = 0x800000, scoped, tag = 'output window, operand 0']
    %6 = vsyncpa [#allocation3], 0
    %s7 = scalar_lea.sflag [#allocation3], 1
    %8 = vsyncpa %s7, 0
    %9 = vsyncpa [#allocation4], 0
    %s10 = scalar_lea.sflag [#allocation4], 1
    %11 = vsyncpa %s10, 0
    loop: start=0, step=1, limit=4
    $region2: #{tpu_custom_call.1} parent=1 // loop_pre_header
      _
    $region3: #{tpu_custom_call.1} parent=1 // loop_header
      %s13 = sphi 0, %s17
      %p14 = scmp.ge.s32.totalorder %s13, 4
      %s23 = sphi 0, %s25
      %s26 = sphi 0, %s23
      %s27 = sphi 0, %s26
      %s43 = sphi 0, %s27
      %s49 = sphi 0, %s51
      %s52 = sphi 0, %s49
      %s53 = sphi 0, %s52
      %s69 = sphi 0, %s53
    $region4: #{tpu_custom_call.1} parent=1 // loop_header_branch
      %16 = sbr.rel (%p14) target = $region8
    $region5: #{tpu_custom_call.1} parent=1 // loop_body
      %s18 = ssub.s32 %s13, 1
      %s19 = ssub.s32 %s13, 2
      %s20 = sadd.s32 %s13, 1
      %s21 = ssub.s32 %s13, %s20
      %p22 = scmp.eq.s32.totalorder %s21, 0
      %s24 = sadd.s32 %s23, 1
      %s25 = scalar_select %p22, %s23, %s24
      %p28 = pneg %p22
      %p29 = scmp.eq.s32.totalorder %s13, 1
      %p30 = por %p28, %p29
      %p31 = scmp.ne.s32.totalorder %s23, %s26
      %p32 = scmp.eq.s32.totalorder %s13, 0
      %p33 = por %p31, %p32
      %p34 = scmp.ne.s32.totalorder %s23, %s26
      %p35 = scmp.eq.s32.totalorder %s18, 1
      %p36 = por %p34, %p35
      %p37 = scmp.ne.s32.totalorder %s26, %s27
      %p38 = scmp.eq.s32.totalorder %s18, 0
      %p39 = por %p37, %p38
      %p40 = scmp.ne.s32.totalorder %s26, %s27
      %p41 = scmp.eq.s32.totalorder %s19, 1
      %p42 = por %p40, %p41
      %p44 = scmp.ne.s32.totalorder %s27, %s43
      %p45 = scmp.eq.s32.totalorder %s19, 0
      %p46 = por %p44, %p45
      %s47 = ssub.s32 %s13, %s20
      %p48 = scmp.eq.s32.totalorder %s47, 0
      %s50 = sadd.s32 %s49, 1
      %s51 = scalar_select %p48, %s49, %s50
      %p54 = pneg %p48
      %p55 = scmp.eq.s32.totalorder %s13, 1
      %p56 = por %p54, %p55
      %p57 = scmp.ne.s32.totalorder %s49, %s52
      %p58 = scmp.eq.s32.totalorder %s13, 0
      %p59 = por %p57, %p58
      %p60 = scmp.ne.s32.totalorder %s49, %s52
      %p61 = scmp.eq.s32.totalorder %s18, 1
      %p62 = por %p60, %p61
      %p63 = scmp.ne.s32.totalorder %s52, %s53
      %p64 = scmp.eq.s32.totalorder %s18, 0
      %p65 = por %p63, %p64
      %p66 = scmp.ne.s32.totalorder %s52, %s53
      %p67 = scmp.eq.s32.totalorder %s19, 1
      %p68 = por %p66, %p67
      %p70 = scmp.ne.s32.totalorder %s53, %s69
      %p71 = scmp.eq.s32.totalorder %s19, 0
      %p72 = por %p70, %p71
      %p73 = scmp.le.s32.totalorder 1, %s13
      %p74 = scmp.lt.s32.totalorder %s13, 3
      %p75 = pnand %p73, %p74
      %p76 = pneg %p75
      // Predicated region
      $region9: #{tpu_custom_call.1} parent=5 // pred_check
        _
      $region10: #{tpu_custom_call.1} parent=5 // pred_check_branch
        %78 = sbr.rel (%p75) target = $region12
      $region11: #{tpu_custom_call.1} parent=5 // pred_region
        %s79 = ssub.s32 %s13, 1
      $region12: #{tpu_custom_call.1} parent=5 // pred_fallthru
        _
      %p80 = scmp.lt.s32.totalorder %s13, 2
      // Predicated region
      $region13: #{tpu_custom_call.1} parent=5 // pred_check
        %p81 = pneg %p80
      $region14: #{tpu_custom_call.1} parent=5 // pred_check_branch
        %83 = sbr.rel (%p81) target = $region16
      $region15: #{tpu_custom_call.1} parent=5 // pred_region
        // Predicated region
        $region17: #{tpu_custom_call.1} parent=15 // pred_check
          %p84 = pneg %p33
        $region18: #{tpu_custom_call.1} parent=15 // pred_check_branch
          %86 = sbr.rel (%p84) target = $region20
        $region19: #{tpu_custom_call.1} parent=15 // pred_region
          %s87 = sand.u32 %s23, 1
          %s88 = scalar_lea.sflag [#allocation3], %s87
          %s89 = sand.u32 %s23, 1
          %s90 = smul.addr %s89, 8192
          %s91 = scalar_lea.vmem [#allocation2], %s90
          %s92 = smul.u32 1024, %s13
          %s93 = ssub.s32 1250, %s92
          %p94 = scmp.lt.s32.totalorder %s93, 1024
          %s95 = scalar_select %p94, %s93, 1024
          %s96 = smul.u32 8, %s95
          %s97 = ssub.s32 8192, %s96
          %s98 = sshll.u32 %s97, 4
          %99 = vsyncadd %s88, %s98
          %p100 = scmp.ne.s32.totalorder 0, %s96
          %s101 = smul.addr %s92, 8
          %s102 = scalar_lea.hbm %s0, %s101
          %s103 = smul.u32 8, %s95
          %s104 = sshll.u32 %s102, 4
          %s105 = int_to_ptr.hbm [resolvable:$true] %s104
          %s106 = sshll.u32 %s91, 4
          %s107 = int_to_ptr.vmem [resolvable:$true] %s106
          %s108 = sshll.u32 %s103, 4
          %112 = dma.hbm_to_vmem [thread:$0]  (%p100), %s105, %s108, %s107, %s88, 128, 128, 8
        $region20: #{tpu_custom_call.1} parent=15 // pred_fallthru
          _
      $region16: #{tpu_custom_call.1} parent=5 // pred_fallthru
        _
      %p113 = scmp.le.s32.totalorder 1, %s13
      %p114 = scmp.lt.s32.totalorder %s13, 3
      %p115 = pnand %p113, %p114
      %p116 = pneg %p115
      // Predicated region
      $region21: #{tpu_custom_call.1} parent=5 // pred_check
        _
      $region22: #{tpu_custom_call.1} parent=5 // pred_check_branch
        %118 = sbr.rel (%p115) target = $region24
      $region23: #{tpu_custom_call.1} parent=5 // pred_region
        %s119 = ssub.s32 %s13, 1
        %s120 = sand.u32 %s26, 1
        %s121 = scalar_lea.sflag [#allocation3], %s120
        %s122 = sand.u32 %s26, 1
        %s123 = smul.addr %s122, 8192
        %s124 = scalar_lea.vmem [#allocation2], %s123
        // Predicated region
        $region25: #{tpu_custom_call.1} parent=23 // pred_check
          %p125 = pneg %p39
        $region26: #{tpu_custom_call.1} parent=23 // pred_check_branch
          %127 = sbr.rel (%p125) target = $region28
        $region27: #{tpu_custom_call.1} parent=23 // pred_region
          %129 = dma.done %s121, 131072
        $region28: #{tpu_custom_call.1} parent=23 // pred_fallthru
          _
        %s130 = sand.u32 %s26, 1
        %s131 = scalar_lea.sflag [#allocation3], %s130
        %s132 = sand.u32 %s26, 1
        %s133 = smul.addr %s132, 8192
        %s134 = scalar_lea.vmem [#allocation2], %s133
        %p135 = pneg %p39
        %p136 = pneg %p36
        %p137 = pneg %p65
        %p138 = pneg %p62
        %s139 = sand.u32 %s52, 1
        %s140 = scalar_lea.sflag [#allocation4], %s139
        %s141 = sand.u32 %s52, 1
        %s142 = smul.addr %s141, 8192
        %s143 = scalar_lea.vmem [#allocation5], %s142
        %s144 = smul.u32 1024, %s18
        %s145 = ssub.s32 1250, %s144
        %p146 = scmp.lt.s32.totalorder %s145, 1024
        %s147 = scalar_select %p146, %s145, 1024
        %s148 = smul.u32 8, %s147
        %s149 = smul.u32 1024, %s18
        %s150 = ssub.s32 1250, %s149
        %p151 = scmp.lt.s32.totalorder %s150, 1024
        %s152 = scalar_select %p151, %s150, 1024
        %s153 = smul.u32 8, %s152
        %v154 = vld [vmem:[%s124] sm:$0xff]
        %v155 = vld [vmem:[%s124 + $0x8] sm:$0xff]
        %v156 = vld [vmem:[%s124 + $0x10] sm:$0xff]
        %v157 = vld [vmem:[%s124 + $0x18] sm:$0xff]
        %v158 = vld [vmem:[%s124 + $0x20] sm:$0xff]
        %v159 = vld [vmem:[%s124 + $0x28] sm:$0xff]
        %v160 = vld [vmem:[%s124 + $0x30] sm:$0xff]
        %v161 = vld [vmem:[%s124 + $0x38] sm:$0xff]
        %v162 = vld [vmem:[%s124 + $0x40] sm:$0xff]
        %v163 = vld [vmem:[%s124 + $0x48] sm:$0xff]
        %v164 = vld [vmem:[%s124 + $0x50] sm:$0xff]
        %v165 = vld [vmem:[%s124 + $0x58] sm:$0xff]
        %v166 = vld [vmem:[%s124 + $0x60] sm:$0xff]
        %v167 = vld [vmem:[%s124 + $0x68] sm:$0xff]
        %v168 = vld [vmem:[%s124 + $0x70] sm:$0xff]
        %v169 = vld [vmem:[%s124 + $0x78] sm:$0xff]
        %v170 = vld [vmem:[%s124 + $0x80] sm:$0xff]
        %v171 = vld [vmem:[%s124 + $0x88] sm:$0xff]
        %v172 = vld [vmem:[%s124 + $0x90] sm:$0xff]
        %v173 = vld [vmem:[%s124 + $0x98] sm:$0xff]
        %v174 = vld [vmem:[%s124 + $0xa0] sm:$0xff]
        %v175 = vld [vmem:[%s124 + $0xa8] sm:$0xff]
        %v176 = vld [vmem:[%s124 + $0xb0] sm:$0xff]
        %v177 = vld [vmem:[%s124 + $0xb8] sm:$0xff]
        %v178 = vld [vmem:[%s124 + $0xc0] sm:$0xff]
        %v179 = vld [vmem:[%s124 + $0xc8] sm:$0xff]
        %v180 = vld [vmem:[%s124 + $0xd0] sm:$0xff]
        %v181 = vld [vmem:[%s124 + $0xd8] sm:$0xff]
        %v182 = vld [vmem:[%s124 + $0xe0] sm:$0xff]
        %v183 = vld [vmem:[%s124 + $0xe8] sm:$0xff]
        %v184 = vld [vmem:[%s124 + $0xf0] sm:$0xff]
        %v185 = vld [vmem:[%s124 + $0xf8] sm:$0xff]
        %v186 = vld [vmem:[%s124 + $0x100] sm:$0xff]
        %v187 = vld [vmem:[%s124 + $0x108] sm:$0xff]
        %v188 = vld [vmem:[%s124 + $0x110] sm:$0xff]
        %v189 = vld [vmem:[%s124 + $0x118] sm:$0xff]
        %v190 = vld [vmem:[%s124 + $0x120] sm:$0xff]
        %v191 = vld [vmem:[%s124 + $0x128] sm:$0xff]
        %v192 = vld [vmem:[%s124 + $0x130] sm:$0xff]
        %v193 = vld [vmem:[%s124 + $0x138] sm:$0xff]
        %v194 = vld [vmem:[%s124 + $0x140] sm:$0xff]
        %v195 = vld [vmem:[%s124 + $0x148] sm:$0xff]
        %v196 = vld [vmem:[%s124 + $0x150] sm:$0xff]
        %v197 = vld [vmem:[%s124 + $0x158] sm:$0xff]
        %v198 = vld [vmem:[%s124 + $0x160] sm:$0xff]
        %v199 = vld [vmem:[%s124 + $0x168] sm:$0xff]
        %v200 = vld [vmem:[%s124 + $0x170] sm:$0xff]
        %v201 = vld [vmem:[%s124 + $0x178] sm:$0xff]
        %v202 = vld [vmem:[%s124 + $0x180] sm:$0xff]
        %v203 = vld [vmem:[%s124 + $0x188] sm:$0xff]
        %v204 = vld [vmem:[%s124 + $0x190] sm:$0xff]
        %v205 = vld [vmem:[%s124 + $0x198] sm:$0xff]
        %v206 = vld [vmem:[%s124 + $0x1a0] sm:$0xff]
        %v207 = vld [vmem:[%s124 + $0x1a8] sm:$0xff]
        %v208 = vld [vmem:[%s124 + $0x1b0] sm:$0xff]
        %v209 = vld [vmem:[%s124 + $0x1b8] sm:$0xff]
        %v210 = vld [vmem:[%s124 + $0x1c0] sm:$0xff]
        %v211 = vld [vmem:[%s124 + $0x1c8] sm:$0xff]
        %v212 = vld [vmem:[%s124 + $0x1d0] sm:$0xff]
        %v213 = vld [vmem:[%s124 + $0x1d8] sm:$0xff]
        %v214 = vld [vmem:[%s124 + $0x1e0] sm:$0xff]
        %v215 = vld [vmem:[%s124 + $0x1e8] sm:$0xff]
        %v216 = vld [vmem:[%s124 + $0x1f0] sm:$0xff]
        %v217 = vld [vmem:[%s124 + $0x1f8] sm:$0xff]
        %v218 = vld [vmem:[%s124 + $0x200] sm:$0xff]
        %v219 = vld [vmem:[%s124 + $0x208] sm:$0xff]
        %v220 = vld [vmem:[%s124 + $0x210] sm:$0xff]
        %v221 = vld [vmem:[%s124 + $0x218] sm:$0xff]
        %v222 = vld [vmem:[%s124 + $0x220] sm:$0xff]
        %v223 = vld [vmem:[%s124 + $0x228] sm:$0xff]
        %v224 = vld [vmem:[%s124 + $0x230] sm:$0xff]
        %v225 = vld [vmem:[%s124 + $0x238] sm:$0xff]
        %v226 = vld [vmem:[%s124 + $0x240] sm:$0xff]
        %v227 = vld [vmem:[%s124 + $0x248] sm:$0xff]
        %v228 = vld [vmem:[%s124 + $0x250] sm:$0xff]
        %v229 = vld [vmem:[%s124 + $0x258] sm:$0xff]
        %v230 = vld [vmem:[%s124 + $0x260] sm:$0xff]
        %v231 = vld [vmem:[%s124 + $0x268] sm:$0xff]
        %v232 = vld [vmem:[%s124 + $0x270] sm:$0xff]
        %v233 = vld [vmem:[%s124 + $0x278] sm:$0xff]
        %v234 = vld [vmem:[%s124 + $0x280] sm:$0xff]
        %v235 = vld [vmem:[%s124 + $0x288] sm:$0xff]
        %v236 = vld [vmem:[%s124 + $0x290] sm:$0xff]
        %v237 = vld [vmem:[%s124 + $0x298] sm:$0xff]
        %v238 = vld [vmem:[%s124 + $0x2a0] sm:$0xff]
        %v239 = vld [vmem:[%s124 + $0x2a8] sm:$0xff]
        %v240 = vld [vmem:[%s124 + $0x2b0] sm:$0xff]
        %v241 = vld [vmem:[%s124 + $0x2b8] sm:$0xff]
        %v242 = vld [vmem:[%s124 + $0x2c0] sm:$0xff]
        %v243 = vld [vmem:[%s124 + $0x2c8] sm:$0xff]
        %v244 = vld [vmem:[%s124 + $0x2d0] sm:$0xff]
        %v245 = vld [vmem:[%s124 + $0x2d8] sm:$0xff]
        %v246 = vld [vmem:[%s124 + $0x2e0] sm:$0xff]
        %v247 = vld [vmem:[%s124 + $0x2e8] sm:$0xff]
        %v248 = vld [vmem:[%s124 + $0x2f0] sm:$0xff]
        %v249 = vld [vmem:[%s124 + $0x2f8] sm:$0xff]
        %v250 = vld [vmem:[%s124 + $0x300] sm:$0xff]
        %v251 = vld [vmem:[%s124 + $0x308] sm:$0xff]
        %v252 = vld [vmem:[%s124 + $0x310] sm:$0xff]
        %v253 = vld [vmem:[%s124 + $0x318] sm:$0xff]
        %v254 = vld [vmem:[%s124 + $0x320] sm:$0xff]
        %v255 = vld [vmem:[%s124 + $0x328] sm:$0xff]
        %v256 = vld [vmem:[%s124 + $0x330] sm:$0xff]
        %v257 = vld [vmem:[%s124 + $0x338] sm:$0xff]
        %v258 = vld [vmem:[%s124 + $0x340] sm:$0xff]
        %v259 = vld [vmem:[%s124 + $0x348] sm:$0xff]
        %v260 = vld [vmem:[%s124 + $0x350] sm:$0xff]
        %v261 = vld [vmem:[%s124 + $0x358] sm:$0xff]
        %v262 = vld [vmem:[%s124 + $0x360] sm:$0xff]
        %v263 = vld [vmem:[%s124 + $0x368] sm:$0xff]
        %v264 = vld [vmem:[%s124 + $0x370] sm:$0xff]
        %v265 = vld [vmem:[%s124 + $0x378] sm:$0xff]
        %v266 = vld [vmem:[%s124 + $0x380] sm:$0xff]
        %v267 = vld [vmem:[%s124 + $0x388] sm:$0xff]
        %v268 = vld [vmem:[%s124 + $0x390] sm:$0xff]
        %v269 = vld [vmem:[%s124 + $0x398] sm:$0xff]
        %v270 = vld [vmem:[%s124 + $0x3a0] sm:$0xff]
        %v271 = vld [vmem:[%s124 + $0x3a8] sm:$0xff]
        %v272 = vld [vmem:[%s124 + $0x3b0] sm:$0xff]
        %v273 = vld [vmem:[%s124 + $0x3b8] sm:$0xff]
        %v274 = vld [vmem:[%s124 + $0x3c0] sm:$0xff]
        %v275 = vld [vmem:[%s124 + $0x3c8] sm:$0xff]
        %v276 = vld [vmem:[%s124 + $0x3d0] sm:$0xff]
        %v277 = vld [vmem:[%s124 + $0x3d8] sm:$0xff]
        %v278 = vld [vmem:[%s124 + $0x3e0] sm:$0xff]
        %v279 = vld [vmem:[%s124 + $0x3e8] sm:$0xff]
        %v280 = vld [vmem:[%s124 + $0x3f0] sm:$0xff]
        %v281 = vld [vmem:[%s124 + $0x3f8] sm:$0xff]
        %v282 = vld [vmem:[%s124 + $0x400] sm:$0xff]
        %v283 = vld [vmem:[%s124 + $0x408] sm:$0xff]
        %v284 = vld [vmem:[%s124 + $0x410] sm:$0xff]
        %v285 = vld [vmem:[%s124 + $0x418] sm:$0xff]
        %v286 = vld [vmem:[%s124 + $0x420] sm:$0xff]
        %v287 = vld [vmem:[%s124 + $0x428] sm:$0xff]
        %v288 = vld [vmem:[%s124 + $0x430] sm:$0xff]
        %v289 = vld [vmem:[%s124 + $0x438] sm:$0xff]
        %v290 = vld [vmem:[%s124 + $0x440] sm:$0xff]
        %v291 = vld [vmem:[%s124 + $0x448] sm:$0xff]
        %v292 = vld [vmem:[%s124 + $0x450] sm:$0xff]
        %v293 = vld [vmem:[%s124 + $0x458] sm:$0xff]
        %v294 = vld [vmem:[%s124 + $0x460] sm:$0xff]
        %v295 = vld [vmem:[%s124 + $0x468] sm:$0xff]
        %v296 = vld [vmem:[%s124 + $0x470] sm:$0xff]
        %v297 = vld [vmem:[%s124 + $0x478] sm:$0xff]
        %v298 = vld [vmem:[%s124 + $0x480] sm:$0xff]
        %v299 = vld [vmem:[%s124 + $0x488] sm:$0xff]
        %v300 = vld [vmem:[%s124 + $0x490] sm:$0xff]
        %v301 = vld [vmem:[%s124 + $0x498] sm:$0xff]
        %v302 = vld [vmem:[%s124 + $0x4a0] sm:$0xff]
        %v303 = vld [vmem:[%s124 + $0x4a8] sm:$0xff]
        %v304 = vld [vmem:[%s124 + $0x4b0] sm:$0xff]
        %v305 = vld [vmem:[%s124 + $0x4b8] sm:$0xff]
        %v306 = vld [vmem:[%s124 + $0x4c0] sm:$0xff]
        %v307 = vld [vmem:[%s124 + $0x4c8] sm:$0xff]
        %v308 = vld [vmem:[%s124 + $0x4d0] sm:$0xff]
        %v309 = vld [vmem:[%s124 + $0x4d8] sm:$0xff]
        %v310 = vld [vmem:[%s124 + $0x4e0] sm:$0xff]
        %v311 = vld [vmem:[%s124 + $0x4e8] sm:$0xff]
        %v312 = vld [vmem:[%s124 + $0x4f0] sm:$0xff]
        %v313 = vld [vmem:[%s124 + $0x4f8] sm:$0xff]
        %v314 = vld [vmem:[%s124 + $0x500] sm:$0xff]
        %v315 = vld [vmem:[%s124 + $0x508] sm:$0xff]
        %v316 = vld [vmem:[%s124 + $0x510] sm:$0xff]
        %v317 = vld [vmem:[%s124 + $0x518] sm:$0xff]
        %v318 = vld [vmem:[%s124 + $0x520] sm:$0xff]
        %v319 = vld [vmem:[%s124 + $0x528] sm:$0xff]
        %v320 = vld [vmem:[%s124 + $0x530] sm:$0xff]
        %v321 = vld [vmem:[%s124 + $0x538] sm:$0xff]
        %v322 = vld [vmem:[%s124 + $0x540] sm:$0xff]
        %v323 = vld [vmem:[%s124 + $0x548] sm:$0xff]
        %v324 = vld [vmem:[%s124 + $0x550] sm:$0xff]
        %v325 = vld [vmem:[%s124 + $0x558] sm:$0xff]
        %v326 = vld [vmem:[%s124 + $0x560] sm:$0xff]
        %v327 = vld [vmem:[%s124 + $0x568] sm:$0xff]
        %v328 = vld [vmem:[%s124 + $0x570] sm:$0xff]
        %v329 = vld [vmem:[%s124 + $0x578] sm:$0xff]
        %v330 = vld [vmem:[%s124 + $0x580] sm:$0xff]
        %v331 = vld [vmem:[%s124 + $0x588] sm:$0xff]
        %v332 = vld [vmem:[%s124 + $0x590] sm:$0xff]
        %v333 = vld [vmem:[%s124 + $0x598] sm:$0xff]
        %v334 = vld [vmem:[%s124 + $0x5a0] sm:$0xff]
        %v335 = vld [vmem:[%s124 + $0x5a8] sm:$0xff]
        %v336 = vld [vmem:[%s124 + $0x5b0] sm:$0xff]
        %v337 = vld [vmem:[%s124 + $0x5b8] sm:$0xff]
        %v338 = vld [vmem:[%s124 + $0x5c0] sm:$0xff]
        %v339 = vld [vmem:[%s124 + $0x5c8] sm:$0xff]
        %v340 = vld [vmem:[%s124 + $0x5d0] sm:$0xff]
        %v341 = vld [vmem:[%s124 + $0x5d8] sm:$0xff]
        %v342 = vld [vmem:[%s124 + $0x5e0] sm:$0xff]
        %v343 = vld [vmem:[%s124 + $0x5e8] sm:$0xff]
        %v344 = vld [vmem:[%s124 + $0x5f0] sm:$0xff]
        %v345 = vld [vmem:[%s124 + $0x5f8] sm:$0xff]
        %v346 = vld [vmem:[%s124 + $0x600] sm:$0xff]
        %v347 = vld [vmem:[%s124 + $0x608] sm:$0xff]
        %v348 = vld [vmem:[%s124 + $0x610] sm:$0xff]
        %v349 = vld [vmem:[%s124 + $0x618] sm:$0xff]
        %v350 = vld [vmem:[%s124 + $0x620] sm:$0xff]
        %v351 = vld [vmem:[%s124 + $0x628] sm:$0xff]
        %v352 = vld [vmem:[%s124 + $0x630] sm:$0xff]
        %v353 = vld [vmem:[%s124 + $0x638] sm:$0xff]
        %v354 = vld [vmem:[%s124 + $0x640] sm:$0xff]
        %v355 = vld [vmem:[%s124 + $0x648] sm:$0xff]
        %v356 = vld [vmem:[%s124 + $0x650] sm:$0xff]
        %v357 = vld [vmem:[%s124 + $0x658] sm:$0xff]
        %v358 = vld [vmem:[%s124 + $0x660] sm:$0xff]
        %v359 = vld [vmem:[%s124 + $0x668] sm:$0xff]
        %v360 = vld [vmem:[%s124 + $0x670] sm:$0xff]
        %v361 = vld [vmem:[%s124 + $0x678] sm:$0xff]
        %v362 = vld [vmem:[%s124 + $0x680] sm:$0xff]
        %v363 = vld [vmem:[%s124 + $0x688] sm:$0xff]
        %v364 = vld [vmem:[%s124 + $0x690] sm:$0xff]
        %v365 = vld [vmem:[%s124 + $0x698] sm:$0xff]
        %v366 = vld [vmem:[%s124 + $0x6a0] sm:$0xff]
        %v367 = vld [vmem:[%s124 + $0x6a8] sm:$0xff]
        %v368 = vld [vmem:[%s124 + $0x6b0] sm:$0xff]
        %v369 = vld [vmem:[%s124 + $0x6b8] sm:$0xff]
        %v370 = vld [vmem:[%s124 + $0x6c0] sm:$0xff]
        %v371 = vld [vmem:[%s124 + $0x6c8] sm:$0xff]
        %v372 = vld [vmem:[%s124 + $0x6d0] sm:$0xff]
        %v373 = vld [vmem:[%s124 + $0x6d8] sm:$0xff]
        %v374 = vld [vmem:[%s124 + $0x6e0] sm:$0xff]
        %v375 = vld [vmem:[%s124 + $0x6e8] sm:$0xff]
        %v376 = vld [vmem:[%s124 + $0x6f0] sm:$0xff]
        %v377 = vld [vmem:[%s124 + $0x6f8] sm:$0xff]
        %v378 = vld [vmem:[%s124 + $0x700] sm:$0xff]
        %v379 = vld [vmem:[%s124 + $0x708] sm:$0xff]
        %v380 = vld [vmem:[%s124 + $0x710] sm:$0xff]
        %v381 = vld [vmem:[%s124 + $0x718] sm:$0xff]
        %v382 = vld [vmem:[%s124 + $0x720] sm:$0xff]
        %v383 = vld [vmem:[%s124 + $0x728] sm:$0xff]
        %v384 = vld [vmem:[%s124 + $0x730] sm:$0xff]
        %v385 = vld [vmem:[%s124 + $0x738] sm:$0xff]
        %v386 = vld [vmem:[%s124 + $0x740] sm:$0xff]
        %v387 = vld [vmem:[%s124 + $0x748] sm:$0xff]
        %v388 = vld [vmem:[%s124 + $0x750] sm:$0xff]
        %v389 = vld [vmem:[%s124 + $0x758] sm:$0xff]
        %v390 = vld [vmem:[%s124 + $0x760] sm:$0xff]
        %v391 = vld [vmem:[%s124 + $0x768] sm:$0xff]
        %v392 = vld [vmem:[%s124 + $0x770] sm:$0xff]
        %v393 = vld [vmem:[%s124 + $0x778] sm:$0xff]
        %v394 = vld [vmem:[%s124 + $0x780] sm:$0xff]
        %v395 = vld [vmem:[%s124 + $0x788] sm:$0xff]
        %v396 = vld [vmem:[%s124 + $0x790] sm:$0xff]
        %v397 = vld [vmem:[%s124 + $0x798] sm:$0xff]
        %v398 = vld [vmem:[%s124 + $0x7a0] sm:$0xff]
        %v399 = vld [vmem:[%s124 + $0x7a8] sm:$0xff]
        %v400 = vld [vmem:[%s124 + $0x7b0] sm:$0xff]
        %v401 = vld [vmem:[%s124 + $0x7b8] sm:$0xff]
        %v402 = vld [vmem:[%s124 + $0x7c0] sm:$0xff]
        %v403 = vld [vmem:[%s124 + $0x7c8] sm:$0xff]
        %v404 = vld [vmem:[%s124 + $0x7d0] sm:$0xff]
        %v405 = vld [vmem:[%s124 + $0x7d8] sm:$0xff]
        %v406 = vld [vmem:[%s124 + $0x7e0] sm:$0xff]
        %v407 = vld [vmem:[%s124 + $0x7e8] sm:$0xff]
        %v408 = vld [vmem:[%s124 + $0x7f0] sm:$0xff]
        %v409 = vld [vmem:[%s124 + $0x7f8] sm:$0xff]
        %v410 = vld [vmem:[%s124 + $0x800] sm:$0xff]
        %v411 = vld [vmem:[%s124 + $0x808] sm:$0xff]
        %v412 = vld [vmem:[%s124 + $0x810] sm:$0xff]
        %v413 = vld [vmem:[%s124 + $0x818] sm:$0xff]
        %v414 = vld [vmem:[%s124 + $0x820] sm:$0xff]
        %v415 = vld [vmem:[%s124 + $0x828] sm:$0xff]
        %v416 = vld [vmem:[%s124 + $0x830] sm:$0xff]
        %v417 = vld [vmem:[%s124 + $0x838] sm:$0xff]
        %v418 = vld [vmem:[%s124 + $0x840] sm:$0xff]
        %v419 = vld [vmem:[%s124 + $0x848] sm:$0xff]
        %v420 = vld [vmem:[%s124 + $0x850] sm:$0xff]
        %v421 = vld [vmem:[%s124 + $0x858] sm:$0xff]
        %v422 = vld [vmem:[%s124 + $0x860] sm:$0xff]
        %v423 = vld [vmem:[%s124 + $0x868] sm:$0xff]
        %v424 = vld [vmem:[%s124 + $0x870] sm:$0xff]
        %v425 = vld [vmem:[%s124 + $0x878] sm:$0xff]
        %v426 = vld [vmem:[%s124 + $0x880] sm:$0xff]
        %v427 = vld [vmem:[%s124 + $0x888] sm:$0xff]
        %v428 = vld [vmem:[%s124 + $0x890] sm:$0xff]
        %v429 = vld [vmem:[%s124 + $0x898] sm:$0xff]
        %v430 = vld [vmem:[%s124 + $0x8a0] sm:$0xff]
        %v431 = vld [vmem:[%s124 + $0x8a8] sm:$0xff]
        %v432 = vld [vmem:[%s124 + $0x8b0] sm:$0xff]
        %v433 = vld [vmem:[%s124 + $0x8b8] sm:$0xff]
        %v434 = vld [vmem:[%s124 + $0x8c0] sm:$0xff]
        %v435 = vld [vmem:[%s124 + $0x8c8] sm:$0xff]
        %v436 = vld [vmem:[%s124 + $0x8d0] sm:$0xff]
        %v437 = vld [vmem:[%s124 + $0x8d8] sm:$0xff]
        %v438 = vld [vmem:[%s124 + $0x8e0] sm:$0xff]
        %v439 = vld [vmem:[%s124 + $0x8e8] sm:$0xff]
        %v440 = vld [vmem:[%s124 + $0x8f0] sm:$0xff]
        %v441 = vld [vmem:[%s124 + $0x8f8] sm:$0xff]
        %v442 = vld [vmem:[%s124 + $0x900] sm:$0xff]
        %v443 = vld [vmem:[%s124 + $0x908] sm:$0xff]
        %v444 = vld [vmem:[%s124 + $0x910] sm:$0xff]
        %v445 = vld [vmem:[%s124 + $0x918] sm:$0xff]
        %v446 = vld [vmem:[%s124 + $0x920] sm:$0xff]
        %v447 = vld [vmem:[%s124 + $0x928] sm:$0xff]
        %v448 = vld [vmem:[%s124 + $0x930] sm:$0xff]
        %v449 = vld [vmem:[%s124 + $0x938] sm:$0xff]
        %v450 = vld [vmem:[%s124 + $0x940] sm:$0xff]
        %v451 = vld [vmem:[%s124 + $0x948] sm:$0xff]
        %v452 = vld [vmem:[%s124 + $0x950] sm:$0xff]
        %v453 = vld [vmem:[%s124 + $0x958] sm:$0xff]
        %v454 = vld [vmem:[%s124 + $0x960] sm:$0xff]
        %v455 = vld [vmem:[%s124 + $0x968] sm:$0xff]
        %v456 = vld [vmem:[%s124 + $0x970] sm:$0xff]
        %v457 = vld [vmem:[%s124 + $0x978] sm:$0xff]
        %v458 = vld [vmem:[%s124 + $0x980] sm:$0xff]
        %v459 = vld [vmem:[%s124 + $0x988] sm:$0xff]
        %v460 = vld [vmem:[%s124 + $0x990] sm:$0xff]
        %v461 = vld [vmem:[%s124 + $0x998] sm:$0xff]
        %v462 = vld [vmem:[%s124 + $0x9a0] sm:$0xff]
        %v463 = vld [vmem:[%s124 + $0x9a8] sm:$0xff]
        %v464 = vld [vmem:[%s124 + $0x9b0] sm:$0xff]
        %v465 = vld [vmem:[%s124 + $0x9b8] sm:$0xff]
        %v466 = vld [vmem:[%s124 + $0x9c0] sm:$0xff]
        %v467 = vld [vmem:[%s124 + $0x9c8] sm:$0xff]
        %v468 = vld [vmem:[%s124 + $0x9d0] sm:$0xff]
        %v469 = vld [vmem:[%s124 + $0x9d8] sm:$0xff]
        %v470 = vld [vmem:[%s124 + $0x9e0] sm:$0xff]
        %v471 = vld [vmem:[%s124 + $0x9e8] sm:$0xff]
        %v472 = vld [vmem:[%s124 + $0x9f0] sm:$0xff]
        %v473 = vld [vmem:[%s124 + $0x9f8] sm:$0xff]
        %v474 = vld [vmem:[%s124 + $0xa00] sm:$0xff]
        %v475 = vld [vmem:[%s124 + $0xa08] sm:$0xff]
        %v476 = vld [vmem:[%s124 + $0xa10] sm:$0xff]
        %v477 = vld [vmem:[%s124 + $0xa18] sm:$0xff]
        %v478 = vld [vmem:[%s124 + $0xa20] sm:$0xff]
        %v479 = vld [vmem:[%s124 + $0xa28] sm:$0xff]
        %v480 = vld [vmem:[%s124 + $0xa30] sm:$0xff]
        %v481 = vld [vmem:[%s124 + $0xa38] sm:$0xff]
        %v482 = vld [vmem:[%s124 + $0xa40] sm:$0xff]
        %v483 = vld [vmem:[%s124 + $0xa48] sm:$0xff]
        %v484 = vld [vmem:[%s124 + $0xa50] sm:$0xff]
        %v485 = vld [vmem:[%s124 + $0xa58] sm:$0xff]
        %v486 = vld [vmem:[%s124 + $0xa60] sm:$0xff]
        %v487 = vld [vmem:[%s124 + $0xa68] sm:$0xff]
        %v488 = vld [vmem:[%s124 + $0xa70] sm:$0xff]
        %v489 = vld [vmem:[%s124 + $0xa78] sm:$0xff]
        %v490 = vld [vmem:[%s124 + $0xa80] sm:$0xff]
        %v491 = vld [vmem:[%s124 + $0xa88] sm:$0xff]
        %v492 = vld [vmem:[%s124 + $0xa90] sm:$0xff]
        %v493 = vld [vmem:[%s124 + $0xa98] sm:$0xff]
        %v494 = vld [vmem:[%s124 + $0xaa0] sm:$0xff]
        %v495 = vld [vmem:[%s124 + $0xaa8] sm:$0xff]
        %v496 = vld [vmem:[%s124 + $0xab0] sm:$0xff]
        %v497 = vld [vmem:[%s124 + $0xab8] sm:$0xff]
        %v498 = vld [vmem:[%s124 + $0xac0] sm:$0xff]
        %v499 = vld [vmem:[%s124 + $0xac8] sm:$0xff]
        %v500 = vld [vmem:[%s124 + $0xad0] sm:$0xff]
        %v501 = vld [vmem:[%s124 + $0xad8] sm:$0xff]
        %v502 = vld [vmem:[%s124 + $0xae0] sm:$0xff]
        %v503 = vld [vmem:[%s124 + $0xae8] sm:$0xff]
        %v504 = vld [vmem:[%s124 + $0xaf0] sm:$0xff]
        %v505 = vld [vmem:[%s124 + $0xaf8] sm:$0xff]
        %v506 = vld [vmem:[%s124 + $0xb00] sm:$0xff]
        %v507 = vld [vmem:[%s124 + $0xb08] sm:$0xff]
        %v508 = vld [vmem:[%s124 + $0xb10] sm:$0xff]
        %v509 = vld [vmem:[%s124 + $0xb18] sm:$0xff]
        %v510 = vld [vmem:[%s124 + $0xb20] sm:$0xff]
        %v511 = vld [vmem:[%s124 + $0xb28] sm:$0xff]
        %v512 = vld [vmem:[%s124 + $0xb30] sm:$0xff]
        %v513 = vld [vmem:[%s124 + $0xb38] sm:$0xff]
        %v514 = vld [vmem:[%s124 + $0xb40] sm:$0xff]
        %v515 = vld [vmem:[%s124 + $0xb48] sm:$0xff]
        %v516 = vld [vmem:[%s124 + $0xb50] sm:$0xff]
        %v517 = vld [vmem:[%s124 + $0xb58] sm:$0xff]
        %v518 = vld [vmem:[%s124 + $0xb60] sm:$0xff]
        %v519 = vld [vmem:[%s124 + $0xb68] sm:$0xff]
        %v520 = vld [vmem:[%s124 + $0xb70] sm:$0xff]
        %v521 = vld [vmem:[%s124 + $0xb78] sm:$0xff]
        %v522 = vld [vmem:[%s124 + $0xb80] sm:$0xff]
        %v523 = vld [vmem:[%s124 + $0xb88] sm:$0xff]
        %v524 = vld [vmem:[%s124 + $0xb90] sm:$0xff]
        %v525 = vld [vmem:[%s124 + $0xb98] sm:$0xff]
        %v526 = vld [vmem:[%s124 + $0xba0] sm:$0xff]
        %v527 = vld [vmem:[%s124 + $0xba8] sm:$0xff]
        %v528 = vld [vmem:[%s124 + $0xbb0] sm:$0xff]
        %v529 = vld [vmem:[%s124 + $0xbb8] sm:$0xff]
        %v530 = vld [vmem:[%s124 + $0xbc0] sm:$0xff]
        %v531 = vld [vmem:[%s124 + $0xbc8] sm:$0xff]
        %v532 = vld [vmem:[%s124 + $0xbd0] sm:$0xff]
        %v533 = vld [vmem:[%s124 + $0xbd8] sm:$0xff]
        %v534 = vld [vmem:[%s124 + $0xbe0] sm:$0xff]
        %v535 = vld [vmem:[%s124 + $0xbe8] sm:$0xff]
        %v536 = vld [vmem:[%s124 + $0xbf0] sm:$0xff]
        %v537 = vld [vmem:[%s124 + $0xbf8] sm:$0xff]
        %v538 = vld [vmem:[%s124 + $0xc00] sm:$0xff]
        %v539 = vld [vmem:[%s124 + $0xc08] sm:$0xff]
        %v540 = vld [vmem:[%s124 + $0xc10] sm:$0xff]
        %v541 = vld [vmem:[%s124 + $0xc18] sm:$0xff]
        %v542 = vld [vmem:[%s124 + $0xc20] sm:$0xff]
        %v543 = vld [vmem:[%s124 + $0xc28] sm:$0xff]
        %v544 = vld [vmem:[%s124 + $0xc30] sm:$0xff]
        %v545 = vld [vmem:[%s124 + $0xc38] sm:$0xff]
        %v546 = vld [vmem:[%s124 + $0xc40] sm:$0xff]
        %v547 = vld [vmem:[%s124 + $0xc48] sm:$0xff]
        %v548 = vld [vmem:[%s124 + $0xc50] sm:$0xff]
        %v549 = vld [vmem:[%s124 + $0xc58] sm:$0xff]
        %v550 = vld [vmem:[%s124 + $0xc60] sm:$0xff]
        %v551 = vld [vmem:[%s124 + $0xc68] sm:$0xff]
        %v552 = vld [vmem:[%s124 + $0xc70] sm:$0xff]
        %v553 = vld [vmem:[%s124 + $0xc78] sm:$0xff]
        %v554 = vld [vmem:[%s124 + $0xc80] sm:$0xff]
        %v555 = vld [vmem:[%s124 + $0xc88] sm:$0xff]
        %v556 = vld [vmem:[%s124 + $0xc90] sm:$0xff]
        %v557 = vld [vmem:[%s124 + $0xc98] sm:$0xff]
        %v558 = vld [vmem:[%s124 + $0xca0] sm:$0xff]
        %v559 = vld [vmem:[%s124 + $0xca8] sm:$0xff]
        %v560 = vld [vmem:[%s124 + $0xcb0] sm:$0xff]
        %v561 = vld [vmem:[%s124 + $0xcb8] sm:$0xff]
        %v562 = vld [vmem:[%s124 + $0xcc0] sm:$0xff]
        %v563 = vld [vmem:[%s124 + $0xcc8] sm:$0xff]
        %v564 = vld [vmem:[%s124 + $0xcd0] sm:$0xff]
        %v565 = vld [vmem:[%s124 + $0xcd8] sm:$0xff]
        %v566 = vld [vmem:[%s124 + $0xce0] sm:$0xff]
        %v567 = vld [vmem:[%s124 + $0xce8] sm:$0xff]
        %v568 = vld [vmem:[%s124 + $0xcf0] sm:$0xff]
        %v569 = vld [vmem:[%s124 + $0xcf8] sm:$0xff]
        %v570 = vld [vmem:[%s124 + $0xd00] sm:$0xff]
        %v571 = vld [vmem:[%s124 + $0xd08] sm:$0xff]
        %v572 = vld [vmem:[%s124 + $0xd10] sm:$0xff]
        %v573 = vld [vmem:[%s124 + $0xd18] sm:$0xff]
        %v574 = vld [vmem:[%s124 + $0xd20] sm:$0xff]
        %v575 = vld [vmem:[%s124 + $0xd28] sm:$0xff]
        %v576 = vld [vmem:[%s124 + $0xd30] sm:$0xff]
        %v577 = vld [vmem:[%s124 + $0xd38] sm:$0xff]
        %v578 = vld [vmem:[%s124 + $0xd40] sm:$0xff]
        %v579 = vld [vmem:[%s124 + $0xd48] sm:$0xff]
        %v580 = vld [vmem:[%s124 + $0xd50] sm:$0xff]
        %v581 = vld [vmem:[%s124 + $0xd58] sm:$0xff]
        %v582 = vld [vmem:[%s124 + $0xd60] sm:$0xff]
        %v583 = vld [vmem:[%s124 + $0xd68] sm:$0xff]
        %v584 = vld [vmem:[%s124 + $0xd70] sm:$0xff]
        %v585 = vld [vmem:[%s124 + $0xd78] sm:$0xff]
        %v586 = vld [vmem:[%s124 + $0xd80] sm:$0xff]
        %v587 = vld [vmem:[%s124 + $0xd88] sm:$0xff]
        %v588 = vld [vmem:[%s124 + $0xd90] sm:$0xff]
        %v589 = vld [vmem:[%s124 + $0xd98] sm:$0xff]
        %v590 = vld [vmem:[%s124 + $0xda0] sm:$0xff]
        %v591 = vld [vmem:[%s124 + $0xda8] sm:$0xff]
        %v592 = vld [vmem:[%s124 + $0xdb0] sm:$0xff]
        %v593 = vld [vmem:[%s124 + $0xdb8] sm:$0xff]
        %v594 = vld [vmem:[%s124 + $0xdc0] sm:$0xff]
        %v595 = vld [vmem:[%s124 + $0xdc8] sm:$0xff]
        %v596 = vld [vmem:[%s124 + $0xdd0] sm:$0xff]
        %v597 = vld [vmem:[%s124 + $0xdd8] sm:$0xff]
        %v598 = vld [vmem:[%s124 + $0xde0] sm:$0xff]
        %v599 = vld [vmem:[%s124 + $0xde8] sm:$0xff]
        %v600 = vld [vmem:[%s124 + $0xdf0] sm:$0xff]
        %v601 = vld [vmem:[%s124 + $0xdf8] sm:$0xff]
        %v602 = vld [vmem:[%s124 + $0xe00] sm:$0xff]
        %v603 = vld [vmem:[%s124 + $0xe08] sm:$0xff]
        %v604 = vld [vmem:[%s124 + $0xe10] sm:$0xff]
        %v605 = vld [vmem:[%s124 + $0xe18] sm:$0xff]
        %v606 = vld [vmem:[%s124 + $0xe20] sm:$0xff]
        %v607 = vld [vmem:[%s124 + $0xe28] sm:$0xff]
        %v608 = vld [vmem:[%s124 + $0xe30] sm:$0xff]
        %v609 = vld [vmem:[%s124 + $0xe38] sm:$0xff]
        %v610 = vld [vmem:[%s124 + $0xe40] sm:$0xff]
        %v611 = vld [vmem:[%s124 + $0xe48] sm:$0xff]
        %v612 = vld [vmem:[%s124 + $0xe50] sm:$0xff]
        %v613 = vld [vmem:[%s124 + $0xe58] sm:$0xff]
        %v614 = vld [vmem:[%s124 + $0xe60] sm:$0xff]
        %v615 = vld [vmem:[%s124 + $0xe68] sm:$0xff]
        %v616 = vld [vmem:[%s124 + $0xe70] sm:$0xff]
        %v617 = vld [vmem:[%s124 + $0xe78] sm:$0xff]
        %v618 = vld [vmem:[%s124 + $0xe80] sm:$0xff]
        %v619 = vld [vmem:[%s124 + $0xe88] sm:$0xff]
        %v620 = vld [vmem:[%s124 + $0xe90] sm:$0xff]
        %v621 = vld [vmem:[%s124 + $0xe98] sm:$0xff]
        %v622 = vld [vmem:[%s124 + $0xea0] sm:$0xff]
        %v623 = vld [vmem:[%s124 + $0xea8] sm:$0xff]
        %v624 = vld [vmem:[%s124 + $0xeb0] sm:$0xff]
        %v625 = vld [vmem:[%s124 + $0xeb8] sm:$0xff]
        %v626 = vld [vmem:[%s124 + $0xec0] sm:$0xff]
        %v627 = vld [vmem:[%s124 + $0xec8] sm:$0xff]
        %v628 = vld [vmem:[%s124 + $0xed0] sm:$0xff]
        %v629 = vld [vmem:[%s124 + $0xed8] sm:$0xff]
        %v630 = vld [vmem:[%s124 + $0xee0] sm:$0xff]
        %v631 = vld [vmem:[%s124 + $0xee8] sm:$0xff]
        %v632 = vld [vmem:[%s124 + $0xef0] sm:$0xff]
        %v633 = vld [vmem:[%s124 + $0xef8] sm:$0xff]
        %v634 = vld [vmem:[%s124 + $0xf00] sm:$0xff]
        %v635 = vld [vmem:[%s124 + $0xf08] sm:$0xff]
        %v636 = vld [vmem:[%s124 + $0xf10] sm:$0xff]
        %v637 = vld [vmem:[%s124 + $0xf18] sm:$0xff]
        %v638 = vld [vmem:[%s124 + $0xf20] sm:$0xff]
        %v639 = vld [vmem:[%s124 + $0xf28] sm:$0xff]
        %v640 = vld [vmem:[%s124 + $0xf30] sm:$0xff]
        %v641 = vld [vmem:[%s124 + $0xf38] sm:$0xff]
        %v642 = vld [vmem:[%s124 + $0xf40] sm:$0xff]
        %v643 = vld [vmem:[%s124 + $0xf48] sm:$0xff]
        %v644 = vld [vmem:[%s124 + $0xf50] sm:$0xff]
        %v645 = vld [vmem:[%s124 + $0xf58] sm:$0xff]
        %v646 = vld [vmem:[%s124 + $0xf60] sm:$0xff]
        %v647 = vld [vmem:[%s124 + $0xf68] sm:$0xff]
        %v648 = vld [vmem:[%s124 + $0xf70] sm:$0xff]
        %v649 = vld [vmem:[%s124 + $0xf78] sm:$0xff]
        %v650 = vld [vmem:[%s124 + $0xf80] sm:$0xff]
        %v651 = vld [vmem:[%s124 + $0xf88] sm:$0xff]
        %v652 = vld [vmem:[%s124 + $0xf90] sm:$0xff]
        %v653 = vld [vmem:[%s124 + $0xf98] sm:$0xff]
        %v654 = vld [vmem:[%s124 + $0xfa0] sm:$0xff]
        %v655 = vld [vmem:[%s124 + $0xfa8] sm:$0xff]
        %v656 = vld [vmem:[%s124 + $0xfb0] sm:$0xff]
        %v657 = vld [vmem:[%s124 + $0xfb8] sm:$0xff]
        %v658 = vld [vmem:[%s124 + $0xfc0] sm:$0xff]
        %v659 = vld [vmem:[%s124 + $0xfc8] sm:$0xff]
        %v660 = vld [vmem:[%s124 + $0xfd0] sm:$0xff]
        %v661 = vld [vmem:[%s124 + $0xfd8] sm:$0xff]
        %v662 = vld [vmem:[%s124 + $0xfe0] sm:$0xff]
        %v663 = vld [vmem:[%s124 + $0xfe8] sm:$0xff]
        %v664 = vld [vmem:[%s124 + $0xff0] sm:$0xff]
        %v665 = vld [vmem:[%s124 + $0xff8] sm:$0xff]
        %v666 = vld [vmem:[%s124 + $0x1000] sm:$0xff]
        %v667 = vld [vmem:[%s124 + $0x1008] sm:$0xff]
        %v668 = vld [vmem:[%s124 + $0x1010] sm:$0xff]
        %v669 = vld [vmem:[%s124 + $0x1018] sm:$0xff]
        %v670 = vld [vmem:[%s124 + $0x1020] sm:$0xff]
        %v671 = vld [vmem:[%s124 + $0x1028] sm:$0xff]
        %v672 = vld [vmem:[%s124 + $0x1030] sm:$0xff]
        %v673 = vld [vmem:[%s124 + $0x1038] sm:$0xff]
        %v674 = vld [vmem:[%s124 + $0x1040] sm:$0xff]
        %v675 = vld [vmem:[%s124 + $0x1048] sm:$0xff]
        %v676 = vld [vmem:[%s124 + $0x1050] sm:$0xff]
        %v677 = vld [vmem:[%s124 + $0x1058] sm:$0xff]
        %v678 = vld [vmem:[%s124 + $0x1060] sm:$0xff]
        %v679 = vld [vmem:[%s124 + $0x1068] sm:$0xff]
        %v680 = vld [vmem:[%s124 + $0x1070] sm:$0xff]
        %v681 = vld [vmem:[%s124 + $0x1078] sm:$0xff]
        %v682 = vld [vmem:[%s124 + $0x1080] sm:$0xff]
        %v683 = vld [vmem:[%s124 + $0x1088] sm:$0xff]
        %v684 = vld [vmem:[%s124 + $0x1090] sm:$0xff]
        %v685 = vld [vmem:[%s124 + $0x1098] sm:$0xff]
        %v686 = vld [vmem:[%s124 + $0x10a0] sm:$0xff]
        %v687 = vld [vmem:[%s124 + $0x10a8] sm:$0xff]
        %v688 = vld [vmem:[%s124 + $0x10b0] sm:$0xff]
        %v689 = vld [vmem:[%s124 + $0x10b8] sm:$0xff]
        %v690 = vld [vmem:[%s124 + $0x10c0] sm:$0xff]
        %v691 = vld [vmem:[%s124 + $0x10c8] sm:$0xff]
        %v692 = vld [vmem:[%s124 + $0x10d0] sm:$0xff]
        %v693 = vld [vmem:[%s124 + $0x10d8] sm:$0xff]
        %v694 = vld [vmem:[%s124 + $0x10e0] sm:$0xff]
        %v695 = vld [vmem:[%s124 + $0x10e8] sm:$0xff]
        %v696 = vld [vmem:[%s124 + $0x10f0] sm:$0xff]
        %v697 = vld [vmem:[%s124 + $0x10f8] sm:$0xff]
        %v698 = vld [vmem:[%s124 + $0x1100] sm:$0xff]
        %v699 = vld [vmem:[%s124 + $0x1108] sm:$0xff]
        %v700 = vld [vmem:[%s124 + $0x1110] sm:$0xff]
        %v701 = vld [vmem:[%s124 + $0x1118] sm:$0xff]
        %v702 = vld [vmem:[%s124 + $0x1120] sm:$0xff]
        %v703 = vld [vmem:[%s124 + $0x1128] sm:$0xff]
        %v704 = vld [vmem:[%s124 + $0x1130] sm:$0xff]
        %v705 = vld [vmem:[%s124 + $0x1138] sm:$0xff]
        %v706 = vld [vmem:[%s124 + $0x1140] sm:$0xff]
        %v707 = vld [vmem:[%s124 + $0x1148] sm:$0xff]
        %v708 = vld [vmem:[%s124 + $0x1150] sm:$0xff]
        %v709 = vld [vmem:[%s124 + $0x1158] sm:$0xff]
        %v710 = vld [vmem:[%s124 + $0x1160] sm:$0xff]
        %v711 = vld [vmem:[%s124 + $0x1168] sm:$0xff]
        %v712 = vld [vmem:[%s124 + $0x1170] sm:$0xff]
        %v713 = vld [vmem:[%s124 + $0x1178] sm:$0xff]
        %v714 = vld [vmem:[%s124 + $0x1180] sm:$0xff]
        %v715 = vld [vmem:[%s124 + $0x1188] sm:$0xff]
        %v716 = vld [vmem:[%s124 + $0x1190] sm:$0xff]
        %v717 = vld [vmem:[%s124 + $0x1198] sm:$0xff]
        %v718 = vld [vmem:[%s124 + $0x11a0] sm:$0xff]
        %v719 = vld [vmem:[%s124 + $0x11a8] sm:$0xff]
        %v720 = vld [vmem:[%s124 + $0x11b0] sm:$0xff]
        %v721 = vld [vmem:[%s124 + $0x11b8] sm:$0xff]
        %v722 = vld [vmem:[%s124 + $0x11c0] sm:$0xff]
        %v723 = vld [vmem:[%s124 + $0x11c8] sm:$0xff]
        %v724 = vld [vmem:[%s124 + $0x11d0] sm:$0xff]
        %v725 = vld [vmem:[%s124 + $0x11d8] sm:$0xff]
        %v726 = vld [vmem:[%s124 + $0x11e0] sm:$0xff]
        %v727 = vld [vmem:[%s124 + $0x11e8] sm:$0xff]
        %v728 = vld [vmem:[%s124 + $0x11f0] sm:$0xff]
        %v729 = vld [vmem:[%s124 + $0x11f8] sm:$0xff]
        %v730 = vld [vmem:[%s124 + $0x1200] sm:$0xff]
        %v731 = vld [vmem:[%s124 + $0x1208] sm:$0xff]
        %v732 = vld [vmem:[%s124 + $0x1210] sm:$0xff]
        %v733 = vld [vmem:[%s124 + $0x1218] sm:$0xff]
        %v734 = vld [vmem:[%s124 + $0x1220] sm:$0xff]
        %v735 = vld [vmem:[%s124 + $0x1228] sm:$0xff]
        %v736 = vld [vmem:[%s124 + $0x1230] sm:$0xff]
        %v737 = vld [vmem:[%s124 + $0x1238] sm:$0xff]
        %v738 = vld [vmem:[%s124 + $0x1240] sm:$0xff]
        %v739 = vld [vmem:[%s124 + $0x1248] sm:$0xff]
        %v740 = vld [vmem:[%s124 + $0x1250] sm:$0xff]
        %v741 = vld [vmem:[%s124 + $0x1258] sm:$0xff]
        %v742 = vld [vmem:[%s124 + $0x1260] sm:$0xff]
        %v743 = vld [vmem:[%s124 + $0x1268] sm:$0xff]
        %v744 = vld [vmem:[%s124 + $0x1270] sm:$0xff]
        %v745 = vld [vmem:[%s124 + $0x1278] sm:$0xff]
        %v746 = vld [vmem:[%s124 + $0x1280] sm:$0xff]
        %v747 = vld [vmem:[%s124 + $0x1288] sm:$0xff]
        %v748 = vld [vmem:[%s124 + $0x1290] sm:$0xff]
        %v749 = vld [vmem:[%s124 + $0x1298] sm:$0xff]
        %v750 = vld [vmem:[%s124 + $0x12a0] sm:$0xff]
        %v751 = vld [vmem:[%s124 + $0x12a8] sm:$0xff]
        %v752 = vld [vmem:[%s124 + $0x12b0] sm:$0xff]
        %v753 = vld [vmem:[%s124 + $0x12b8] sm:$0xff]
        %v754 = vld [vmem:[%s124 + $0x12c0] sm:$0xff]
        %v755 = vld [vmem:[%s124 + $0x12c8] sm:$0xff]
        %v756 = vld [vmem:[%s124 + $0x12d0] sm:$0xff]
        %v757 = vld [vmem:[%s124 + $0x12d8] sm:$0xff]
        %v758 = vld [vmem:[%s124 + $0x12e0] sm:$0xff]
        %v759 = vld [vmem:[%s124 + $0x12e8] sm:$0xff]
        %v760 = vld [vmem:[%s124 + $0x12f0] sm:$0xff]
        %v761 = vld [vmem:[%s124 + $0x12f8] sm:$0xff]
        %v762 = vld [vmem:[%s124 + $0x1300] sm:$0xff]
        %v763 = vld [vmem:[%s124 + $0x1308] sm:$0xff]
        %v764 = vld [vmem:[%s124 + $0x1310] sm:$0xff]
        %v765 = vld [vmem:[%s124 + $0x1318] sm:$0xff]
        %v766 = vld [vmem:[%s124 + $0x1320] sm:$0xff]
        %v767 = vld [vmem:[%s124 + $0x1328] sm:$0xff]
        %v768 = vld [vmem:[%s124 + $0x1330] sm:$0xff]
        %v769 = vld [vmem:[%s124 + $0x1338] sm:$0xff]
        %v770 = vld [vmem:[%s124 + $0x1340] sm:$0xff]
        %v771 = vld [vmem:[%s124 + $0x1348] sm:$0xff]
        %v772 = vld [vmem:[%s124 + $0x1350] sm:$0xff]
        %v773 = vld [vmem:[%s124 + $0x1358] sm:$0xff]
        %v774 = vld [vmem:[%s124 + $0x1360] sm:$0xff]
        %v775 = vld [vmem:[%s124 + $0x1368] sm:$0xff]
        %v776 = vld [vmem:[%s124 + $0x1370] sm:$0xff]
        %v777 = vld [vmem:[%s124 + $0x1378] sm:$0xff]
        %v778 = vld [vmem:[%s124 + $0x1380] sm:$0xff]
        %v779 = vld [vmem:[%s124 + $0x1388] sm:$0xff]
        %v780 = vld [vmem:[%s124 + $0x1390] sm:$0xff]
        %v781 = vld [vmem:[%s124 + $0x1398] sm:$0xff]
        %v782 = vld [vmem:[%s124 + $0x13a0] sm:$0xff]
        %v783 = vld [vmem:[%s124 + $0x13a8] sm:$0xff]
        %v784 = vld [vmem:[%s124 + $0x13b0] sm:$0xff]
        %v785 = vld [vmem:[%s124 + $0x13b8] sm:$0xff]
        %v786 = vld [vmem:[%s124 + $0x13c0] sm:$0xff]
        %v787 = vld [vmem:[%s124 + $0x13c8] sm:$0xff]
        %v788 = vld [vmem:[%s124 + $0x13d0] sm:$0xff]
        %v789 = vld [vmem:[%s124 + $0x13d8] sm:$0xff]
        %v790 = vld [vmem:[%s124 + $0x13e0] sm:$0xff]
        %v791 = vld [vmem:[%s124 + $0x13e8] sm:$0xff]
        %v792 = vld [vmem:[%s124 + $0x13f0] sm:$0xff]
        %v793 = vld [vmem:[%s124 + $0x13f8] sm:$0xff]
        %v794 = vld [vmem:[%s124 + $0x1400] sm:$0xff]
        %v795 = vld [vmem:[%s124 + $0x1408] sm:$0xff]
        %v796 = vld [vmem:[%s124 + $0x1410] sm:$0xff]
        %v797 = vld [vmem:[%s124 + $0x1418] sm:$0xff]
        %v798 = vld [vmem:[%s124 + $0x1420] sm:$0xff]
        %v799 = vld [vmem:[%s124 + $0x1428] sm:$0xff]
        %v800 = vld [vmem:[%s124 + $0x1430] sm:$0xff]
        %v801 = vld [vmem:[%s124 + $0x1438] sm:$0xff]
        %v802 = vld [vmem:[%s124 + $0x1440] sm:$0xff]
        %v803 = vld [vmem:[%s124 + $0x1448] sm:$0xff]
        %v804 = vld [vmem:[%s124 + $0x1450] sm:$0xff]
        %v805 = vld [vmem:[%s124 + $0x1458] sm:$0xff]
        %v806 = vld [vmem:[%s124 + $0x1460] sm:$0xff]
        %v807 = vld [vmem:[%s124 + $0x1468] sm:$0xff]
        %v808 = vld [vmem:[%s124 + $0x1470] sm:$0xff]
        %v809 = vld [vmem:[%s124 + $0x1478] sm:$0xff]
        %v810 = vld [vmem:[%s124 + $0x1480] sm:$0xff]
        %v811 = vld [vmem:[%s124 + $0x1488] sm:$0xff]
        %v812 = vld [vmem:[%s124 + $0x1490] sm:$0xff]
        %v813 = vld [vmem:[%s124 + $0x1498] sm:$0xff]
        %v814 = vld [vmem:[%s124 + $0x14a0] sm:$0xff]
        %v815 = vld [vmem:[%s124 + $0x14a8] sm:$0xff]
        %v816 = vld [vmem:[%s124 + $0x14b0] sm:$0xff]
        %v817 = vld [vmem:[%s124 + $0x14b8] sm:$0xff]
        %v818 = vld [vmem:[%s124 + $0x14c0] sm:$0xff]
        %v819 = vld [vmem:[%s124 + $0x14c8] sm:$0xff]
        %v820 = vld [vmem:[%s124 + $0x14d0] sm:$0xff]
        %v821 = vld [vmem:[%s124 + $0x14d8] sm:$0xff]
        %v822 = vld [vmem:[%s124 + $0x14e0] sm:$0xff]
        %v823 = vld [vmem:[%s124 + $0x14e8] sm:$0xff]
        %v824 = vld [vmem:[%s124 + $0x14f0] sm:$0xff]
        %v825 = vld [vmem:[%s124 + $0x14f8] sm:$0xff]
        %v826 = vld [vmem:[%s124 + $0x1500] sm:$0xff]
        %v827 = vld [vmem:[%s124 + $0x1508] sm:$0xff]
        %v828 = vld [vmem:[%s124 + $0x1510] sm:$0xff]
        %v829 = vld [vmem:[%s124 + $0x1518] sm:$0xff]
        %v830 = vld [vmem:[%s124 + $0x1520] sm:$0xff]
        %v831 = vld [vmem:[%s124 + $0x1528] sm:$0xff]
        %v832 = vld [vmem:[%s124 + $0x1530] sm:$0xff]
        %v833 = vld [vmem:[%s124 + $0x1538] sm:$0xff]
        %v834 = vld [vmem:[%s124 + $0x1540] sm:$0xff]
        %v835 = vld [vmem:[%s124 + $0x1548] sm:$0xff]
        %v836 = vld [vmem:[%s124 + $0x1550] sm:$0xff]
        %v837 = vld [vmem:[%s124 + $0x1558] sm:$0xff]
        %v838 = vld [vmem:[%s124 + $0x1560] sm:$0xff]
        %v839 = vld [vmem:[%s124 + $0x1568] sm:$0xff]
        %v840 = vld [vmem:[%s124 + $0x1570] sm:$0xff]
        %v841 = vld [vmem:[%s124 + $0x1578] sm:$0xff]
        %v842 = vld [vmem:[%s124 + $0x1580] sm:$0xff]
        %v843 = vld [vmem:[%s124 + $0x1588] sm:$0xff]
        %v844 = vld [vmem:[%s124 + $0x1590] sm:$0xff]
        %v845 = vld [vmem:[%s124 + $0x1598] sm:$0xff]
        %v846 = vld [vmem:[%s124 + $0x15a0] sm:$0xff]
        %v847 = vld [vmem:[%s124 + $0x15a8] sm:$0xff]
        %v848 = vld [vmem:[%s124 + $0x15b0] sm:$0xff]
        %v849 = vld [vmem:[%s124 + $0x15b8] sm:$0xff]
        %v850 = vld [vmem:[%s124 + $0x15c0] sm:$0xff]
        %v851 = vld [vmem:[%s124 + $0x15c8] sm:$0xff]
        %v852 = vld [vmem:[%s124 + $0x15d0] sm:$0xff]
        %v853 = vld [vmem:[%s124 + $0x15d8] sm:$0xff]
        %v854 = vld [vmem:[%s124 + $0x15e0] sm:$0xff]
        %v855 = vld [vmem:[%s124 + $0x15e8] sm:$0xff]
        %v856 = vld [vmem:[%s124 + $0x15f0] sm:$0xff]
        %v857 = vld [vmem:[%s124 + $0x15f8] sm:$0xff]
        %v858 = vld [vmem:[%s124 + $0x1600] sm:$0xff]
        %v859 = vld [vmem:[%s124 + $0x1608] sm:$0xff]
        %v860 = vld [vmem:[%s124 + $0x1610] sm:$0xff]
        %v861 = vld [vmem:[%s124 + $0x1618] sm:$0xff]
        %v862 = vld [vmem:[%s124 + $0x1620] sm:$0xff]
        %v863 = vld [vmem:[%s124 + $0x1628] sm:$0xff]
        %v864 = vld [vmem:[%s124 + $0x1630] sm:$0xff]
        %v865 = vld [vmem:[%s124 + $0x1638] sm:$0xff]
        %v866 = vld [vmem:[%s124 + $0x1640] sm:$0xff]
        %v867 = vld [vmem:[%s124 + $0x1648] sm:$0xff]
        %v868 = vld [vmem:[%s124 + $0x1650] sm:$0xff]
        %v869 = vld [vmem:[%s124 + $0x1658] sm:$0xff]
        %v870 = vld [vmem:[%s124 + $0x1660] sm:$0xff]
        %v871 = vld [vmem:[%s124 + $0x1668] sm:$0xff]
        %v872 = vld [vmem:[%s124 + $0x1670] sm:$0xff]
        %v873 = vld [vmem:[%s124 + $0x1678] sm:$0xff]
        %v874 = vld [vmem:[%s124 + $0x1680] sm:$0xff]
        %v875 = vld [vmem:[%s124 + $0x1688] sm:$0xff]
        %v876 = vld [vmem:[%s124 + $0x1690] sm:$0xff]
        %v877 = vld [vmem:[%s124 + $0x1698] sm:$0xff]
        %v878 = vld [vmem:[%s124 + $0x16a0] sm:$0xff]
        %v879 = vld [vmem:[%s124 + $0x16a8] sm:$0xff]
        %v880 = vld [vmem:[%s124 + $0x16b0] sm:$0xff]
        %v881 = vld [vmem:[%s124 + $0x16b8] sm:$0xff]
        %v882 = vld [vmem:[%s124 + $0x16c0] sm:$0xff]
        %v883 = vld [vmem:[%s124 + $0x16c8] sm:$0xff]
        %v884 = vld [vmem:[%s124 + $0x16d0] sm:$0xff]
        %v885 = vld [vmem:[%s124 + $0x16d8] sm:$0xff]
        %v886 = vld [vmem:[%s124 + $0x16e0] sm:$0xff]
        %v887 = vld [vmem:[%s124 + $0x16e8] sm:$0xff]
        %v888 = vld [vmem:[%s124 + $0x16f0] sm:$0xff]
        %v889 = vld [vmem:[%s124 + $0x16f8] sm:$0xff]
        %v890 = vld [vmem:[%s124 + $0x1700] sm:$0xff]
        %v891 = vld [vmem:[%s124 + $0x1708] sm:$0xff]
        %v892 = vld [vmem:[%s124 + $0x1710] sm:$0xff]
        %v893 = vld [vmem:[%s124 + $0x1718] sm:$0xff]
        %v894 = vld [vmem:[%s124 + $0x1720] sm:$0xff]
        %v895 = vld [vmem:[%s124 + $0x1728] sm:$0xff]
        %v896 = vld [vmem:[%s124 + $0x1730] sm:$0xff]
        %v897 = vld [vmem:[%s124 + $0x1738] sm:$0xff]
        %v898 = vld [vmem:[%s124 + $0x1740] sm:$0xff]
        %v899 = vld [vmem:[%s124 + $0x1748] sm:$0xff]
        %v900 = vld [vmem:[%s124 + $0x1750] sm:$0xff]
        %v901 = vld [vmem:[%s124 + $0x1758] sm:$0xff]
        %v902 = vld [vmem:[%s124 + $0x1760] sm:$0xff]
        %v903 = vld [vmem:[%s124 + $0x1768] sm:$0xff]
        %v904 = vld [vmem:[%s124 + $0x1770] sm:$0xff]
        %v905 = vld [vmem:[%s124 + $0x1778] sm:$0xff]
        %v906 = vld [vmem:[%s124 + $0x1780] sm:$0xff]
        %v907 = vld [vmem:[%s124 + $0x1788] sm:$0xff]
        %v908 = vld [vmem:[%s124 + $0x1790] sm:$0xff]
        %v909 = vld [vmem:[%s124 + $0x1798] sm:$0xff]
        %v910 = vld [vmem:[%s124 + $0x17a0] sm:$0xff]
        %v911 = vld [vmem:[%s124 + $0x17a8] sm:$0xff]
        %v912 = vld [vmem:[%s124 + $0x17b0] sm:$0xff]
        %v913 = vld [vmem:[%s124 + $0x17b8] sm:$0xff]
        %v914 = vld [vmem:[%s124 + $0x17c0] sm:$0xff]
        %v915 = vld [vmem:[%s124 + $0x17c8] sm:$0xff]
        %v916 = vld [vmem:[%s124 + $0x17d0] sm:$0xff]
        %v917 = vld [vmem:[%s124 + $0x17d8] sm:$0xff]
        %v918 = vld [vmem:[%s124 + $0x17e0] sm:$0xff]
        %v919 = vld [vmem:[%s124 + $0x17e8] sm:$0xff]
        %v920 = vld [vmem:[%s124 + $0x17f0] sm:$0xff]
        %v921 = vld [vmem:[%s124 + $0x17f8] sm:$0xff]
        %v922 = vld [vmem:[%s124 + $0x1800] sm:$0xff]
        %v923 = vld [vmem:[%s124 + $0x1808] sm:$0xff]
        %v924 = vld [vmem:[%s124 + $0x1810] sm:$0xff]
        %v925 = vld [vmem:[%s124 + $0x1818] sm:$0xff]
        %v926 = vld [vmem:[%s124 + $0x1820] sm:$0xff]
        %v927 = vld [vmem:[%s124 + $0x1828] sm:$0xff]
        %v928 = vld [vmem:[%s124 + $0x1830] sm:$0xff]
        %v929 = vld [vmem:[%s124 + $0x1838] sm:$0xff]
        %v930 = vld [vmem:[%s124 + $0x1840] sm:$0xff]
        %v931 = vld [vmem:[%s124 + $0x1848] sm:$0xff]
        %v932 = vld [vmem:[%s124 + $0x1850] sm:$0xff]
        %v933 = vld [vmem:[%s124 + $0x1858] sm:$0xff]
        %v934 = vld [vmem:[%s124 + $0x1860] sm:$0xff]
        %v935 = vld [vmem:[%s124 + $0x1868] sm:$0xff]
        %v936 = vld [vmem:[%s124 + $0x1870] sm:$0xff]
        %v937 = vld [vmem:[%s124 + $0x1878] sm:$0xff]
        %v938 = vld [vmem:[%s124 + $0x1880] sm:$0xff]
        %v939 = vld [vmem:[%s124 + $0x1888] sm:$0xff]
        %v940 = vld [vmem:[%s124 + $0x1890] sm:$0xff]
        %v941 = vld [vmem:[%s124 + $0x1898] sm:$0xff]
        %v942 = vld [vmem:[%s124 + $0x18a0] sm:$0xff]
        %v943 = vld [vmem:[%s124 + $0x18a8] sm:$0xff]
        %v944 = vld [vmem:[%s124 + $0x18b0] sm:$0xff]
        %v945 = vld [vmem:[%s124 + $0x18b8] sm:$0xff]
        %v946 = vld [vmem:[%s124 + $0x18c0] sm:$0xff]
        %v947 = vld [vmem:[%s124 + $0x18c8] sm:$0xff]
        %v948 = vld [vmem:[%s124 + $0x18d0] sm:$0xff]
        %v949 = vld [vmem:[%s124 + $0x18d8] sm:$0xff]
        %v950 = vld [vmem:[%s124 + $0x18e0] sm:$0xff]
        %v951 = vld [vmem:[%s124 + $0x18e8] sm:$0xff]
        %v952 = vld [vmem:[%s124 + $0x18f0] sm:$0xff]
        %v953 = vld [vmem:[%s124 + $0x18f8] sm:$0xff]
        %v954 = vld [vmem:[%s124 + $0x1900] sm:$0xff]
        %v955 = vld [vmem:[%s124 + $0x1908] sm:$0xff]
        %v956 = vld [vmem:[%s124 + $0x1910] sm:$0xff]
        %v957 = vld [vmem:[%s124 + $0x1918] sm:$0xff]
        %v958 = vld [vmem:[%s124 + $0x1920] sm:$0xff]
        %v959 = vld [vmem:[%s124 + $0x1928] sm:$0xff]
        %v960 = vld [vmem:[%s124 + $0x1930] sm:$0xff]
        %v961 = vld [vmem:[%s124 + $0x1938] sm:$0xff]
        %v962 = vld [vmem:[%s124 + $0x1940] sm:$0xff]
        %v963 = vld [vmem:[%s124 + $0x1948] sm:$0xff]
        %v964 = vld [vmem:[%s124 + $0x1950] sm:$0xff]
        %v965 = vld [vmem:[%s124 + $0x1958] sm:$0xff]
        %v966 = vld [vmem:[%s124 + $0x1960] sm:$0xff]
        %v967 = vld [vmem:[%s124 + $0x1968] sm:$0xff]
        %v968 = vld [vmem:[%s124 + $0x1970] sm:$0xff]
        %v969 = vld [vmem:[%s124 + $0x1978] sm:$0xff]
        %v970 = vld [vmem:[%s124 + $0x1980] sm:$0xff]
        %v971 = vld [vmem:[%s124 + $0x1988] sm:$0xff]
        %v972 = vld [vmem:[%s124 + $0x1990] sm:$0xff]
        %v973 = vld [vmem:[%s124 + $0x1998] sm:$0xff]
        %v974 = vld [vmem:[%s124 + $0x19a0] sm:$0xff]
        %v975 = vld [vmem:[%s124 + $0x19a8] sm:$0xff]
        %v976 = vld [vmem:[%s124 + $0x19b0] sm:$0xff]
        %v977 = vld [vmem:[%s124 + $0x19b8] sm:$0xff]
        %v978 = vld [vmem:[%s124 + $0x19c0] sm:$0xff]
        %v979 = vld [vmem:[%s124 + $0x19c8] sm:$0xff]
        %v980 = vld [vmem:[%s124 + $0x19d0] sm:$0xff]
        %v981 = vld [vmem:[%s124 + $0x19d8] sm:$0xff]
        %v982 = vld [vmem:[%s124 + $0x19e0] sm:$0xff]
        %v983 = vld [vmem:[%s124 + $0x19e8] sm:$0xff]
        %v984 = vld [vmem:[%s124 + $0x19f0] sm:$0xff]
        %v985 = vld [vmem:[%s124 + $0x19f8] sm:$0xff]
        %v986 = vld [vmem:[%s124 + $0x1a00] sm:$0xff]
        %v987 = vld [vmem:[%s124 + $0x1a08] sm:$0xff]
        %v988 = vld [vmem:[%s124 + $0x1a10] sm:$0xff]
        %v989 = vld [vmem:[%s124 + $0x1a18] sm:$0xff]
        %v990 = vld [vmem:[%s124 + $0x1a20] sm:$0xff]
        %v991 = vld [vmem:[%s124 + $0x1a28] sm:$0xff]
        %v992 = vld [vmem:[%s124 + $0x1a30] sm:$0xff]
        %v993 = vld [vmem:[%s124 + $0x1a38] sm:$0xff]
        %v994 = vld [vmem:[%s124 + $0x1a40] sm:$0xff]
        %v995 = vld [vmem:[%s124 + $0x1a48] sm:$0xff]
        %v996 = vld [vmem:[%s124 + $0x1a50] sm:$0xff]
        %v997 = vld [vmem:[%s124 + $0x1a58] sm:$0xff]
        %v998 = vld [vmem:[%s124 + $0x1a60] sm:$0xff]
        %v999 = vld [vmem:[%s124 + $0x1a68] sm:$0xff]
        %v1000 = vld [vmem:[%s124 + $0x1a70] sm:$0xff]
        %v1001 = vld [vmem:[%s124 + $0x1a78] sm:$0xff]
        %v1002 = vld [vmem:[%s124 + $0x1a80] sm:$0xff]
        %v1003 = vld [vmem:[%s124 + $0x1a88] sm:$0xff]
        %v1004 = vld [vmem:[%s124 + $0x1a90] sm:$0xff]
        %v1005 = vld [vmem:[%s124 + $0x1a98] sm:$0xff]
        %v1006 = vld [vmem:[%s124 + $0x1aa0] sm:$0xff]
        %v1007 = vld [vmem:[%s124 + $0x1aa8] sm:$0xff]
        %v1008 = vld [vmem:[%s124 + $0x1ab0] sm:$0xff]
        %v1009 = vld [vmem:[%s124 + $0x1ab8] sm:$0xff]
        %v1010 = vld [vmem:[%s124 + $0x1ac0] sm:$0xff]
        %v1011 = vld [vmem:[%s124 + $0x1ac8] sm:$0xff]
        %v1012 = vld [vmem:[%s124 + $0x1ad0] sm:$0xff]
        %v1013 = vld [vmem:[%s124 + $0x1ad8] sm:$0xff]
        %v1014 = vld [vmem:[%s124 + $0x1ae0] sm:$0xff]
        %v1015 = vld [vmem:[%s124 + $0x1ae8] sm:$0xff]
        %v1016 = vld [vmem:[%s124 + $0x1af0] sm:$0xff]
        %v1017 = vld [vmem:[%s124 + $0x1af8] sm:$0xff]
        %v1018 = vld [vmem:[%s124 + $0x1b00] sm:$0xff]
        %v1019 = vld [vmem:[%s124 + $0x1b08] sm:$0xff]
        %v1020 = vld [vmem:[%s124 + $0x1b10] sm:$0xff]
        %v1021 = vld [vmem:[%s124 + $0x1b18] sm:$0xff]
        %v1022 = vld [vmem:[%s124 + $0x1b20] sm:$0xff]
        %v1023 = vld [vmem:[%s124 + $0x1b28] sm:$0xff]
        %v1024 = vld [vmem:[%s124 + $0x1b30] sm:$0xff]
        %v1025 = vld [vmem:[%s124 + $0x1b38] sm:$0xff]
        %v1026 = vld [vmem:[%s124 + $0x1b40] sm:$0xff]
        %v1027 = vld [vmem:[%s124 + $0x1b48] sm:$0xff]
        %v1028 = vld [vmem:[%s124 + $0x1b50] sm:$0xff]
        %v1029 = vld [vmem:[%s124 + $0x1b58] sm:$0xff]
        %v1030 = vld [vmem:[%s124 + $0x1b60] sm:$0xff]
        %v1031 = vld [vmem:[%s124 + $0x1b68] sm:$0xff]
        %v1032 = vld [vmem:[%s124 + $0x1b70] sm:$0xff]
        %v1033 = vld [vmem:[%s124 + $0x1b78] sm:$0xff]
        %v1034 = vld [vmem:[%s124 + $0x1b80] sm:$0xff]
        %v1035 = vld [vmem:[%s124 + $0x1b88] sm:$0xff]
        %v1036 = vld [vmem:[%s124 + $0x1b90] sm:$0xff]
        %v1037 = vld [vmem:[%s124 + $0x1b98] sm:$0xff]
        %v1038 = vld [vmem:[%s124 + $0x1ba0] sm:$0xff]
        %v1039 = vld [vmem:[%s124 + $0x1ba8] sm:$0xff]
        %v1040 = vld [vmem:[%s124 + $0x1bb0] sm:$0xff]
        %v1041 = vld [vmem:[%s124 + $0x1bb8] sm:$0xff]
        %v1042 = vld [vmem:[%s124 + $0x1bc0] sm:$0xff]
        %v1043 = vld [vmem:[%s124 + $0x1bc8] sm:$0xff]
        %v1044 = vld [vmem:[%s124 + $0x1bd0] sm:$0xff]
        %v1045 = vld [vmem:[%s124 + $0x1bd8] sm:$0xff]
        %v1046 = vld [vmem:[%s124 + $0x1be0] sm:$0xff]
        %v1047 = vld [vmem:[%s124 + $0x1be8] sm:$0xff]
        %v1048 = vld [vmem:[%s124 + $0x1bf0] sm:$0xff]
        %v1049 = vld [vmem:[%s124 + $0x1bf8] sm:$0xff]
        %v1050 = vld [vmem:[%s124 + $0x1c00] sm:$0xff]
        %v1051 = vld [vmem:[%s124 + $0x1c08] sm:$0xff]
        %v1052 = vld [vmem:[%s124 + $0x1c10] sm:$0xff]
        %v1053 = vld [vmem:[%s124 + $0x1c18] sm:$0xff]
        %v1054 = vld [vmem:[%s124 + $0x1c20] sm:$0xff]
        %v1055 = vld [vmem:[%s124 + $0x1c28] sm:$0xff]
        %v1056 = vld [vmem:[%s124 + $0x1c30] sm:$0xff]
        %v1057 = vld [vmem:[%s124 + $0x1c38] sm:$0xff]
        %v1058 = vld [vmem:[%s124 + $0x1c40] sm:$0xff]
        %v1059 = vld [vmem:[%s124 + $0x1c48] sm:$0xff]
        %v1060 = vld [vmem:[%s124 + $0x1c50] sm:$0xff]
        %v1061 = vld [vmem:[%s124 + $0x1c58] sm:$0xff]
        %v1062 = vld [vmem:[%s124 + $0x1c60] sm:$0xff]
        %v1063 = vld [vmem:[%s124 + $0x1c68] sm:$0xff]
        %v1064 = vld [vmem:[%s124 + $0x1c70] sm:$0xff]
        %v1065 = vld [vmem:[%s124 + $0x1c78] sm:$0xff]
        %v1066 = vld [vmem:[%s124 + $0x1c80] sm:$0xff]
        %v1067 = vld [vmem:[%s124 + $0x1c88] sm:$0xff]
        %v1068 = vld [vmem:[%s124 + $0x1c90] sm:$0xff]
        %v1069 = vld [vmem:[%s124 + $0x1c98] sm:$0xff]
        %v1070 = vld [vmem:[%s124 + $0x1ca0] sm:$0xff]
        %v1071 = vld [vmem:[%s124 + $0x1ca8] sm:$0xff]
        %v1072 = vld [vmem:[%s124 + $0x1cb0] sm:$0xff]
        %v1073 = vld [vmem:[%s124 + $0x1cb8] sm:$0xff]
        %v1074 = vld [vmem:[%s124 + $0x1cc0] sm:$0xff]
        %v1075 = vld [vmem:[%s124 + $0x1cc8] sm:$0xff]
        %v1076 = vld [vmem:[%s124 + $0x1cd0] sm:$0xff]
        %v1077 = vld [vmem:[%s124 + $0x1cd8] sm:$0xff]
        %v1078 = vld [vmem:[%s124 + $0x1ce0] sm:$0xff]
        %v1079 = vld [vmem:[%s124 + $0x1ce8] sm:$0xff]
        %v1080 = vld [vmem:[%s124 + $0x1cf0] sm:$0xff]
        %v1081 = vld [vmem:[%s124 + $0x1cf8] sm:$0xff]
        %v1082 = vld [vmem:[%s124 + $0x1d00] sm:$0xff]
        %v1083 = vld [vmem:[%s124 + $0x1d08] sm:$0xff]
        %v1084 = vld [vmem:[%s124 + $0x1d10] sm:$0xff]
        %v1085 = vld [vmem:[%s124 + $0x1d18] sm:$0xff]
        %v1086 = vld [vmem:[%s124 + $0x1d20] sm:$0xff]
        %v1087 = vld [vmem:[%s124 + $0x1d28] sm:$0xff]
        %v1088 = vld [vmem:[%s124 + $0x1d30] sm:$0xff]
        %v1089 = vld [vmem:[%s124 + $0x1d38] sm:$0xff]
        %v1090 = vld [vmem:[%s124 + $0x1d40] sm:$0xff]
        %v1091 = vld [vmem:[%s124 + $0x1d48] sm:$0xff]
        %v1092 = vld [vmem:[%s124 + $0x1d50] sm:$0xff]
        %v1093 = vld [vmem:[%s124 + $0x1d58] sm:$0xff]
        %v1094 = vld [vmem:[%s124 + $0x1d60] sm:$0xff]
        %v1095 = vld [vmem:[%s124 + $0x1d68] sm:$0xff]
        %v1096 = vld [vmem:[%s124 + $0x1d70] sm:$0xff]
        %v1097 = vld [vmem:[%s124 + $0x1d78] sm:$0xff]
        %v1098 = vld [vmem:[%s124 + $0x1d80] sm:$0xff]
        %v1099 = vld [vmem:[%s124 + $0x1d88] sm:$0xff]
        %v1100 = vld [vmem:[%s124 + $0x1d90] sm:$0xff]
        %v1101 = vld [vmem:[%s124 + $0x1d98] sm:$0xff]
        %v1102 = vld [vmem:[%s124 + $0x1da0] sm:$0xff]
        %v1103 = vld [vmem:[%s124 + $0x1da8] sm:$0xff]
        %v1104 = vld [vmem:[%s124 + $0x1db0] sm:$0xff]
        %v1105 = vld [vmem:[%s124 + $0x1db8] sm:$0xff]
        %v1106 = vld [vmem:[%s124 + $0x1dc0] sm:$0xff]
        %v1107 = vld [vmem:[%s124 + $0x1dc8] sm:$0xff]
        %v1108 = vld [vmem:[%s124 + $0x1dd0] sm:$0xff]
        %v1109 = vld [vmem:[%s124 + $0x1dd8] sm:$0xff]
        %v1110 = vld [vmem:[%s124 + $0x1de0] sm:$0xff]
        %v1111 = vld [vmem:[%s124 + $0x1de8] sm:$0xff]
        %v1112 = vld [vmem:[%s124 + $0x1df0] sm:$0xff]
        %v1113 = vld [vmem:[%s124 + $0x1df8] sm:$0xff]
        %v1114 = vld [vmem:[%s124 + $0x1e00] sm:$0xff]
        %v1115 = vld [vmem:[%s124 + $0x1e08] sm:$0xff]
        %v1116 = vld [vmem:[%s124 + $0x1e10] sm:$0xff]
        %v1117 = vld [vmem:[%s124 + $0x1e18] sm:$0xff]
        %v1118 = vld [vmem:[%s124 + $0x1e20] sm:$0xff]
        %v1119 = vld [vmem:[%s124 + $0x1e28] sm:$0xff]
        %v1120 = vld [vmem:[%s124 + $0x1e30] sm:$0xff]
        %v1121 = vld [vmem:[%s124 + $0x1e38] sm:$0xff]
        %v1122 = vld [vmem:[%s124 + $0x1e40] sm:$0xff]
        %v1123 = vld [vmem:[%s124 + $0x1e48] sm:$0xff]
        %v1124 = vld [vmem:[%s124 + $0x1e50] sm:$0xff]
        %v1125 = vld [vmem:[%s124 + $0x1e58] sm:$0xff]
        %v1126 = vld [vmem:[%s124 + $0x1e60] sm:$0xff]
        %v1127 = vld [vmem:[%s124 + $0x1e68] sm:$0xff]
        %v1128 = vld [vmem:[%s124 + $0x1e70] sm:$0xff]
        %v1129 = vld [vmem:[%s124 + $0x1e78] sm:$0xff]
        %v1130 = vld [vmem:[%s124 + $0x1e80] sm:$0xff]
        %v1131 = vld [vmem:[%s124 + $0x1e88] sm:$0xff]
        %v1132 = vld [vmem:[%s124 + $0x1e90] sm:$0xff]
        %v1133 = vld [vmem:[%s124 + $0x1e98] sm:$0xff]
        %v1134 = vld [vmem:[%s124 + $0x1ea0] sm:$0xff]
        %v1135 = vld [vmem:[%s124 + $0x1ea8] sm:$0xff]
        %v1136 = vld [vmem:[%s124 + $0x1eb0] sm:$0xff]
        %v1137 = vld [vmem:[%s124 + $0x1eb8] sm:$0xff]
        %v1138 = vld [vmem:[%s124 + $0x1ec0] sm:$0xff]
        %v1139 = vld [vmem:[%s124 + $0x1ec8] sm:$0xff]
        %v1140 = vld [vmem:[%s124 + $0x1ed0] sm:$0xff]
        %v1141 = vld [vmem:[%s124 + $0x1ed8] sm:$0xff]
        %v1142 = vld [vmem:[%s124 + $0x1ee0] sm:$0xff]
        %v1143 = vld [vmem:[%s124 + $0x1ee8] sm:$0xff]
        %v1144 = vld [vmem:[%s124 + $0x1ef0] sm:$0xff]
        %v1145 = vld [vmem:[%s124 + $0x1ef8] sm:$0xff]
        %v1146 = vld [vmem:[%s124 + $0x1f00] sm:$0xff]
        %v1147 = vld [vmem:[%s124 + $0x1f08] sm:$0xff]
        %v1148 = vld [vmem:[%s124 + $0x1f10] sm:$0xff]
        %v1149 = vld [vmem:[%s124 + $0x1f18] sm:$0xff]
        %v1150 = vld [vmem:[%s124 + $0x1f20] sm:$0xff]
        %v1151 = vld [vmem:[%s124 + $0x1f28] sm:$0xff]
        %v1152 = vld [vmem:[%s124 + $0x1f30] sm:$0xff]
        %v1153 = vld [vmem:[%s124 + $0x1f38] sm:$0xff]
        %v1154 = vld [vmem:[%s124 + $0x1f40] sm:$0xff]
        %v1155 = vld [vmem:[%s124 + $0x1f48] sm:$0xff]
        %v1156 = vld [vmem:[%s124 + $0x1f50] sm:$0xff]
        %v1157 = vld [vmem:[%s124 + $0x1f58] sm:$0xff]
        %v1158 = vld [vmem:[%s124 + $0x1f60] sm:$0xff]
        %v1159 = vld [vmem:[%s124 + $0x1f68] sm:$0xff]
        %v1160 = vld [vmem:[%s124 + $0x1f70] sm:$0xff]
        %v1161 = vld [vmem:[%s124 + $0x1f78] sm:$0xff]
        %v1162 = vld [vmem:[%s124 + $0x1f80] sm:$0xff]
        %v1163 = vld [vmem:[%s124 + $0x1f88] sm:$0xff]
        %v1164 = vld [vmem:[%s124 + $0x1f90] sm:$0xff]
        %v1165 = vld [vmem:[%s124 + $0x1f98] sm:$0xff]
        %v1166 = vld [vmem:[%s124 + $0x1fa0] sm:$0xff]
        %v1167 = vld [vmem:[%s124 + $0x1fa8] sm:$0xff]
        %v1168 = vld [vmem:[%s124 + $0x1fb0] sm:$0xff]
        %v1169 = vld [vmem:[%s124 + $0x1fb8] sm:$0xff]
        %v1170 = vld [vmem:[%s124 + $0x1fc0] sm:$0xff]
        %v1171 = vld [vmem:[%s124 + $0x1fc8] sm:$0xff]
        %v1172 = vld [vmem:[%s124 + $0x1fd0] sm:$0xff]
        %v1173 = vld [vmem:[%s124 + $0x1fd8] sm:$0xff]
        %v1174 = vld [vmem:[%s124 + $0x1fe0] sm:$0xff]
        %v1175 = vld [vmem:[%s124 + $0x1fe8] sm:$0xff]
        %v1176 = vld [vmem:[%s124 + $0x1ff0] sm:$0xff]
        %v1177 = vld [vmem:[%s124 + $0x1ff8] sm:$0xff]
        %vm1178 = vcmp.lt.f32.partialorder %v154, 0.0031308
        %vm1179 = vcmp.lt.f32.partialorder %v155, 0.0031308
        %vm1180 = vcmp.lt.f32.partialorder %v156, 0.0031308
        %vm1181 = vcmp.lt.f32.partialorder %v157, 0.0031308
        %vm1182 = vcmp.lt.f32.partialorder %v158, 0.0031308
        %vm1183 = vcmp.lt.f32.partialorder %v159, 0.0031308
        %vm1184 = vcmp.lt.f32.partialorder %v160, 0.0031308
        %vm1185 = vcmp.lt.f32.partialorder %v161, 0.0031308
        %vm1186 = vcmp.lt.f32.partialorder %v162, 0.0031308
        %vm1187 = vcmp.lt.f32.partialorder %v163, 0.0031308
        %vm1188 = vcmp.lt.f32.partialorder %v164, 0.0031308
        %vm1189 = vcmp.lt.f32.partialorder %v165, 0.0031308
        %vm1190 = vcmp.lt.f32.partialorder %v166, 0.0031308
        %vm1191 = vcmp.lt.f32.partialorder %v167, 0.0031308
        %vm1192 = vcmp.lt.f32.partialorder %v168, 0.0031308
        %vm1193 = vcmp.lt.f32.partialorder %v169, 0.0031308
        %vm1194 = vcmp.lt.f32.partialorder %v170, 0.0031308
        %vm1195 = vcmp.lt.f32.partialorder %v171, 0.0031308
        %vm1196 = vcmp.lt.f32.partialorder %v172, 0.0031308
        %vm1197 = vcmp.lt.f32.partialorder %v173, 0.0031308
        %vm1198 = vcmp.lt.f32.partialorder %v174, 0.0031308
        %vm1199 = vcmp.lt.f32.partialorder %v175, 0.0031308
        %vm1200 = vcmp.lt.f32.partialorder %v176, 0.0031308
        %vm1201 = vcmp.lt.f32.partialorder %v177, 0.0031308
        %vm1202 = vcmp.lt.f32.partialorder %v178, 0.0031308
        %vm1203 = vcmp.lt.f32.partialorder %v179, 0.0031308
        %vm1204 = vcmp.lt.f32.partialorder %v180, 0.0031308
        %vm1205 = vcmp.lt.f32.partialorder %v181, 0.0031308
        %vm1206 = vcmp.lt.f32.partialorder %v182, 0.0031308
        %vm1207 = vcmp.lt.f32.partialorder %v183, 0.0031308
        %vm1208 = vcmp.lt.f32.partialorder %v184, 0.0031308
        %vm1209 = vcmp.lt.f32.partialorder %v185, 0.0031308
        %vm1210 = vcmp.lt.f32.partialorder %v186, 0.0031308
        %vm1211 = vcmp.lt.f32.partialorder %v187, 0.0031308
        %vm1212 = vcmp.lt.f32.partialorder %v188, 0.0031308
        %vm1213 = vcmp.lt.f32.partialorder %v189, 0.0031308
        %vm1214 = vcmp.lt.f32.partialorder %v190, 0.0031308
        %vm1215 = vcmp.lt.f32.partialorder %v191, 0.0031308
        %vm1216 = vcmp.lt.f32.partialorder %v192, 0.0031308
        %vm1217 = vcmp.lt.f32.partialorder %v193, 0.0031308
        %vm1218 = vcmp.lt.f32.partialorder %v194, 0.0031308
        %vm1219 = vcmp.lt.f32.partialorder %v195, 0.0031308
        %vm1220 = vcmp.lt.f32.partialorder %v196, 0.0031308
        %vm1221 = vcmp.lt.f32.partialorder %v197, 0.0031308
        %vm1222 = vcmp.lt.f32.partialorder %v198, 0.0031308
        %vm1223 = vcmp.lt.f32.partialorder %v199, 0.0031308
        %vm1224 = vcmp.lt.f32.partialorder %v200, 0.0031308
        %vm1225 = vcmp.lt.f32.partialorder %v201, 0.0031308
        %vm1226 = vcmp.lt.f32.partialorder %v202, 0.0031308
        %vm1227 = vcmp.lt.f32.partialorder %v203, 0.0031308
        %vm1228 = vcmp.lt.f32.partialorder %v204, 0.0031308
        %vm1229 = vcmp.lt.f32.partialorder %v205, 0.0031308
        %vm1230 = vcmp.lt.f32.partialorder %v206, 0.0031308
        %vm1231 = vcmp.lt.f32.partialorder %v207, 0.0031308
        %vm1232 = vcmp.lt.f32.partialorder %v208, 0.0031308
        %vm1233 = vcmp.lt.f32.partialorder %v209, 0.0031308
        %vm1234 = vcmp.lt.f32.partialorder %v210, 0.0031308
        %vm1235 = vcmp.lt.f32.partialorder %v211, 0.0031308
        %vm1236 = vcmp.lt.f32.partialorder %v212, 0.0031308
        %vm1237 = vcmp.lt.f32.partialorder %v213, 0.0031308
        %vm1238 = vcmp.lt.f32.partialorder %v214, 0.0031308
        %vm1239 = vcmp.lt.f32.partialorder %v215, 0.0031308
        %vm1240 = vcmp.lt.f32.partialorder %v216, 0.0031308
        %vm1241 = vcmp.lt.f32.partialorder %v217, 0.0031308
        %vm1242 = vcmp.lt.f32.partialorder %v218, 0.0031308
        %vm1243 = vcmp.lt.f32.partialorder %v219, 0.0031308
        %vm1244 = vcmp.lt.f32.partialorder %v220, 0.0031308
        %vm1245 = vcmp.lt.f32.partialorder %v221, 0.0031308
        %vm1246 = vcmp.lt.f32.partialorder %v222, 0.0031308
        %vm1247 = vcmp.lt.f32.partialorder %v223, 0.0031308
        %vm1248 = vcmp.lt.f32.partialorder %v224, 0.0031308
        %vm1249 = vcmp.lt.f32.partialorder %v225, 0.0031308
        %vm1250 = vcmp.lt.f32.partialorder %v226, 0.0031308
        %vm1251 = vcmp.lt.f32.partialorder %v227, 0.0031308
        %vm1252 = vcmp.lt.f32.partialorder %v228, 0.0031308
        %vm1253 = vcmp.lt.f32.partialorder %v229, 0.0031308
        %vm1254 = vcmp.lt.f32.partialorder %v230, 0.0031308
        %vm1255 = vcmp.lt.f32.partialorder %v231, 0.0031308
        %vm1256 = vcmp.lt.f32.partialorder %v232, 0.0031308
        %vm1257 = vcmp.lt.f32.partialorder %v233, 0.0031308
        %vm1258 = vcmp.lt.f32.partialorder %v234, 0.0031308
        %vm1259 = vcmp.lt.f32.partialorder %v235, 0.0031308
        %vm1260 = vcmp.lt.f32.partialorder %v236, 0.0031308
        %vm1261 = vcmp.lt.f32.partialorder %v237, 0.0031308
        %vm1262 = vcmp.lt.f32.partialorder %v238, 0.0031308
        %vm1263 = vcmp.lt.f32.partialorder %v239, 0.0031308
        %vm1264 = vcmp.lt.f32.partialorder %v240, 0.0031308
        %vm1265 = vcmp.lt.f32.partialorder %v241, 0.0031308
        %vm1266 = vcmp.lt.f32.partialorder %v242, 0.0031308
        %vm1267 = vcmp.lt.f32.partialorder %v243, 0.0031308
        %vm1268 = vcmp.lt.f32.partialorder %v244, 0.0031308
        %vm1269 = vcmp.lt.f32.partialorder %v245, 0.0031308
        %vm1270 = vcmp.lt.f32.partialorder %v246, 0.0031308
        %vm1271 = vcmp.lt.f32.partialorder %v247, 0.0031308
        %vm1272 = vcmp.lt.f32.partialorder %v248, 0.0031308
        %vm1273 = vcmp.lt.f32.partialorder %v249, 0.0031308
        %vm1274 = vcmp.lt.f32.partialorder %v250, 0.0031308
        %vm1275 = vcmp.lt.f32.partialorder %v251, 0.0031308
        %vm1276 = vcmp.lt.f32.partialorder %v252, 0.0031308
        %vm1277 = vcmp.lt.f32.partialorder %v253, 0.0031308
        %vm1278 = vcmp.lt.f32.partialorder %v254, 0.0031308
        %vm1279 = vcmp.lt.f32.partialorder %v255, 0.0031308
        %vm1280 = vcmp.lt.f32.partialorder %v256, 0.0031308
        %vm1281 = vcmp.lt.f32.partialorder %v257, 0.0031308
        %vm1282 = vcmp.lt.f32.partialorder %v258, 0.0031308
        %vm1283 = vcmp.lt.f32.partialorder %v259, 0.0031308
        %vm1284 = vcmp.lt.f32.partialorder %v260, 0.0031308
        %vm1285 = vcmp.lt.f32.partialorder %v261, 0.0031308
        %vm1286 = vcmp.lt.f32.partialorder %v262, 0.0031308
        %vm1287 = vcmp.lt.f32.partialorder %v263, 0.0031308
        %vm1288 = vcmp.lt.f32.partialorder %v264, 0.0031308
        %vm1289 = vcmp.lt.f32.partialorder %v265, 0.0031308
        %vm1290 = vcmp.lt.f32.partialorder %v266, 0.0031308
        %vm1291 = vcmp.lt.f32.partialorder %v267, 0.0031308
        %vm1292 = vcmp.lt.f32.partialorder %v268, 0.0031308
        %vm1293 = vcmp.lt.f32.partialorder %v269, 0.0031308
        %vm1294 = vcmp.lt.f32.partialorder %v270, 0.0031308
        %vm1295 = vcmp.lt.f32.partialorder %v271, 0.0031308
        %vm1296 = vcmp.lt.f32.partialorder %v272, 0.0031308
        %vm1297 = vcmp.lt.f32.partialorder %v273, 0.0031308
        %vm1298 = vcmp.lt.f32.partialorder %v274, 0.0031308
        %vm1299 = vcmp.lt.f32.partialorder %v275, 0.0031308
        %vm1300 = vcmp.lt.f32.partialorder %v276, 0.0031308
        %vm1301 = vcmp.lt.f32.partialorder %v277, 0.0031308
        %vm1302 = vcmp.lt.f32.partialorder %v278, 0.0031308
        %vm1303 = vcmp.lt.f32.partialorder %v279, 0.0031308
        %vm1304 = vcmp.lt.f32.partialorder %v280, 0.0031308
        %vm1305 = vcmp.lt.f32.partialorder %v281, 0.0031308
        %vm1306 = vcmp.lt.f32.partialorder %v282, 0.0031308
        %vm1307 = vcmp.lt.f32.partialorder %v283, 0.0031308
        %vm1308 = vcmp.lt.f32.partialorder %v284, 0.0031308
        %vm1309 = vcmp.lt.f32.partialorder %v285, 0.0031308
        %vm1310 = vcmp.lt.f32.partialorder %v286, 0.0031308
        %vm1311 = vcmp.lt.f32.partialorder %v287, 0.0031308
        %vm1312 = vcmp.lt.f32.partialorder %v288, 0.0031308
        %vm1313 = vcmp.lt.f32.partialorder %v289, 0.0031308
        %vm1314 = vcmp.lt.f32.partialorder %v290, 0.0031308
        %vm1315 = vcmp.lt.f32.partialorder %v291, 0.0031308
        %vm1316 = vcmp.lt.f32.partialorder %v292, 0.0031308
        %vm1317 = vcmp.lt.f32.partialorder %v293, 0.0031308
        %vm1318 = vcmp.lt.f32.partialorder %v294, 0.0031308
        %vm1319 = vcmp.lt.f32.partialorder %v295, 0.0031308
        %vm1320 = vcmp.lt.f32.partialorder %v296, 0.0031308
        %vm1321 = vcmp.lt.f32.partialorder %v297, 0.0031308
        %vm1322 = vcmp.lt.f32.partialorder %v298, 0.0031308
        %vm1323 = vcmp.lt.f32.partialorder %v299, 0.0031308
        %vm1324 = vcmp.lt.f32.partialorder %v300, 0.0031308
        %vm1325 = vcmp.lt.f32.partialorder %v301, 0.0031308
        %vm1326 = vcmp.lt.f32.partialorder %v302, 0.0031308
        %vm1327 = vcmp.lt.f32.partialorder %v303, 0.0031308
        %vm1328 = vcmp.lt.f32.partialorder %v304, 0.0031308
        %vm1329 = vcmp.lt.f32.partialorder %v305, 0.0031308
        %vm1330 = vcmp.lt.f32.partialorder %v306, 0.0031308
        %vm1331 = vcmp.lt.f32.partialorder %v307, 0.0031308
        %vm1332 = vcmp.lt.f32.partialorder %v308, 0.0031308
        %vm1333 = vcmp.lt.f32.partialorder %v309, 0.0031308
        %vm1334 = vcmp.lt.f32.partialorder %v310, 0.0031308
        %vm1335 = vcmp.lt.f32.partialorder %v311, 0.0031308
        %vm1336 = vcmp.lt.f32.partialorder %v312, 0.0031308
        %vm1337 = vcmp.lt.f32.partialorder %v313, 0.0031308
        %vm1338 = vcmp.lt.f32.partialorder %v314, 0.0031308
        %vm1339 = vcmp.lt.f32.partialorder %v315, 0.0031308
        %vm1340 = vcmp.lt.f32.partialorder %v316, 0.0031308
        %vm1341 = vcmp.lt.f32.partialorder %v317, 0.0031308
        %vm1342 = vcmp.lt.f32.partialorder %v318, 0.0031308
        %vm1343 = vcmp.lt.f32.partialorder %v319, 0.0031308
        %vm1344 = vcmp.lt.f32.partialorder %v320, 0.0031308
        %vm1345 = vcmp.lt.f32.partialorder %v321, 0.0031308
        %vm1346 = vcmp.lt.f32.partialorder %v322, 0.0031308
        %vm1347 = vcmp.lt.f32.partialorder %v323, 0.0031308
        %vm1348 = vcmp.lt.f32.partialorder %v324, 0.0031308
        %vm1349 = vcmp.lt.f32.partialorder %v325, 0.0031308
        %vm1350 = vcmp.lt.f32.partialorder %v326, 0.0031308
        %vm1351 = vcmp.lt.f32.partialorder %v327, 0.0031308
        %vm1352 = vcmp.lt.f32.partialorder %v328, 0.0031308
        %vm1353 = vcmp.lt.f32.partialorder %v329, 0.0031308
        %vm1354 = vcmp.lt.f32.partialorder %v330, 0.0031308
        %vm1355 = vcmp.lt.f32.partialorder %v331, 0.0031308
        %vm1356 = vcmp.lt.f32.partialorder %v332, 0.0031308
        %vm1357 = vcmp.lt.f32.partialorder %v333, 0.0031308
        %vm1358 = vcmp.lt.f32.partialorder %v334, 0.0031308
        %vm1359 = vcmp.lt.f32.partialorder %v335, 0.0031308
        %vm1360 = vcmp.lt.f32.partialorder %v336, 0.0031308
        %vm1361 = vcmp.lt.f32.partialorder %v337, 0.0031308
        %vm1362 = vcmp.lt.f32.partialorder %v338, 0.0031308
        %vm1363 = vcmp.lt.f32.partialorder %v339, 0.0031308
        %vm1364 = vcmp.lt.f32.partialorder %v340, 0.0031308
        %vm1365 = vcmp.lt.f32.partialorder %v341, 0.0031308
        %vm1366 = vcmp.lt.f32.partialorder %v342, 0.0031308
        %vm1367 = vcmp.lt.f32.partialorder %v343, 0.0031308
        %vm1368 = vcmp.lt.f32.partialorder %v344, 0.0031308
        %vm1369 = vcmp.lt.f32.partialorder %v345, 0.0031308
        %vm1370 = vcmp.lt.f32.partialorder %v346, 0.0031308
        %vm1371 = vcmp.lt.f32.partialorder %v347, 0.0031308
        %vm1372 = vcmp.lt.f32.partialorder %v348, 0.0031308
        %vm1373 = vcmp.lt.f32.partialorder %v349, 0.0031308
        %vm1374 = vcmp.lt.f32.partialorder %v350, 0.0031308
        %vm1375 = vcmp.lt.f32.partialorder %v351, 0.0031308
        %vm1376 = vcmp.lt.f32.partialorder %v352, 0.0031308
        %vm1377 = vcmp.lt.f32.partialorder %v353, 0.0031308
        %vm1378 = vcmp.lt.f32.partialorder %v354, 0.0031308
        %vm1379 = vcmp.lt.f32.partialorder %v355, 0.0031308
        %vm1380 = vcmp.lt.f32.partialorder %v356, 0.0031308
        %vm1381 = vcmp.lt.f32.partialorder %v357, 0.0031308
        %vm1382 = vcmp.lt.f32.partialorder %v358, 0.0031308
        %vm1383 = vcmp.lt.f32.partialorder %v359, 0.0031308
        %vm1384 = vcmp.lt.f32.partialorder %v360, 0.0031308
        %vm1385 = vcmp.lt.f32.partialorder %v361, 0.0031308
        %vm1386 = vcmp.lt.f32.partialorder %v362, 0.0031308
        %vm1387 = vcmp.lt.f32.partialorder %v363, 0.0031308
        %vm1388 = vcmp.lt.f32.partialorder %v364, 0.0031308
        %vm1389 = vcmp.lt.f32.partialorder %v365, 0.0031308
        %vm1390 = vcmp.lt.f32.partialorder %v366, 0.0031308
        %vm1391 = vcmp.lt.f32.partialorder %v367, 0.0031308
        %vm1392 = vcmp.lt.f32.partialorder %v368, 0.0031308
        %vm1393 = vcmp.lt.f32.partialorder %v369, 0.0031308
        %vm1394 = vcmp.lt.f32.partialorder %v370, 0.0031308
        %vm1395 = vcmp.lt.f32.partialorder %v371, 0.0031308
        %vm1396 = vcmp.lt.f32.partialorder %v372, 0.0031308
        %vm1397 = vcmp.lt.f32.partialorder %v373, 0.0031308
        %vm1398 = vcmp.lt.f32.partialorder %v374, 0.0031308
        %vm1399 = vcmp.lt.f32.partialorder %v375, 0.0031308
        %vm1400 = vcmp.lt.f32.partialorder %v376, 0.0031308
        %vm1401 = vcmp.lt.f32.partialorder %v377, 0.0031308
        %vm1402 = vcmp.lt.f32.partialorder %v378, 0.0031308
        %vm1403 = vcmp.lt.f32.partialorder %v379, 0.0031308
        %vm1404 = vcmp.lt.f32.partialorder %v380, 0.0031308
        %vm1405 = vcmp.lt.f32.partialorder %v381, 0.0031308
        %vm1406 = vcmp.lt.f32.partialorder %v382, 0.0031308
        %vm1407 = vcmp.lt.f32.partialorder %v383, 0.0031308
        %vm1408 = vcmp.lt.f32.partialorder %v384, 0.0031308
        %vm1409 = vcmp.lt.f32.partialorder %v385, 0.0031308
        %vm1410 = vcmp.lt.f32.partialorder %v386, 0.0031308
        %vm1411 = vcmp.lt.f32.partialorder %v387, 0.0031308
        %vm1412 = vcmp.lt.f32.partialorder %v388, 0.0031308
        %vm1413 = vcmp.lt.f32.partialorder %v389, 0.0031308
        %vm1414 = vcmp.lt.f32.partialorder %v390, 0.0031308
        %vm1415 = vcmp.lt.f32.partialorder %v391, 0.0031308
        %vm1416 = vcmp.lt.f32.partialorder %v392, 0.0031308
        %vm1417 = vcmp.lt.f32.partialorder %v393, 0.0031308
        %vm1418 = vcmp.lt.f32.partialorder %v394, 0.0031308
        %vm1419 = vcmp.lt.f32.partialorder %v395, 0.0031308
        %vm1420 = vcmp.lt.f32.partialorder %v396, 0.0031308
        %vm1421 = vcmp.lt.f32.partialorder %v397, 0.0031308
        %vm1422 = vcmp.lt.f32.partialorder %v398, 0.0031308
        %vm1423 = vcmp.lt.f32.partialorder %v399, 0.0031308
        %vm1424 = vcmp.lt.f32.partialorder %v400, 0.0031308
        %vm1425 = vcmp.lt.f32.partialorder %v401, 0.0031308
        %vm1426 = vcmp.lt.f32.partialorder %v402, 0.0031308
        %vm1427 = vcmp.lt.f32.partialorder %v403, 0.0031308
        %vm1428 = vcmp.lt.f32.partialorder %v404, 0.0031308
        %vm1429 = vcmp.lt.f32.partialorder %v405, 0.0031308
        %vm1430 = vcmp.lt.f32.partialorder %v406, 0.0031308
        %vm1431 = vcmp.lt.f32.partialorder %v407, 0.0031308
        %vm1432 = vcmp.lt.f32.partialorder %v408, 0.0031308
        %vm1433 = vcmp.lt.f32.partialorder %v409, 0.0031308
        %vm1434 = vcmp.lt.f32.partialorder %v410, 0.0031308
        %vm1435 = vcmp.lt.f32.partialorder %v411, 0.0031308
        %vm1436 = vcmp.lt.f32.partialorder %v412, 0.0031308
        %vm1437 = vcmp.lt.f32.partialorder %v413, 0.0031308
        %vm1438 = vcmp.lt.f32.partialorder %v414, 0.0031308
        %vm1439 = vcmp.lt.f32.partialorder %v415, 0.0031308
        %vm1440 = vcmp.lt.f32.partialorder %v416, 0.0031308
        %vm1441 = vcmp.lt.f32.partialorder %v417, 0.0031308
        %vm1442 = vcmp.lt.f32.partialorder %v418, 0.0031308
        %vm1443 = vcmp.lt.f32.partialorder %v419, 0.0031308
        %vm1444 = vcmp.lt.f32.partialorder %v420, 0.0031308
        %vm1445 = vcmp.lt.f32.partialorder %v421, 0.0031308
        %vm1446 = vcmp.lt.f32.partialorder %v422, 0.0031308
        %vm1447 = vcmp.lt.f32.partialorder %v423, 0.0031308
        %vm1448 = vcmp.lt.f32.partialorder %v424, 0.0031308
        %vm1449 = vcmp.lt.f32.partialorder %v425, 0.0031308
        %vm1450 = vcmp.lt.f32.partialorder %v426, 0.0031308
        %vm1451 = vcmp.lt.f32.partialorder %v427, 0.0031308
        %vm1452 = vcmp.lt.f32.partialorder %v428, 0.0031308
        %vm1453 = vcmp.lt.f32.partialorder %v429, 0.0031308
        %vm1454 = vcmp.lt.f32.partialorder %v430, 0.0031308
        %vm1455 = vcmp.lt.f32.partialorder %v431, 0.0031308
        %vm1456 = vcmp.lt.f32.partialorder %v432, 0.0031308
        %vm1457 = vcmp.lt.f32.partialorder %v433, 0.0031308
        %vm1458 = vcmp.lt.f32.partialorder %v434, 0.0031308
        %vm1459 = vcmp.lt.f32.partialorder %v435, 0.0031308
        %vm1460 = vcmp.lt.f32.partialorder %v436, 0.0031308
        %vm1461 = vcmp.lt.f32.partialorder %v437, 0.0031308
        %vm1462 = vcmp.lt.f32.partialorder %v438, 0.0031308
        %vm1463 = vcmp.lt.f32.partialorder %v439, 0.0031308
        %vm1464 = vcmp.lt.f32.partialorder %v440, 0.0031308
        %vm1465 = vcmp.lt.f32.partialorder %v441, 0.0031308
        %vm1466 = vcmp.lt.f32.partialorder %v442, 0.0031308
        %vm1467 = vcmp.lt.f32.partialorder %v443, 0.0031308
        %vm1468 = vcmp.lt.f32.partialorder %v444, 0.0031308
        %vm1469 = vcmp.lt.f32.partialorder %v445, 0.0031308
        %vm1470 = vcmp.lt.f32.partialorder %v446, 0.0031308
        %vm1471 = vcmp.lt.f32.partialorder %v447, 0.0031308
        %vm1472 = vcmp.lt.f32.partialorder %v448, 0.0031308
        %vm1473 = vcmp.lt.f32.partialorder %v449, 0.0031308
        %vm1474 = vcmp.lt.f32.partialorder %v450, 0.0031308
        %vm1475 = vcmp.lt.f32.partialorder %v451, 0.0031308
        %vm1476 = vcmp.lt.f32.partialorder %v452, 0.0031308
        %vm1477 = vcmp.lt.f32.partialorder %v453, 0.0031308
        %vm1478 = vcmp.lt.f32.partialorder %v454, 0.0031308
        %vm1479 = vcmp.lt.f32.partialorder %v455, 0.0031308
        %vm1480 = vcmp.lt.f32.partialorder %v456, 0.0031308
        %vm1481 = vcmp.lt.f32.partialorder %v457, 0.0031308
        %vm1482 = vcmp.lt.f32.partialorder %v458, 0.0031308
        %vm1483 = vcmp.lt.f32.partialorder %v459, 0.0031308
        %vm1484 = vcmp.lt.f32.partialorder %v460, 0.0031308
        %vm1485 = vcmp.lt.f32.partialorder %v461, 0.0031308
        %vm1486 = vcmp.lt.f32.partialorder %v462, 0.0031308
        %vm1487 = vcmp.lt.f32.partialorder %v463, 0.0031308
        %vm1488 = vcmp.lt.f32.partialorder %v464, 0.0031308
        %vm1489 = vcmp.lt.f32.partialorder %v465, 0.0031308
        %vm1490 = vcmp.lt.f32.partialorder %v466, 0.0031308
        %vm1491 = vcmp.lt.f32.partialorder %v467, 0.0031308
        %vm1492 = vcmp.lt.f32.partialorder %v468, 0.0031308
        %vm1493 = vcmp.lt.f32.partialorder %v469, 0.0031308
        %vm1494 = vcmp.lt.f32.partialorder %v470, 0.0031308
        %vm1495 = vcmp.lt.f32.partialorder %v471, 0.0031308
        %vm1496 = vcmp.lt.f32.partialorder %v472, 0.0031308
        %vm1497 = vcmp.lt.f32.partialorder %v473, 0.0031308
        %vm1498 = vcmp.lt.f32.partialorder %v474, 0.0031308
        %vm1499 = vcmp.lt.f32.partialorder %v475, 0.0031308
        %vm1500 = vcmp.lt.f32.partialorder %v476, 0.0031308
        %vm1501 = vcmp.lt.f32.partialorder %v477, 0.0031308
        %vm1502 = vcmp.lt.f32.partialorder %v478, 0.0031308
        %vm1503 = vcmp.lt.f32.partialorder %v479, 0.0031308
        %vm1504 = vcmp.lt.f32.partialorder %v480, 0.0031308
        %vm1505 = vcmp.lt.f32.partialorder %v481, 0.0031308
        %vm1506 = vcmp.lt.f32.partialorder %v482, 0.0031308
        %vm1507 = vcmp.lt.f32.partialorder %v483, 0.0031308
        %vm1508 = vcmp.lt.f32.partialorder %v484, 0.0031308
        %vm1509 = vcmp.lt.f32.partialorder %v485, 0.0031308
        %vm1510 = vcmp.lt.f32.partialorder %v486, 0.0031308
        %vm1511 = vcmp.lt.f32.partialorder %v487, 0.0031308
        %vm1512 = vcmp.lt.f32.partialorder %v488, 0.0031308
        %vm1513 = vcmp.lt.f32.partialorder %v489, 0.0031308
        %vm1514 = vcmp.lt.f32.partialorder %v490, 0.0031308
        %vm1515 = vcmp.lt.f32.partialorder %v491, 0.0031308
        %vm1516 = vcmp.lt.f32.partialorder %v492, 0.0031308
        %vm1517 = vcmp.lt.f32.partialorder %v493, 0.0031308
        %vm1518 = vcmp.lt.f32.partialorder %v494, 0.0031308
        %vm1519 = vcmp.lt.f32.partialorder %v495, 0.0031308
        %vm1520 = vcmp.lt.f32.partialorder %v496, 0.0031308
        %vm1521 = vcmp.lt.f32.partialorder %v497, 0.0031308
        %vm1522 = vcmp.lt.f32.partialorder %v498, 0.0031308
        %vm1523 = vcmp.lt.f32.partialorder %v499, 0.0031308
        %vm1524 = vcmp.lt.f32.partialorder %v500, 0.0031308
        %vm1525 = vcmp.lt.f32.partialorder %v501, 0.0031308
        %vm1526 = vcmp.lt.f32.partialorder %v502, 0.0031308
        %vm1527 = vcmp.lt.f32.partialorder %v503, 0.0031308
        %vm1528 = vcmp.lt.f32.partialorder %v504, 0.0031308
        %vm1529 = vcmp.lt.f32.partialorder %v505, 0.0031308
        %vm1530 = vcmp.lt.f32.partialorder %v506, 0.0031308
        %vm1531 = vcmp.lt.f32.partialorder %v507, 0.0031308
        %vm1532 = vcmp.lt.f32.partialorder %v508, 0.0031308
        %vm1533 = vcmp.lt.f32.partialorder %v509, 0.0031308
        %vm1534 = vcmp.lt.f32.partialorder %v510, 0.0031308
        %vm1535 = vcmp.lt.f32.partialorder %v511, 0.0031308
        %vm1536 = vcmp.lt.f32.partialorder %v512, 0.0031308
        %vm1537 = vcmp.lt.f32.partialorder %v513, 0.0031308
        %vm1538 = vcmp.lt.f32.partialorder %v514, 0.0031308
        %vm1539 = vcmp.lt.f32.partialorder %v515, 0.0031308
        %vm1540 = vcmp.lt.f32.partialorder %v516, 0.0031308
        %vm1541 = vcmp.lt.f32.partialorder %v517, 0.0031308
        %vm1542 = vcmp.lt.f32.partialorder %v518, 0.0031308
        %vm1543 = vcmp.lt.f32.partialorder %v519, 0.0031308
        %vm1544 = vcmp.lt.f32.partialorder %v520, 0.0031308
        %vm1545 = vcmp.lt.f32.partialorder %v521, 0.0031308
        %vm1546 = vcmp.lt.f32.partialorder %v522, 0.0031308
        %vm1547 = vcmp.lt.f32.partialorder %v523, 0.0031308
        %vm1548 = vcmp.lt.f32.partialorder %v524, 0.0031308
        %vm1549 = vcmp.lt.f32.partialorder %v525, 0.0031308
        %vm1550 = vcmp.lt.f32.partialorder %v526, 0.0031308
        %vm1551 = vcmp.lt.f32.partialorder %v527, 0.0031308
        %vm1552 = vcmp.lt.f32.partialorder %v528, 0.0031308
        %vm1553 = vcmp.lt.f32.partialorder %v529, 0.0031308
        %vm1554 = vcmp.lt.f32.partialorder %v530, 0.0031308
        %vm1555 = vcmp.lt.f32.partialorder %v531, 0.0031308
        %vm1556 = vcmp.lt.f32.partialorder %v532, 0.0031308
        %vm1557 = vcmp.lt.f32.partialorder %v533, 0.0031308
        %vm1558 = vcmp.lt.f32.partialorder %v534, 0.0031308
        %vm1559 = vcmp.lt.f32.partialorder %v535, 0.0031308
        %vm1560 = vcmp.lt.f32.partialorder %v536, 0.0031308
        %vm1561 = vcmp.lt.f32.partialorder %v537, 0.0031308
        %vm1562 = vcmp.lt.f32.partialorder %v538, 0.0031308
        %vm1563 = vcmp.lt.f32.partialorder %v539, 0.0031308
        %vm1564 = vcmp.lt.f32.partialorder %v540, 0.0031308
        %vm1565 = vcmp.lt.f32.partialorder %v541, 0.0031308
        %vm1566 = vcmp.lt.f32.partialorder %v542, 0.0031308
        %vm1567 = vcmp.lt.f32.partialorder %v543, 0.0031308
        %vm1568 = vcmp.lt.f32.partialorder %v544, 0.0031308
        %vm1569 = vcmp.lt.f32.partialorder %v545, 0.0031308
        %vm1570 = vcmp.lt.f32.partialorder %v546, 0.0031308
        %vm1571 = vcmp.lt.f32.partialorder %v547, 0.0031308
        %vm1572 = vcmp.lt.f32.partialorder %v548, 0.0031308
        %vm1573 = vcmp.lt.f32.partialorder %v549, 0.0031308
        %vm1574 = vcmp.lt.f32.partialorder %v550, 0.0031308
        %vm1575 = vcmp.lt.f32.partialorder %v551, 0.0031308
        %vm1576 = vcmp.lt.f32.partialorder %v552, 0.0031308
        %vm1577 = vcmp.lt.f32.partialorder %v553, 0.0031308
        %vm1578 = vcmp.lt.f32.partialorder %v554, 0.0031308
        %vm1579 = vcmp.lt.f32.partialorder %v555, 0.0031308
        %vm1580 = vcmp.lt.f32.partialorder %v556, 0.0031308
        %vm1581 = vcmp.lt.f32.partialorder %v557, 0.0031308
        %vm1582 = vcmp.lt.f32.partialorder %v558, 0.0031308
        %vm1583 = vcmp.lt.f32.partialorder %v559, 0.0031308
        %vm1584 = vcmp.lt.f32.partialorder %v560, 0.0031308
        %vm1585 = vcmp.lt.f32.partialorder %v561, 0.0031308
        %vm1586 = vcmp.lt.f32.partialorder %v562, 0.0031308
        %vm1587 = vcmp.lt.f32.partialorder %v563, 0.0031308
        %vm1588 = vcmp.lt.f32.partialorder %v564, 0.0031308
        %vm1589 = vcmp.lt.f32.partialorder %v565, 0.0031308
        %vm1590 = vcmp.lt.f32.partialorder %v566, 0.0031308
        %vm1591 = vcmp.lt.f32.partialorder %v567, 0.0031308
        %vm1592 = vcmp.lt.f32.partialorder %v568, 0.0031308
        %vm1593 = vcmp.lt.f32.partialorder %v569, 0.0031308
        %vm1594 = vcmp.lt.f32.partialorder %v570, 0.0031308
        %vm1595 = vcmp.lt.f32.partialorder %v571, 0.0031308
        %vm1596 = vcmp.lt.f32.partialorder %v572, 0.0031308
        %vm1597 = vcmp.lt.f32.partialorder %v573, 0.0031308
        %vm1598 = vcmp.lt.f32.partialorder %v574, 0.0031308
        %vm1599 = vcmp.lt.f32.partialorder %v575, 0.0031308
        %vm1600 = vcmp.lt.f32.partialorder %v576, 0.0031308
        %vm1601 = vcmp.lt.f32.partialorder %v577, 0.0031308
        %vm1602 = vcmp.lt.f32.partialorder %v578, 0.0031308
        %vm1603 = vcmp.lt.f32.partialorder %v579, 0.0031308
        %vm1604 = vcmp.lt.f32.partialorder %v580, 0.0031308
        %vm1605 = vcmp.lt.f32.partialorder %v581, 0.0031308
        %vm1606 = vcmp.lt.f32.partialorder %v582, 0.0031308
        %vm1607 = vcmp.lt.f32.partialorder %v583, 0.0031308
        %vm1608 = vcmp.lt.f32.partialorder %v584, 0.0031308
        %vm1609 = vcmp.lt.f32.partialorder %v585, 0.0031308
        %vm1610 = vcmp.lt.f32.partialorder %v586, 0.0031308
        %vm1611 = vcmp.lt.f32.partialorder %v587, 0.0031308
        %vm1612 = vcmp.lt.f32.partialorder %v588, 0.0031308
        %vm1613 = vcmp.lt.f32.partialorder %v589, 0.0031308
        %vm1614 = vcmp.lt.f32.partialorder %v590, 0.0031308
        %vm1615 = vcmp.lt.f32.partialorder %v591, 0.0031308
        %vm1616 = vcmp.lt.f32.partialorder %v592, 0.0031308
        %vm1617 = vcmp.lt.f32.partialorder %v593, 0.0031308
        %vm1618 = vcmp.lt.f32.partialorder %v594, 0.0031308
        %vm1619 = vcmp.lt.f32.partialorder %v595, 0.0031308
        %vm1620 = vcmp.lt.f32.partialorder %v596, 0.0031308
        %vm1621 = vcmp.lt.f32.partialorder %v597, 0.0031308
        %vm1622 = vcmp.lt.f32.partialorder %v598, 0.0031308
        %vm1623 = vcmp.lt.f32.partialorder %v599, 0.0031308
        %vm1624 = vcmp.lt.f32.partialorder %v600, 0.0031308
        %vm1625 = vcmp.lt.f32.partialorder %v601, 0.0031308
        %vm1626 = vcmp.lt.f32.partialorder %v602, 0.0031308
        %vm1627 = vcmp.lt.f32.partialorder %v603, 0.0031308
        %vm1628 = vcmp.lt.f32.partialorder %v604, 0.0031308
        %vm1629 = vcmp.lt.f32.partialorder %v605, 0.0031308
        %vm1630 = vcmp.lt.f32.partialorder %v606, 0.0031308
        %vm1631 = vcmp.lt.f32.partialorder %v607, 0.0031308
        %vm1632 = vcmp.lt.f32.partialorder %v608, 0.0031308
        %vm1633 = vcmp.lt.f32.partialorder %v609, 0.0031308
        %vm1634 = vcmp.lt.f32.partialorder %v610, 0.0031308
        %vm1635 = vcmp.lt.f32.partialorder %v611, 0.0031308
        %vm1636 = vcmp.lt.f32.partialorder %v612, 0.0031308
        %vm1637 = vcmp.lt.f32.partialorder %v613, 0.0031308
        %vm1638 = vcmp.lt.f32.partialorder %v614, 0.0031308
        %vm1639 = vcmp.lt.f32.partialorder %v615, 0.0031308
        %vm1640 = vcmp.lt.f32.partialorder %v616, 0.0031308
        %vm1641 = vcmp.lt.f32.partialorder %v617, 0.0031308
        %vm1642 = vcmp.lt.f32.partialorder %v618, 0.0031308
        %vm1643 = vcmp.lt.f32.partialorder %v619, 0.0031308
        %vm1644 = vcmp.lt.f32.partialorder %v620, 0.0031308
        %vm1645 = vcmp.lt.f32.partialorder %v621, 0.0031308
        %vm1646 = vcmp.lt.f32.partialorder %v622, 0.0031308
        %vm1647 = vcmp.lt.f32.partialorder %v623, 0.0031308
        %vm1648 = vcmp.lt.f32.partialorder %v624, 0.0031308
        %vm1649 = vcmp.lt.f32.partialorder %v625, 0.0031308
        %vm1650 = vcmp.lt.f32.partialorder %v626, 0.0031308
        %vm1651 = vcmp.lt.f32.partialorder %v627, 0.0031308
        %vm1652 = vcmp.lt.f32.partialorder %v628, 0.0031308
        %vm1653 = vcmp.lt.f32.partialorder %v629, 0.0031308
        %vm1654 = vcmp.lt.f32.partialorder %v630, 0.0031308
        %vm1655 = vcmp.lt.f32.partialorder %v631, 0.0031308
        %vm1656 = vcmp.lt.f32.partialorder %v632, 0.0031308
        %vm1657 = vcmp.lt.f32.partialorder %v633, 0.0031308
        %vm1658 = vcmp.lt.f32.partialorder %v634, 0.0031308
        %vm1659 = vcmp.lt.f32.partialorder %v635, 0.0031308
        %vm1660 = vcmp.lt.f32.partialorder %v636, 0.0031308
        %vm1661 = vcmp.lt.f32.partialorder %v637, 0.0031308
        %vm1662 = vcmp.lt.f32.partialorder %v638, 0.0031308
        %vm1663 = vcmp.lt.f32.partialorder %v639, 0.0031308
        %vm1664 = vcmp.lt.f32.partialorder %v640, 0.0031308
        %vm1665 = vcmp.lt.f32.partialorder %v641, 0.0031308
        %vm1666 = vcmp.lt.f32.partialorder %v642, 0.0031308
        %vm1667 = vcmp.lt.f32.partialorder %v643, 0.0031308
        %vm1668 = vcmp.lt.f32.partialorder %v644, 0.0031308
        %vm1669 = vcmp.lt.f32.partialorder %v645, 0.0031308
        %vm1670 = vcmp.lt.f32.partialorder %v646, 0.0031308
        %vm1671 = vcmp.lt.f32.partialorder %v647, 0.0031308
        %vm1672 = vcmp.lt.f32.partialorder %v648, 0.0031308
        %vm1673 = vcmp.lt.f32.partialorder %v649, 0.0031308
        %vm1674 = vcmp.lt.f32.partialorder %v650, 0.0031308
        %vm1675 = vcmp.lt.f32.partialorder %v651, 0.0031308
        %vm1676 = vcmp.lt.f32.partialorder %v652, 0.0031308
        %vm1677 = vcmp.lt.f32.partialorder %v653, 0.0031308
        %vm1678 = vcmp.lt.f32.partialorder %v654, 0.0031308
        %vm1679 = vcmp.lt.f32.partialorder %v655, 0.0031308
        %vm1680 = vcmp.lt.f32.partialorder %v656, 0.0031308
        %vm1681 = vcmp.lt.f32.partialorder %v657, 0.0031308
        %vm1682 = vcmp.lt.f32.partialorder %v658, 0.0031308
        %vm1683 = vcmp.lt.f32.partialorder %v659, 0.0031308
        %vm1684 = vcmp.lt.f32.partialorder %v660, 0.0031308
        %vm1685 = vcmp.lt.f32.partialorder %v661, 0.0031308
        %vm1686 = vcmp.lt.f32.partialorder %v662, 0.0031308
        %vm1687 = vcmp.lt.f32.partialorder %v663, 0.0031308
        %vm1688 = vcmp.lt.f32.partialorder %v664, 0.0031308
        %vm1689 = vcmp.lt.f32.partialorder %v665, 0.0031308
        %vm1690 = vcmp.lt.f32.partialorder %v666, 0.0031308
        %vm1691 = vcmp.lt.f32.partialorder %v667, 0.0031308
        %vm1692 = vcmp.lt.f32.partialorder %v668, 0.0031308
        %vm1693 = vcmp.lt.f32.partialorder %v669, 0.0031308
        %vm1694 = vcmp.lt.f32.partialorder %v670, 0.0031308
        %vm1695 = vcmp.lt.f32.partialorder %v671, 0.0031308
        %vm1696 = vcmp.lt.f32.partialorder %v672, 0.0031308
        %vm1697 = vcmp.lt.f32.partialorder %v673, 0.0031308
        %vm1698 = vcmp.lt.f32.partialorder %v674, 0.0031308
        %vm1699 = vcmp.lt.f32.partialorder %v675, 0.0031308
        %vm1700 = vcmp.lt.f32.partialorder %v676, 0.0031308
        %vm1701 = vcmp.lt.f32.partialorder %v677, 0.0031308
        %vm1702 = vcmp.lt.f32.partialorder %v678, 0.0031308
        %vm1703 = vcmp.lt.f32.partialorder %v679, 0.0031308
        %vm1704 = vcmp.lt.f32.partialorder %v680, 0.0031308
        %vm1705 = vcmp.lt.f32.partialorder %v681, 0.0031308
        %vm1706 = vcmp.lt.f32.partialorder %v682, 0.0031308
        %vm1707 = vcmp.lt.f32.partialorder %v683, 0.0031308
        %vm1708 = vcmp.lt.f32.partialorder %v684, 0.0031308
        %vm1709 = vcmp.lt.f32.partialorder %v685, 0.0031308
        %vm1710 = vcmp.lt.f32.partialorder %v686, 0.0031308
        %vm1711 = vcmp.lt.f32.partialorder %v687, 0.0031308
        %vm1712 = vcmp.lt.f32.partialorder %v688, 0.0031308
        %vm1713 = vcmp.lt.f32.partialorder %v689, 0.0031308
        %vm1714 = vcmp.lt.f32.partialorder %v690, 0.0031308
        %vm1715 = vcmp.lt.f32.partialorder %v691, 0.0031308
        %vm1716 = vcmp.lt.f32.partialorder %v692, 0.0031308
        %vm1717 = vcmp.lt.f32.partialorder %v693, 0.0031308
        %vm1718 = vcmp.lt.f32.partialorder %v694, 0.0031308
        %vm1719 = vcmp.lt.f32.partialorder %v695, 0.0031308
        %vm1720 = vcmp.lt.f32.partialorder %v696, 0.0031308
        %vm1721 = vcmp.lt.f32.partialorder %v697, 0.0031308
        %vm1722 = vcmp.lt.f32.partialorder %v698, 0.0031308
        %vm1723 = vcmp.lt.f32.partialorder %v699, 0.0031308
        %vm1724 = vcmp.lt.f32.partialorder %v700, 0.0031308
        %vm1725 = vcmp.lt.f32.partialorder %v701, 0.0031308
        %vm1726 = vcmp.lt.f32.partialorder %v702, 0.0031308
        %vm1727 = vcmp.lt.f32.partialorder %v703, 0.0031308
        %vm1728 = vcmp.lt.f32.partialorder %v704, 0.0031308
        %vm1729 = vcmp.lt.f32.partialorder %v705, 0.0031308
        %vm1730 = vcmp.lt.f32.partialorder %v706, 0.0031308
        %vm1731 = vcmp.lt.f32.partialorder %v707, 0.0031308
        %vm1732 = vcmp.lt.f32.partialorder %v708, 0.0031308
        %vm1733 = vcmp.lt.f32.partialorder %v709, 0.0031308
        %vm1734 = vcmp.lt.f32.partialorder %v710, 0.0031308
        %vm1735 = vcmp.lt.f32.partialorder %v711, 0.0031308
        %vm1736 = vcmp.lt.f32.partialorder %v712, 0.0031308
        %vm1737 = vcmp.lt.f32.partialorder %v713, 0.0031308
        %vm1738 = vcmp.lt.f32.partialorder %v714, 0.0031308
        %vm1739 = vcmp.lt.f32.partialorder %v715, 0.0031308
        %vm1740 = vcmp.lt.f32.partialorder %v716, 0.0031308
        %vm1741 = vcmp.lt.f32.partialorder %v717, 0.0031308
        %vm1742 = vcmp.lt.f32.partialorder %v718, 0.0031308
        %vm1743 = vcmp.lt.f32.partialorder %v719, 0.0031308
        %vm1744 = vcmp.lt.f32.partialorder %v720, 0.0031308
        %vm1745 = vcmp.lt.f32.partialorder %v721, 0.0031308
        %vm1746 = vcmp.lt.f32.partialorder %v722, 0.0031308
        %vm1747 = vcmp.lt.f32.partialorder %v723, 0.0031308
        %vm1748 = vcmp.lt.f32.partialorder %v724, 0.0031308
        %vm1749 = vcmp.lt.f32.partialorder %v725, 0.0031308
        %vm1750 = vcmp.lt.f32.partialorder %v726, 0.0031308
        %vm1751 = vcmp.lt.f32.partialorder %v727, 0.0031308
        %vm1752 = vcmp.lt.f32.partialorder %v728, 0.0031308
        %vm1753 = vcmp.lt.f32.partialorder %v729, 0.0031308
        %vm1754 = vcmp.lt.f32.partialorder %v730, 0.0031308
        %vm1755 = vcmp.lt.f32.partialorder %v731, 0.0031308
        %vm1756 = vcmp.lt.f32.partialorder %v732, 0.0031308
        %vm1757 = vcmp.lt.f32.partialorder %v733, 0.0031308
        %vm1758 = vcmp.lt.f32.partialorder %v734, 0.0031308
        %vm1759 = vcmp.lt.f32.partialorder %v735, 0.0031308
        %vm1760 = vcmp.lt.f32.partialorder %v736, 0.0031308
        %vm1761 = vcmp.lt.f32.partialorder %v737, 0.0031308
        %vm1762 = vcmp.lt.f32.partialorder %v738, 0.0031308
        %vm1763 = vcmp.lt.f32.partialorder %v739, 0.0031308
        %vm1764 = vcmp.lt.f32.partialorder %v740, 0.0031308
        %vm1765 = vcmp.lt.f32.partialorder %v741, 0.0031308
        %vm1766 = vcmp.lt.f32.partialorder %v742, 0.0031308
        %vm1767 = vcmp.lt.f32.partialorder %v743, 0.0031308
        %vm1768 = vcmp.lt.f32.partialorder %v744, 0.0031308
        %vm1769 = vcmp.lt.f32.partialorder %v745, 0.0031308
        %vm1770 = vcmp.lt.f32.partialorder %v746, 0.0031308
        %vm1771 = vcmp.lt.f32.partialorder %v747, 0.0031308
        %vm1772 = vcmp.lt.f32.partialorder %v748, 0.0031308
        %vm1773 = vcmp.lt.f32.partialorder %v749, 0.0031308
        %vm1774 = vcmp.lt.f32.partialorder %v750, 0.0031308
        %vm1775 = vcmp.lt.f32.partialorder %v751, 0.0031308
        %vm1776 = vcmp.lt.f32.partialorder %v752, 0.0031308
        %vm1777 = vcmp.lt.f32.partialorder %v753, 0.0031308
        %vm1778 = vcmp.lt.f32.partialorder %v754, 0.0031308
        %vm1779 = vcmp.lt.f32.partialorder %v755, 0.0031308
        %vm1780 = vcmp.lt.f32.partialorder %v756, 0.0031308
        %vm1781 = vcmp.lt.f32.partialorder %v757, 0.0031308
        %vm1782 = vcmp.lt.f32.partialorder %v758, 0.0031308
        %vm1783 = vcmp.lt.f32.partialorder %v759, 0.0031308
        %vm1784 = vcmp.lt.f32.partialorder %v760, 0.0031308
        %vm1785 = vcmp.lt.f32.partialorder %v761, 0.0031308
        %vm1786 = vcmp.lt.f32.partialorder %v762, 0.0031308
        %vm1787 = vcmp.lt.f32.partialorder %v763, 0.0031308
        %vm1788 = vcmp.lt.f32.partialorder %v764, 0.0031308
        %vm1789 = vcmp.lt.f32.partialorder %v765, 0.0031308
        %vm1790 = vcmp.lt.f32.partialorder %v766, 0.0031308
        %vm1791 = vcmp.lt.f32.partialorder %v767, 0.0031308
        %vm1792 = vcmp.lt.f32.partialorder %v768, 0.0031308
        %vm1793 = vcmp.lt.f32.partialorder %v769, 0.0031308
        %vm1794 = vcmp.lt.f32.partialorder %v770, 0.0031308
        %vm1795 = vcmp.lt.f32.partialorder %v771, 0.0031308
        %vm1796 = vcmp.lt.f32.partialorder %v772, 0.0031308
        %vm1797 = vcmp.lt.f32.partialorder %v773, 0.0031308
        %vm1798 = vcmp.lt.f32.partialorder %v774, 0.0031308
        %vm1799 = vcmp.lt.f32.partialorder %v775, 0.0031308
        %vm1800 = vcmp.lt.f32.partialorder %v776, 0.0031308
        %vm1801 = vcmp.lt.f32.partialorder %v777, 0.0031308
        %vm1802 = vcmp.lt.f32.partialorder %v778, 0.0031308
        %vm1803 = vcmp.lt.f32.partialorder %v779, 0.0031308
        %vm1804 = vcmp.lt.f32.partialorder %v780, 0.0031308
        %vm1805 = vcmp.lt.f32.partialorder %v781, 0.0031308
        %vm1806 = vcmp.lt.f32.partialorder %v782, 0.0031308
        %vm1807 = vcmp.lt.f32.partialorder %v783, 0.0031308
        %vm1808 = vcmp.lt.f32.partialorder %v784, 0.0031308
        %vm1809 = vcmp.lt.f32.partialorder %v785, 0.0031308
        %vm1810 = vcmp.lt.f32.partialorder %v786, 0.0031308
        %vm1811 = vcmp.lt.f32.partialorder %v787, 0.0031308
        %vm1812 = vcmp.lt.f32.partialorder %v788, 0.0031308
        %vm1813 = vcmp.lt.f32.partialorder %v789, 0.0031308
        %vm1814 = vcmp.lt.f32.partialorder %v790, 0.0031308
        %vm1815 = vcmp.lt.f32.partialorder %v791, 0.0031308
        %vm1816 = vcmp.lt.f32.partialorder %v792, 0.0031308
        %vm1817 = vcmp.lt.f32.partialorder %v793, 0.0031308
        %vm1818 = vcmp.lt.f32.partialorder %v794, 0.0031308
        %vm1819 = vcmp.lt.f32.partialorder %v795, 0.0031308
        %vm1820 = vcmp.lt.f32.partialorder %v796, 0.0031308
        %vm1821 = vcmp.lt.f32.partialorder %v797, 0.0031308
        %vm1822 = vcmp.lt.f32.partialorder %v798, 0.0031308
        %vm1823 = vcmp.lt.f32.partialorder %v799, 0.0031308
        %vm1824 = vcmp.lt.f32.partialorder %v800, 0.0031308
        %vm1825 = vcmp.lt.f32.partialorder %v801, 0.0031308
        %vm1826 = vcmp.lt.f32.partialorder %v802, 0.0031308
        %vm1827 = vcmp.lt.f32.partialorder %v803, 0.0031308
        %vm1828 = vcmp.lt.f32.partialorder %v804, 0.0031308
        %vm1829 = vcmp.lt.f32.partialorder %v805, 0.0031308
        %vm1830 = vcmp.lt.f32.partialorder %v806, 0.0031308
        %vm1831 = vcmp.lt.f32.partialorder %v807, 0.0031308
        %vm1832 = vcmp.lt.f32.partialorder %v808, 0.0031308
        %vm1833 = vcmp.lt.f32.partialorder %v809, 0.0031308
        %vm1834 = vcmp.lt.f32.partialorder %v810, 0.0031308
        %vm1835 = vcmp.lt.f32.partialorder %v811, 0.0031308
        %vm1836 = vcmp.lt.f32.partialorder %v812, 0.0031308
        %vm1837 = vcmp.lt.f32.partialorder %v813, 0.0031308
        %vm1838 = vcmp.lt.f32.partialorder %v814, 0.0031308
        %vm1839 = vcmp.lt.f32.partialorder %v815, 0.0031308
        %vm1840 = vcmp.lt.f32.partialorder %v816, 0.0031308
        %vm1841 = vcmp.lt.f32.partialorder %v817, 0.0031308
        %vm1842 = vcmp.lt.f32.partialorder %v818, 0.0031308
        %vm1843 = vcmp.lt.f32.partialorder %v819, 0.0031308
        %vm1844 = vcmp.lt.f32.partialorder %v820, 0.0031308
        %vm1845 = vcmp.lt.f32.partialorder %v821, 0.0031308
        %vm1846 = vcmp.lt.f32.partialorder %v822, 0.0031308
        %vm1847 = vcmp.lt.f32.partialorder %v823, 0.0031308
        %vm1848 = vcmp.lt.f32.partialorder %v824, 0.0031308
        %vm1849 = vcmp.lt.f32.partialorder %v825, 0.0031308
        %vm1850 = vcmp.lt.f32.partialorder %v826, 0.0031308
        %vm1851 = vcmp.lt.f32.partialorder %v827, 0.0031308
        %vm1852 = vcmp.lt.f32.partialorder %v828, 0.0031308
        %vm1853 = vcmp.lt.f32.partialorder %v829, 0.0031308
        %vm1854 = vcmp.lt.f32.partialorder %v830, 0.0031308
        %vm1855 = vcmp.lt.f32.partialorder %v831, 0.0031308
        %vm1856 = vcmp.lt.f32.partialorder %v832, 0.0031308
        %vm1857 = vcmp.lt.f32.partialorder %v833, 0.0031308
        %vm1858 = vcmp.lt.f32.partialorder %v834, 0.0031308
        %vm1859 = vcmp.lt.f32.partialorder %v835, 0.0031308
        %vm1860 = vcmp.lt.f32.partialorder %v836, 0.0031308
        %vm1861 = vcmp.lt.f32.partialorder %v837, 0.0031308
        %vm1862 = vcmp.lt.f32.partialorder %v838, 0.0031308
        %vm1863 = vcmp.lt.f32.partialorder %v839, 0.0031308
        %vm1864 = vcmp.lt.f32.partialorder %v840, 0.0031308
        %vm1865 = vcmp.lt.f32.partialorder %v841, 0.0031308
        %vm1866 = vcmp.lt.f32.partialorder %v842, 0.0031308
        %vm1867 = vcmp.lt.f32.partialorder %v843, 0.0031308
        %vm1868 = vcmp.lt.f32.partialorder %v844, 0.0031308
        %vm1869 = vcmp.lt.f32.partialorder %v845, 0.0031308
        %vm1870 = vcmp.lt.f32.partialorder %v846, 0.0031308
        %vm1871 = vcmp.lt.f32.partialorder %v847, 0.0031308
        %vm1872 = vcmp.lt.f32.partialorder %v848, 0.0031308
        %vm1873 = vcmp.lt.f32.partialorder %v849, 0.0031308
        %vm1874 = vcmp.lt.f32.partialorder %v850, 0.0031308
        %vm1875 = vcmp.lt.f32.partialorder %v851, 0.0031308
        %vm1876 = vcmp.lt.f32.partialorder %v852, 0.0031308
        %vm1877 = vcmp.lt.f32.partialorder %v853, 0.0031308
        %vm1878 = vcmp.lt.f32.partialorder %v854, 0.0031308
        %vm1879 = vcmp.lt.f32.partialorder %v855, 0.0031308
        %vm1880 = vcmp.lt.f32.partialorder %v856, 0.0031308
        %vm1881 = vcmp.lt.f32.partialorder %v857, 0.0031308
        %vm1882 = vcmp.lt.f32.partialorder %v858, 0.0031308
        %vm1883 = vcmp.lt.f32.partialorder %v859, 0.0031308
        %vm1884 = vcmp.lt.f32.partialorder %v860, 0.0031308
        %vm1885 = vcmp.lt.f32.partialorder %v861, 0.0031308
        %vm1886 = vcmp.lt.f32.partialorder %v862, 0.0031308
        %vm1887 = vcmp.lt.f32.partialorder %v863, 0.0031308
        %vm1888 = vcmp.lt.f32.partialorder %v864, 0.0031308
        %vm1889 = vcmp.lt.f32.partialorder %v865, 0.0031308
        %vm1890 = vcmp.lt.f32.partialorder %v866, 0.0031308
        %vm1891 = vcmp.lt.f32.partialorder %v867, 0.0031308
        %vm1892 = vcmp.lt.f32.partialorder %v868, 0.0031308
        %vm1893 = vcmp.lt.f32.partialorder %v869, 0.0031308
        %vm1894 = vcmp.lt.f32.partialorder %v870, 0.0031308
        %vm1895 = vcmp.lt.f32.partialorder %v871, 0.0031308
        %vm1896 = vcmp.lt.f32.partialorder %v872, 0.0031308
        %vm1897 = vcmp.lt.f32.partialorder %v873, 0.0031308
        %vm1898 = vcmp.lt.f32.partialorder %v874, 0.0031308
        %vm1899 = vcmp.lt.f32.partialorder %v875, 0.0031308
        %vm1900 = vcmp.lt.f32.partialorder %v876, 0.0031308
        %vm1901 = vcmp.lt.f32.partialorder %v877, 0.0031308
        %vm1902 = vcmp.lt.f32.partialorder %v878, 0.0031308
        %vm1903 = vcmp.lt.f32.partialorder %v879, 0.0031308
        %vm1904 = vcmp.lt.f32.partialorder %v880, 0.0031308
        %vm1905 = vcmp.lt.f32.partialorder %v881, 0.0031308
        %vm1906 = vcmp.lt.f32.partialorder %v882, 0.0031308
        %vm1907 = vcmp.lt.f32.partialorder %v883, 0.0031308
        %vm1908 = vcmp.lt.f32.partialorder %v884, 0.0031308
        %vm1909 = vcmp.lt.f32.partialorder %v885, 0.0031308
        %vm1910 = vcmp.lt.f32.partialorder %v886, 0.0031308
        %vm1911 = vcmp.lt.f32.partialorder %v887, 0.0031308
        %vm1912 = vcmp.lt.f32.partialorder %v888, 0.0031308
        %vm1913 = vcmp.lt.f32.partialorder %v889, 0.0031308
        %vm1914 = vcmp.lt.f32.partialorder %v890, 0.0031308
        %vm1915 = vcmp.lt.f32.partialorder %v891, 0.0031308
        %vm1916 = vcmp.lt.f32.partialorder %v892, 0.0031308
        %vm1917 = vcmp.lt.f32.partialorder %v893, 0.0031308
        %vm1918 = vcmp.lt.f32.partialorder %v894, 0.0031308
        %vm1919 = vcmp.lt.f32.partialorder %v895, 0.0031308
        %vm1920 = vcmp.lt.f32.partialorder %v896, 0.0031308
        %vm1921 = vcmp.lt.f32.partialorder %v897, 0.0031308
        %vm1922 = vcmp.lt.f32.partialorder %v898, 0.0031308
        %vm1923 = vcmp.lt.f32.partialorder %v899, 0.0031308
        %vm1924 = vcmp.lt.f32.partialorder %v900, 0.0031308
        %vm1925 = vcmp.lt.f32.partialorder %v901, 0.0031308
        %vm1926 = vcmp.lt.f32.partialorder %v902, 0.0031308
        %vm1927 = vcmp.lt.f32.partialorder %v903, 0.0031308
        %vm1928 = vcmp.lt.f32.partialorder %v904, 0.0031308
        %vm1929 = vcmp.lt.f32.partialorder %v905, 0.0031308
        %vm1930 = vcmp.lt.f32.partialorder %v906, 0.0031308
        %vm1931 = vcmp.lt.f32.partialorder %v907, 0.0031308
        %vm1932 = vcmp.lt.f32.partialorder %v908, 0.0031308
        %vm1933 = vcmp.lt.f32.partialorder %v909, 0.0031308
        %vm1934 = vcmp.lt.f32.partialorder %v910, 0.0031308
        %vm1935 = vcmp.lt.f32.partialorder %v911, 0.0031308
        %vm1936 = vcmp.lt.f32.partialorder %v912, 0.0031308
        %vm1937 = vcmp.lt.f32.partialorder %v913, 0.0031308
        %vm1938 = vcmp.lt.f32.partialorder %v914, 0.0031308
        %vm1939 = vcmp.lt.f32.partialorder %v915, 0.0031308
        %vm1940 = vcmp.lt.f32.partialorder %v916, 0.0031308
        %vm1941 = vcmp.lt.f32.partialorder %v917, 0.0031308
        %vm1942 = vcmp.lt.f32.partialorder %v918, 0.0031308
        %vm1943 = vcmp.lt.f32.partialorder %v919, 0.0031308
        %vm1944 = vcmp.lt.f32.partialorder %v920, 0.0031308
        %vm1945 = vcmp.lt.f32.partialorder %v921, 0.0031308
        %vm1946 = vcmp.lt.f32.partialorder %v922, 0.0031308
        %vm1947 = vcmp.lt.f32.partialorder %v923, 0.0031308
        %vm1948 = vcmp.lt.f32.partialorder %v924, 0.0031308
        %vm1949 = vcmp.lt.f32.partialorder %v925, 0.0031308
        %vm1950 = vcmp.lt.f32.partialorder %v926, 0.0031308
        %vm1951 = vcmp.lt.f32.partialorder %v927, 0.0031308
        %vm1952 = vcmp.lt.f32.partialorder %v928, 0.0031308
        %vm1953 = vcmp.lt.f32.partialorder %v929, 0.0031308
        %vm1954 = vcmp.lt.f32.partialorder %v930, 0.0031308
        %vm1955 = vcmp.lt.f32.partialorder %v931, 0.0031308
        %vm1956 = vcmp.lt.f32.partialorder %v932, 0.0031308
        %vm1957 = vcmp.lt.f32.partialorder %v933, 0.0031308
        %vm1958 = vcmp.lt.f32.partialorder %v934, 0.0031308
        %vm1959 = vcmp.lt.f32.partialorder %v935, 0.0031308
        %vm1960 = vcmp.lt.f32.partialorder %v936, 0.0031308
        %vm1961 = vcmp.lt.f32.partialorder %v937, 0.0031308
        %vm1962 = vcmp.lt.f32.partialorder %v938, 0.0031308
        %vm1963 = vcmp.lt.f32.partialorder %v939, 0.0031308
        %vm1964 = vcmp.lt.f32.partialorder %v940, 0.0031308
        %vm1965 = vcmp.lt.f32.partialorder %v941, 0.0031308
        %vm1966 = vcmp.lt.f32.partialorder %v942, 0.0031308
        %vm1967 = vcmp.lt.f32.partialorder %v943, 0.0031308
        %vm1968 = vcmp.lt.f32.partialorder %v944, 0.0031308
        %vm1969 = vcmp.lt.f32.partialorder %v945, 0.0031308
        %vm1970 = vcmp.lt.f32.partialorder %v946, 0.0031308
        %vm1971 = vcmp.lt.f32.partialorder %v947, 0.0031308
        %vm1972 = vcmp.lt.f32.partialorder %v948, 0.0031308
        %vm1973 = vcmp.lt.f32.partialorder %v949, 0.0031308
        %vm1974 = vcmp.lt.f32.partialorder %v950, 0.0031308
        %vm1975 = vcmp.lt.f32.partialorder %v951, 0.0031308
        %vm1976 = vcmp.lt.f32.partialorder %v952, 0.0031308
        %vm1977 = vcmp.lt.f32.partialorder %v953, 0.0031308
        %vm1978 = vcmp.lt.f32.partialorder %v954, 0.0031308
        %vm1979 = vcmp.lt.f32.partialorder %v955, 0.0031308
        %vm1980 = vcmp.lt.f32.partialorder %v956, 0.0031308
        %vm1981 = vcmp.lt.f32.partialorder %v957, 0.0031308
        %vm1982 = vcmp.lt.f32.partialorder %v958, 0.0031308
        %vm1983 = vcmp.lt.f32.partialorder %v959, 0.0031308
        %vm1984 = vcmp.lt.f32.partialorder %v960, 0.0031308
        %vm1985 = vcmp.lt.f32.partialorder %v961, 0.0031308
        %vm1986 = vcmp.lt.f32.partialorder %v962, 0.0031308
        %vm1987 = vcmp.lt.f32.partialorder %v963, 0.0031308
        %vm1988 = vcmp.lt.f32.partialorder %v964, 0.0031308
        %vm1989 = vcmp.lt.f32.partialorder %v965, 0.0031308
        %vm1990 = vcmp.lt.f32.partialorder %v966, 0.0031308
        %vm1991 = vcmp.lt.f32.partialorder %v967, 0.0031308
        %vm1992 = vcmp.lt.f32.partialorder %v968, 0.0031308
        %vm1993 = vcmp.lt.f32.partialorder %v969, 0.0031308
        %vm1994 = vcmp.lt.f32.partialorder %v970, 0.0031308
        %vm1995 = vcmp.lt.f32.partialorder %v971, 0.0031308
        %vm1996 = vcmp.lt.f32.partialorder %v972, 0.0031308
        %vm1997 = vcmp.lt.f32.partialorder %v973, 0.0031308
        %vm1998 = vcmp.lt.f32.partialorder %v974, 0.0031308
        %vm1999 = vcmp.lt.f32.partialorder %v975, 0.0031308
        %vm2000 = vcmp.lt.f32.partialorder %v976, 0.0031308
        %vm2001 = vcmp.lt.f32.partialorder %v977, 0.0031308
        %vm2002 = vcmp.lt.f32.partialorder %v978, 0.0031308
        %vm2003 = vcmp.lt.f32.partialorder %v979, 0.0031308
        %vm2004 = vcmp.lt.f32.partialorder %v980, 0.0031308
        %vm2005 = vcmp.lt.f32.partialorder %v981, 0.0031308
        %vm2006 = vcmp.lt.f32.partialorder %v982, 0.0031308
        %vm2007 = vcmp.lt.f32.partialorder %v983, 0.0031308
        %vm2008 = vcmp.lt.f32.partialorder %v984, 0.0031308
        %vm2009 = vcmp.lt.f32.partialorder %v985, 0.0031308
        %vm2010 = vcmp.lt.f32.partialorder %v986, 0.0031308
        %vm2011 = vcmp.lt.f32.partialorder %v987, 0.0031308
        %vm2012 = vcmp.lt.f32.partialorder %v988, 0.0031308
        %vm2013 = vcmp.lt.f32.partialorder %v989, 0.0031308
        %vm2014 = vcmp.lt.f32.partialorder %v990, 0.0031308
        %vm2015 = vcmp.lt.f32.partialorder %v991, 0.0031308
        %vm2016 = vcmp.lt.f32.partialorder %v992, 0.0031308
        %vm2017 = vcmp.lt.f32.partialorder %v993, 0.0031308
        %vm2018 = vcmp.lt.f32.partialorder %v994, 0.0031308
        %vm2019 = vcmp.lt.f32.partialorder %v995, 0.0031308
        %vm2020 = vcmp.lt.f32.partialorder %v996, 0.0031308
        %vm2021 = vcmp.lt.f32.partialorder %v997, 0.0031308
        %vm2022 = vcmp.lt.f32.partialorder %v998, 0.0031308
        %vm2023 = vcmp.lt.f32.partialorder %v999, 0.0031308
        %vm2024 = vcmp.lt.f32.partialorder %v1000, 0.0031308
        %vm2025 = vcmp.lt.f32.partialorder %v1001, 0.0031308
        %vm2026 = vcmp.lt.f32.partialorder %v1002, 0.0031308
        %vm2027 = vcmp.lt.f32.partialorder %v1003, 0.0031308
        %vm2028 = vcmp.lt.f32.partialorder %v1004, 0.0031308
        %vm2029 = vcmp.lt.f32.partialorder %v1005, 0.0031308
        %vm2030 = vcmp.lt.f32.partialorder %v1006, 0.0031308
        %vm2031 = vcmp.lt.f32.partialorder %v1007, 0.0031308
        %vm2032 = vcmp.lt.f32.partialorder %v1008, 0.0031308
        %vm2033 = vcmp.lt.f32.partialorder %v1009, 0.0031308
        %vm2034 = vcmp.lt.f32.partialorder %v1010, 0.0031308
        %vm2035 = vcmp.lt.f32.partialorder %v1011, 0.0031308
        %vm2036 = vcmp.lt.f32.partialorder %v1012, 0.0031308
        %vm2037 = vcmp.lt.f32.partialorder %v1013, 0.0031308
        %vm2038 = vcmp.lt.f32.partialorder %v1014, 0.0031308
        %vm2039 = vcmp.lt.f32.partialorder %v1015, 0.0031308
        %vm2040 = vcmp.lt.f32.partialorder %v1016, 0.0031308
        %vm2041 = vcmp.lt.f32.partialorder %v1017, 0.0031308
        %vm2042 = vcmp.lt.f32.partialorder %v1018, 0.0031308
        %vm2043 = vcmp.lt.f32.partialorder %v1019, 0.0031308
        %vm2044 = vcmp.lt.f32.partialorder %v1020, 0.0031308
        %vm2045 = vcmp.lt.f32.partialorder %v1021, 0.0031308
        %vm2046 = vcmp.lt.f32.partialorder %v1022, 0.0031308
        %vm2047 = vcmp.lt.f32.partialorder %v1023, 0.0031308
        %vm2048 = vcmp.lt.f32.partialorder %v1024, 0.0031308
        %vm2049 = vcmp.lt.f32.partialorder %v1025, 0.0031308
        %vm2050 = vcmp.lt.f32.partialorder %v1026, 0.0031308
        %vm2051 = vcmp.lt.f32.partialorder %v1027, 0.0031308
        %vm2052 = vcmp.lt.f32.partialorder %v1028, 0.0031308
        %vm2053 = vcmp.lt.f32.partialorder %v1029, 0.0031308
        %vm2054 = vcmp.lt.f32.partialorder %v1030, 0.0031308
        %vm2055 = vcmp.lt.f32.partialorder %v1031, 0.0031308
        %vm2056 = vcmp.lt.f32.partialorder %v1032, 0.0031308
        %vm2057 = vcmp.lt.f32.partialorder %v1033, 0.0031308
        %vm2058 = vcmp.lt.f32.partialorder %v1034, 0.0031308
        %vm2059 = vcmp.lt.f32.partialorder %v1035, 0.0031308
        %vm2060 = vcmp.lt.f32.partialorder %v1036, 0.0031308
        %vm2061 = vcmp.lt.f32.partialorder %v1037, 0.0031308
        %vm2062 = vcmp.lt.f32.partialorder %v1038, 0.0031308
        %vm2063 = vcmp.lt.f32.partialorder %v1039, 0.0031308
        %vm2064 = vcmp.lt.f32.partialorder %v1040, 0.0031308
        %vm2065 = vcmp.lt.f32.partialorder %v1041, 0.0031308
        %vm2066 = vcmp.lt.f32.partialorder %v1042, 0.0031308
        %vm2067 = vcmp.lt.f32.partialorder %v1043, 0.0031308
        %vm2068 = vcmp.lt.f32.partialorder %v1044, 0.0031308
        %vm2069 = vcmp.lt.f32.partialorder %v1045, 0.0031308
        %vm2070 = vcmp.lt.f32.partialorder %v1046, 0.0031308
        %vm2071 = vcmp.lt.f32.partialorder %v1047, 0.0031308
        %vm2072 = vcmp.lt.f32.partialorder %v1048, 0.0031308
        %vm2073 = vcmp.lt.f32.partialorder %v1049, 0.0031308
        %vm2074 = vcmp.lt.f32.partialorder %v1050, 0.0031308
        %vm2075 = vcmp.lt.f32.partialorder %v1051, 0.0031308
        %vm2076 = vcmp.lt.f32.partialorder %v1052, 0.0031308
        %vm2077 = vcmp.lt.f32.partialorder %v1053, 0.0031308
        %vm2078 = vcmp.lt.f32.partialorder %v1054, 0.0031308
        %vm2079 = vcmp.lt.f32.partialorder %v1055, 0.0031308
        %vm2080 = vcmp.lt.f32.partialorder %v1056, 0.0031308
        %vm2081 = vcmp.lt.f32.partialorder %v1057, 0.0031308
        %vm2082 = vcmp.lt.f32.partialorder %v1058, 0.0031308
        %vm2083 = vcmp.lt.f32.partialorder %v1059, 0.0031308
        %vm2084 = vcmp.lt.f32.partialorder %v1060, 0.0031308
        %vm2085 = vcmp.lt.f32.partialorder %v1061, 0.0031308
        %vm2086 = vcmp.lt.f32.partialorder %v1062, 0.0031308
        %vm2087 = vcmp.lt.f32.partialorder %v1063, 0.0031308
        %vm2088 = vcmp.lt.f32.partialorder %v1064, 0.0031308
        %vm2089 = vcmp.lt.f32.partialorder %v1065, 0.0031308
        %vm2090 = vcmp.lt.f32.partialorder %v1066, 0.0031308
        %vm2091 = vcmp.lt.f32.partialorder %v1067, 0.0031308
        %vm2092 = vcmp.lt.f32.partialorder %v1068, 0.0031308
        %vm2093 = vcmp.lt.f32.partialorder %v1069, 0.0031308
        %vm2094 = vcmp.lt.f32.partialorder %v1070, 0.0031308
        %vm2095 = vcmp.lt.f32.partialorder %v1071, 0.0031308
        %vm2096 = vcmp.lt.f32.partialorder %v1072, 0.0031308
        %vm2097 = vcmp.lt.f32.partialorder %v1073, 0.0031308
        %vm2098 = vcmp.lt.f32.partialorder %v1074, 0.0031308
        %vm2099 = vcmp.lt.f32.partialorder %v1075, 0.0031308
        %vm2100 = vcmp.lt.f32.partialorder %v1076, 0.0031308
        %vm2101 = vcmp.lt.f32.partialorder %v1077, 0.0031308
        %vm2102 = vcmp.lt.f32.partialorder %v1078, 0.0031308
        %vm2103 = vcmp.lt.f32.partialorder %v1079, 0.0031308
        %vm2104 = vcmp.lt.f32.partialorder %v1080, 0.0031308
        %vm2105 = vcmp.lt.f32.partialorder %v1081, 0.0031308
        %vm2106 = vcmp.lt.f32.partialorder %v1082, 0.0031308
        %vm2107 = vcmp.lt.f32.partialorder %v1083, 0.0031308
        %vm2108 = vcmp.lt.f32.partialorder %v1084, 0.0031308
        %vm2109 = vcmp.lt.f32.partialorder %v1085, 0.0031308
        %vm2110 = vcmp.lt.f32.partialorder %v1086, 0.0031308
        %vm2111 = vcmp.lt.f32.partialorder %v1087, 0.0031308
        %vm2112 = vcmp.lt.f32.partialorder %v1088, 0.0031308
        %vm2113 = vcmp.lt.f32.partialorder %v1089, 0.0031308
        %vm2114 = vcmp.lt.f32.partialorder %v1090, 0.0031308
        %vm2115 = vcmp.lt.f32.partialorder %v1091, 0.0031308
        %vm2116 = vcmp.lt.f32.partialorder %v1092, 0.0031308
        %vm2117 = vcmp.lt.f32.partialorder %v1093, 0.0031308
        %vm2118 = vcmp.lt.f32.partialorder %v1094, 0.0031308
        %vm2119 = vcmp.lt.f32.partialorder %v1095, 0.0031308
        %vm2120 = vcmp.lt.f32.partialorder %v1096, 0.0031308
        %vm2121 = vcmp.lt.f32.partialorder %v1097, 0.0031308
        %vm2122 = vcmp.lt.f32.partialorder %v1098, 0.0031308
        %vm2123 = vcmp.lt.f32.partialorder %v1099, 0.0031308
        %vm2124 = vcmp.lt.f32.partialorder %v1100, 0.0031308
        %vm2125 = vcmp.lt.f32.partialorder %v1101, 0.0031308
        %vm2126 = vcmp.lt.f32.partialorder %v1102, 0.0031308
        %vm2127 = vcmp.lt.f32.partialorder %v1103, 0.0031308
        %vm2128 = vcmp.lt.f32.partialorder %v1104, 0.0031308
        %vm2129 = vcmp.lt.f32.partialorder %v1105, 0.0031308
        %vm2130 = vcmp.lt.f32.partialorder %v1106, 0.0031308
        %vm2131 = vcmp.lt.f32.partialorder %v1107, 0.0031308
        %vm2132 = vcmp.lt.f32.partialorder %v1108, 0.0031308
        %vm2133 = vcmp.lt.f32.partialorder %v1109, 0.0031308
        %vm2134 = vcmp.lt.f32.partialorder %v1110, 0.0031308
        %vm2135 = vcmp.lt.f32.partialorder %v1111, 0.0031308
        %vm2136 = vcmp.lt.f32.partialorder %v1112, 0.0031308
        %vm2137 = vcmp.lt.f32.partialorder %v1113, 0.0031308
        %vm2138 = vcmp.lt.f32.partialorder %v1114, 0.0031308
        %vm2139 = vcmp.lt.f32.partialorder %v1115, 0.0031308
        %vm2140 = vcmp.lt.f32.partialorder %v1116, 0.0031308
        %vm2141 = vcmp.lt.f32.partialorder %v1117, 0.0031308
        %vm2142 = vcmp.lt.f32.partialorder %v1118, 0.0031308
        %vm2143 = vcmp.lt.f32.partialorder %v1119, 0.0031308
        %vm2144 = vcmp.lt.f32.partialorder %v1120, 0.0031308
        %vm2145 = vcmp.lt.f32.partialorder %v1121, 0.0031308
        %vm2146 = vcmp.lt.f32.partialorder %v1122, 0.0031308
        %vm2147 = vcmp.lt.f32.partialorder %v1123, 0.0031308
        %vm2148 = vcmp.lt.f32.partialorder %v1124, 0.0031308
        %vm2149 = vcmp.lt.f32.partialorder %v1125, 0.0031308
        %vm2150 = vcmp.lt.f32.partialorder %v1126, 0.0031308
        %vm2151 = vcmp.lt.f32.partialorder %v1127, 0.0031308
        %vm2152 = vcmp.lt.f32.partialorder %v1128, 0.0031308
        %vm2153 = vcmp.lt.f32.partialorder %v1129, 0.0031308
        %vm2154 = vcmp.lt.f32.partialorder %v1130, 0.0031308
        %vm2155 = vcmp.lt.f32.partialorder %v1131, 0.0031308
        %vm2156 = vcmp.lt.f32.partialorder %v1132, 0.0031308
        %vm2157 = vcmp.lt.f32.partialorder %v1133, 0.0031308
        %vm2158 = vcmp.lt.f32.partialorder %v1134, 0.0031308
        %vm2159 = vcmp.lt.f32.partialorder %v1135, 0.0031308
        %vm2160 = vcmp.lt.f32.partialorder %v1136, 0.0031308
        %vm2161 = vcmp.lt.f32.partialorder %v1137, 0.0031308
        %vm2162 = vcmp.lt.f32.partialorder %v1138, 0.0031308
        %vm2163 = vcmp.lt.f32.partialorder %v1139, 0.0031308
        %vm2164 = vcmp.lt.f32.partialorder %v1140, 0.0031308
        %vm2165 = vcmp.lt.f32.partialorder %v1141, 0.0031308
        %vm2166 = vcmp.lt.f32.partialorder %v1142, 0.0031308
        %vm2167 = vcmp.lt.f32.partialorder %v1143, 0.0031308
        %vm2168 = vcmp.lt.f32.partialorder %v1144, 0.0031308
        %vm2169 = vcmp.lt.f32.partialorder %v1145, 0.0031308
        %vm2170 = vcmp.lt.f32.partialorder %v1146, 0.0031308
        %vm2171 = vcmp.lt.f32.partialorder %v1147, 0.0031308
        %vm2172 = vcmp.lt.f32.partialorder %v1148, 0.0031308
        %vm2173 = vcmp.lt.f32.partialorder %v1149, 0.0031308
        %vm2174 = vcmp.lt.f32.partialorder %v1150, 0.0031308
        %vm2175 = vcmp.lt.f32.partialorder %v1151, 0.0031308
        %vm2176 = vcmp.lt.f32.partialorder %v1152, 0.0031308
        %vm2177 = vcmp.lt.f32.partialorder %v1153, 0.0031308
        %vm2178 = vcmp.lt.f32.partialorder %v1154, 0.0031308
        %vm2179 = vcmp.lt.f32.partialorder %v1155, 0.0031308
        %vm2180 = vcmp.lt.f32.partialorder %v1156, 0.0031308
        %vm2181 = vcmp.lt.f32.partialorder %v1157, 0.0031308
        %vm2182 = vcmp.lt.f32.partialorder %v1158, 0.0031308
        %vm2183 = vcmp.lt.f32.partialorder %v1159, 0.0031308
        %vm2184 = vcmp.lt.f32.partialorder %v1160, 0.0031308
        %vm2185 = vcmp.lt.f32.partialorder %v1161, 0.0031308
        %vm2186 = vcmp.lt.f32.partialorder %v1162, 0.0031308
        %vm2187 = vcmp.lt.f32.partialorder %v1163, 0.0031308
        %vm2188 = vcmp.lt.f32.partialorder %v1164, 0.0031308
        %vm2189 = vcmp.lt.f32.partialorder %v1165, 0.0031308
        %vm2190 = vcmp.lt.f32.partialorder %v1166, 0.0031308
        %vm2191 = vcmp.lt.f32.partialorder %v1167, 0.0031308
        %vm2192 = vcmp.lt.f32.partialorder %v1168, 0.0031308
        %vm2193 = vcmp.lt.f32.partialorder %v1169, 0.0031308
        %vm2194 = vcmp.lt.f32.partialorder %v1170, 0.0031308
        %vm2195 = vcmp.lt.f32.partialorder %v1171, 0.0031308
        %vm2196 = vcmp.lt.f32.partialorder %v1172, 0.0031308
        %vm2197 = vcmp.lt.f32.partialorder %v1173, 0.0031308
        %vm2198 = vcmp.lt.f32.partialorder %v1174, 0.0031308
        %vm2199 = vcmp.lt.f32.partialorder %v1175, 0.0031308
        %vm2200 = vcmp.lt.f32.partialorder %v1176, 0.0031308
        %vm2201 = vcmp.lt.f32.partialorder %v1177, 0.0031308
        %v2202 = vmul.f32 %v154, 12.92
        %v2203 = vmul.f32 %v155, 12.92
        %v2204 = vmul.f32 %v156, 12.92
        %v2205 = vmul.f32 %v157, 12.92
        %v2206 = vmul.f32 %v158, 12.92
        %v2207 = vmul.f32 %v159, 12.92
        %v2208 = vmul.f32 %v160, 12.92
        %v2209 = vmul.f32 %v161, 12.92
        %v2210 = vmul.f32 %v162, 12.92
        %v2211 = vmul.f32 %v163, 12.92
        %v2212 = vmul.f32 %v164, 12.92
        %v2213 = vmul.f32 %v165, 12.92
        %v2214 = vmul.f32 %v166, 12.92
        %v2215 = vmul.f32 %v167, 12.92
        %v2216 = vmul.f32 %v168, 12.92
        %v2217 = vmul.f32 %v169, 12.92
        %v2218 = vmul.f32 %v170, 12.92
        %v2219 = vmul.f32 %v171, 12.92
        %v2220 = vmul.f32 %v172, 12.92
        %v2221 = vmul.f32 %v173, 12.92
        %v2222 = vmul.f32 %v174, 12.92
        %v2223 = vmul.f32 %v175, 12.92
        %v2224 = vmul.f32 %v176, 12.92
        %v2225 = vmul.f32 %v177, 12.92
        %v2226 = vmul.f32 %v178, 12.92
        %v2227 = vmul.f32 %v179, 12.92
        %v2228 = vmul.f32 %v180, 12.92
        %v2229 = vmul.f32 %v181, 12.92
        %v2230 = vmul.f32 %v182, 12.92
        %v2231 = vmul.f32 %v183, 12.92
        %v2232 = vmul.f32 %v184, 12.92
        %v2233 = vmul.f32 %v185, 12.92
        %v2234 = vmul.f32 %v186, 12.92
        %v2235 = vmul.f32 %v187, 12.92
        %v2236 = vmul.f32 %v188, 12.92
        %v2237 = vmul.f32 %v189, 12.92
        %v2238 = vmul.f32 %v190, 12.92
        %v2239 = vmul.f32 %v191, 12.92
        %v2240 = vmul.f32 %v192, 12.92
        %v2241 = vmul.f32 %v193, 12.92
        %v2242 = vmul.f32 %v194, 12.92
        %v2243 = vmul.f32 %v195, 12.92
        %v2244 = vmul.f32 %v196, 12.92
        %v2245 = vmul.f32 %v197, 12.92
        %v2246 = vmul.f32 %v198, 12.92
        %v2247 = vmul.f32 %v199, 12.92
        %v2248 = vmul.f32 %v200, 12.92
        %v2249 = vmul.f32 %v201, 12.92
        %v2250 = vmul.f32 %v202, 12.92
        %v2251 = vmul.f32 %v203, 12.92
        %v2252 = vmul.f32 %v204, 12.92
        %v2253 = vmul.f32 %v205, 12.92
        %v2254 = vmul.f32 %v206, 12.92
        %v2255 = vmul.f32 %v207, 12.92
        %v2256 = vmul.f32 %v208, 12.92
        %v2257 = vmul.f32 %v209, 12.92
        %v2258 = vmul.f32 %v210, 12.92
        %v2259 = vmul.f32 %v211, 12.92
        %v2260 = vmul.f32 %v212, 12.92
        %v2261 = vmul.f32 %v213, 12.92
        %v2262 = vmul.f32 %v214, 12.92
        %v2263 = vmul.f32 %v215, 12.92
        %v2264 = vmul.f32 %v216, 12.92
        %v2265 = vmul.f32 %v217, 12.92
        %v2266 = vmul.f32 %v218, 12.92
        %v2267 = vmul.f32 %v219, 12.92
        %v2268 = vmul.f32 %v220, 12.92
        %v2269 = vmul.f32 %v221, 12.92
        %v2270 = vmul.f32 %v222, 12.92
        %v2271 = vmul.f32 %v223, 12.92
        %v2272 = vmul.f32 %v224, 12.92
        %v2273 = vmul.f32 %v225, 12.92
        %v2274 = vmul.f32 %v226, 12.92
        %v2275 = vmul.f32 %v227, 12.92
        %v2276 = vmul.f32 %v228, 12.92
        %v2277 = vmul.f32 %v229, 12.92
        %v2278 = vmul.f32 %v230, 12.92
        %v2279 = vmul.f32 %v231, 12.92
        %v2280 = vmul.f32 %v232, 12.92
        %v2281 = vmul.f32 %v233, 12.92
        %v2282 = vmul.f32 %v234, 12.92
        %v2283 = vmul.f32 %v235, 12.92
        %v2284 = vmul.f32 %v236, 12.92
        %v2285 = vmul.f32 %v237, 12.92
        %v2286 = vmul.f32 %v238, 12.92
        %v2287 = vmul.f32 %v239, 12.92
        %v2288 = vmul.f32 %v240, 12.92
        %v2289 = vmul.f32 %v241, 12.92
        %v2290 = vmul.f32 %v242, 12.92
        %v2291 = vmul.f32 %v243, 12.92
        %v2292 = vmul.f32 %v244, 12.92
        %v2293 = vmul.f32 %v245, 12.92
        %v2294 = vmul.f32 %v246, 12.92
        %v2295 = vmul.f32 %v247, 12.92
        %v2296 = vmul.f32 %v248, 12.92
        %v2297 = vmul.f32 %v249, 12.92
        %v2298 = vmul.f32 %v250, 12.92
        %v2299 = vmul.f32 %v251, 12.92
        %v2300 = vmul.f32 %v252, 12.92
        %v2301 = vmul.f32 %v253, 12.92
        %v2302 = vmul.f32 %v254, 12.92
        %v2303 = vmul.f32 %v255, 12.92
        %v2304 = vmul.f32 %v256, 12.92
        %v2305 = vmul.f32 %v257, 12.92
        %v2306 = vmul.f32 %v258, 12.92
        %v2307 = vmul.f32 %v259, 12.92
        %v2308 = vmul.f32 %v260, 12.92
        %v2309 = vmul.f32 %v261, 12.92
        %v2310 = vmul.f32 %v262, 12.92
        %v2311 = vmul.f32 %v263, 12.92
        %v2312 = vmul.f32 %v264, 12.92
        %v2313 = vmul.f32 %v265, 12.92
        %v2314 = vmul.f32 %v266, 12.92
        %v2315 = vmul.f32 %v267, 12.92
        %v2316 = vmul.f32 %v268, 12.92
        %v2317 = vmul.f32 %v269, 12.92
        %v2318 = vmul.f32 %v270, 12.92
        %v2319 = vmul.f32 %v271, 12.92
        %v2320 = vmul.f32 %v272, 12.92
        %v2321 = vmul.f32 %v273, 12.92
        %v2322 = vmul.f32 %v274, 12.92
        %v2323 = vmul.f32 %v275, 12.92
        %v2324 = vmul.f32 %v276, 12.92
        %v2325 = vmul.f32 %v277, 12.92
        %v2326 = vmul.f32 %v278, 12.92
        %v2327 = vmul.f32 %v279, 12.92
        %v2328 = vmul.f32 %v280, 12.92
        %v2329 = vmul.f32 %v281, 12.92
        %v2330 = vmul.f32 %v282, 12.92
        %v2331 = vmul.f32 %v283, 12.92
        %v2332 = vmul.f32 %v284, 12.92
        %v2333 = vmul.f32 %v285, 12.92
        %v2334 = vmul.f32 %v286, 12.92
        %v2335 = vmul.f32 %v287, 12.92
        %v2336 = vmul.f32 %v288, 12.92
        %v2337 = vmul.f32 %v289, 12.92
        %v2338 = vmul.f32 %v290, 12.92
        %v2339 = vmul.f32 %v291, 12.92
        %v2340 = vmul.f32 %v292, 12.92
        %v2341 = vmul.f32 %v293, 12.92
        %v2342 = vmul.f32 %v294, 12.92
        %v2343 = vmul.f32 %v295, 12.92
        %v2344 = vmul.f32 %v296, 12.92
        %v2345 = vmul.f32 %v297, 12.92
        %v2346 = vmul.f32 %v298, 12.92
        %v2347 = vmul.f32 %v299, 12.92
        %v2348 = vmul.f32 %v300, 12.92
        %v2349 = vmul.f32 %v301, 12.92
        %v2350 = vmul.f32 %v302, 12.92
        %v2351 = vmul.f32 %v303, 12.92
        %v2352 = vmul.f32 %v304, 12.92
        %v2353 = vmul.f32 %v305, 12.92
        %v2354 = vmul.f32 %v306, 12.92
        %v2355 = vmul.f32 %v307, 12.92
        %v2356 = vmul.f32 %v308, 12.92
        %v2357 = vmul.f32 %v309, 12.92
        %v2358 = vmul.f32 %v310, 12.92
        %v2359 = vmul.f32 %v311, 12.92
        %v2360 = vmul.f32 %v312, 12.92
        %v2361 = vmul.f32 %v313, 12.92
        %v2362 = vmul.f32 %v314, 12.92
        %v2363 = vmul.f32 %v315, 12.92
        %v2364 = vmul.f32 %v316, 12.92
        %v2365 = vmul.f32 %v317, 12.92
        %v2366 = vmul.f32 %v318, 12.92
        %v2367 = vmul.f32 %v319, 12.92
        %v2368 = vmul.f32 %v320, 12.92
        %v2369 = vmul.f32 %v321, 12.92
        %v2370 = vmul.f32 %v322, 12.92
        %v2371 = vmul.f32 %v323, 12.92
        %v2372 = vmul.f32 %v324, 12.92
        %v2373 = vmul.f32 %v325, 12.92
        %v2374 = vmul.f32 %v326, 12.92
        %v2375 = vmul.f32 %v327, 12.92
        %v2376 = vmul.f32 %v328, 12.92
        %v2377 = vmul.f32 %v329, 12.92
        %v2378 = vmul.f32 %v330, 12.92
        %v2379 = vmul.f32 %v331, 12.92
        %v2380 = vmul.f32 %v332, 12.92
        %v2381 = vmul.f32 %v333, 12.92
        %v2382 = vmul.f32 %v334, 12.92
        %v2383 = vmul.f32 %v335, 12.92
        %v2384 = vmul.f32 %v336, 12.92
        %v2385 = vmul.f32 %v337, 12.92
        %v2386 = vmul.f32 %v338, 12.92
        %v2387 = vmul.f32 %v339, 12.92
        %v2388 = vmul.f32 %v340, 12.92
        %v2389 = vmul.f32 %v341, 12.92
        %v2390 = vmul.f32 %v342, 12.92
        %v2391 = vmul.f32 %v343, 12.92
        %v2392 = vmul.f32 %v344, 12.92
        %v2393 = vmul.f32 %v345, 12.92
        %v2394 = vmul.f32 %v346, 12.92
        %v2395 = vmul.f32 %v347, 12.92
        %v2396 = vmul.f32 %v348, 12.92
        %v2397 = vmul.f32 %v349, 12.92
        %v2398 = vmul.f32 %v350, 12.92
        %v2399 = vmul.f32 %v351, 12.92
        %v2400 = vmul.f32 %v352, 12.92
        %v2401 = vmul.f32 %v353, 12.92
        %v2402 = vmul.f32 %v354, 12.92
        %v2403 = vmul.f32 %v355, 12.92
        %v2404 = vmul.f32 %v356, 12.92
        %v2405 = vmul.f32 %v357, 12.92
        %v2406 = vmul.f32 %v358, 12.92
        %v2407 = vmul.f32 %v359, 12.92
        %v2408 = vmul.f32 %v360, 12.92
        %v2409 = vmul.f32 %v361, 12.92
        %v2410 = vmul.f32 %v362, 12.92
        %v2411 = vmul.f32 %v363, 12.92
        %v2412 = vmul.f32 %v364, 12.92
        %v2413 = vmul.f32 %v365, 12.92
        %v2414 = vmul.f32 %v366, 12.92
        %v2415 = vmul.f32 %v367, 12.92
        %v2416 = vmul.f32 %v368, 12.92
        %v2417 = vmul.f32 %v369, 12.92
        %v2418 = vmul.f32 %v370, 12.92
        %v2419 = vmul.f32 %v371, 12.92
        %v2420 = vmul.f32 %v372, 12.92
        %v2421 = vmul.f32 %v373, 12.92
        %v2422 = vmul.f32 %v374, 12.92
        %v2423 = vmul.f32 %v375, 12.92
        %v2424 = vmul.f32 %v376, 12.92
        %v2425 = vmul.f32 %v377, 12.92
        %v2426 = vmul.f32 %v378, 12.92
        %v2427 = vmul.f32 %v379, 12.92
        %v2428 = vmul.f32 %v380, 12.92
        %v2429 = vmul.f32 %v381, 12.92
        %v2430 = vmul.f32 %v382, 12.92
        %v2431 = vmul.f32 %v383, 12.92
        %v2432 = vmul.f32 %v384, 12.92
        %v2433 = vmul.f32 %v385, 12.92
        %v2434 = vmul.f32 %v386, 12.92
        %v2435 = vmul.f32 %v387, 12.92
        %v2436 = vmul.f32 %v388, 12.92
        %v2437 = vmul.f32 %v389, 12.92
        %v2438 = vmul.f32 %v390, 12.92
        %v2439 = vmul.f32 %v391, 12.92
        %v2440 = vmul.f32 %v392, 12.92
        %v2441 = vmul.f32 %v393, 12.92
        %v2442 = vmul.f32 %v394, 12.92
        %v2443 = vmul.f32 %v395, 12.92
        %v2444 = vmul.f32 %v396, 12.92
        %v2445 = vmul.f32 %v397, 12.92
        %v2446 = vmul.f32 %v398, 12.92
        %v2447 = vmul.f32 %v399, 12.92
        %v2448 = vmul.f32 %v400, 12.92
        %v2449 = vmul.f32 %v401, 12.92
        %v2450 = vmul.f32 %v402, 12.92
        %v2451 = vmul.f32 %v403, 12.92
        %v2452 = vmul.f32 %v404, 12.92
        %v2453 = vmul.f32 %v405, 12.92
        %v2454 = vmul.f32 %v406, 12.92
        %v2455 = vmul.f32 %v407, 12.92
        %v2456 = vmul.f32 %v408, 12.92
        %v2457 = vmul.f32 %v409, 12.92
        %v2458 = vmul.f32 %v410, 12.92
        %v2459 = vmul.f32 %v411, 12.92
        %v2460 = vmul.f32 %v412, 12.92
        %v2461 = vmul.f32 %v413, 12.92
        %v2462 = vmul.f32 %v414, 12.92
        %v2463 = vmul.f32 %v415, 12.92
        %v2464 = vmul.f32 %v416, 12.92
        %v2465 = vmul.f32 %v417, 12.92
        %v2466 = vmul.f32 %v418, 12.92
        %v2467 = vmul.f32 %v419, 12.92
        %v2468 = vmul.f32 %v420, 12.92
        %v2469 = vmul.f32 %v421, 12.92
        %v2470 = vmul.f32 %v422, 12.92
        %v2471 = vmul.f32 %v423, 12.92
        %v2472 = vmul.f32 %v424, 12.92
        %v2473 = vmul.f32 %v425, 12.92
        %v2474 = vmul.f32 %v426, 12.92
        %v2475 = vmul.f32 %v427, 12.92
        %v2476 = vmul.f32 %v428, 12.92
        %v2477 = vmul.f32 %v429, 12.92
        %v2478 = vmul.f32 %v430, 12.92
        %v2479 = vmul.f32 %v431, 12.92
        %v2480 = vmul.f32 %v432, 12.92
        %v2481 = vmul.f32 %v433, 12.92
        %v2482 = vmul.f32 %v434, 12.92
        %v2483 = vmul.f32 %v435, 12.92
        %v2484 = vmul.f32 %v436, 12.92
        %v2485 = vmul.f32 %v437, 12.92
        %v2486 = vmul.f32 %v438, 12.92
        %v2487 = vmul.f32 %v439, 12.92
        %v2488 = vmul.f32 %v440, 12.92
        %v2489 = vmul.f32 %v441, 12.92
        %v2490 = vmul.f32 %v442, 12.92
        %v2491 = vmul.f32 %v443, 12.92
        %v2492 = vmul.f32 %v444, 12.92
        %v2493 = vmul.f32 %v445, 12.92
        %v2494 = vmul.f32 %v446, 12.92
        %v2495 = vmul.f32 %v447, 12.92
        %v2496 = vmul.f32 %v448, 12.92
        %v2497 = vmul.f32 %v449, 12.92
        %v2498 = vmul.f32 %v450, 12.92
        %v2499 = vmul.f32 %v451, 12.92
        %v2500 = vmul.f32 %v452, 12.92
        %v2501 = vmul.f32 %v453, 12.92
        %v2502 = vmul.f32 %v454, 12.92
        %v2503 = vmul.f32 %v455, 12.92
        %v2504 = vmul.f32 %v456, 12.92
        %v2505 = vmul.f32 %v457, 12.92
        %v2506 = vmul.f32 %v458, 12.92
        %v2507 = vmul.f32 %v459, 12.92
        %v2508 = vmul.f32 %v460, 12.92
        %v2509 = vmul.f32 %v461, 12.92
        %v2510 = vmul.f32 %v462, 12.92
        %v2511 = vmul.f32 %v463, 12.92
        %v2512 = vmul.f32 %v464, 12.92
        %v2513 = vmul.f32 %v465, 12.92
        %v2514 = vmul.f32 %v466, 12.92
        %v2515 = vmul.f32 %v467, 12.92
        %v2516 = vmul.f32 %v468, 12.92
        %v2517 = vmul.f32 %v469, 12.92
        %v2518 = vmul.f32 %v470, 12.92
        %v2519 = vmul.f32 %v471, 12.92
        %v2520 = vmul.f32 %v472, 12.92
        %v2521 = vmul.f32 %v473, 12.92
        %v2522 = vmul.f32 %v474, 12.92
        %v2523 = vmul.f32 %v475, 12.92
        %v2524 = vmul.f32 %v476, 12.92
        %v2525 = vmul.f32 %v477, 12.92
        %v2526 = vmul.f32 %v478, 12.92
        %v2527 = vmul.f32 %v479, 12.92
        %v2528 = vmul.f32 %v480, 12.92
        %v2529 = vmul.f32 %v481, 12.92
        %v2530 = vmul.f32 %v482, 12.92
        %v2531 = vmul.f32 %v483, 12.92
        %v2532 = vmul.f32 %v484, 12.92
        %v2533 = vmul.f32 %v485, 12.92
        %v2534 = vmul.f32 %v486, 12.92
        %v2535 = vmul.f32 %v487, 12.92
        %v2536 = vmul.f32 %v488, 12.92
        %v2537 = vmul.f32 %v489, 12.92
        %v2538 = vmul.f32 %v490, 12.92
        %v2539 = vmul.f32 %v491, 12.92
        %v2540 = vmul.f32 %v492, 12.92
        %v2541 = vmul.f32 %v493, 12.92
        %v2542 = vmul.f32 %v494, 12.92
        %v2543 = vmul.f32 %v495, 12.92
        %v2544 = vmul.f32 %v496, 12.92
        %v2545 = vmul.f32 %v497, 12.92
        %v2546 = vmul.f32 %v498, 12.92
        %v2547 = vmul.f32 %v499, 12.92
        %v2548 = vmul.f32 %v500, 12.92
        %v2549 = vmul.f32 %v501, 12.92
        %v2550 = vmul.f32 %v502, 12.92
        %v2551 = vmul.f32 %v503, 12.92
        %v2552 = vmul.f32 %v504, 12.92
        %v2553 = vmul.f32 %v505, 12.92
        %v2554 = vmul.f32 %v506, 12.92
        %v2555 = vmul.f32 %v507, 12.92
        %v2556 = vmul.f32 %v508, 12.92
        %v2557 = vmul.f32 %v509, 12.92
        %v2558 = vmul.f32 %v510, 12.92
        %v2559 = vmul.f32 %v511, 12.92
        %v2560 = vmul.f32 %v512, 12.92
        %v2561 = vmul.f32 %v513, 12.92
        %v2562 = vmul.f32 %v514, 12.92
        %v2563 = vmul.f32 %v515, 12.92
        %v2564 = vmul.f32 %v516, 12.92
        %v2565 = vmul.f32 %v517, 12.92
        %v2566 = vmul.f32 %v518, 12.92
        %v2567 = vmul.f32 %v519, 12.92
        %v2568 = vmul.f32 %v520, 12.92
        %v2569 = vmul.f32 %v521, 12.92
        %v2570 = vmul.f32 %v522, 12.92
        %v2571 = vmul.f32 %v523, 12.92
        %v2572 = vmul.f32 %v524, 12.92
        %v2573 = vmul.f32 %v525, 12.92
        %v2574 = vmul.f32 %v526, 12.92
        %v2575 = vmul.f32 %v527, 12.92
        %v2576 = vmul.f32 %v528, 12.92
        %v2577 = vmul.f32 %v529, 12.92
        %v2578 = vmul.f32 %v530, 12.92
        %v2579 = vmul.f32 %v531, 12.92
        %v2580 = vmul.f32 %v532, 12.92
        %v2581 = vmul.f32 %v533, 12.92
        %v2582 = vmul.f32 %v534, 12.92
        %v2583 = vmul.f32 %v535, 12.92
        %v2584 = vmul.f32 %v536, 12.92
        %v2585 = vmul.f32 %v537, 12.92
        %v2586 = vmul.f32 %v538, 12.92
        %v2587 = vmul.f32 %v539, 12.92
        %v2588 = vmul.f32 %v540, 12.92
        %v2589 = vmul.f32 %v541, 12.92
        %v2590 = vmul.f32 %v542, 12.92
        %v2591 = vmul.f32 %v543, 12.92
        %v2592 = vmul.f32 %v544, 12.92
        %v2593 = vmul.f32 %v545, 12.92
        %v2594 = vmul.f32 %v546, 12.92
        %v2595 = vmul.f32 %v547, 12.92
        %v2596 = vmul.f32 %v548, 12.92
        %v2597 = vmul.f32 %v549, 12.92
        %v2598 = vmul.f32 %v550, 12.92
        %v2599 = vmul.f32 %v551, 12.92
        %v2600 = vmul.f32 %v552, 12.92
        %v2601 = vmul.f32 %v553, 12.92
        %v2602 = vmul.f32 %v554, 12.92
        %v2603 = vmul.f32 %v555, 12.92
        %v2604 = vmul.f32 %v556, 12.92
        %v2605 = vmul.f32 %v557, 12.92
        %v2606 = vmul.f32 %v558, 12.92
        %v2607 = vmul.f32 %v559, 12.92
        %v2608 = vmul.f32 %v560, 12.92
        %v2609 = vmul.f32 %v561, 12.92
        %v2610 = vmul.f32 %v562, 12.92
        %v2611 = vmul.f32 %v563, 12.92
        %v2612 = vmul.f32 %v564, 12.92
        %v2613 = vmul.f32 %v565, 12.92
        %v2614 = vmul.f32 %v566, 12.92
        %v2615 = vmul.f32 %v567, 12.92
        %v2616 = vmul.f32 %v568, 12.92
        %v2617 = vmul.f32 %v569, 12.92
        %v2618 = vmul.f32 %v570, 12.92
        %v2619 = vmul.f32 %v571, 12.92
        %v2620 = vmul.f32 %v572, 12.92
        %v2621 = vmul.f32 %v573, 12.92
        %v2622 = vmul.f32 %v574, 12.92
        %v2623 = vmul.f32 %v575, 12.92
        %v2624 = vmul.f32 %v576, 12.92
        %v2625 = vmul.f32 %v577, 12.92
        %v2626 = vmul.f32 %v578, 12.92
        %v2627 = vmul.f32 %v579, 12.92
        %v2628 = vmul.f32 %v580, 12.92
        %v2629 = vmul.f32 %v581, 12.92
        %v2630 = vmul.f32 %v582, 12.92
        %v2631 = vmul.f32 %v583, 12.92
        %v2632 = vmul.f32 %v584, 12.92
        %v2633 = vmul.f32 %v585, 12.92
        %v2634 = vmul.f32 %v586, 12.92
        %v2635 = vmul.f32 %v587, 12.92
        %v2636 = vmul.f32 %v588, 12.92
        %v2637 = vmul.f32 %v589, 12.92
        %v2638 = vmul.f32 %v590, 12.92
        %v2639 = vmul.f32 %v591, 12.92
        %v2640 = vmul.f32 %v592, 12.92
        %v2641 = vmul.f32 %v593, 12.92
        %v2642 = vmul.f32 %v594, 12.92
        %v2643 = vmul.f32 %v595, 12.92
        %v2644 = vmul.f32 %v596, 12.92
        %v2645 = vmul.f32 %v597, 12.92
        %v2646 = vmul.f32 %v598, 12.92
        %v2647 = vmul.f32 %v599, 12.92
        %v2648 = vmul.f32 %v600, 12.92
        %v2649 = vmul.f32 %v601, 12.92
        %v2650 = vmul.f32 %v602, 12.92
        %v2651 = vmul.f32 %v603, 12.92
        %v2652 = vmul.f32 %v604, 12.92
        %v2653 = vmul.f32 %v605, 12.92
        %v2654 = vmul.f32 %v606, 12.92
        %v2655 = vmul.f32 %v607, 12.92
        %v2656 = vmul.f32 %v608, 12.92
        %v2657 = vmul.f32 %v609, 12.92
        %v2658 = vmul.f32 %v610, 12.92
        %v2659 = vmul.f32 %v611, 12.92
        %v2660 = vmul.f32 %v612, 12.92
        %v2661 = vmul.f32 %v613, 12.92
        %v2662 = vmul.f32 %v614, 12.92
        %v2663 = vmul.f32 %v615, 12.92
        %v2664 = vmul.f32 %v616, 12.92
        %v2665 = vmul.f32 %v617, 12.92
        %v2666 = vmul.f32 %v618, 12.92
        %v2667 = vmul.f32 %v619, 12.92
        %v2668 = vmul.f32 %v620, 12.92
        %v2669 = vmul.f32 %v621, 12.92
        %v2670 = vmul.f32 %v622, 12.92
        %v2671 = vmul.f32 %v623, 12.92
        %v2672 = vmul.f32 %v624, 12.92
        %v2673 = vmul.f32 %v625, 12.92
        %v2674 = vmul.f32 %v626, 12.92
        %v2675 = vmul.f32 %v627, 12.92
        %v2676 = vmul.f32 %v628, 12.92
        %v2677 = vmul.f32 %v629, 12.92
        %v2678 = vmul.f32 %v630, 12.92
        %v2679 = vmul.f32 %v631, 12.92
        %v2680 = vmul.f32 %v632, 12.92
        %v2681 = vmul.f32 %v633, 12.92
        %v2682 = vmul.f32 %v634, 12.92
        %v2683 = vmul.f32 %v635, 12.92
        %v2684 = vmul.f32 %v636, 12.92
        %v2685 = vmul.f32 %v637, 12.92
        %v2686 = vmul.f32 %v638, 12.92
        %v2687 = vmul.f32 %v639, 12.92
        %v2688 = vmul.f32 %v640, 12.92
        %v2689 = vmul.f32 %v641, 12.92
        %v2690 = vmul.f32 %v642, 12.92
        %v2691 = vmul.f32 %v643, 12.92
        %v2692 = vmul.f32 %v644, 12.92
        %v2693 = vmul.f32 %v645, 12.92
        %v2694 = vmul.f32 %v646, 12.92
        %v2695 = vmul.f32 %v647, 12.92
        %v2696 = vmul.f32 %v648, 12.92
        %v2697 = vmul.f32 %v649, 12.92
        %v2698 = vmul.f32 %v650, 12.92
        %v2699 = vmul.f32 %v651, 12.92
        %v2700 = vmul.f32 %v652, 12.92
        %v2701 = vmul.f32 %v653, 12.92
        %v2702 = vmul.f32 %v654, 12.92
        %v2703 = vmul.f32 %v655, 12.92
        %v2704 = vmul.f32 %v656, 12.92
        %v2705 = vmul.f32 %v657, 12.92
        %v2706 = vmul.f32 %v658, 12.92
        %v2707 = vmul.f32 %v659, 12.92
        %v2708 = vmul.f32 %v660, 12.92
        %v2709 = vmul.f32 %v661, 12.92
        %v2710 = vmul.f32 %v662, 12.92
        %v2711 = vmul.f32 %v663, 12.92
        %v2712 = vmul.f32 %v664, 12.92
        %v2713 = vmul.f32 %v665, 12.92
        %v2714 = vmul.f32 %v666, 12.92
        %v2715 = vmul.f32 %v667, 12.92
        %v2716 = vmul.f32 %v668, 12.92
        %v2717 = vmul.f32 %v669, 12.92
        %v2718 = vmul.f32 %v670, 12.92
        %v2719 = vmul.f32 %v671, 12.92
        %v2720 = vmul.f32 %v672, 12.92
        %v2721 = vmul.f32 %v673, 12.92
        %v2722 = vmul.f32 %v674, 12.92
        %v2723 = vmul.f32 %v675, 12.92
        %v2724 = vmul.f32 %v676, 12.92
        %v2725 = vmul.f32 %v677, 12.92
        %v2726 = vmul.f32 %v678, 12.92
        %v2727 = vmul.f32 %v679, 12.92
        %v2728 = vmul.f32 %v680, 12.92
        %v2729 = vmul.f32 %v681, 12.92
        %v2730 = vmul.f32 %v682, 12.92
        %v2731 = vmul.f32 %v683, 12.92
        %v2732 = vmul.f32 %v684, 12.92
        %v2733 = vmul.f32 %v685, 12.92
        %v2734 = vmul.f32 %v686, 12.92
        %v2735 = vmul.f32 %v687, 12.92
        %v2736 = vmul.f32 %v688, 12.92
        %v2737 = vmul.f32 %v689, 12.92
        %v2738 = vmul.f32 %v690, 12.92
        %v2739 = vmul.f32 %v691, 12.92
        %v2740 = vmul.f32 %v692, 12.92
        %v2741 = vmul.f32 %v693, 12.92
        %v2742 = vmul.f32 %v694, 12.92
        %v2743 = vmul.f32 %v695, 12.92
        %v2744 = vmul.f32 %v696, 12.92
        %v2745 = vmul.f32 %v697, 12.92
        %v2746 = vmul.f32 %v698, 12.92
        %v2747 = vmul.f32 %v699, 12.92
        %v2748 = vmul.f32 %v700, 12.92
        %v2749 = vmul.f32 %v701, 12.92
        %v2750 = vmul.f32 %v702, 12.92
        %v2751 = vmul.f32 %v703, 12.92
        %v2752 = vmul.f32 %v704, 12.92
        %v2753 = vmul.f32 %v705, 12.92
        %v2754 = vmul.f32 %v706, 12.92
        %v2755 = vmul.f32 %v707, 12.92
        %v2756 = vmul.f32 %v708, 12.92
        %v2757 = vmul.f32 %v709, 12.92
        %v2758 = vmul.f32 %v710, 12.92
        %v2759 = vmul.f32 %v711, 12.92
        %v2760 = vmul.f32 %v712, 12.92
        %v2761 = vmul.f32 %v713, 12.92
        %v2762 = vmul.f32 %v714, 12.92
        %v2763 = vmul.f32 %v715, 12.92
        %v2764 = vmul.f32 %v716, 12.92
        %v2765 = vmul.f32 %v717, 12.92
        %v2766 = vmul.f32 %v718, 12.92
        %v2767 = vmul.f32 %v719, 12.92
        %v2768 = vmul.f32 %v720, 12.92
        %v2769 = vmul.f32 %v721, 12.92
        %v2770 = vmul.f32 %v722, 12.92
        %v2771 = vmul.f32 %v723, 12.92
        %v2772 = vmul.f32 %v724, 12.92
        %v2773 = vmul.f32 %v725, 12.92
        %v2774 = vmul.f32 %v726, 12.92
        %v2775 = vmul.f32 %v727, 12.92
        %v2776 = vmul.f32 %v728, 12.92
        %v2777 = vmul.f32 %v729, 12.92
        %v2778 = vmul.f32 %v730, 12.92
        %v2779 = vmul.f32 %v731, 12.92
        %v2780 = vmul.f32 %v732, 12.92
        %v2781 = vmul.f32 %v733, 12.92
        %v2782 = vmul.f32 %v734, 12.92
        %v2783 = vmul.f32 %v735, 12.92
        %v2784 = vmul.f32 %v736, 12.92
        %v2785 = vmul.f32 %v737, 12.92
        %v2786 = vmul.f32 %v738, 12.92
        %v2787 = vmul.f32 %v739, 12.92
        %v2788 = vmul.f32 %v740, 12.92
        %v2789 = vmul.f32 %v741, 12.92
        %v2790 = vmul.f32 %v742, 12.92
        %v2791 = vmul.f32 %v743, 12.92
        %v2792 = vmul.f32 %v744, 12.92
        %v2793 = vmul.f32 %v745, 12.92
        %v2794 = vmul.f32 %v746, 12.92
        %v2795 = vmul.f32 %v747, 12.92
        %v2796 = vmul.f32 %v748, 12.92
        %v2797 = vmul.f32 %v749, 12.92
        %v2798 = vmul.f32 %v750, 12.92
        %v2799 = vmul.f32 %v751, 12.92
        %v2800 = vmul.f32 %v752, 12.92
        %v2801 = vmul.f32 %v753, 12.92
        %v2802 = vmul.f32 %v754, 12.92
        %v2803 = vmul.f32 %v755, 12.92
        %v2804 = vmul.f32 %v756, 12.92
        %v2805 = vmul.f32 %v757, 12.92
        %v2806 = vmul.f32 %v758, 12.92
        %v2807 = vmul.f32 %v759, 12.92
        %v2808 = vmul.f32 %v760, 12.92
        %v2809 = vmul.f32 %v761, 12.92
        %v2810 = vmul.f32 %v762, 12.92
        %v2811 = vmul.f32 %v763, 12.92
        %v2812 = vmul.f32 %v764, 12.92
        %v2813 = vmul.f32 %v765, 12.92
        %v2814 = vmul.f32 %v766, 12.92
        %v2815 = vmul.f32 %v767, 12.92
        %v2816 = vmul.f32 %v768, 12.92
        %v2817 = vmul.f32 %v769, 12.92
        %v2818 = vmul.f32 %v770, 12.92
        %v2819 = vmul.f32 %v771, 12.92
        %v2820 = vmul.f32 %v772, 12.92
        %v2821 = vmul.f32 %v773, 12.92
        %v2822 = vmul.f32 %v774, 12.92
        %v2823 = vmul.f32 %v775, 12.92
        %v2824 = vmul.f32 %v776, 12.92
        %v2825 = vmul.f32 %v777, 12.92
        %v2826 = vmul.f32 %v778, 12.92
        %v2827 = vmul.f32 %v779, 12.92
        %v2828 = vmul.f32 %v780, 12.92
        %v2829 = vmul.f32 %v781, 12.92
        %v2830 = vmul.f32 %v782, 12.92
        %v2831 = vmul.f32 %v783, 12.92
        %v2832 = vmul.f32 %v784, 12.92
        %v2833 = vmul.f32 %v785, 12.92
        %v2834 = vmul.f32 %v786, 12.92
        %v2835 = vmul.f32 %v787, 12.92
        %v2836 = vmul.f32 %v788, 12.92
        %v2837 = vmul.f32 %v789, 12.92
        %v2838 = vmul.f32 %v790, 12.92
        %v2839 = vmul.f32 %v791, 12.92
        %v2840 = vmul.f32 %v792, 12.92
        %v2841 = vmul.f32 %v793, 12.92
        %v2842 = vmul.f32 %v794, 12.92
        %v2843 = vmul.f32 %v795, 12.92
        %v2844 = vmul.f32 %v796, 12.92
        %v2845 = vmul.f32 %v797, 12.92
        %v2846 = vmul.f32 %v798, 12.92
        %v2847 = vmul.f32 %v799, 12.92
        %v2848 = vmul.f32 %v800, 12.92
        %v2849 = vmul.f32 %v801, 12.92
        %v2850 = vmul.f32 %v802, 12.92
        %v2851 = vmul.f32 %v803, 12.92
        %v2852 = vmul.f32 %v804, 12.92
        %v2853 = vmul.f32 %v805, 12.92
        %v2854 = vmul.f32 %v806, 12.92
        %v2855 = vmul.f32 %v807, 12.92
        %v2856 = vmul.f32 %v808, 12.92
        %v2857 = vmul.f32 %v809, 12.92
        %v2858 = vmul.f32 %v810, 12.92
        %v2859 = vmul.f32 %v811, 12.92
        %v2860 = vmul.f32 %v812, 12.92
        %v2861 = vmul.f32 %v813, 12.92
        %v2862 = vmul.f32 %v814, 12.92
        %v2863 = vmul.f32 %v815, 12.92
        %v2864 = vmul.f32 %v816, 12.92
        %v2865 = vmul.f32 %v817, 12.92
        %v2866 = vmul.f32 %v818, 12.92
        %v2867 = vmul.f32 %v819, 12.92
        %v2868 = vmul.f32 %v820, 12.92
        %v2869 = vmul.f32 %v821, 12.92
        %v2870 = vmul.f32 %v822, 12.92
        %v2871 = vmul.f32 %v823, 12.92
        %v2872 = vmul.f32 %v824, 12.92
        %v2873 = vmul.f32 %v825, 12.92
        %v2874 = vmul.f32 %v826, 12.92
        %v2875 = vmul.f32 %v827, 12.92
        %v2876 = vmul.f32 %v828, 12.92
        %v2877 = vmul.f32 %v829, 12.92
        %v2878 = vmul.f32 %v830, 12.92
        %v2879 = vmul.f32 %v831, 12.92
        %v2880 = vmul.f32 %v832, 12.92
        %v2881 = vmul.f32 %v833, 12.92
        %v2882 = vmul.f32 %v834, 12.92
        %v2883 = vmul.f32 %v835, 12.92
        %v2884 = vmul.f32 %v836, 12.92
        %v2885 = vmul.f32 %v837, 12.92
        %v2886 = vmul.f32 %v838, 12.92
        %v2887 = vmul.f32 %v839, 12.92
        %v2888 = vmul.f32 %v840, 12.92
        %v2889 = vmul.f32 %v841, 12.92
        %v2890 = vmul.f32 %v842, 12.92
        %v2891 = vmul.f32 %v843, 12.92
        %v2892 = vmul.f32 %v844, 12.92
        %v2893 = vmul.f32 %v845, 12.92
        %v2894 = vmul.f32 %v846, 12.92
        %v2895 = vmul.f32 %v847, 12.92
        %v2896 = vmul.f32 %v848, 12.92
        %v2897 = vmul.f32 %v849, 12.92
        %v2898 = vmul.f32 %v850, 12.92
        %v2899 = vmul.f32 %v851, 12.92
        %v2900 = vmul.f32 %v852, 12.92
        %v2901 = vmul.f32 %v853, 12.92
        %v2902 = vmul.f32 %v854, 12.92
        %v2903 = vmul.f32 %v855, 12.92
        %v2904 = vmul.f32 %v856, 12.92
        %v2905 = vmul.f32 %v857, 12.92
        %v2906 = vmul.f32 %v858, 12.92
        %v2907 = vmul.f32 %v859, 12.92
        %v2908 = vmul.f32 %v860, 12.92
        %v2909 = vmul.f32 %v861, 12.92
        %v2910 = vmul.f32 %v862, 12.92
        %v2911 = vmul.f32 %v863, 12.92
        %v2912 = vmul.f32 %v864, 12.92
        %v2913 = vmul.f32 %v865, 12.92
        %v2914 = vmul.f32 %v866, 12.92
        %v2915 = vmul.f32 %v867, 12.92
        %v2916 = vmul.f32 %v868, 12.92
        %v2917 = vmul.f32 %v869, 12.92
        %v2918 = vmul.f32 %v870, 12.92
        %v2919 = vmul.f32 %v871, 12.92
        %v2920 = vmul.f32 %v872, 12.92
        %v2921 = vmul.f32 %v873, 12.92
        %v2922 = vmul.f32 %v874, 12.92
        %v2923 = vmul.f32 %v875, 12.92
        %v2924 = vmul.f32 %v876, 12.92
        %v2925 = vmul.f32 %v877, 12.92
        %v2926 = vmul.f32 %v878, 12.92
        %v2927 = vmul.f32 %v879, 12.92
        %v2928 = vmul.f32 %v880, 12.92
        %v2929 = vmul.f32 %v881, 12.92
        %v2930 = vmul.f32 %v882, 12.92
        %v2931 = vmul.f32 %v883, 12.92
        %v2932 = vmul.f32 %v884, 12.92
        %v2933 = vmul.f32 %v885, 12.92
        %v2934 = vmul.f32 %v886, 12.92
        %v2935 = vmul.f32 %v887, 12.92
        %v2936 = vmul.f32 %v888, 12.92
        %v2937 = vmul.f32 %v889, 12.92
        %v2938 = vmul.f32 %v890, 12.92
        %v2939 = vmul.f32 %v891, 12.92
        %v2940 = vmul.f32 %v892, 12.92
        %v2941 = vmul.f32 %v893, 12.92
        %v2942 = vmul.f32 %v894, 12.92
        %v2943 = vmul.f32 %v895, 12.92
        %v2944 = vmul.f32 %v896, 12.92
        %v2945 = vmul.f32 %v897, 12.92
        %v2946 = vmul.f32 %v898, 12.92
        %v2947 = vmul.f32 %v899, 12.92
        %v2948 = vmul.f32 %v900, 12.92
        %v2949 = vmul.f32 %v901, 12.92
        %v2950 = vmul.f32 %v902, 12.92
        %v2951 = vmul.f32 %v903, 12.92
        %v2952 = vmul.f32 %v904, 12.92
        %v2953 = vmul.f32 %v905, 12.92
        %v2954 = vmul.f32 %v906, 12.92
        %v2955 = vmul.f32 %v907, 12.92
        %v2956 = vmul.f32 %v908, 12.92
        %v2957 = vmul.f32 %v909, 12.92
        %v2958 = vmul.f32 %v910, 12.92
        %v2959 = vmul.f32 %v911, 12.92
        %v2960 = vmul.f32 %v912, 12.92
        %v2961 = vmul.f32 %v913, 12.92
        %v2962 = vmul.f32 %v914, 12.92
        %v2963 = vmul.f32 %v915, 12.92
        %v2964 = vmul.f32 %v916, 12.92
        %v2965 = vmul.f32 %v917, 12.92
        %v2966 = vmul.f32 %v918, 12.92
        %v2967 = vmul.f32 %v919, 12.92
        %v2968 = vmul.f32 %v920, 12.92
        %v2969 = vmul.f32 %v921, 12.92
        %v2970 = vmul.f32 %v922, 12.92
        %v2971 = vmul.f32 %v923, 12.92
        %v2972 = vmul.f32 %v924, 12.92
        %v2973 = vmul.f32 %v925, 12.92
        %v2974 = vmul.f32 %v926, 12.92
        %v2975 = vmul.f32 %v927, 12.92
        %v2976 = vmul.f32 %v928, 12.92
        %v2977 = vmul.f32 %v929, 12.92
        %v2978 = vmul.f32 %v930, 12.92
        %v2979 = vmul.f32 %v931, 12.92
        %v2980 = vmul.f32 %v932, 12.92
        %v2981 = vmul.f32 %v933, 12.92
        %v2982 = vmul.f32 %v934, 12.92
        %v2983 = vmul.f32 %v935, 12.92
        %v2984 = vmul.f32 %v936, 12.92
        %v2985 = vmul.f32 %v937, 12.92
        %v2986 = vmul.f32 %v938, 12.92
        %v2987 = vmul.f32 %v939, 12.92
        %v2988 = vmul.f32 %v940, 12.92
        %v2989 = vmul.f32 %v941, 12.92
        %v2990 = vmul.f32 %v942, 12.92
        %v2991 = vmul.f32 %v943, 12.92
        %v2992 = vmul.f32 %v944, 12.92
        %v2993 = vmul.f32 %v945, 12.92
        %v2994 = vmul.f32 %v946, 12.92
        %v2995 = vmul.f32 %v947, 12.92
        %v2996 = vmul.f32 %v948, 12.92
        %v2997 = vmul.f32 %v949, 12.92
        %v2998 = vmul.f32 %v950, 12.92
        %v2999 = vmul.f32 %v951, 12.92
        %v3000 = vmul.f32 %v952, 12.92
        %v3001 = vmul.f32 %v953, 12.92
        %v3002 = vmul.f32 %v954, 12.92
        %v3003 = vmul.f32 %v955, 12.92
        %v3004 = vmul.f32 %v956, 12.92
        %v3005 = vmul.f32 %v957, 12.92
        %v3006 = vmul.f32 %v958, 12.92
        %v3007 = vmul.f32 %v959, 12.92
        %v3008 = vmul.f32 %v960, 12.92
        %v3009 = vmul.f32 %v961, 12.92
        %v3010 = vmul.f32 %v962, 12.92
        %v3011 = vmul.f32 %v963, 12.92
        %v3012 = vmul.f32 %v964, 12.92
        %v3013 = vmul.f32 %v965, 12.92
        %v3014 = vmul.f32 %v966, 12.92
        %v3015 = vmul.f32 %v967, 12.92
        %v3016 = vmul.f32 %v968, 12.92
        %v3017 = vmul.f32 %v969, 12.92
        %v3018 = vmul.f32 %v970, 12.92
        %v3019 = vmul.f32 %v971, 12.92
        %v3020 = vmul.f32 %v972, 12.92
        %v3021 = vmul.f32 %v973, 12.92
        %v3022 = vmul.f32 %v974, 12.92
        %v3023 = vmul.f32 %v975, 12.92
        %v3024 = vmul.f32 %v976, 12.92
        %v3025 = vmul.f32 %v977, 12.92
        %v3026 = vmul.f32 %v978, 12.92
        %v3027 = vmul.f32 %v979, 12.92
        %v3028 = vmul.f32 %v980, 12.92
        %v3029 = vmul.f32 %v981, 12.92
        %v3030 = vmul.f32 %v982, 12.92
        %v3031 = vmul.f32 %v983, 12.92
        %v3032 = vmul.f32 %v984, 12.92
        %v3033 = vmul.f32 %v985, 12.92
        %v3034 = vmul.f32 %v986, 12.92
        %v3035 = vmul.f32 %v987, 12.92
        %v3036 = vmul.f32 %v988, 12.92
        %v3037 = vmul.f32 %v989, 12.92
        %v3038 = vmul.f32 %v990, 12.92
        %v3039 = vmul.f32 %v991, 12.92
        %v3040 = vmul.f32 %v992, 12.92
        %v3041 = vmul.f32 %v993, 12.92
        %v3042 = vmul.f32 %v994, 12.92
        %v3043 = vmul.f32 %v995, 12.92
        %v3044 = vmul.f32 %v996, 12.92
        %v3045 = vmul.f32 %v997, 12.92
        %v3046 = vmul.f32 %v998, 12.92
        %v3047 = vmul.f32 %v999, 12.92
        %v3048 = vmul.f32 %v1000, 12.92
        %v3049 = vmul.f32 %v1001, 12.92
        %v3050 = vmul.f32 %v1002, 12.92
        %v3051 = vmul.f32 %v1003, 12.92
        %v3052 = vmul.f32 %v1004, 12.92
        %v3053 = vmul.f32 %v1005, 12.92
        %v3054 = vmul.f32 %v1006, 12.92
        %v3055 = vmul.f32 %v1007, 12.92
        %v3056 = vmul.f32 %v1008, 12.92
        %v3057 = vmul.f32 %v1009, 12.92
        %v3058 = vmul.f32 %v1010, 12.92
        %v3059 = vmul.f32 %v1011, 12.92
        %v3060 = vmul.f32 %v1012, 12.92
        %v3061 = vmul.f32 %v1013, 12.92
        %v3062 = vmul.f32 %v1014, 12.92
        %v3063 = vmul.f32 %v1015, 12.92
        %v3064 = vmul.f32 %v1016, 12.92
        %v3065 = vmul.f32 %v1017, 12.92
        %v3066 = vmul.f32 %v1018, 12.92
        %v3067 = vmul.f32 %v1019, 12.92
        %v3068 = vmul.f32 %v1020, 12.92
        %v3069 = vmul.f32 %v1021, 12.92
        %v3070 = vmul.f32 %v1022, 12.92
        %v3071 = vmul.f32 %v1023, 12.92
        %v3072 = vmul.f32 %v1024, 12.92
        %v3073 = vmul.f32 %v1025, 12.92
        %v3074 = vmul.f32 %v1026, 12.92
        %v3075 = vmul.f32 %v1027, 12.92
        %v3076 = vmul.f32 %v1028, 12.92
        %v3077 = vmul.f32 %v1029, 12.92
        %v3078 = vmul.f32 %v1030, 12.92
        %v3079 = vmul.f32 %v1031, 12.92
        %v3080 = vmul.f32 %v1032, 12.92
        %v3081 = vmul.f32 %v1033, 12.92
        %v3082 = vmul.f32 %v1034, 12.92
        %v3083 = vmul.f32 %v1035, 12.92
        %v3084 = vmul.f32 %v1036, 12.92
        %v3085 = vmul.f32 %v1037, 12.92
        %v3086 = vmul.f32 %v1038, 12.92
        %v3087 = vmul.f32 %v1039, 12.92
        %v3088 = vmul.f32 %v1040, 12.92
        %v3089 = vmul.f32 %v1041, 12.92
        %v3090 = vmul.f32 %v1042, 12.92
        %v3091 = vmul.f32 %v1043, 12.92
        %v3092 = vmul.f32 %v1044, 12.92
        %v3093 = vmul.f32 %v1045, 12.92
        %v3094 = vmul.f32 %v1046, 12.92
        %v3095 = vmul.f32 %v1047, 12.92
        %v3096 = vmul.f32 %v1048, 12.92
        %v3097 = vmul.f32 %v1049, 12.92
        %v3098 = vmul.f32 %v1050, 12.92
        %v3099 = vmul.f32 %v1051, 12.92
        %v3100 = vmul.f32 %v1052, 12.92
        %v3101 = vmul.f32 %v1053, 12.92
        %v3102 = vmul.f32 %v1054, 12.92
        %v3103 = vmul.f32 %v1055, 12.92
        %v3104 = vmul.f32 %v1056, 12.92
        %v3105 = vmul.f32 %v1057, 12.92
        %v3106 = vmul.f32 %v1058, 12.92
        %v3107 = vmul.f32 %v1059, 12.92
        %v3108 = vmul.f32 %v1060, 12.92
        %v3109 = vmul.f32 %v1061, 12.92
        %v3110 = vmul.f32 %v1062, 12.92
        %v3111 = vmul.f32 %v1063, 12.92
        %v3112 = vmul.f32 %v1064, 12.92
        %v3113 = vmul.f32 %v1065, 12.92
        %v3114 = vmul.f32 %v1066, 12.92
        %v3115 = vmul.f32 %v1067, 12.92
        %v3116 = vmul.f32 %v1068, 12.92
        %v3117 = vmul.f32 %v1069, 12.92
        %v3118 = vmul.f32 %v1070, 12.92
        %v3119 = vmul.f32 %v1071, 12.92
        %v3120 = vmul.f32 %v1072, 12.92
        %v3121 = vmul.f32 %v1073, 12.92
        %v3122 = vmul.f32 %v1074, 12.92
        %v3123 = vmul.f32 %v1075, 12.92
        %v3124 = vmul.f32 %v1076, 12.92
        %v3125 = vmul.f32 %v1077, 12.92
        %v3126 = vmul.f32 %v1078, 12.92
        %v3127 = vmul.f32 %v1079, 12.92
        %v3128 = vmul.f32 %v1080, 12.92
        %v3129 = vmul.f32 %v1081, 12.92
        %v3130 = vmul.f32 %v1082, 12.92
        %v3131 = vmul.f32 %v1083, 12.92
        %v3132 = vmul.f32 %v1084, 12.92
        %v3133 = vmul.f32 %v1085, 12.92
        %v3134 = vmul.f32 %v1086, 12.92
        %v3135 = vmul.f32 %v1087, 12.92
        %v3136 = vmul.f32 %v1088, 12.92
        %v3137 = vmul.f32 %v1089, 12.92
        %v3138 = vmul.f32 %v1090, 12.92
        %v3139 = vmul.f32 %v1091, 12.92
        %v3140 = vmul.f32 %v1092, 12.92
        %v3141 = vmul.f32 %v1093, 12.92
        %v3142 = vmul.f32 %v1094, 12.92
        %v3143 = vmul.f32 %v1095, 12.92
        %v3144 = vmul.f32 %v1096, 12.92
        %v3145 = vmul.f32 %v1097, 12.92
        %v3146 = vmul.f32 %v1098, 12.92
        %v3147 = vmul.f32 %v1099, 12.92
        %v3148 = vmul.f32 %v1100, 12.92
        %v3149 = vmul.f32 %v1101, 12.92
        %v3150 = vmul.f32 %v1102, 12.92
        %v3151 = vmul.f32 %v1103, 12.92
        %v3152 = vmul.f32 %v1104, 12.92
        %v3153 = vmul.f32 %v1105, 12.92
        %v3154 = vmul.f32 %v1106, 12.92
        %v3155 = vmul.f32 %v1107, 12.92
        %v3156 = vmul.f32 %v1108, 12.92
        %v3157 = vmul.f32 %v1109, 12.92
        %v3158 = vmul.f32 %v1110, 12.92
        %v3159 = vmul.f32 %v1111, 12.92
        %v3160 = vmul.f32 %v1112, 12.92
        %v3161 = vmul.f32 %v1113, 12.92
        %v3162 = vmul.f32 %v1114, 12.92
        %v3163 = vmul.f32 %v1115, 12.92
        %v3164 = vmul.f32 %v1116, 12.92
        %v3165 = vmul.f32 %v1117, 12.92
        %v3166 = vmul.f32 %v1118, 12.92
        %v3167 = vmul.f32 %v1119, 12.92
        %v3168 = vmul.f32 %v1120, 12.92
        %v3169 = vmul.f32 %v1121, 12.92
        %v3170 = vmul.f32 %v1122, 12.92
        %v3171 = vmul.f32 %v1123, 12.92
        %v3172 = vmul.f32 %v1124, 12.92
        %v3173 = vmul.f32 %v1125, 12.92
        %v3174 = vmul.f32 %v1126, 12.92
        %v3175 = vmul.f32 %v1127, 12.92
        %v3176 = vmul.f32 %v1128, 12.92
        %v3177 = vmul.f32 %v1129, 12.92
        %v3178 = vmul.f32 %v1130, 12.92
        %v3179 = vmul.f32 %v1131, 12.92
        %v3180 = vmul.f32 %v1132, 12.92
        %v3181 = vmul.f32 %v1133, 12.92
        %v3182 = vmul.f32 %v1134, 12.92
        %v3183 = vmul.f32 %v1135, 12.92
        %v3184 = vmul.f32 %v1136, 12.92
        %v3185 = vmul.f32 %v1137, 12.92
        %v3186 = vmul.f32 %v1138, 12.92
        %v3187 = vmul.f32 %v1139, 12.92
        %v3188 = vmul.f32 %v1140, 12.92
        %v3189 = vmul.f32 %v1141, 12.92
        %v3190 = vmul.f32 %v1142, 12.92
        %v3191 = vmul.f32 %v1143, 12.92
        %v3192 = vmul.f32 %v1144, 12.92
        %v3193 = vmul.f32 %v1145, 12.92
        %v3194 = vmul.f32 %v1146, 12.92
        %v3195 = vmul.f32 %v1147, 12.92
        %v3196 = vmul.f32 %v1148, 12.92
        %v3197 = vmul.f32 %v1149, 12.92
        %v3198 = vmul.f32 %v1150, 12.92
        %v3199 = vmul.f32 %v1151, 12.92
        %v3200 = vmul.f32 %v1152, 12.92
        %v3201 = vmul.f32 %v1153, 12.92
        %v3202 = vmul.f32 %v1154, 12.92
        %v3203 = vmul.f32 %v1155, 12.92
        %v3204 = vmul.f32 %v1156, 12.92
        %v3205 = vmul.f32 %v1157, 12.92
        %v3206 = vmul.f32 %v1158, 12.92
        %v3207 = vmul.f32 %v1159, 12.92
        %v3208 = vmul.f32 %v1160, 12.92
        %v3209 = vmul.f32 %v1161, 12.92
        %v3210 = vmul.f32 %v1162, 12.92
        %v3211 = vmul.f32 %v1163, 12.92
        %v3212 = vmul.f32 %v1164, 12.92
        %v3213 = vmul.f32 %v1165, 12.92
        %v3214 = vmul.f32 %v1166, 12.92
        %v3215 = vmul.f32 %v1167, 12.92
        %v3216 = vmul.f32 %v1168, 12.92
        %v3217 = vmul.f32 %v1169, 12.92
        %v3218 = vmul.f32 %v1170, 12.92
        %v3219 = vmul.f32 %v1171, 12.92
        %v3220 = vmul.f32 %v1172, 12.92
        %v3221 = vmul.f32 %v1173, 12.92
        %v3222 = vmul.f32 %v1174, 12.92
        %v3223 = vmul.f32 %v1175, 12.92
        %v3224 = vmul.f32 %v1176, 12.92
        %v3225 = vmul.f32 %v1177, 12.92
        %v3226 = vmax.f32 %v154, 0.0
        %v3227 = vmax.f32 %v155, 0.0
        %v3228 = vmax.f32 %v156, 0.0
        %v3229 = vmax.f32 %v157, 0.0
        %v3230 = vmax.f32 %v158, 0.0
        %v3231 = vmax.f32 %v159, 0.0
        %v3232 = vmax.f32 %v160, 0.0
        %v3233 = vmax.f32 %v161, 0.0
        %v3234 = vmax.f32 %v162, 0.0
        %v3235 = vmax.f32 %v163, 0.0
        %v3236 = vmax.f32 %v164, 0.0
        %v3237 = vmax.f32 %v165, 0.0
        %v3238 = vmax.f32 %v166, 0.0
        %v3239 = vmax.f32 %v167, 0.0
        %v3240 = vmax.f32 %v168, 0.0
        %v3241 = vmax.f32 %v169, 0.0
        %v3242 = vmax.f32 %v170, 0.0
        %v3243 = vmax.f32 %v171, 0.0
        %v3244 = vmax.f32 %v172, 0.0
        %v3245 = vmax.f32 %v173, 0.0
        %v3246 = vmax.f32 %v174, 0.0
        %v3247 = vmax.f32 %v175, 0.0
        %v3248 = vmax.f32 %v176, 0.0
        %v3249 = vmax.f32 %v177, 0.0
        %v3250 = vmax.f32 %v178, 0.0
        %v3251 = vmax.f32 %v179, 0.0
        %v3252 = vmax.f32 %v180, 0.0
        %v3253 = vmax.f32 %v181, 0.0
        %v3254 = vmax.f32 %v182, 0.0
        %v3255 = vmax.f32 %v183, 0.0
        %v3256 = vmax.f32 %v184, 0.0
        %v3257 = vmax.f32 %v185, 0.0
        %v3258 = vmax.f32 %v186, 0.0
        %v3259 = vmax.f32 %v187, 0.0
        %v3260 = vmax.f32 %v188, 0.0
        %v3261 = vmax.f32 %v189, 0.0
        %v3262 = vmax.f32 %v190, 0.0
        %v3263 = vmax.f32 %v191, 0.0
        %v3264 = vmax.f32 %v192, 0.0
        %v3265 = vmax.f32 %v193, 0.0
        %v3266 = vmax.f32 %v194, 0.0
        %v3267 = vmax.f32 %v195, 0.0
        %v3268 = vmax.f32 %v196, 0.0
        %v3269 = vmax.f32 %v197, 0.0
        %v3270 = vmax.f32 %v198, 0.0
        %v3271 = vmax.f32 %v199, 0.0
        %v3272 = vmax.f32 %v200, 0.0
        %v3273 = vmax.f32 %v201, 0.0
        %v3274 = vmax.f32 %v202, 0.0
        %v3275 = vmax.f32 %v203, 0.0
        %v3276 = vmax.f32 %v204, 0.0
        %v3277 = vmax.f32 %v205, 0.0
        %v3278 = vmax.f32 %v206, 0.0
        %v3279 = vmax.f32 %v207, 0.0
        %v3280 = vmax.f32 %v208, 0.0
        %v3281 = vmax.f32 %v209, 0.0
        %v3282 = vmax.f32 %v210, 0.0
        %v3283 = vmax.f32 %v211, 0.0
        %v3284 = vmax.f32 %v212, 0.0
        %v3285 = vmax.f32 %v213, 0.0
        %v3286 = vmax.f32 %v214, 0.0
        %v3287 = vmax.f32 %v215, 0.0
        %v3288 = vmax.f32 %v216, 0.0
        %v3289 = vmax.f32 %v217, 0.0
        %v3290 = vmax.f32 %v218, 0.0
        %v3291 = vmax.f32 %v219, 0.0
        %v3292 = vmax.f32 %v220, 0.0
        %v3293 = vmax.f32 %v221, 0.0
        %v3294 = vmax.f32 %v222, 0.0
        %v3295 = vmax.f32 %v223, 0.0
        %v3296 = vmax.f32 %v224, 0.0
        %v3297 = vmax.f32 %v225, 0.0
        %v3298 = vmax.f32 %v226, 0.0
        %v3299 = vmax.f32 %v227, 0.0
        %v3300 = vmax.f32 %v228, 0.0
        %v3301 = vmax.f32 %v229, 0.0
        %v3302 = vmax.f32 %v230, 0.0
        %v3303 = vmax.f32 %v231, 0.0
        %v3304 = vmax.f32 %v232, 0.0
        %v3305 = vmax.f32 %v233, 0.0
        %v3306 = vmax.f32 %v234, 0.0
        %v3307 = vmax.f32 %v235, 0.0
        %v3308 = vmax.f32 %v236, 0.0
        %v3309 = vmax.f32 %v237, 0.0
        %v3310 = vmax.f32 %v238, 0.0
        %v3311 = vmax.f32 %v239, 0.0
        %v3312 = vmax.f32 %v240, 0.0
        %v3313 = vmax.f32 %v241, 0.0
        %v3314 = vmax.f32 %v242, 0.0
        %v3315 = vmax.f32 %v243, 0.0
        %v3316 = vmax.f32 %v244, 0.0
        %v3317 = vmax.f32 %v245, 0.0
        %v3318 = vmax.f32 %v246, 0.0
        %v3319 = vmax.f32 %v247, 0.0
        %v3320 = vmax.f32 %v248, 0.0
        %v3321 = vmax.f32 %v249, 0.0
        %v3322 = vmax.f32 %v250, 0.0
        %v3323 = vmax.f32 %v251, 0.0
        %v3324 = vmax.f32 %v252, 0.0
        %v3325 = vmax.f32 %v253, 0.0
        %v3326 = vmax.f32 %v254, 0.0
        %v3327 = vmax.f32 %v255, 0.0
        %v3328 = vmax.f32 %v256, 0.0
        %v3329 = vmax.f32 %v257, 0.0
        %v3330 = vmax.f32 %v258, 0.0
        %v3331 = vmax.f32 %v259, 0.0
        %v3332 = vmax.f32 %v260, 0.0
        %v3333 = vmax.f32 %v261, 0.0
        %v3334 = vmax.f32 %v262, 0.0
        %v3335 = vmax.f32 %v263, 0.0
        %v3336 = vmax.f32 %v264, 0.0
        %v3337 = vmax.f32 %v265, 0.0
        %v3338 = vmax.f32 %v266, 0.0
        %v3339 = vmax.f32 %v267, 0.0
        %v3340 = vmax.f32 %v268, 0.0
        %v3341 = vmax.f32 %v269, 0.0
        %v3342 = vmax.f32 %v270, 0.0
        %v3343 = vmax.f32 %v271, 0.0
        %v3344 = vmax.f32 %v272, 0.0
        %v3345 = vmax.f32 %v273, 0.0
        %v3346 = vmax.f32 %v274, 0.0
        %v3347 = vmax.f32 %v275, 0.0
        %v3348 = vmax.f32 %v276, 0.0
        %v3349 = vmax.f32 %v277, 0.0
        %v3350 = vmax.f32 %v278, 0.0
        %v3351 = vmax.f32 %v279, 0.0
        %v3352 = vmax.f32 %v280, 0.0
        %v3353 = vmax.f32 %v281, 0.0
        %v3354 = vmax.f32 %v282, 0.0
        %v3355 = vmax.f32 %v283, 0.0
        %v3356 = vmax.f32 %v284, 0.0
        %v3357 = vmax.f32 %v285, 0.0
        %v3358 = vmax.f32 %v286, 0.0
        %v3359 = vmax.f32 %v287, 0.0
        %v3360 = vmax.f32 %v288, 0.0
        %v3361 = vmax.f32 %v289, 0.0
        %v3362 = vmax.f32 %v290, 0.0
        %v3363 = vmax.f32 %v291, 0.0
        %v3364 = vmax.f32 %v292, 0.0
        %v3365 = vmax.f32 %v293, 0.0
        %v3366 = vmax.f32 %v294, 0.0
        %v3367 = vmax.f32 %v295, 0.0
        %v3368 = vmax.f32 %v296, 0.0
        %v3369 = vmax.f32 %v297, 0.0
        %v3370 = vmax.f32 %v298, 0.0
        %v3371 = vmax.f32 %v299, 0.0
        %v3372 = vmax.f32 %v300, 0.0
        %v3373 = vmax.f32 %v301, 0.0
        %v3374 = vmax.f32 %v302, 0.0
        %v3375 = vmax.f32 %v303, 0.0
        %v3376 = vmax.f32 %v304, 0.0
        %v3377 = vmax.f32 %v305, 0.0
        %v3378 = vmax.f32 %v306, 0.0
        %v3379 = vmax.f32 %v307, 0.0
        %v3380 = vmax.f32 %v308, 0.0
        %v3381 = vmax.f32 %v309, 0.0
        %v3382 = vmax.f32 %v310, 0.0
        %v3383 = vmax.f32 %v311, 0.0
        %v3384 = vmax.f32 %v312, 0.0
        %v3385 = vmax.f32 %v313, 0.0
        %v3386 = vmax.f32 %v314, 0.0
        %v3387 = vmax.f32 %v315, 0.0
        %v3388 = vmax.f32 %v316, 0.0
        %v3389 = vmax.f32 %v317, 0.0
        %v3390 = vmax.f32 %v318, 0.0
        %v3391 = vmax.f32 %v319, 0.0
        %v3392 = vmax.f32 %v320, 0.0
        %v3393 = vmax.f32 %v321, 0.0
        %v3394 = vmax.f32 %v322, 0.0
        %v3395 = vmax.f32 %v323, 0.0
        %v3396 = vmax.f32 %v324, 0.0
        %v3397 = vmax.f32 %v325, 0.0
        %v3398 = vmax.f32 %v326, 0.0
        %v3399 = vmax.f32 %v327, 0.0
        %v3400 = vmax.f32 %v328, 0.0
        %v3401 = vmax.f32 %v329, 0.0
        %v3402 = vmax.f32 %v330, 0.0
        %v3403 = vmax.f32 %v331, 0.0
        %v3404 = vmax.f32 %v332, 0.0
        %v3405 = vmax.f32 %v333, 0.0
        %v3406 = vmax.f32 %v334, 0.0
        %v3407 = vmax.f32 %v335, 0.0
        %v3408 = vmax.f32 %v336, 0.0
        %v3409 = vmax.f32 %v337, 0.0
        %v3410 = vmax.f32 %v338, 0.0
        %v3411 = vmax.f32 %v339, 0.0
        %v3412 = vmax.f32 %v340, 0.0
        %v3413 = vmax.f32 %v341, 0.0
        %v3414 = vmax.f32 %v342, 0.0
        %v3415 = vmax.f32 %v343, 0.0
        %v3416 = vmax.f32 %v344, 0.0
        %v3417 = vmax.f32 %v345, 0.0
        %v3418 = vmax.f32 %v346, 0.0
        %v3419 = vmax.f32 %v347, 0.0
        %v3420 = vmax.f32 %v348, 0.0
        %v3421 = vmax.f32 %v349, 0.0
        %v3422 = vmax.f32 %v350, 0.0
        %v3423 = vmax.f32 %v351, 0.0
        %v3424 = vmax.f32 %v352, 0.0
        %v3425 = vmax.f32 %v353, 0.0
        %v3426 = vmax.f32 %v354, 0.0
        %v3427 = vmax.f32 %v355, 0.0
        %v3428 = vmax.f32 %v356, 0.0
        %v3429 = vmax.f32 %v357, 0.0
        %v3430 = vmax.f32 %v358, 0.0
        %v3431 = vmax.f32 %v359, 0.0
        %v3432 = vmax.f32 %v360, 0.0
        %v3433 = vmax.f32 %v361, 0.0
        %v3434 = vmax.f32 %v362, 0.0
        %v3435 = vmax.f32 %v363, 0.0
        %v3436 = vmax.f32 %v364, 0.0
        %v3437 = vmax.f32 %v365, 0.0
        %v3438 = vmax.f32 %v366, 0.0
        %v3439 = vmax.f32 %v367, 0.0
        %v3440 = vmax.f32 %v368, 0.0
        %v3441 = vmax.f32 %v369, 0.0
        %v3442 = vmax.f32 %v370, 0.0
        %v3443 = vmax.f32 %v371, 0.0
        %v3444 = vmax.f32 %v372, 0.0
        %v3445 = vmax.f32 %v373, 0.0
        %v3446 = vmax.f32 %v374, 0.0
        %v3447 = vmax.f32 %v375, 0.0
        %v3448 = vmax.f32 %v376, 0.0
        %v3449 = vmax.f32 %v377, 0.0
        %v3450 = vmax.f32 %v378, 0.0
        %v3451 = vmax.f32 %v379, 0.0
        %v3452 = vmax.f32 %v380, 0.0
        %v3453 = vmax.f32 %v381, 0.0
        %v3454 = vmax.f32 %v382, 0.0
        %v3455 = vmax.f32 %v383, 0.0
        %v3456 = vmax.f32 %v384, 0.0
        %v3457 = vmax.f32 %v385, 0.0
        %v3458 = vmax.f32 %v386, 0.0
        %v3459 = vmax.f32 %v387, 0.0
        %v3460 = vmax.f32 %v388, 0.0
        %v3461 = vmax.f32 %v389, 0.0
        %v3462 = vmax.f32 %v390, 0.0
        %v3463 = vmax.f32 %v391, 0.0
        %v3464 = vmax.f32 %v392, 0.0
        %v3465 = vmax.f32 %v393, 0.0
        %v3466 = vmax.f32 %v394, 0.0
        %v3467 = vmax.f32 %v395, 0.0
        %v3468 = vmax.f32 %v396, 0.0
        %v3469 = vmax.f32 %v397, 0.0
        %v3470 = vmax.f32 %v398, 0.0
        %v3471 = vmax.f32 %v399, 0.0
        %v3472 = vmax.f32 %v400, 0.0
        %v3473 = vmax.f32 %v401, 0.0
        %v3474 = vmax.f32 %v402, 0.0
        %v3475 = vmax.f32 %v403, 0.0
        %v3476 = vmax.f32 %v404, 0.0
        %v3477 = vmax.f32 %v405, 0.0
        %v3478 = vmax.f32 %v406, 0.0
        %v3479 = vmax.f32 %v407, 0.0
        %v3480 = vmax.f32 %v408, 0.0
        %v3481 = vmax.f32 %v409, 0.0
        %v3482 = vmax.f32 %v410, 0.0
        %v3483 = vmax.f32 %v411, 0.0
        %v3484 = vmax.f32 %v412, 0.0
        %v3485 = vmax.f32 %v413, 0.0
        %v3486 = vmax.f32 %v414, 0.0
        %v3487 = vmax.f32 %v415, 0.0
        %v3488 = vmax.f32 %v416, 0.0
        %v3489 = vmax.f32 %v417, 0.0
        %v3490 = vmax.f32 %v418, 0.0
        %v3491 = vmax.f32 %v419, 0.0
        %v3492 = vmax.f32 %v420, 0.0
        %v3493 = vmax.f32 %v421, 0.0
        %v3494 = vmax.f32 %v422, 0.0
        %v3495 = vmax.f32 %v423, 0.0
        %v3496 = vmax.f32 %v424, 0.0
        %v3497 = vmax.f32 %v425, 0.0
        %v3498 = vmax.f32 %v426, 0.0
        %v3499 = vmax.f32 %v427, 0.0
        %v3500 = vmax.f32 %v428, 0.0
        %v3501 = vmax.f32 %v429, 0.0
        %v3502 = vmax.f32 %v430, 0.0
        %v3503 = vmax.f32 %v431, 0.0
        %v3504 = vmax.f32 %v432, 0.0
        %v3505 = vmax.f32 %v433, 0.0
        %v3506 = vmax.f32 %v434, 0.0
        %v3507 = vmax.f32 %v435, 0.0
        %v3508 = vmax.f32 %v436, 0.0
        %v3509 = vmax.f32 %v437, 0.0
        %v3510 = vmax.f32 %v438, 0.0
        %v3511 = vmax.f32 %v439, 0.0
        %v3512 = vmax.f32 %v440, 0.0
        %v3513 = vmax.f32 %v441, 0.0
        %v3514 = vmax.f32 %v442, 0.0
        %v3515 = vmax.f32 %v443, 0.0
        %v3516 = vmax.f32 %v444, 0.0
        %v3517 = vmax.f32 %v445, 0.0
        %v3518 = vmax.f32 %v446, 0.0
        %v3519 = vmax.f32 %v447, 0.0
        %v3520 = vmax.f32 %v448, 0.0
        %v3521 = vmax.f32 %v449, 0.0
        %v3522 = vmax.f32 %v450, 0.0
        %v3523 = vmax.f32 %v451, 0.0
        %v3524 = vmax.f32 %v452, 0.0
        %v3525 = vmax.f32 %v453, 0.0
        %v3526 = vmax.f32 %v454, 0.0
        %v3527 = vmax.f32 %v455, 0.0
        %v3528 = vmax.f32 %v456, 0.0
        %v3529 = vmax.f32 %v457, 0.0
        %v3530 = vmax.f32 %v458, 0.0
        %v3531 = vmax.f32 %v459, 0.0
        %v3532 = vmax.f32 %v460, 0.0
        %v3533 = vmax.f32 %v461, 0.0
        %v3534 = vmax.f32 %v462, 0.0
        %v3535 = vmax.f32 %v463, 0.0
        %v3536 = vmax.f32 %v464, 0.0
        %v3537 = vmax.f32 %v465, 0.0
        %v3538 = vmax.f32 %v466, 0.0
        %v3539 = vmax.f32 %v467, 0.0
        %v3540 = vmax.f32 %v468, 0.0
        %v3541 = vmax.f32 %v469, 0.0
        %v3542 = vmax.f32 %v470, 0.0
        %v3543 = vmax.f32 %v471, 0.0
        %v3544 = vmax.f32 %v472, 0.0
        %v3545 = vmax.f32 %v473, 0.0
        %v3546 = vmax.f32 %v474, 0.0
        %v3547 = vmax.f32 %v475, 0.0
        %v3548 = vmax.f32 %v476, 0.0
        %v3549 = vmax.f32 %v477, 0.0
        %v3550 = vmax.f32 %v478, 0.0
        %v3551 = vmax.f32 %v479, 0.0
        %v3552 = vmax.f32 %v480, 0.0
        %v3553 = vmax.f32 %v481, 0.0
        %v3554 = vmax.f32 %v482, 0.0
        %v3555 = vmax.f32 %v483, 0.0
        %v3556 = vmax.f32 %v484, 0.0
        %v3557 = vmax.f32 %v485, 0.0
        %v3558 = vmax.f32 %v486, 0.0
        %v3559 = vmax.f32 %v487, 0.0
        %v3560 = vmax.f32 %v488, 0.0
        %v3561 = vmax.f32 %v489, 0.0
        %v3562 = vmax.f32 %v490, 0.0
        %v3563 = vmax.f32 %v491, 0.0
        %v3564 = vmax.f32 %v492, 0.0
        %v3565 = vmax.f32 %v493, 0.0
        %v3566 = vmax.f32 %v494, 0.0
        %v3567 = vmax.f32 %v495, 0.0
        %v3568 = vmax.f32 %v496, 0.0
        %v3569 = vmax.f32 %v497, 0.0
        %v3570 = vmax.f32 %v498, 0.0
        %v3571 = vmax.f32 %v499, 0.0
        %v3572 = vmax.f32 %v500, 0.0
        %v3573 = vmax.f32 %v501, 0.0
        %v3574 = vmax.f32 %v502, 0.0
        %v3575 = vmax.f32 %v503, 0.0
        %v3576 = vmax.f32 %v504, 0.0
        %v3577 = vmax.f32 %v505, 0.0
        %v3578 = vmax.f32 %v506, 0.0
        %v3579 = vmax.f32 %v507, 0.0
        %v3580 = vmax.f32 %v508, 0.0
        %v3581 = vmax.f32 %v509, 0.0
        %v3582 = vmax.f32 %v510, 0.0
        %v3583 = vmax.f32 %v511, 0.0
        %v3584 = vmax.f32 %v512, 0.0
        %v3585 = vmax.f32 %v513, 0.0
        %v3586 = vmax.f32 %v514, 0.0
        %v3587 = vmax.f32 %v515, 0.0
        %v3588 = vmax.f32 %v516, 0.0
        %v3589 = vmax.f32 %v517, 0.0
        %v3590 = vmax.f32 %v518, 0.0
        %v3591 = vmax.f32 %v519, 0.0
        %v3592 = vmax.f32 %v520, 0.0
        %v3593 = vmax.f32 %v521, 0.0
        %v3594 = vmax.f32 %v522, 0.0
        %v3595 = vmax.f32 %v523, 0.0
        %v3596 = vmax.f32 %v524, 0.0
        %v3597 = vmax.f32 %v525, 0.0
        %v3598 = vmax.f32 %v526, 0.0
        %v3599 = vmax.f32 %v527, 0.0
        %v3600 = vmax.f32 %v528, 0.0
        %v3601 = vmax.f32 %v529, 0.0
        %v3602 = vmax.f32 %v530, 0.0
        %v3603 = vmax.f32 %v531, 0.0
        %v3604 = vmax.f32 %v532, 0.0
        %v3605 = vmax.f32 %v533, 0.0
        %v3606 = vmax.f32 %v534, 0.0
        %v3607 = vmax.f32 %v535, 0.0
        %v3608 = vmax.f32 %v536, 0.0
        %v3609 = vmax.f32 %v537, 0.0
        %v3610 = vmax.f32 %v538, 0.0
        %v3611 = vmax.f32 %v539, 0.0
        %v3612 = vmax.f32 %v540, 0.0
        %v3613 = vmax.f32 %v541, 0.0
        %v3614 = vmax.f32 %v542, 0.0
        %v3615 = vmax.f32 %v543, 0.0
        %v3616 = vmax.f32 %v544, 0.0
        %v3617 = vmax.f32 %v545, 0.0
        %v3618 = vmax.f32 %v546, 0.0
        %v3619 = vmax.f32 %v547, 0.0
        %v3620 = vmax.f32 %v548, 0.0
        %v3621 = vmax.f32 %v549, 0.0
        %v3622 = vmax.f32 %v550, 0.0
        %v3623 = vmax.f32 %v551, 0.0
        %v3624 = vmax.f32 %v552, 0.0
        %v3625 = vmax.f32 %v553, 0.0
        %v3626 = vmax.f32 %v554, 0.0
        %v3627 = vmax.f32 %v555, 0.0
        %v3628 = vmax.f32 %v556, 0.0
        %v3629 = vmax.f32 %v557, 0.0
        %v3630 = vmax.f32 %v558, 0.0
        %v3631 = vmax.f32 %v559, 0.0
        %v3632 = vmax.f32 %v560, 0.0
        %v3633 = vmax.f32 %v561, 0.0
        %v3634 = vmax.f32 %v562, 0.0
        %v3635 = vmax.f32 %v563, 0.0
        %v3636 = vmax.f32 %v564, 0.0
        %v3637 = vmax.f32 %v565, 0.0
        %v3638 = vmax.f32 %v566, 0.0
        %v3639 = vmax.f32 %v567, 0.0
        %v3640 = vmax.f32 %v568, 0.0
        %v3641 = vmax.f32 %v569, 0.0
        %v3642 = vmax.f32 %v570, 0.0
        %v3643 = vmax.f32 %v571, 0.0
        %v3644 = vmax.f32 %v572, 0.0
        %v3645 = vmax.f32 %v573, 0.0
        %v3646 = vmax.f32 %v574, 0.0
        %v3647 = vmax.f32 %v575, 0.0
        %v3648 = vmax.f32 %v576, 0.0
        %v3649 = vmax.f32 %v577, 0.0
        %v3650 = vmax.f32 %v578, 0.0
        %v3651 = vmax.f32 %v579, 0.0
        %v3652 = vmax.f32 %v580, 0.0
        %v3653 = vmax.f32 %v581, 0.0
        %v3654 = vmax.f32 %v582, 0.0
        %v3655 = vmax.f32 %v583, 0.0
        %v3656 = vmax.f32 %v584, 0.0
        %v3657 = vmax.f32 %v585, 0.0
        %v3658 = vmax.f32 %v586, 0.0
        %v3659 = vmax.f32 %v587, 0.0
        %v3660 = vmax.f32 %v588, 0.0
        %v3661 = vmax.f32 %v589, 0.0
        %v3662 = vmax.f32 %v590, 0.0
        %v3663 = vmax.f32 %v591, 0.0
        %v3664 = vmax.f32 %v592, 0.0
        %v3665 = vmax.f32 %v593, 0.0
        %v3666 = vmax.f32 %v594, 0.0
        %v3667 = vmax.f32 %v595, 0.0
        %v3668 = vmax.f32 %v596, 0.0
        %v3669 = vmax.f32 %v597, 0.0
        %v3670 = vmax.f32 %v598, 0.0
        %v3671 = vmax.f32 %v599, 0.0
        %v3672 = vmax.f32 %v600, 0.0
        %v3673 = vmax.f32 %v601, 0.0
        %v3674 = vmax.f32 %v602, 0.0
        %v3675 = vmax.f32 %v603, 0.0
        %v3676 = vmax.f32 %v604, 0.0
        %v3677 = vmax.f32 %v605, 0.0
        %v3678 = vmax.f32 %v606, 0.0
        %v3679 = vmax.f32 %v607, 0.0
        %v3680 = vmax.f32 %v608, 0.0
        %v3681 = vmax.f32 %v609, 0.0
        %v3682 = vmax.f32 %v610, 0.0
        %v3683 = vmax.f32 %v611, 0.0
        %v3684 = vmax.f32 %v612, 0.0
        %v3685 = vmax.f32 %v613, 0.0
        %v3686 = vmax.f32 %v614, 0.0
        %v3687 = vmax.f32 %v615, 0.0
        %v3688 = vmax.f32 %v616, 0.0
        %v3689 = vmax.f32 %v617, 0.0
        %v3690 = vmax.f32 %v618, 0.0
        %v3691 = vmax.f32 %v619, 0.0
        %v3692 = vmax.f32 %v620, 0.0
        %v3693 = vmax.f32 %v621, 0.0
        %v3694 = vmax.f32 %v622, 0.0
        %v3695 = vmax.f32 %v623, 0.0
        %v3696 = vmax.f32 %v624, 0.0
        %v3697 = vmax.f32 %v625, 0.0
        %v3698 = vmax.f32 %v626, 0.0
        %v3699 = vmax.f32 %v627, 0.0
        %v3700 = vmax.f32 %v628, 0.0
        %v3701 = vmax.f32 %v629, 0.0
        %v3702 = vmax.f32 %v630, 0.0
        %v3703 = vmax.f32 %v631, 0.0
        %v3704 = vmax.f32 %v632, 0.0
        %v3705 = vmax.f32 %v633, 0.0
        %v3706 = vmax.f32 %v634, 0.0
        %v3707 = vmax.f32 %v635, 0.0
        %v3708 = vmax.f32 %v636, 0.0
        %v3709 = vmax.f32 %v637, 0.0
        %v3710 = vmax.f32 %v638, 0.0
        %v3711 = vmax.f32 %v639, 0.0
        %v3712 = vmax.f32 %v640, 0.0
        %v3713 = vmax.f32 %v641, 0.0
        %v3714 = vmax.f32 %v642, 0.0
        %v3715 = vmax.f32 %v643, 0.0
        %v3716 = vmax.f32 %v644, 0.0
        %v3717 = vmax.f32 %v645, 0.0
        %v3718 = vmax.f32 %v646, 0.0
        %v3719 = vmax.f32 %v647, 0.0
        %v3720 = vmax.f32 %v648, 0.0
        %v3721 = vmax.f32 %v649, 0.0
        %v3722 = vmax.f32 %v650, 0.0
        %v3723 = vmax.f32 %v651, 0.0
        %v3724 = vmax.f32 %v652, 0.0
        %v3725 = vmax.f32 %v653, 0.0
        %v3726 = vmax.f32 %v654, 0.0
        %v3727 = vmax.f32 %v655, 0.0
        %v3728 = vmax.f32 %v656, 0.0
        %v3729 = vmax.f32 %v657, 0.0
        %v3730 = vmax.f32 %v658, 0.0
        %v3731 = vmax.f32 %v659, 0.0
        %v3732 = vmax.f32 %v660, 0.0
        %v3733 = vmax.f32 %v661, 0.0
        %v3734 = vmax.f32 %v662, 0.0
        %v3735 = vmax.f32 %v663, 0.0
        %v3736 = vmax.f32 %v664, 0.0
        %v3737 = vmax.f32 %v665, 0.0
        %v3738 = vmax.f32 %v666, 0.0
        %v3739 = vmax.f32 %v667, 0.0
        %v3740 = vmax.f32 %v668, 0.0
        %v3741 = vmax.f32 %v669, 0.0
        %v3742 = vmax.f32 %v670, 0.0
        %v3743 = vmax.f32 %v671, 0.0
        %v3744 = vmax.f32 %v672, 0.0
        %v3745 = vmax.f32 %v673, 0.0
        %v3746 = vmax.f32 %v674, 0.0
        %v3747 = vmax.f32 %v675, 0.0
        %v3748 = vmax.f32 %v676, 0.0
        %v3749 = vmax.f32 %v677, 0.0
        %v3750 = vmax.f32 %v678, 0.0
        %v3751 = vmax.f32 %v679, 0.0
        %v3752 = vmax.f32 %v680, 0.0
        %v3753 = vmax.f32 %v681, 0.0
        %v3754 = vmax.f32 %v682, 0.0
        %v3755 = vmax.f32 %v683, 0.0
        %v3756 = vmax.f32 %v684, 0.0
        %v3757 = vmax.f32 %v685, 0.0
        %v3758 = vmax.f32 %v686, 0.0
        %v3759 = vmax.f32 %v687, 0.0
        %v3760 = vmax.f32 %v688, 0.0
        %v3761 = vmax.f32 %v689, 0.0
        %v3762 = vmax.f32 %v690, 0.0
        %v3763 = vmax.f32 %v691, 0.0
        %v3764 = vmax.f32 %v692, 0.0
        %v3765 = vmax.f32 %v693, 0.0
        %v3766 = vmax.f32 %v694, 0.0
        %v3767 = vmax.f32 %v695, 0.0
        %v3768 = vmax.f32 %v696, 0.0
        %v3769 = vmax.f32 %v697, 0.0
        %v3770 = vmax.f32 %v698, 0.0
        %v3771 = vmax.f32 %v699, 0.0
        %v3772 = vmax.f32 %v700, 0.0
        %v3773 = vmax.f32 %v701, 0.0
        %v3774 = vmax.f32 %v702, 0.0
        %v3775 = vmax.f32 %v703, 0.0
        %v3776 = vmax.f32 %v704, 0.0
        %v3777 = vmax.f32 %v705, 0.0
        %v3778 = vmax.f32 %v706, 0.0
        %v3779 = vmax.f32 %v707, 0.0
        %v3780 = vmax.f32 %v708, 0.0
        %v3781 = vmax.f32 %v709, 0.0
        %v3782 = vmax.f32 %v710, 0.0
        %v3783 = vmax.f32 %v711, 0.0
        %v3784 = vmax.f32 %v712, 0.0
        %v3785 = vmax.f32 %v713, 0.0
        %v3786 = vmax.f32 %v714, 0.0
        %v3787 = vmax.f32 %v715, 0.0
        %v3788 = vmax.f32 %v716, 0.0
        %v3789 = vmax.f32 %v717, 0.0
        %v3790 = vmax.f32 %v718, 0.0
        %v3791 = vmax.f32 %v719, 0.0
        %v3792 = vmax.f32 %v720, 0.0
        %v3793 = vmax.f32 %v721, 0.0
        %v3794 = vmax.f32 %v722, 0.0
        %v3795 = vmax.f32 %v723, 0.0
        %v3796 = vmax.f32 %v724, 0.0
        %v3797 = vmax.f32 %v725, 0.0
        %v3798 = vmax.f32 %v726, 0.0
        %v3799 = vmax.f32 %v727, 0.0
        %v3800 = vmax.f32 %v728, 0.0
        %v3801 = vmax.f32 %v729, 0.0
        %v3802 = vmax.f32 %v730, 0.0
        %v3803 = vmax.f32 %v731, 0.0
        %v3804 = vmax.f32 %v732, 0.0
        %v3805 = vmax.f32 %v733, 0.0
        %v3806 = vmax.f32 %v734, 0.0
        %v3807 = vmax.f32 %v735, 0.0
        %v3808 = vmax.f32 %v736, 0.0
        %v3809 = vmax.f32 %v737, 0.0
        %v3810 = vmax.f32 %v738, 0.0
        %v3811 = vmax.f32 %v739, 0.0
        %v3812 = vmax.f32 %v740, 0.0
        %v3813 = vmax.f32 %v741, 0.0
        %v3814 = vmax.f32 %v742, 0.0
        %v3815 = vmax.f32 %v743, 0.0
        %v3816 = vmax.f32 %v744, 0.0
        %v3817 = vmax.f32 %v745, 0.0
        %v3818 = vmax.f32 %v746, 0.0
        %v3819 = vmax.f32 %v747, 0.0
        %v3820 = vmax.f32 %v748, 0.0
        %v3821 = vmax.f32 %v749, 0.0
        %v3822 = vmax.f32 %v750, 0.0
        %v3823 = vmax.f32 %v751, 0.0
        %v3824 = vmax.f32 %v752, 0.0
        %v3825 = vmax.f32 %v753, 0.0
        %v3826 = vmax.f32 %v754, 0.0
        %v3827 = vmax.f32 %v755, 0.0
        %v3828 = vmax.f32 %v756, 0.0
        %v3829 = vmax.f32 %v757, 0.0
        %v3830 = vmax.f32 %v758, 0.0
        %v3831 = vmax.f32 %v759, 0.0
        %v3832 = vmax.f32 %v760, 0.0
        %v3833 = vmax.f32 %v761, 0.0
        %v3834 = vmax.f32 %v762, 0.0
        %v3835 = vmax.f32 %v763, 0.0
        %v3836 = vmax.f32 %v764, 0.0
        %v3837 = vmax.f32 %v765, 0.0
        %v3838 = vmax.f32 %v766, 0.0
        %v3839 = vmax.f32 %v767, 0.0
        %v3840 = vmax.f32 %v768, 0.0
        %v3841 = vmax.f32 %v769, 0.0
        %v3842 = vmax.f32 %v770, 0.0
        %v3843 = vmax.f32 %v771, 0.0
        %v3844 = vmax.f32 %v772, 0.0
        %v3845 = vmax.f32 %v773, 0.0
        %v3846 = vmax.f32 %v774, 0.0
        %v3847 = vmax.f32 %v775, 0.0
        %v3848 = vmax.f32 %v776, 0.0
        %v3849 = vmax.f32 %v777, 0.0
        %v3850 = vmax.f32 %v778, 0.0
        %v3851 = vmax.f32 %v779, 0.0
        %v3852 = vmax.f32 %v780, 0.0
        %v3853 = vmax.f32 %v781, 0.0
        %v3854 = vmax.f32 %v782, 0.0
        %v3855 = vmax.f32 %v783, 0.0
        %v3856 = vmax.f32 %v784, 0.0
        %v3857 = vmax.f32 %v785, 0.0
        %v3858 = vmax.f32 %v786, 0.0
        %v3859 = vmax.f32 %v787, 0.0
        %v3860 = vmax.f32 %v788, 0.0
        %v3861 = vmax.f32 %v789, 0.0
        %v3862 = vmax.f32 %v790, 0.0
        %v3863 = vmax.f32 %v791, 0.0
        %v3864 = vmax.f32 %v792, 0.0
        %v3865 = vmax.f32 %v793, 0.0
        %v3866 = vmax.f32 %v794, 0.0
        %v3867 = vmax.f32 %v795, 0.0
        %v3868 = vmax.f32 %v796, 0.0
        %v3869 = vmax.f32 %v797, 0.0
        %v3870 = vmax.f32 %v798, 0.0
        %v3871 = vmax.f32 %v799, 0.0
        %v3872 = vmax.f32 %v800, 0.0
        %v3873 = vmax.f32 %v801, 0.0
        %v3874 = vmax.f32 %v802, 0.0
        %v3875 = vmax.f32 %v803, 0.0
        %v3876 = vmax.f32 %v804, 0.0
        %v3877 = vmax.f32 %v805, 0.0
        %v3878 = vmax.f32 %v806, 0.0
        %v3879 = vmax.f32 %v807, 0.0
        %v3880 = vmax.f32 %v808, 0.0
        %v3881 = vmax.f32 %v809, 0.0
        %v3882 = vmax.f32 %v810, 0.0
        %v3883 = vmax.f32 %v811, 0.0
        %v3884 = vmax.f32 %v812, 0.0
        %v3885 = vmax.f32 %v813, 0.0
        %v3886 = vmax.f32 %v814, 0.0
        %v3887 = vmax.f32 %v815, 0.0
        %v3888 = vmax.f32 %v816, 0.0
        %v3889 = vmax.f32 %v817, 0.0
        %v3890 = vmax.f32 %v818, 0.0
        %v3891 = vmax.f32 %v819, 0.0
        %v3892 = vmax.f32 %v820, 0.0
        %v3893 = vmax.f32 %v821, 0.0
        %v3894 = vmax.f32 %v822, 0.0
        %v3895 = vmax.f32 %v823, 0.0
        %v3896 = vmax.f32 %v824, 0.0
        %v3897 = vmax.f32 %v825, 0.0
        %v3898 = vmax.f32 %v826, 0.0
        %v3899 = vmax.f32 %v827, 0.0
        %v3900 = vmax.f32 %v828, 0.0
        %v3901 = vmax.f32 %v829, 0.0
        %v3902 = vmax.f32 %v830, 0.0
        %v3903 = vmax.f32 %v831, 0.0
        %v3904 = vmax.f32 %v832, 0.0
        %v3905 = vmax.f32 %v833, 0.0
        %v3906 = vmax.f32 %v834, 0.0
        %v3907 = vmax.f32 %v835, 0.0
        %v3908 = vmax.f32 %v836, 0.0
        %v3909 = vmax.f32 %v837, 0.0
        %v3910 = vmax.f32 %v838, 0.0
        %v3911 = vmax.f32 %v839, 0.0
        %v3912 = vmax.f32 %v840, 0.0
        %v3913 = vmax.f32 %v841, 0.0
        %v3914 = vmax.f32 %v842, 0.0
        %v3915 = vmax.f32 %v843, 0.0
        %v3916 = vmax.f32 %v844, 0.0
        %v3917 = vmax.f32 %v845, 0.0
        %v3918 = vmax.f32 %v846, 0.0
        %v3919 = vmax.f32 %v847, 0.0
        %v3920 = vmax.f32 %v848, 0.0
        %v3921 = vmax.f32 %v849, 0.0
        %v3922 = vmax.f32 %v850, 0.0
        %v3923 = vmax.f32 %v851, 0.0
        %v3924 = vmax.f32 %v852, 0.0
        %v3925 = vmax.f32 %v853, 0.0
        %v3926 = vmax.f32 %v854, 0.0
        %v3927 = vmax.f32 %v855, 0.0
        %v3928 = vmax.f32 %v856, 0.0
        %v3929 = vmax.f32 %v857, 0.0
        %v3930 = vmax.f32 %v858, 0.0
        %v3931 = vmax.f32 %v859, 0.0
        %v3932 = vmax.f32 %v860, 0.0
        %v3933 = vmax.f32 %v861, 0.0
        %v3934 = vmax.f32 %v862, 0.0
        %v3935 = vmax.f32 %v863, 0.0
        %v3936 = vmax.f32 %v864, 0.0
        %v3937 = vmax.f32 %v865, 0.0
        %v3938 = vmax.f32 %v866, 0.0
        %v3939 = vmax.f32 %v867, 0.0
        %v3940 = vmax.f32 %v868, 0.0
        %v3941 = vmax.f32 %v869, 0.0
        %v3942 = vmax.f32 %v870, 0.0
        %v3943 = vmax.f32 %v871, 0.0
        %v3944 = vmax.f32 %v872, 0.0
        %v3945 = vmax.f32 %v873, 0.0
        %v3946 = vmax.f32 %v874, 0.0
        %v3947 = vmax.f32 %v875, 0.0
        %v3948 = vmax.f32 %v876, 0.0
        %v3949 = vmax.f32 %v877, 0.0
        %v3950 = vmax.f32 %v878, 0.0
        %v3951 = vmax.f32 %v879, 0.0
        %v3952 = vmax.f32 %v880, 0.0
        %v3953 = vmax.f32 %v881, 0.0
        %v3954 = vmax.f32 %v882, 0.0
        %v3955 = vmax.f32 %v883, 0.0
        %v3956 = vmax.f32 %v884, 0.0
        %v3957 = vmax.f32 %v885, 0.0
        %v3958 = vmax.f32 %v886, 0.0
        %v3959 = vmax.f32 %v887, 0.0
        %v3960 = vmax.f32 %v888, 0.0
        %v3961 = vmax.f32 %v889, 0.0
        %v3962 = vmax.f32 %v890, 0.0
        %v3963 = vmax.f32 %v891, 0.0
        %v3964 = vmax.f32 %v892, 0.0
        %v3965 = vmax.f32 %v893, 0.0
        %v3966 = vmax.f32 %v894, 0.0
        %v3967 = vmax.f32 %v895, 0.0
        %v3968 = vmax.f32 %v896, 0.0
        %v3969 = vmax.f32 %v897, 0.0
        %v3970 = vmax.f32 %v898, 0.0
        %v3971 = vmax.f32 %v899, 0.0
        %v3972 = vmax.f32 %v900, 0.0
        %v3973 = vmax.f32 %v901, 0.0
        %v3974 = vmax.f32 %v902, 0.0
        %v3975 = vmax.f32 %v903, 0.0
        %v3976 = vmax.f32 %v904, 0.0
        %v3977 = vmax.f32 %v905, 0.0
        %v3978 = vmax.f32 %v906, 0.0
        %v3979 = vmax.f32 %v907, 0.0
        %v3980 = vmax.f32 %v908, 0.0
        %v3981 = vmax.f32 %v909, 0.0
        %v3982 = vmax.f32 %v910, 0.0
        %v3983 = vmax.f32 %v911, 0.0
        %v3984 = vmax.f32 %v912, 0.0
        %v3985 = vmax.f32 %v913, 0.0
        %v3986 = vmax.f32 %v914, 0.0
        %v3987 = vmax.f32 %v915, 0.0
        %v3988 = vmax.f32 %v916, 0.0
        %v3989 = vmax.f32 %v917, 0.0
        %v3990 = vmax.f32 %v918, 0.0
        %v3991 = vmax.f32 %v919, 0.0
        %v3992 = vmax.f32 %v920, 0.0
        %v3993 = vmax.f32 %v921, 0.0
        %v3994 = vmax.f32 %v922, 0.0
        %v3995 = vmax.f32 %v923, 0.0
        %v3996 = vmax.f32 %v924, 0.0
        %v3997 = vmax.f32 %v925, 0.0
        %v3998 = vmax.f32 %v926, 0.0
        %v3999 = vmax.f32 %v927, 0.0
        %v4000 = vmax.f32 %v928, 0.0
        %v4001 = vmax.f32 %v929, 0.0
        %v4002 = vmax.f32 %v930, 0.0
        %v4003 = vmax.f32 %v931, 0.0
        %v4004 = vmax.f32 %v932, 0.0
        %v4005 = vmax.f32 %v933, 0.0
        %v4006 = vmax.f32 %v934, 0.0
        %v4007 = vmax.f32 %v935, 0.0
        %v4008 = vmax.f32 %v936, 0.0
        %v4009 = vmax.f32 %v937, 0.0
        %v4010 = vmax.f32 %v938, 0.0
        %v4011 = vmax.f32 %v939, 0.0
        %v4012 = vmax.f32 %v940, 0.0
        %v4013 = vmax.f32 %v941, 0.0
        %v4014 = vmax.f32 %v942, 0.0
        %v4015 = vmax.f32 %v943, 0.0
        %v4016 = vmax.f32 %v944, 0.0
        %v4017 = vmax.f32 %v945, 0.0
        %v4018 = vmax.f32 %v946, 0.0
        %v4019 = vmax.f32 %v947, 0.0
        %v4020 = vmax.f32 %v948, 0.0
        %v4021 = vmax.f32 %v949, 0.0
        %v4022 = vmax.f32 %v950, 0.0
        %v4023 = vmax.f32 %v951, 0.0
        %v4024 = vmax.f32 %v952, 0.0
        %v4025 = vmax.f32 %v953, 0.0
        %v4026 = vmax.f32 %v954, 0.0
        %v4027 = vmax.f32 %v955, 0.0
        %v4028 = vmax.f32 %v956, 0.0
        %v4029 = vmax.f32 %v957, 0.0
        %v4030 = vmax.f32 %v958, 0.0
        %v4031 = vmax.f32 %v959, 0.0
        %v4032 = vmax.f32 %v960, 0.0
        %v4033 = vmax.f32 %v961, 0.0
        %v4034 = vmax.f32 %v962, 0.0
        %v4035 = vmax.f32 %v963, 0.0
        %v4036 = vmax.f32 %v964, 0.0
        %v4037 = vmax.f32 %v965, 0.0
        %v4038 = vmax.f32 %v966, 0.0
        %v4039 = vmax.f32 %v967, 0.0
        %v4040 = vmax.f32 %v968, 0.0
        %v4041 = vmax.f32 %v969, 0.0
        %v4042 = vmax.f32 %v970, 0.0
        %v4043 = vmax.f32 %v971, 0.0
        %v4044 = vmax.f32 %v972, 0.0
        %v4045 = vmax.f32 %v973, 0.0
        %v4046 = vmax.f32 %v974, 0.0
        %v4047 = vmax.f32 %v975, 0.0
        %v4048 = vmax.f32 %v976, 0.0
        %v4049 = vmax.f32 %v977, 0.0
        %v4050 = vmax.f32 %v978, 0.0
        %v4051 = vmax.f32 %v979, 0.0
        %v4052 = vmax.f32 %v980, 0.0
        %v4053 = vmax.f32 %v981, 0.0
        %v4054 = vmax.f32 %v982, 0.0
        %v4055 = vmax.f32 %v983, 0.0
        %v4056 = vmax.f32 %v984, 0.0
        %v4057 = vmax.f32 %v985, 0.0
        %v4058 = vmax.f32 %v986, 0.0
        %v4059 = vmax.f32 %v987, 0.0
        %v4060 = vmax.f32 %v988, 0.0
        %v4061 = vmax.f32 %v989, 0.0
        %v4062 = vmax.f32 %v990, 0.0
        %v4063 = vmax.f32 %v991, 0.0
        %v4064 = vmax.f32 %v992, 0.0
        %v4065 = vmax.f32 %v993, 0.0
        %v4066 = vmax.f32 %v994, 0.0
        %v4067 = vmax.f32 %v995, 0.0
        %v4068 = vmax.f32 %v996, 0.0
        %v4069 = vmax.f32 %v997, 0.0
        %v4070 = vmax.f32 %v998, 0.0
        %v4071 = vmax.f32 %v999, 0.0
        %v4072 = vmax.f32 %v1000, 0.0
        %v4073 = vmax.f32 %v1001, 0.0
        %v4074 = vmax.f32 %v1002, 0.0
        %v4075 = vmax.f32 %v1003, 0.0
        %v4076 = vmax.f32 %v1004, 0.0
        %v4077 = vmax.f32 %v1005, 0.0
        %v4078 = vmax.f32 %v1006, 0.0
        %v4079 = vmax.f32 %v1007, 0.0
        %v4080 = vmax.f32 %v1008, 0.0
        %v4081 = vmax.f32 %v1009, 0.0
        %v4082 = vmax.f32 %v1010, 0.0
        %v4083 = vmax.f32 %v1011, 0.0
        %v4084 = vmax.f32 %v1012, 0.0
        %v4085 = vmax.f32 %v1013, 0.0
        %v4086 = vmax.f32 %v1014, 0.0
        %v4087 = vmax.f32 %v1015, 0.0
        %v4088 = vmax.f32 %v1016, 0.0
        %v4089 = vmax.f32 %v1017, 0.0
        %v4090 = vmax.f32 %v1018, 0.0
        %v4091 = vmax.f32 %v1019, 0.0
        %v4092 = vmax.f32 %v1020, 0.0
        %v4093 = vmax.f32 %v1021, 0.0
        %v4094 = vmax.f32 %v1022, 0.0
        %v4095 = vmax.f32 %v1023, 0.0
        %v4096 = vmax.f32 %v1024, 0.0
        %v4097 = vmax.f32 %v1025, 0.0
        %v4098 = vmax.f32 %v1026, 0.0
        %v4099 = vmax.f32 %v1027, 0.0
        %v4100 = vmax.f32 %v1028, 0.0
        %v4101 = vmax.f32 %v1029, 0.0
        %v4102 = vmax.f32 %v1030, 0.0
        %v4103 = vmax.f32 %v1031, 0.0
        %v4104 = vmax.f32 %v1032, 0.0
        %v4105 = vmax.f32 %v1033, 0.0
        %v4106 = vmax.f32 %v1034, 0.0
        %v4107 = vmax.f32 %v1035, 0.0
        %v4108 = vmax.f32 %v1036, 0.0
        %v4109 = vmax.f32 %v1037, 0.0
        %v4110 = vmax.f32 %v1038, 0.0
        %v4111 = vmax.f32 %v1039, 0.0
        %v4112 = vmax.f32 %v1040, 0.0
        %v4113 = vmax.f32 %v1041, 0.0
        %v4114 = vmax.f32 %v1042, 0.0
        %v4115 = vmax.f32 %v1043, 0.0
        %v4116 = vmax.f32 %v1044, 0.0
        %v4117 = vmax.f32 %v1045, 0.0
        %v4118 = vmax.f32 %v1046, 0.0
        %v4119 = vmax.f32 %v1047, 0.0
        %v4120 = vmax.f32 %v1048, 0.0
        %v4121 = vmax.f32 %v1049, 0.0
        %v4122 = vmax.f32 %v1050, 0.0
        %v4123 = vmax.f32 %v1051, 0.0
        %v4124 = vmax.f32 %v1052, 0.0
        %v4125 = vmax.f32 %v1053, 0.0
        %v4126 = vmax.f32 %v1054, 0.0
        %v4127 = vmax.f32 %v1055, 0.0
        %v4128 = vmax.f32 %v1056, 0.0
        %v4129 = vmax.f32 %v1057, 0.0
        %v4130 = vmax.f32 %v1058, 0.0
        %v4131 = vmax.f32 %v1059, 0.0
        %v4132 = vmax.f32 %v1060, 0.0
        %v4133 = vmax.f32 %v1061, 0.0
        %v4134 = vmax.f32 %v1062, 0.0
        %v4135 = vmax.f32 %v1063, 0.0
        %v4136 = vmax.f32 %v1064, 0.0
        %v4137 = vmax.f32 %v1065, 0.0
        %v4138 = vmax.f32 %v1066, 0.0
        %v4139 = vmax.f32 %v1067, 0.0
        %v4140 = vmax.f32 %v1068, 0.0
        %v4141 = vmax.f32 %v1069, 0.0
        %v4142 = vmax.f32 %v1070, 0.0
        %v4143 = vmax.f32 %v1071, 0.0
        %v4144 = vmax.f32 %v1072, 0.0
        %v4145 = vmax.f32 %v1073, 0.0
        %v4146 = vmax.f32 %v1074, 0.0
        %v4147 = vmax.f32 %v1075, 0.0
        %v4148 = vmax.f32 %v1076, 0.0
        %v4149 = vmax.f32 %v1077, 0.0
        %v4150 = vmax.f32 %v1078, 0.0
        %v4151 = vmax.f32 %v1079, 0.0
        %v4152 = vmax.f32 %v1080, 0.0
        %v4153 = vmax.f32 %v1081, 0.0
        %v4154 = vmax.f32 %v1082, 0.0
        %v4155 = vmax.f32 %v1083, 0.0
        %v4156 = vmax.f32 %v1084, 0.0
        %v4157 = vmax.f32 %v1085, 0.0
        %v4158 = vmax.f32 %v1086, 0.0
        %v4159 = vmax.f32 %v1087, 0.0
        %v4160 = vmax.f32 %v1088, 0.0
        %v4161 = vmax.f32 %v1089, 0.0
        %v4162 = vmax.f32 %v1090, 0.0
        %v4163 = vmax.f32 %v1091, 0.0
        %v4164 = vmax.f32 %v1092, 0.0
        %v4165 = vmax.f32 %v1093, 0.0
        %v4166 = vmax.f32 %v1094, 0.0
        %v4167 = vmax.f32 %v1095, 0.0
        %v4168 = vmax.f32 %v1096, 0.0
        %v4169 = vmax.f32 %v1097, 0.0
        %v4170 = vmax.f32 %v1098, 0.0
        %v4171 = vmax.f32 %v1099, 0.0
        %v4172 = vmax.f32 %v1100, 0.0
        %v4173 = vmax.f32 %v1101, 0.0
        %v4174 = vmax.f32 %v1102, 0.0
        %v4175 = vmax.f32 %v1103, 0.0
        %v4176 = vmax.f32 %v1104, 0.0
        %v4177 = vmax.f32 %v1105, 0.0
        %v4178 = vmax.f32 %v1106, 0.0
        %v4179 = vmax.f32 %v1107, 0.0
        %v4180 = vmax.f32 %v1108, 0.0
        %v4181 = vmax.f32 %v1109, 0.0
        %v4182 = vmax.f32 %v1110, 0.0
        %v4183 = vmax.f32 %v1111, 0.0
        %v4184 = vmax.f32 %v1112, 0.0
        %v4185 = vmax.f32 %v1113, 0.0
        %v4186 = vmax.f32 %v1114, 0.0
        %v4187 = vmax.f32 %v1115, 0.0
        %v4188 = vmax.f32 %v1116, 0.0
        %v4189 = vmax.f32 %v1117, 0.0
        %v4190 = vmax.f32 %v1118, 0.0
        %v4191 = vmax.f32 %v1119, 0.0
        %v4192 = vmax.f32 %v1120, 0.0
        %v4193 = vmax.f32 %v1121, 0.0
        %v4194 = vmax.f32 %v1122, 0.0
        %v4195 = vmax.f32 %v1123, 0.0
        %v4196 = vmax.f32 %v1124, 0.0
        %v4197 = vmax.f32 %v1125, 0.0
        %v4198 = vmax.f32 %v1126, 0.0
        %v4199 = vmax.f32 %v1127, 0.0
        %v4200 = vmax.f32 %v1128, 0.0
        %v4201 = vmax.f32 %v1129, 0.0
        %v4202 = vmax.f32 %v1130, 0.0
        %v4203 = vmax.f32 %v1131, 0.0
        %v4204 = vmax.f32 %v1132, 0.0
        %v4205 = vmax.f32 %v1133, 0.0
        %v4206 = vmax.f32 %v1134, 0.0
        %v4207 = vmax.f32 %v1135, 0.0
        %v4208 = vmax.f32 %v1136, 0.0
        %v4209 = vmax.f32 %v1137, 0.0
        %v4210 = vmax.f32 %v1138, 0.0
        %v4211 = vmax.f32 %v1139, 0.0
        %v4212 = vmax.f32 %v1140, 0.0
        %v4213 = vmax.f32 %v1141, 0.0
        %v4214 = vmax.f32 %v1142, 0.0
        %v4215 = vmax.f32 %v1143, 0.0
        %v4216 = vmax.f32 %v1144, 0.0
        %v4217 = vmax.f32 %v1145, 0.0
        %v4218 = vmax.f32 %v1146, 0.0
        %v4219 = vmax.f32 %v1147, 0.0
        %v4220 = vmax.f32 %v1148, 0.0
        %v4221 = vmax.f32 %v1149, 0.0
        %v4222 = vmax.f32 %v1150, 0.0
        %v4223 = vmax.f32 %v1151, 0.0
        %v4224 = vmax.f32 %v1152, 0.0
        %v4225 = vmax.f32 %v1153, 0.0
        %v4226 = vmax.f32 %v1154, 0.0
        %v4227 = vmax.f32 %v1155, 0.0
        %v4228 = vmax.f32 %v1156, 0.0
        %v4229 = vmax.f32 %v1157, 0.0
        %v4230 = vmax.f32 %v1158, 0.0
        %v4231 = vmax.f32 %v1159, 0.0
        %v4232 = vmax.f32 %v1160, 0.0
        %v4233 = vmax.f32 %v1161, 0.0
        %v4234 = vmax.f32 %v1162, 0.0
        %v4235 = vmax.f32 %v1163, 0.0
        %v4236 = vmax.f32 %v1164, 0.0
        %v4237 = vmax.f32 %v1165, 0.0
        %v4238 = vmax.f32 %v1166, 0.0
        %v4239 = vmax.f32 %v1167, 0.0
        %v4240 = vmax.f32 %v1168, 0.0
        %v4241 = vmax.f32 %v1169, 0.0
        %v4242 = vmax.f32 %v1170, 0.0
        %v4243 = vmax.f32 %v1171, 0.0
        %v4244 = vmax.f32 %v1172, 0.0
        %v4245 = vmax.f32 %v1173, 0.0
        %v4246 = vmax.f32 %v1174, 0.0
        %v4247 = vmax.f32 %v1175, 0.0
        %v4248 = vmax.f32 %v1176, 0.0
        %v4249 = vmax.f32 %v1177, 0.0
        %v4250 = vpow.f32 %v3226, 0.41666
        %v4251 = vpow.f32 %v3227, 0.41666
        %v4252 = vpow.f32 %v3228, 0.41666
        %v4253 = vpow.f32 %v3229, 0.41666
        %v4254 = vpow.f32 %v3230, 0.41666
        %v4255 = vpow.f32 %v3231, 0.41666
        %v4256 = vpow.f32 %v3232, 0.41666
        %v4257 = vpow.f32 %v3233, 0.41666
        %v4258 = vpow.f32 %v3234, 0.41666
        %v4259 = vpow.f32 %v3235, 0.41666
        %v4260 = vpow.f32 %v3236, 0.41666
        %v4261 = vpow.f32 %v3237, 0.41666
        %v4262 = vpow.f32 %v3238, 0.41666
        %v4263 = vpow.f32 %v3239, 0.41666
        %v4264 = vpow.f32 %v3240, 0.41666
        %v4265 = vpow.f32 %v3241, 0.41666
        %v4266 = vpow.f32 %v3242, 0.41666
        %v4267 = vpow.f32 %v3243, 0.41666
        %v4268 = vpow.f32 %v3244, 0.41666
        %v4269 = vpow.f32 %v3245, 0.41666
        %v4270 = vpow.f32 %v3246, 0.41666
        %v4271 = vpow.f32 %v3247, 0.41666
        %v4272 = vpow.f32 %v3248, 0.41666
        %v4273 = vpow.f32 %v3249, 0.41666
        %v4274 = vpow.f32 %v3250, 0.41666
        %v4275 = vpow.f32 %v3251, 0.41666
        %v4276 = vpow.f32 %v3252, 0.41666
        %v4277 = vpow.f32 %v3253, 0.41666
        %v4278 = vpow.f32 %v3254, 0.41666
        %v4279 = vpow.f32 %v3255, 0.41666
        %v4280 = vpow.f32 %v3256, 0.41666
        %v4281 = vpow.f32 %v3257, 0.41666
        %v4282 = vpow.f32 %v3258, 0.41666
        %v4283 = vpow.f32 %v3259, 0.41666
        %v4284 = vpow.f32 %v3260, 0.41666
        %v4285 = vpow.f32 %v3261, 0.41666
        %v4286 = vpow.f32 %v3262, 0.41666
        %v4287 = vpow.f32 %v3263, 0.41666
        %v4288 = vpow.f32 %v3264, 0.41666
        %v4289 = vpow.f32 %v3265, 0.41666
        %v4290 = vpow.f32 %v3266, 0.41666
        %v4291 = vpow.f32 %v3267, 0.41666
        %v4292 = vpow.f32 %v3268, 0.41666
        %v4293 = vpow.f32 %v3269, 0.41666
        %v4294 = vpow.f32 %v3270, 0.41666
        %v4295 = vpow.f32 %v3271, 0.41666
        %v4296 = vpow.f32 %v3272, 0.41666
        %v4297 = vpow.f32 %v3273, 0.41666
        %v4298 = vpow.f32 %v3274, 0.41666
        %v4299 = vpow.f32 %v3275, 0.41666
        %v4300 = vpow.f32 %v3276, 0.41666
        %v4301 = vpow.f32 %v3277, 0.41666
        %v4302 = vpow.f32 %v3278, 0.41666
        %v4303 = vpow.f32 %v3279, 0.41666
        %v4304 = vpow.f32 %v3280, 0.41666
        %v4305 = vpow.f32 %v3281, 0.41666
        %v4306 = vpow.f32 %v3282, 0.41666
        %v4307 = vpow.f32 %v3283, 0.41666
        %v4308 = vpow.f32 %v3284, 0.41666
        %v4309 = vpow.f32 %v3285, 0.41666
        %v4310 = vpow.f32 %v3286, 0.41666
        %v4311 = vpow.f32 %v3287, 0.41666
        %v4312 = vpow.f32 %v3288, 0.41666
        %v4313 = vpow.f32 %v3289, 0.41666
        %v4314 = vpow.f32 %v3290, 0.41666
        %v4315 = vpow.f32 %v3291, 0.41666
        %v4316 = vpow.f32 %v3292, 0.41666
        %v4317 = vpow.f32 %v3293, 0.41666
        %v4318 = vpow.f32 %v3294, 0.41666
        %v4319 = vpow.f32 %v3295, 0.41666
        %v4320 = vpow.f32 %v3296, 0.41666
        %v4321 = vpow.f32 %v3297, 0.41666
        %v4322 = vpow.f32 %v3298, 0.41666
        %v4323 = vpow.f32 %v3299, 0.41666
        %v4324 = vpow.f32 %v3300, 0.41666
        %v4325 = vpow.f32 %v3301, 0.41666
        %v4326 = vpow.f32 %v3302, 0.41666
        %v4327 = vpow.f32 %v3303, 0.41666
        %v4328 = vpow.f32 %v3304, 0.41666
        %v4329 = vpow.f32 %v3305, 0.41666
        %v4330 = vpow.f32 %v3306, 0.41666
        %v4331 = vpow.f32 %v3307, 0.41666
        %v4332 = vpow.f32 %v3308, 0.41666
        %v4333 = vpow.f32 %v3309, 0.41666
        %v4334 = vpow.f32 %v3310, 0.41666
        %v4335 = vpow.f32 %v3311, 0.41666
        %v4336 = vpow.f32 %v3312, 0.41666
        %v4337 = vpow.f32 %v3313, 0.41666
        %v4338 = vpow.f32 %v3314, 0.41666
        %v4339 = vpow.f32 %v3315, 0.41666
        %v4340 = vpow.f32 %v3316, 0.41666
        %v4341 = vpow.f32 %v3317, 0.41666
        %v4342 = vpow.f32 %v3318, 0.41666
        %v4343 = vpow.f32 %v3319, 0.41666
        %v4344 = vpow.f32 %v3320, 0.41666
        %v4345 = vpow.f32 %v3321, 0.41666
        %v4346 = vpow.f32 %v3322, 0.41666
        %v4347 = vpow.f32 %v3323, 0.41666
        %v4348 = vpow.f32 %v3324, 0.41666
        %v4349 = vpow.f32 %v3325, 0.41666
        %v4350 = vpow.f32 %v3326, 0.41666
        %v4351 = vpow.f32 %v3327, 0.41666
        %v4352 = vpow.f32 %v3328, 0.41666
        %v4353 = vpow.f32 %v3329, 0.41666
        %v4354 = vpow.f32 %v3330, 0.41666
        %v4355 = vpow.f32 %v3331, 0.41666
        %v4356 = vpow.f32 %v3332, 0.41666
        %v4357 = vpow.f32 %v3333, 0.41666
        %v4358 = vpow.f32 %v3334, 0.41666
        %v4359 = vpow.f32 %v3335, 0.41666
        %v4360 = vpow.f32 %v3336, 0.41666
        %v4361 = vpow.f32 %v3337, 0.41666
        %v4362 = vpow.f32 %v3338, 0.41666
        %v4363 = vpow.f32 %v3339, 0.41666
        %v4364 = vpow.f32 %v3340, 0.41666
        %v4365 = vpow.f32 %v3341, 0.41666
        %v4366 = vpow.f32 %v3342, 0.41666
        %v4367 = vpow.f32 %v3343, 0.41666
        %v4368 = vpow.f32 %v3344, 0.41666
        %v4369 = vpow.f32 %v3345, 0.41666
        %v4370 = vpow.f32 %v3346, 0.41666
        %v4371 = vpow.f32 %v3347, 0.41666
        %v4372 = vpow.f32 %v3348, 0.41666
        %v4373 = vpow.f32 %v3349, 0.41666
        %v4374 = vpow.f32 %v3350, 0.41666
        %v4375 = vpow.f32 %v3351, 0.41666
        %v4376 = vpow.f32 %v3352, 0.41666
        %v4377 = vpow.f32 %v3353, 0.41666
        %v4378 = vpow.f32 %v3354, 0.41666
        %v4379 = vpow.f32 %v3355, 0.41666
        %v4380 = vpow.f32 %v3356, 0.41666
        %v4381 = vpow.f32 %v3357, 0.41666
        %v4382 = vpow.f32 %v3358, 0.41666
        %v4383 = vpow.f32 %v3359, 0.41666
        %v4384 = vpow.f32 %v3360, 0.41666
        %v4385 = vpow.f32 %v3361, 0.41666
        %v4386 = vpow.f32 %v3362, 0.41666
        %v4387 = vpow.f32 %v3363, 0.41666
        %v4388 = vpow.f32 %v3364, 0.41666
        %v4389 = vpow.f32 %v3365, 0.41666
        %v4390 = vpow.f32 %v3366, 0.41666
        %v4391 = vpow.f32 %v3367, 0.41666
        %v4392 = vpow.f32 %v3368, 0.41666
        %v4393 = vpow.f32 %v3369, 0.41666
        %v4394 = vpow.f32 %v3370, 0.41666
        %v4395 = vpow.f32 %v3371, 0.41666
        %v4396 = vpow.f32 %v3372, 0.41666
        %v4397 = vpow.f32 %v3373, 0.41666
        %v4398 = vpow.f32 %v3374, 0.41666
        %v4399 = vpow.f32 %v3375, 0.41666
        %v4400 = vpow.f32 %v3376, 0.41666
        %v4401 = vpow.f32 %v3377, 0.41666
        %v4402 = vpow.f32 %v3378, 0.41666
        %v4403 = vpow.f32 %v3379, 0.41666
        %v4404 = vpow.f32 %v3380, 0.41666
        %v4405 = vpow.f32 %v3381, 0.41666
        %v4406 = vpow.f32 %v3382, 0.41666
        %v4407 = vpow.f32 %v3383, 0.41666
        %v4408 = vpow.f32 %v3384, 0.41666
        %v4409 = vpow.f32 %v3385, 0.41666
        %v4410 = vpow.f32 %v3386, 0.41666
        %v4411 = vpow.f32 %v3387, 0.41666
        %v4412 = vpow.f32 %v3388, 0.41666
        %v4413 = vpow.f32 %v3389, 0.41666
        %v4414 = vpow.f32 %v3390, 0.41666
        %v4415 = vpow.f32 %v3391, 0.41666
        %v4416 = vpow.f32 %v3392, 0.41666
        %v4417 = vpow.f32 %v3393, 0.41666
        %v4418 = vpow.f32 %v3394, 0.41666
        %v4419 = vpow.f32 %v3395, 0.41666
        %v4420 = vpow.f32 %v3396, 0.41666
        %v4421 = vpow.f32 %v3397, 0.41666
        %v4422 = vpow.f32 %v3398, 0.41666
        %v4423 = vpow.f32 %v3399, 0.41666
        %v4424 = vpow.f32 %v3400, 0.41666
        %v4425 = vpow.f32 %v3401, 0.41666
        %v4426 = vpow.f32 %v3402, 0.41666
        %v4427 = vpow.f32 %v3403, 0.41666
        %v4428 = vpow.f32 %v3404, 0.41666
        %v4429 = vpow.f32 %v3405, 0.41666
        %v4430 = vpow.f32 %v3406, 0.41666
        %v4431 = vpow.f32 %v3407, 0.41666
        %v4432 = vpow.f32 %v3408, 0.41666
        %v4433 = vpow.f32 %v3409, 0.41666
        %v4434 = vpow.f32 %v3410, 0.41666
        %v4435 = vpow.f32 %v3411, 0.41666
        %v4436 = vpow.f32 %v3412, 0.41666
        %v4437 = vpow.f32 %v3413, 0.41666
        %v4438 = vpow.f32 %v3414, 0.41666
        %v4439 = vpow.f32 %v3415, 0.41666
        %v4440 = vpow.f32 %v3416, 0.41666
        %v4441 = vpow.f32 %v3417, 0.41666
        %v4442 = vpow.f32 %v3418, 0.41666
        %v4443 = vpow.f32 %v3419, 0.41666
        %v4444 = vpow.f32 %v3420, 0.41666
        %v4445 = vpow.f32 %v3421, 0.41666
        %v4446 = vpow.f32 %v3422, 0.41666
        %v4447 = vpow.f32 %v3423, 0.41666
        %v4448 = vpow.f32 %v3424, 0.41666
        %v4449 = vpow.f32 %v3425, 0.41666
        %v4450 = vpow.f32 %v3426, 0.41666
        %v4451 = vpow.f32 %v3427, 0.41666
        %v4452 = vpow.f32 %v3428, 0.41666
        %v4453 = vpow.f32 %v3429, 0.41666
        %v4454 = vpow.f32 %v3430, 0.41666
        %v4455 = vpow.f32 %v3431, 0.41666
        %v4456 = vpow.f32 %v3432, 0.41666
        %v4457 = vpow.f32 %v3433, 0.41666
        %v4458 = vpow.f32 %v3434, 0.41666
        %v4459 = vpow.f32 %v3435, 0.41666
        %v4460 = vpow.f32 %v3436, 0.41666
        %v4461 = vpow.f32 %v3437, 0.41666
        %v4462 = vpow.f32 %v3438, 0.41666
        %v4463 = vpow.f32 %v3439, 0.41666
        %v4464 = vpow.f32 %v3440, 0.41666
        %v4465 = vpow.f32 %v3441, 0.41666
        %v4466 = vpow.f32 %v3442, 0.41666
        %v4467 = vpow.f32 %v3443, 0.41666
        %v4468 = vpow.f32 %v3444, 0.41666
        %v4469 = vpow.f32 %v3445, 0.41666
        %v4470 = vpow.f32 %v3446, 0.41666
        %v4471 = vpow.f32 %v3447, 0.41666
        %v4472 = vpow.f32 %v3448, 0.41666
        %v4473 = vpow.f32 %v3449, 0.41666
        %v4474 = vpow.f32 %v3450, 0.41666
        %v4475 = vpow.f32 %v3451, 0.41666
        %v4476 = vpow.f32 %v3452, 0.41666
        %v4477 = vpow.f32 %v3453, 0.41666
        %v4478 = vpow.f32 %v3454, 0.41666
        %v4479 = vpow.f32 %v3455, 0.41666
        %v4480 = vpow.f32 %v3456, 0.41666
        %v4481 = vpow.f32 %v3457, 0.41666
        %v4482 = vpow.f32 %v3458, 0.41666
        %v4483 = vpow.f32 %v3459, 0.41666
        %v4484 = vpow.f32 %v3460, 0.41666
        %v4485 = vpow.f32 %v3461, 0.41666
        %v4486 = vpow.f32 %v3462, 0.41666
        %v4487 = vpow.f32 %v3463, 0.41666
        %v4488 = vpow.f32 %v3464, 0.41666
        %v4489 = vpow.f32 %v3465, 0.41666
        %v4490 = vpow.f32 %v3466, 0.41666
        %v4491 = vpow.f32 %v3467, 0.41666
        %v4492 = vpow.f32 %v3468, 0.41666
        %v4493 = vpow.f32 %v3469, 0.41666
        %v4494 = vpow.f32 %v3470, 0.41666
        %v4495 = vpow.f32 %v3471, 0.41666
        %v4496 = vpow.f32 %v3472, 0.41666
        %v4497 = vpow.f32 %v3473, 0.41666
        %v4498 = vpow.f32 %v3474, 0.41666
        %v4499 = vpow.f32 %v3475, 0.41666
        %v4500 = vpow.f32 %v3476, 0.41666
        %v4501 = vpow.f32 %v3477, 0.41666
        %v4502 = vpow.f32 %v3478, 0.41666
        %v4503 = vpow.f32 %v3479, 0.41666
        %v4504 = vpow.f32 %v3480, 0.41666
        %v4505 = vpow.f32 %v3481, 0.41666
        %v4506 = vpow.f32 %v3482, 0.41666
        %v4507 = vpow.f32 %v3483, 0.41666
        %v4508 = vpow.f32 %v3484, 0.41666
        %v4509 = vpow.f32 %v3485, 0.41666
        %v4510 = vpow.f32 %v3486, 0.41666
        %v4511 = vpow.f32 %v3487, 0.41666
        %v4512 = vpow.f32 %v3488, 0.41666
        %v4513 = vpow.f32 %v3489, 0.41666
        %v4514 = vpow.f32 %v3490, 0.41666
        %v4515 = vpow.f32 %v3491, 0.41666
        %v4516 = vpow.f32 %v3492, 0.41666
        %v4517 = vpow.f32 %v3493, 0.41666
        %v4518 = vpow.f32 %v3494, 0.41666
        %v4519 = vpow.f32 %v3495, 0.41666
        %v4520 = vpow.f32 %v3496, 0.41666
        %v4521 = vpow.f32 %v3497, 0.41666
        %v4522 = vpow.f32 %v3498, 0.41666
        %v4523 = vpow.f32 %v3499, 0.41666
        %v4524 = vpow.f32 %v3500, 0.41666
        %v4525 = vpow.f32 %v3501, 0.41666
        %v4526 = vpow.f32 %v3502, 0.41666
        %v4527 = vpow.f32 %v3503, 0.41666
        %v4528 = vpow.f32 %v3504, 0.41666
        %v4529 = vpow.f32 %v3505, 0.41666
        %v4530 = vpow.f32 %v3506, 0.41666
        %v4531 = vpow.f32 %v3507, 0.41666
        %v4532 = vpow.f32 %v3508, 0.41666
        %v4533 = vpow.f32 %v3509, 0.41666
        %v4534 = vpow.f32 %v3510, 0.41666
        %v4535 = vpow.f32 %v3511, 0.41666
        %v4536 = vpow.f32 %v3512, 0.41666
        %v4537 = vpow.f32 %v3513, 0.41666
        %v4538 = vpow.f32 %v3514, 0.41666
        %v4539 = vpow.f32 %v3515, 0.41666
        %v4540 = vpow.f32 %v3516, 0.41666
        %v4541 = vpow.f32 %v3517, 0.41666
        %v4542 = vpow.f32 %v3518, 0.41666
        %v4543 = vpow.f32 %v3519, 0.41666
        %v4544 = vpow.f32 %v3520, 0.41666
        %v4545 = vpow.f32 %v3521, 0.41666
        %v4546 = vpow.f32 %v3522, 0.41666
        %v4547 = vpow.f32 %v3523, 0.41666
        %v4548 = vpow.f32 %v3524, 0.41666
        %v4549 = vpow.f32 %v3525, 0.41666
        %v4550 = vpow.f32 %v3526, 0.41666
        %v4551 = vpow.f32 %v3527, 0.41666
        %v4552 = vpow.f32 %v3528, 0.41666
        %v4553 = vpow.f32 %v3529, 0.41666
        %v4554 = vpow.f32 %v3530, 0.41666
        %v4555 = vpow.f32 %v3531, 0.41666
        %v4556 = vpow.f32 %v3532, 0.41666
        %v4557 = vpow.f32 %v3533, 0.41666
        %v4558 = vpow.f32 %v3534, 0.41666
        %v4559 = vpow.f32 %v3535, 0.41666
        %v4560 = vpow.f32 %v3536, 0.41666
        %v4561 = vpow.f32 %v3537, 0.41666
        %v4562 = vpow.f32 %v3538, 0.41666
        %v4563 = vpow.f32 %v3539, 0.41666
        %v4564 = vpow.f32 %v3540, 0.41666
        %v4565 = vpow.f32 %v3541, 0.41666
        %v4566 = vpow.f32 %v3542, 0.41666
        %v4567 = vpow.f32 %v3543, 0.41666
        %v4568 = vpow.f32 %v3544, 0.41666
        %v4569 = vpow.f32 %v3545, 0.41666
        %v4570 = vpow.f32 %v3546, 0.41666
        %v4571 = vpow.f32 %v3547, 0.41666
        %v4572 = vpow.f32 %v3548, 0.41666
        %v4573 = vpow.f32 %v3549, 0.41666
        %v4574 = vpow.f32 %v3550, 0.41666
        %v4575 = vpow.f32 %v3551, 0.41666
        %v4576 = vpow.f32 %v3552, 0.41666
        %v4577 = vpow.f32 %v3553, 0.41666
        %v4578 = vpow.f32 %v3554, 0.41666
        %v4579 = vpow.f32 %v3555, 0.41666
        %v4580 = vpow.f32 %v3556, 0.41666
        %v4581 = vpow.f32 %v3557, 0.41666
        %v4582 = vpow.f32 %v3558, 0.41666
        %v4583 = vpow.f32 %v3559, 0.41666
        %v4584 = vpow.f32 %v3560, 0.41666
        %v4585 = vpow.f32 %v3561, 0.41666
        %v4586 = vpow.f32 %v3562, 0.41666
        %v4587 = vpow.f32 %v3563, 0.41666
        %v4588 = vpow.f32 %v3564, 0.41666
        %v4589 = vpow.f32 %v3565, 0.41666
        %v4590 = vpow.f32 %v3566, 0.41666
        %v4591 = vpow.f32 %v3567, 0.41666
        %v4592 = vpow.f32 %v3568, 0.41666
        %v4593 = vpow.f32 %v3569, 0.41666
        %v4594 = vpow.f32 %v3570, 0.41666
        %v4595 = vpow.f32 %v3571, 0.41666
        %v4596 = vpow.f32 %v3572, 0.41666
        %v4597 = vpow.f32 %v3573, 0.41666
        %v4598 = vpow.f32 %v3574, 0.41666
        %v4599 = vpow.f32 %v3575, 0.41666
        %v4600 = vpow.f32 %v3576, 0.41666
        %v4601 = vpow.f32 %v3577, 0.41666
        %v4602 = vpow.f32 %v3578, 0.41666
        %v4603 = vpow.f32 %v3579, 0.41666
        %v4604 = vpow.f32 %v3580, 0.41666
        %v4605 = vpow.f32 %v3581, 0.41666
        %v4606 = vpow.f32 %v3582, 0.41666
        %v4607 = vpow.f32 %v3583, 0.41666
        %v4608 = vpow.f32 %v3584, 0.41666
        %v4609 = vpow.f32 %v3585, 0.41666
        %v4610 = vpow.f32 %v3586, 0.41666
        %v4611 = vpow.f32 %v3587, 0.41666
        %v4612 = vpow.f32 %v3588, 0.41666
        %v4613 = vpow.f32 %v3589, 0.41666
        %v4614 = vpow.f32 %v3590, 0.41666
        %v4615 = vpow.f32 %v3591, 0.41666
        %v4616 = vpow.f32 %v3592, 0.41666
        %v4617 = vpow.f32 %v3593, 0.41666
        %v4618 = vpow.f32 %v3594, 0.41666
        %v4619 = vpow.f32 %v3595, 0.41666
        %v4620 = vpow.f32 %v3596, 0.41666
        %v4621 = vpow.f32 %v3597, 0.41666
        %v4622 = vpow.f32 %v3598, 0.41666
        %v4623 = vpow.f32 %v3599, 0.41666
        %v4624 = vpow.f32 %v3600, 0.41666
        %v4625 = vpow.f32 %v3601, 0.41666
        %v4626 = vpow.f32 %v3602, 0.41666
        %v4627 = vpow.f32 %v3603, 0.41666
        %v4628 = vpow.f32 %v3604, 0.41666
        %v4629 = vpow.f32 %v3605, 0.41666
        %v4630 = vpow.f32 %v3606, 0.41666
        %v4631 = vpow.f32 %v3607, 0.41666
        %v4632 = vpow.f32 %v3608, 0.41666
        %v4633 = vpow.f32 %v3609, 0.41666
        %v4634 = vpow.f32 %v3610, 0.41666
        %v4635 = vpow.f32 %v3611, 0.41666
        %v4636 = vpow.f32 %v3612, 0.41666
        %v4637 = vpow.f32 %v3613, 0.41666
        %v4638 = vpow.f32 %v3614, 0.41666
        %v4639 = vpow.f32 %v3615, 0.41666
        %v4640 = vpow.f32 %v3616, 0.41666
        %v4641 = vpow.f32 %v3617, 0.41666
        %v4642 = vpow.f32 %v3618, 0.41666
        %v4643 = vpow.f32 %v3619, 0.41666
        %v4644 = vpow.f32 %v3620, 0.41666
        %v4645 = vpow.f32 %v3621, 0.41666
        %v4646 = vpow.f32 %v3622, 0.41666
        %v4647 = vpow.f32 %v3623, 0.41666
        %v4648 = vpow.f32 %v3624, 0.41666
        %v4649 = vpow.f32 %v3625, 0.41666
        %v4650 = vpow.f32 %v3626, 0.41666
        %v4651 = vpow.f32 %v3627, 0.41666
        %v4652 = vpow.f32 %v3628, 0.41666
        %v4653 = vpow.f32 %v3629, 0.41666
        %v4654 = vpow.f32 %v3630, 0.41666
        %v4655 = vpow.f32 %v3631, 0.41666
        %v4656 = vpow.f32 %v3632, 0.41666
        %v4657 = vpow.f32 %v3633, 0.41666
        %v4658 = vpow.f32 %v3634, 0.41666
        %v4659 = vpow.f32 %v3635, 0.41666
        %v4660 = vpow.f32 %v3636, 0.41666
        %v4661 = vpow.f32 %v3637, 0.41666
        %v4662 = vpow.f32 %v3638, 0.41666
        %v4663 = vpow.f32 %v3639, 0.41666
        %v4664 = vpow.f32 %v3640, 0.41666
        %v4665 = vpow.f32 %v3641, 0.41666
        %v4666 = vpow.f32 %v3642, 0.41666
        %v4667 = vpow.f32 %v3643, 0.41666
        %v4668 = vpow.f32 %v3644, 0.41666
        %v4669 = vpow.f32 %v3645, 0.41666
        %v4670 = vpow.f32 %v3646, 0.41666
        %v4671 = vpow.f32 %v3647, 0.41666
        %v4672 = vpow.f32 %v3648, 0.41666
        %v4673 = vpow.f32 %v3649, 0.41666
        %v4674 = vpow.f32 %v3650, 0.41666
        %v4675 = vpow.f32 %v3651, 0.41666
        %v4676 = vpow.f32 %v3652, 0.41666
        %v4677 = vpow.f32 %v3653, 0.41666
        %v4678 = vpow.f32 %v3654, 0.41666
        %v4679 = vpow.f32 %v3655, 0.41666
        %v4680 = vpow.f32 %v3656, 0.41666
        %v4681 = vpow.f32 %v3657, 0.41666
        %v4682 = vpow.f32 %v3658, 0.41666
        %v4683 = vpow.f32 %v3659, 0.41666
        %v4684 = vpow.f32 %v3660, 0.41666
        %v4685 = vpow.f32 %v3661, 0.41666
        %v4686 = vpow.f32 %v3662, 0.41666
        %v4687 = vpow.f32 %v3663, 0.41666
        %v4688 = vpow.f32 %v3664, 0.41666
        %v4689 = vpow.f32 %v3665, 0.41666
        %v4690 = vpow.f32 %v3666, 0.41666
        %v4691 = vpow.f32 %v3667, 0.41666
        %v4692 = vpow.f32 %v3668, 0.41666
        %v4693 = vpow.f32 %v3669, 0.41666
        %v4694 = vpow.f32 %v3670, 0.41666
        %v4695 = vpow.f32 %v3671, 0.41666
        %v4696 = vpow.f32 %v3672, 0.41666
        %v4697 = vpow.f32 %v3673, 0.41666
        %v4698 = vpow.f32 %v3674, 0.41666
        %v4699 = vpow.f32 %v3675, 0.41666
        %v4700 = vpow.f32 %v3676, 0.41666
        %v4701 = vpow.f32 %v3677, 0.41666
        %v4702 = vpow.f32 %v3678, 0.41666
        %v4703 = vpow.f32 %v3679, 0.41666
        %v4704 = vpow.f32 %v3680, 0.41666
        %v4705 = vpow.f32 %v3681, 0.41666
        %v4706 = vpow.f32 %v3682, 0.41666
        %v4707 = vpow.f32 %v3683, 0.41666
        %v4708 = vpow.f32 %v3684, 0.41666
        %v4709 = vpow.f32 %v3685, 0.41666
        %v4710 = vpow.f32 %v3686, 0.41666
        %v4711 = vpow.f32 %v3687, 0.41666
        %v4712 = vpow.f32 %v3688, 0.41666
        %v4713 = vpow.f32 %v3689, 0.41666
        %v4714 = vpow.f32 %v3690, 0.41666
        %v4715 = vpow.f32 %v3691, 0.41666
        %v4716 = vpow.f32 %v3692, 0.41666
        %v4717 = vpow.f32 %v3693, 0.41666
        %v4718 = vpow.f32 %v3694, 0.41666
        %v4719 = vpow.f32 %v3695, 0.41666
        %v4720 = vpow.f32 %v3696, 0.41666
        %v4721 = vpow.f32 %v3697, 0.41666
        %v4722 = vpow.f32 %v3698, 0.41666
        %v4723 = vpow.f32 %v3699, 0.41666
        %v4724 = vpow.f32 %v3700, 0.41666
        %v4725 = vpow.f32 %v3701, 0.41666
        %v4726 = vpow.f32 %v3702, 0.41666
        %v4727 = vpow.f32 %v3703, 0.41666
        %v4728 = vpow.f32 %v3704, 0.41666
        %v4729 = vpow.f32 %v3705, 0.41666
        %v4730 = vpow.f32 %v3706, 0.41666
        %v4731 = vpow.f32 %v3707, 0.41666
        %v4732 = vpow.f32 %v3708, 0.41666
        %v4733 = vpow.f32 %v3709, 0.41666
        %v4734 = vpow.f32 %v3710, 0.41666
        %v4735 = vpow.f32 %v3711, 0.41666
        %v4736 = vpow.f32 %v3712, 0.41666
        %v4737 = vpow.f32 %v3713, 0.41666
        %v4738 = vpow.f32 %v3714, 0.41666
        %v4739 = vpow.f32 %v3715, 0.41666
        %v4740 = vpow.f32 %v3716, 0.41666
        %v4741 = vpow.f32 %v3717, 0.41666
        %v4742 = vpow.f32 %v3718, 0.41666
        %v4743 = vpow.f32 %v3719, 0.41666
        %v4744 = vpow.f32 %v3720, 0.41666
        %v4745 = vpow.f32 %v3721, 0.41666
        %v4746 = vpow.f32 %v3722, 0.41666
        %v4747 = vpow.f32 %v3723, 0.41666
        %v4748 = vpow.f32 %v3724, 0.41666
        %v4749 = vpow.f32 %v3725, 0.41666
        %v4750 = vpow.f32 %v3726, 0.41666
        %v4751 = vpow.f32 %v3727, 0.41666
        %v4752 = vpow.f32 %v3728, 0.41666
        %v4753 = vpow.f32 %v3729, 0.41666
        %v4754 = vpow.f32 %v3730, 0.41666
        %v4755 = vpow.f32 %v3731, 0.41666
        %v4756 = vpow.f32 %v3732, 0.41666
        %v4757 = vpow.f32 %v3733, 0.41666
        %v4758 = vpow.f32 %v3734, 0.41666
        %v4759 = vpow.f32 %v3735, 0.41666
        %v4760 = vpow.f32 %v3736, 0.41666
        %v4761 = vpow.f32 %v3737, 0.41666
        %v4762 = vpow.f32 %v3738, 0.41666
        %v4763 = vpow.f32 %v3739, 0.41666
        %v4764 = vpow.f32 %v3740, 0.41666
        %v4765 = vpow.f32 %v3741, 0.41666
        %v4766 = vpow.f32 %v3742, 0.41666
        %v4767 = vpow.f32 %v3743, 0.41666
        %v4768 = vpow.f32 %v3744, 0.41666
        %v4769 = vpow.f32 %v3745, 0.41666
        %v4770 = vpow.f32 %v3746, 0.41666
        %v4771 = vpow.f32 %v3747, 0.41666
        %v4772 = vpow.f32 %v3748, 0.41666
        %v4773 = vpow.f32 %v3749, 0.41666
        %v4774 = vpow.f32 %v3750, 0.41666
        %v4775 = vpow.f32 %v3751, 0.41666
        %v4776 = vpow.f32 %v3752, 0.41666
        %v4777 = vpow.f32 %v3753, 0.41666
        %v4778 = vpow.f32 %v3754, 0.41666
        %v4779 = vpow.f32 %v3755, 0.41666
        %v4780 = vpow.f32 %v3756, 0.41666
        %v4781 = vpow.f32 %v3757, 0.41666
        %v4782 = vpow.f32 %v3758, 0.41666
        %v4783 = vpow.f32 %v3759, 0.41666
        %v4784 = vpow.f32 %v3760, 0.41666
        %v4785 = vpow.f32 %v3761, 0.41666
        %v4786 = vpow.f32 %v3762, 0.41666
        %v4787 = vpow.f32 %v3763, 0.41666
        %v4788 = vpow.f32 %v3764, 0.41666
        %v4789 = vpow.f32 %v3765, 0.41666
        %v4790 = vpow.f32 %v3766, 0.41666
        %v4791 = vpow.f32 %v3767, 0.41666
        %v4792 = vpow.f32 %v3768, 0.41666
        %v4793 = vpow.f32 %v3769, 0.41666
        %v4794 = vpow.f32 %v3770, 0.41666
        %v4795 = vpow.f32 %v3771, 0.41666
        %v4796 = vpow.f32 %v3772, 0.41666
        %v4797 = vpow.f32 %v3773, 0.41666
        %v4798 = vpow.f32 %v3774, 0.41666
        %v4799 = vpow.f32 %v3775, 0.41666
        %v4800 = vpow.f32 %v3776, 0.41666
        %v4801 = vpow.f32 %v3777, 0.41666
        %v4802 = vpow.f32 %v3778, 0.41666
        %v4803 = vpow.f32 %v3779, 0.41666
        %v4804 = vpow.f32 %v3780, 0.41666
        %v4805 = vpow.f32 %v3781, 0.41666
        %v4806 = vpow.f32 %v3782, 0.41666
        %v4807 = vpow.f32 %v3783, 0.41666
        %v4808 = vpow.f32 %v3784, 0.41666
        %v4809 = vpow.f32 %v3785, 0.41666
        %v4810 = vpow.f32 %v3786, 0.41666
        %v4811 = vpow.f32 %v3787, 0.41666
        %v4812 = vpow.f32 %v3788, 0.41666
        %v4813 = vpow.f32 %v3789, 0.41666
        %v4814 = vpow.f32 %v3790, 0.41666
        %v4815 = vpow.f32 %v3791, 0.41666
        %v4816 = vpow.f32 %v3792, 0.41666
        %v4817 = vpow.f32 %v3793, 0.41666
        %v4818 = vpow.f32 %v3794, 0.41666
        %v4819 = vpow.f32 %v3795, 0.41666
        %v4820 = vpow.f32 %v3796, 0.41666
        %v4821 = vpow.f32 %v3797, 0.41666
        %v4822 = vpow.f32 %v3798, 0.41666
        %v4823 = vpow.f32 %v3799, 0.41666
        %v4824 = vpow.f32 %v3800, 0.41666
        %v4825 = vpow.f32 %v3801, 0.41666
        %v4826 = vpow.f32 %v3802, 0.41666
        %v4827 = vpow.f32 %v3803, 0.41666
        %v4828 = vpow.f32 %v3804, 0.41666
        %v4829 = vpow.f32 %v3805, 0.41666
        %v4830 = vpow.f32 %v3806, 0.41666
        %v4831 = vpow.f32 %v3807, 0.41666
        %v4832 = vpow.f32 %v3808, 0.41666
        %v4833 = vpow.f32 %v3809, 0.41666
        %v4834 = vpow.f32 %v3810, 0.41666
        %v4835 = vpow.f32 %v3811, 0.41666
        %v4836 = vpow.f32 %v3812, 0.41666
        %v4837 = vpow.f32 %v3813, 0.41666
        %v4838 = vpow.f32 %v3814, 0.41666
        %v4839 = vpow.f32 %v3815, 0.41666
        %v4840 = vpow.f32 %v3816, 0.41666
        %v4841 = vpow.f32 %v3817, 0.41666
        %v4842 = vpow.f32 %v3818, 0.41666
        %v4843 = vpow.f32 %v3819, 0.41666
        %v4844 = vpow.f32 %v3820, 0.41666
        %v4845 = vpow.f32 %v3821, 0.41666
        %v4846 = vpow.f32 %v3822, 0.41666
        %v4847 = vpow.f32 %v3823, 0.41666
        %v4848 = vpow.f32 %v3824, 0.41666
        %v4849 = vpow.f32 %v3825, 0.41666
        %v4850 = vpow.f32 %v3826, 0.41666
        %v4851 = vpow.f32 %v3827, 0.41666
        %v4852 = vpow.f32 %v3828, 0.41666
        %v4853 = vpow.f32 %v3829, 0.41666
        %v4854 = vpow.f32 %v3830, 0.41666
        %v4855 = vpow.f32 %v3831, 0.41666
        %v4856 = vpow.f32 %v3832, 0.41666
        %v4857 = vpow.f32 %v3833, 0.41666
        %v4858 = vpow.f32 %v3834, 0.41666
        %v4859 = vpow.f32 %v3835, 0.41666
        %v4860 = vpow.f32 %v3836, 0.41666
        %v4861 = vpow.f32 %v3837, 0.41666
        %v4862 = vpow.f32 %v3838, 0.41666
        %v4863 = vpow.f32 %v3839, 0.41666
        %v4864 = vpow.f32 %v3840, 0.41666
        %v4865 = vpow.f32 %v3841, 0.41666
        %v4866 = vpow.f32 %v3842, 0.41666
        %v4867 = vpow.f32 %v3843, 0.41666
        %v4868 = vpow.f32 %v3844, 0.41666
        %v4869 = vpow.f32 %v3845, 0.41666
        %v4870 = vpow.f32 %v3846, 0.41666
        %v4871 = vpow.f32 %v3847, 0.41666
        %v4872 = vpow.f32 %v3848, 0.41666
        %v4873 = vpow.f32 %v3849, 0.41666
        %v4874 = vpow.f32 %v3850, 0.41666
        %v4875 = vpow.f32 %v3851, 0.41666
        %v4876 = vpow.f32 %v3852, 0.41666
        %v4877 = vpow.f32 %v3853, 0.41666
        %v4878 = vpow.f32 %v3854, 0.41666
        %v4879 = vpow.f32 %v3855, 0.41666
        %v4880 = vpow.f32 %v3856, 0.41666
        %v4881 = vpow.f32 %v3857, 0.41666
        %v4882 = vpow.f32 %v3858, 0.41666
        %v4883 = vpow.f32 %v3859, 0.41666
        %v4884 = vpow.f32 %v3860, 0.41666
        %v4885 = vpow.f32 %v3861, 0.41666
        %v4886 = vpow.f32 %v3862, 0.41666
        %v4887 = vpow.f32 %v3863, 0.41666
        %v4888 = vpow.f32 %v3864, 0.41666
        %v4889 = vpow.f32 %v3865, 0.41666
        %v4890 = vpow.f32 %v3866, 0.41666
        %v4891 = vpow.f32 %v3867, 0.41666
        %v4892 = vpow.f32 %v3868, 0.41666
        %v4893 = vpow.f32 %v3869, 0.41666
        %v4894 = vpow.f32 %v3870, 0.41666
        %v4895 = vpow.f32 %v3871, 0.41666
        %v4896 = vpow.f32 %v3872, 0.41666
        %v4897 = vpow.f32 %v3873, 0.41666
        %v4898 = vpow.f32 %v3874, 0.41666
        %v4899 = vpow.f32 %v3875, 0.41666
        %v4900 = vpow.f32 %v3876, 0.41666
        %v4901 = vpow.f32 %v3877, 0.41666
        %v4902 = vpow.f32 %v3878, 0.41666
        %v4903 = vpow.f32 %v3879, 0.41666
        %v4904 = vpow.f32 %v3880, 0.41666
        %v4905 = vpow.f32 %v3881, 0.41666
        %v4906 = vpow.f32 %v3882, 0.41666
        %v4907 = vpow.f32 %v3883, 0.41666
        %v4908 = vpow.f32 %v3884, 0.41666
        %v4909 = vpow.f32 %v3885, 0.41666
        %v4910 = vpow.f32 %v3886, 0.41666
        %v4911 = vpow.f32 %v3887, 0.41666
        %v4912 = vpow.f32 %v3888, 0.41666
        %v4913 = vpow.f32 %v3889, 0.41666
        %v4914 = vpow.f32 %v3890, 0.41666
        %v4915 = vpow.f32 %v3891, 0.41666
        %v4916 = vpow.f32 %v3892, 0.41666
        %v4917 = vpow.f32 %v3893, 0.41666
        %v4918 = vpow.f32 %v3894, 0.41666
        %v4919 = vpow.f32 %v3895, 0.41666
        %v4920 = vpow.f32 %v3896, 0.41666
        %v4921 = vpow.f32 %v3897, 0.41666
        %v4922 = vpow.f32 %v3898, 0.41666
        %v4923 = vpow.f32 %v3899, 0.41666
        %v4924 = vpow.f32 %v3900, 0.41666
        %v4925 = vpow.f32 %v3901, 0.41666
        %v4926 = vpow.f32 %v3902, 0.41666
        %v4927 = vpow.f32 %v3903, 0.41666
        %v4928 = vpow.f32 %v3904, 0.41666
        %v4929 = vpow.f32 %v3905, 0.41666
        %v4930 = vpow.f32 %v3906, 0.41666
        %v4931 = vpow.f32 %v3907, 0.41666
        %v4932 = vpow.f32 %v3908, 0.41666
        %v4933 = vpow.f32 %v3909, 0.41666
        %v4934 = vpow.f32 %v3910, 0.41666
        %v4935 = vpow.f32 %v3911, 0.41666
        %v4936 = vpow.f32 %v3912, 0.41666
        %v4937 = vpow.f32 %v3913, 0.41666
        %v4938 = vpow.f32 %v3914, 0.41666
        %v4939 = vpow.f32 %v3915, 0.41666
        %v4940 = vpow.f32 %v3916, 0.41666
        %v4941 = vpow.f32 %v3917, 0.41666
        %v4942 = vpow.f32 %v3918, 0.41666
        %v4943 = vpow.f32 %v3919, 0.41666
        %v4944 = vpow.f32 %v3920, 0.41666
        %v4945 = vpow.f32 %v3921, 0.41666
        %v4946 = vpow.f32 %v3922, 0.41666
        %v4947 = vpow.f32 %v3923, 0.41666
        %v4948 = vpow.f32 %v3924, 0.41666
        %v4949 = vpow.f32 %v3925, 0.41666
        %v4950 = vpow.f32 %v3926, 0.41666
        %v4951 = vpow.f32 %v3927, 0.41666
        %v4952 = vpow.f32 %v3928, 0.41666
        %v4953 = vpow.f32 %v3929, 0.41666
        %v4954 = vpow.f32 %v3930, 0.41666
        %v4955 = vpow.f32 %v3931, 0.41666
        %v4956 = vpow.f32 %v3932, 0.41666
        %v4957 = vpow.f32 %v3933, 0.41666
        %v4958 = vpow.f32 %v3934, 0.41666
        %v4959 = vpow.f32 %v3935, 0.41666
        %v4960 = vpow.f32 %v3936, 0.41666
        %v4961 = vpow.f32 %v3937, 0.41666
        %v4962 = vpow.f32 %v3938, 0.41666
        %v4963 = vpow.f32 %v3939, 0.41666
        %v4964 = vpow.f32 %v3940, 0.41666
        %v4965 = vpow.f32 %v3941, 0.41666
        %v4966 = vpow.f32 %v3942, 0.41666
        %v4967 = vpow.f32 %v3943, 0.41666
        %v4968 = vpow.f32 %v3944, 0.41666
        %v4969 = vpow.f32 %v3945, 0.41666
        %v4970 = vpow.f32 %v3946, 0.41666
        %v4971 = vpow.f32 %v3947, 0.41666
        %v4972 = vpow.f32 %v3948, 0.41666
        %v4973 = vpow.f32 %v3949, 0.41666
        %v4974 = vpow.f32 %v3950, 0.41666
        %v4975 = vpow.f32 %v3951, 0.41666
        %v4976 = vpow.f32 %v3952, 0.41666
        %v4977 = vpow.f32 %v3953, 0.41666
        %v4978 = vpow.f32 %v3954, 0.41666
        %v4979 = vpow.f32 %v3955, 0.41666
        %v4980 = vpow.f32 %v3956, 0.41666
        %v4981 = vpow.f32 %v3957, 0.41666
        %v4982 = vpow.f32 %v3958, 0.41666
        %v4983 = vpow.f32 %v3959, 0.41666
        %v4984 = vpow.f32 %v3960, 0.41666
        %v4985 = vpow.f32 %v3961, 0.41666
        %v4986 = vpow.f32 %v3962, 0.41666
        %v4987 = vpow.f32 %v3963, 0.41666
        %v4988 = vpow.f32 %v3964, 0.41666
        %v4989 = vpow.f32 %v3965, 0.41666
        %v4990 = vpow.f32 %v3966, 0.41666
        %v4991 = vpow.f32 %v3967, 0.41666
        %v4992 = vpow.f32 %v3968, 0.41666
        %v4993 = vpow.f32 %v3969, 0.41666
        %v4994 = vpow.f32 %v3970, 0.41666
        %v4995 = vpow.f32 %v3971, 0.41666
        %v4996 = vpow.f32 %v3972, 0.41666
        %v4997 = vpow.f32 %v3973, 0.41666
        %v4998 = vpow.f32 %v3974, 0.41666
        %v4999 = vpow.f32 %v3975, 0.41666
        %v5000 = vpow.f32 %v3976, 0.41666
        %v5001 = vpow.f32 %v3977, 0.41666
        %v5002 = vpow.f32 %v3978, 0.41666
        %v5003 = vpow.f32 %v3979, 0.41666
        %v5004 = vpow.f32 %v3980, 0.41666
        %v5005 = vpow.f32 %v3981, 0.41666
        %v5006 = vpow.f32 %v3982, 0.41666
        %v5007 = vpow.f32 %v3983, 0.41666
        %v5008 = vpow.f32 %v3984, 0.41666
        %v5009 = vpow.f32 %v3985, 0.41666
        %v5010 = vpow.f32 %v3986, 0.41666
        %v5011 = vpow.f32 %v3987, 0.41666
        %v5012 = vpow.f32 %v3988, 0.41666
        %v5013 = vpow.f32 %v3989, 0.41666
        %v5014 = vpow.f32 %v3990, 0.41666
        %v5015 = vpow.f32 %v3991, 0.41666
        %v5016 = vpow.f32 %v3992, 0.41666
        %v5017 = vpow.f32 %v3993, 0.41666
        %v5018 = vpow.f32 %v3994, 0.41666
        %v5019 = vpow.f32 %v3995, 0.41666
        %v5020 = vpow.f32 %v3996, 0.41666
        %v5021 = vpow.f32 %v3997, 0.41666
        %v5022 = vpow.f32 %v3998, 0.41666
        %v5023 = vpow.f32 %v3999, 0.41666
        %v5024 = vpow.f32 %v4000, 0.41666
        %v5025 = vpow.f32 %v4001, 0.41666
        %v5026 = vpow.f32 %v4002, 0.41666
        %v5027 = vpow.f32 %v4003, 0.41666
        %v5028 = vpow.f32 %v4004, 0.41666
        %v5029 = vpow.f32 %v4005, 0.41666
        %v5030 = vpow.f32 %v4006, 0.41666
        %v5031 = vpow.f32 %v4007, 0.41666
        %v5032 = vpow.f32 %v4008, 0.41666
        %v5033 = vpow.f32 %v4009, 0.41666
        %v5034 = vpow.f32 %v4010, 0.41666
        %v5035 = vpow.f32 %v4011, 0.41666
        %v5036 = vpow.f32 %v4012, 0.41666
        %v5037 = vpow.f32 %v4013, 0.41666
        %v5038 = vpow.f32 %v4014, 0.41666
        %v5039 = vpow.f32 %v4015, 0.41666
        %v5040 = vpow.f32 %v4016, 0.41666
        %v5041 = vpow.f32 %v4017, 0.41666
        %v5042 = vpow.f32 %v4018, 0.41666
        %v5043 = vpow.f32 %v4019, 0.41666
        %v5044 = vpow.f32 %v4020, 0.41666
        %v5045 = vpow.f32 %v4021, 0.41666
        %v5046 = vpow.f32 %v4022, 0.41666
        %v5047 = vpow.f32 %v4023, 0.41666
        %v5048 = vpow.f32 %v4024, 0.41666
        %v5049 = vpow.f32 %v4025, 0.41666
        %v5050 = vpow.f32 %v4026, 0.41666
        %v5051 = vpow.f32 %v4027, 0.41666
        %v5052 = vpow.f32 %v4028, 0.41666
        %v5053 = vpow.f32 %v4029, 0.41666
        %v5054 = vpow.f32 %v4030, 0.41666
        %v5055 = vpow.f32 %v4031, 0.41666
        %v5056 = vpow.f32 %v4032, 0.41666
        %v5057 = vpow.f32 %v4033, 0.41666
        %v5058 = vpow.f32 %v4034, 0.41666
        %v5059 = vpow.f32 %v4035, 0.41666
        %v5060 = vpow.f32 %v4036, 0.41666
        %v5061 = vpow.f32 %v4037, 0.41666
        %v5062 = vpow.f32 %v4038, 0.41666
        %v5063 = vpow.f32 %v4039, 0.41666
        %v5064 = vpow.f32 %v4040, 0.41666
        %v5065 = vpow.f32 %v4041, 0.41666
        %v5066 = vpow.f32 %v4042, 0.41666
        %v5067 = vpow.f32 %v4043, 0.41666
        %v5068 = vpow.f32 %v4044, 0.41666
        %v5069 = vpow.f32 %v4045, 0.41666
        %v5070 = vpow.f32 %v4046, 0.41666
        %v5071 = vpow.f32 %v4047, 0.41666
        %v5072 = vpow.f32 %v4048, 0.41666
        %v5073 = vpow.f32 %v4049, 0.41666
        %v5074 = vpow.f32 %v4050, 0.41666
        %v5075 = vpow.f32 %v4051, 0.41666
        %v5076 = vpow.f32 %v4052, 0.41666
        %v5077 = vpow.f32 %v4053, 0.41666
        %v5078 = vpow.f32 %v4054, 0.41666
        %v5079 = vpow.f32 %v4055, 0.41666
        %v5080 = vpow.f32 %v4056, 0.41666
        %v5081 = vpow.f32 %v4057, 0.41666
        %v5082 = vpow.f32 %v4058, 0.41666
        %v5083 = vpow.f32 %v4059, 0.41666
        %v5084 = vpow.f32 %v4060, 0.41666
        %v5085 = vpow.f32 %v4061, 0.41666
        %v5086 = vpow.f32 %v4062, 0.41666
        %v5087 = vpow.f32 %v4063, 0.41666
        %v5088 = vpow.f32 %v4064, 0.41666
        %v5089 = vpow.f32 %v4065, 0.41666
        %v5090 = vpow.f32 %v4066, 0.41666
        %v5091 = vpow.f32 %v4067, 0.41666
        %v5092 = vpow.f32 %v4068, 0.41666
        %v5093 = vpow.f32 %v4069, 0.41666
        %v5094 = vpow.f32 %v4070, 0.41666
        %v5095 = vpow.f32 %v4071, 0.41666
        %v5096 = vpow.f32 %v4072, 0.41666
        %v5097 = vpow.f32 %v4073, 0.41666
        %v5098 = vpow.f32 %v4074, 0.41666
        %v5099 = vpow.f32 %v4075, 0.41666
        %v5100 = vpow.f32 %v4076, 0.41666
        %v5101 = vpow.f32 %v4077, 0.41666
        %v5102 = vpow.f32 %v4078, 0.41666
        %v5103 = vpow.f32 %v4079, 0.41666
        %v5104 = vpow.f32 %v4080, 0.41666
        %v5105 = vpow.f32 %v4081, 0.41666
        %v5106 = vpow.f32 %v4082, 0.41666
        %v5107 = vpow.f32 %v4083, 0.41666
        %v5108 = vpow.f32 %v4084, 0.41666
        %v5109 = vpow.f32 %v4085, 0.41666
        %v5110 = vpow.f32 %v4086, 0.41666
        %v5111 = vpow.f32 %v4087, 0.41666
        %v5112 = vpow.f32 %v4088, 0.41666
        %v5113 = vpow.f32 %v4089, 0.41666
        %v5114 = vpow.f32 %v4090, 0.41666
        %v5115 = vpow.f32 %v4091, 0.41666
        %v5116 = vpow.f32 %v4092, 0.41666
        %v5117 = vpow.f32 %v4093, 0.41666
        %v5118 = vpow.f32 %v4094, 0.41666
        %v5119 = vpow.f32 %v4095, 0.41666
        %v5120 = vpow.f32 %v4096, 0.41666
        %v5121 = vpow.f32 %v4097, 0.41666
        %v5122 = vpow.f32 %v4098, 0.41666
        %v5123 = vpow.f32 %v4099, 0.41666
        %v5124 = vpow.f32 %v4100, 0.41666
        %v5125 = vpow.f32 %v4101, 0.41666
        %v5126 = vpow.f32 %v4102, 0.41666
        %v5127 = vpow.f32 %v4103, 0.41666
        %v5128 = vpow.f32 %v4104, 0.41666
        %v5129 = vpow.f32 %v4105, 0.41666
        %v5130 = vpow.f32 %v4106, 0.41666
        %v5131 = vpow.f32 %v4107, 0.41666
        %v5132 = vpow.f32 %v4108, 0.41666
        %v5133 = vpow.f32 %v4109, 0.41666
        %v5134 = vpow.f32 %v4110, 0.41666
        %v5135 = vpow.f32 %v4111, 0.41666
        %v5136 = vpow.f32 %v4112, 0.41666
        %v5137 = vpow.f32 %v4113, 0.41666
        %v5138 = vpow.f32 %v4114, 0.41666
        %v5139 = vpow.f32 %v4115, 0.41666
        %v5140 = vpow.f32 %v4116, 0.41666
        %v5141 = vpow.f32 %v4117, 0.41666
        %v5142 = vpow.f32 %v4118, 0.41666
        %v5143 = vpow.f32 %v4119, 0.41666
        %v5144 = vpow.f32 %v4120, 0.41666
        %v5145 = vpow.f32 %v4121, 0.41666
        %v5146 = vpow.f32 %v4122, 0.41666
        %v5147 = vpow.f32 %v4123, 0.41666
        %v5148 = vpow.f32 %v4124, 0.41666
        %v5149 = vpow.f32 %v4125, 0.41666
        %v5150 = vpow.f32 %v4126, 0.41666
        %v5151 = vpow.f32 %v4127, 0.41666
        %v5152 = vpow.f32 %v4128, 0.41666
        %v5153 = vpow.f32 %v4129, 0.41666
        %v5154 = vpow.f32 %v4130, 0.41666
        %v5155 = vpow.f32 %v4131, 0.41666
        %v5156 = vpow.f32 %v4132, 0.41666
        %v5157 = vpow.f32 %v4133, 0.41666
        %v5158 = vpow.f32 %v4134, 0.41666
        %v5159 = vpow.f32 %v4135, 0.41666
        %v5160 = vpow.f32 %v4136, 0.41666
        %v5161 = vpow.f32 %v4137, 0.41666
        %v5162 = vpow.f32 %v4138, 0.41666
        %v5163 = vpow.f32 %v4139, 0.41666
        %v5164 = vpow.f32 %v4140, 0.41666
        %v5165 = vpow.f32 %v4141, 0.41666
        %v5166 = vpow.f32 %v4142, 0.41666
        %v5167 = vpow.f32 %v4143, 0.41666
        %v5168 = vpow.f32 %v4144, 0.41666
        %v5169 = vpow.f32 %v4145, 0.41666
        %v5170 = vpow.f32 %v4146, 0.41666
        %v5171 = vpow.f32 %v4147, 0.41666
        %v5172 = vpow.f32 %v4148, 0.41666
        %v5173 = vpow.f32 %v4149, 0.41666
        %v5174 = vpow.f32 %v4150, 0.41666
        %v5175 = vpow.f32 %v4151, 0.41666
        %v5176 = vpow.f32 %v4152, 0.41666
        %v5177 = vpow.f32 %v4153, 0.41666
        %v5178 = vpow.f32 %v4154, 0.41666
        %v5179 = vpow.f32 %v4155, 0.41666
        %v5180 = vpow.f32 %v4156, 0.41666
        %v5181 = vpow.f32 %v4157, 0.41666
        %v5182 = vpow.f32 %v4158, 0.41666
        %v5183 = vpow.f32 %v4159, 0.41666
        %v5184 = vpow.f32 %v4160, 0.41666
        %v5185 = vpow.f32 %v4161, 0.41666
        %v5186 = vpow.f32 %v4162, 0.41666
        %v5187 = vpow.f32 %v4163, 0.41666
        %v5188 = vpow.f32 %v4164, 0.41666
        %v5189 = vpow.f32 %v4165, 0.41666
        %v5190 = vpow.f32 %v4166, 0.41666
        %v5191 = vpow.f32 %v4167, 0.41666
        %v5192 = vpow.f32 %v4168, 0.41666
        %v5193 = vpow.f32 %v4169, 0.41666
        %v5194 = vpow.f32 %v4170, 0.41666
        %v5195 = vpow.f32 %v4171, 0.41666
        %v5196 = vpow.f32 %v4172, 0.41666
        %v5197 = vpow.f32 %v4173, 0.41666
        %v5198 = vpow.f32 %v4174, 0.41666
        %v5199 = vpow.f32 %v4175, 0.41666
        %v5200 = vpow.f32 %v4176, 0.41666
        %v5201 = vpow.f32 %v4177, 0.41666
        %v5202 = vpow.f32 %v4178, 0.41666
        %v5203 = vpow.f32 %v4179, 0.41666
        %v5204 = vpow.f32 %v4180, 0.41666
        %v5205 = vpow.f32 %v4181, 0.41666
        %v5206 = vpow.f32 %v4182, 0.41666
        %v5207 = vpow.f32 %v4183, 0.41666
        %v5208 = vpow.f32 %v4184, 0.41666
        %v5209 = vpow.f32 %v4185, 0.41666
        %v5210 = vpow.f32 %v4186, 0.41666
        %v5211 = vpow.f32 %v4187, 0.41666
        %v5212 = vpow.f32 %v4188, 0.41666
        %v5213 = vpow.f32 %v4189, 0.41666
        %v5214 = vpow.f32 %v4190, 0.41666
        %v5215 = vpow.f32 %v4191, 0.41666
        %v5216 = vpow.f32 %v4192, 0.41666
        %v5217 = vpow.f32 %v4193, 0.41666
        %v5218 = vpow.f32 %v4194, 0.41666
        %v5219 = vpow.f32 %v4195, 0.41666
        %v5220 = vpow.f32 %v4196, 0.41666
        %v5221 = vpow.f32 %v4197, 0.41666
        %v5222 = vpow.f32 %v4198, 0.41666
        %v5223 = vpow.f32 %v4199, 0.41666
        %v5224 = vpow.f32 %v4200, 0.41666
        %v5225 = vpow.f32 %v4201, 0.41666
        %v5226 = vpow.f32 %v4202, 0.41666
        %v5227 = vpow.f32 %v4203, 0.41666
        %v5228 = vpow.f32 %v4204, 0.41666
        %v5229 = vpow.f32 %v4205, 0.41666
        %v5230 = vpow.f32 %v4206, 0.41666
        %v5231 = vpow.f32 %v4207, 0.41666
        %v5232 = vpow.f32 %v4208, 0.41666
        %v5233 = vpow.f32 %v4209, 0.41666
        %v5234 = vpow.f32 %v4210, 0.41666
        %v5235 = vpow.f32 %v4211, 0.41666
        %v5236 = vpow.f32 %v4212, 0.41666
        %v5237 = vpow.f32 %v4213, 0.41666
        %v5238 = vpow.f32 %v4214, 0.41666
        %v5239 = vpow.f32 %v4215, 0.41666
        %v5240 = vpow.f32 %v4216, 0.41666
        %v5241 = vpow.f32 %v4217, 0.41666
        %v5242 = vpow.f32 %v4218, 0.41666
        %v5243 = vpow.f32 %v4219, 0.41666
        %v5244 = vpow.f32 %v4220, 0.41666
        %v5245 = vpow.f32 %v4221, 0.41666
        %v5246 = vpow.f32 %v4222, 0.41666
        %v5247 = vpow.f32 %v4223, 0.41666
        %v5248 = vpow.f32 %v4224, 0.41666
        %v5249 = vpow.f32 %v4225, 0.41666
        %v5250 = vpow.f32 %v4226, 0.41666
        %v5251 = vpow.f32 %v4227, 0.41666
        %v5252 = vpow.f32 %v4228, 0.41666
        %v5253 = vpow.f32 %v4229, 0.41666
        %v5254 = vpow.f32 %v4230, 0.41666
        %v5255 = vpow.f32 %v4231, 0.41666
        %v5256 = vpow.f32 %v4232, 0.41666
        %v5257 = vpow.f32 %v4233, 0.41666
        %v5258 = vpow.f32 %v4234, 0.41666
        %v5259 = vpow.f32 %v4235, 0.41666
        %v5260 = vpow.f32 %v4236, 0.41666
        %v5261 = vpow.f32 %v4237, 0.41666
        %v5262 = vpow.f32 %v4238, 0.41666
        %v5263 = vpow.f32 %v4239, 0.41666
        %v5264 = vpow.f32 %v4240, 0.41666
        %v5265 = vpow.f32 %v4241, 0.41666
        %v5266 = vpow.f32 %v4242, 0.41666
        %v5267 = vpow.f32 %v4243, 0.41666
        %v5268 = vpow.f32 %v4244, 0.41666
        %v5269 = vpow.f32 %v4245, 0.41666
        %v5270 = vpow.f32 %v4246, 0.41666
        %v5271 = vpow.f32 %v4247, 0.41666
        %v5272 = vpow.f32 %v4248, 0.41666
        %v5273 = vpow.f32 %v4249, 0.41666
        %v5274 = vmul.f32 %v4250, 1.055
        %v5275 = vmul.f32 %v4251, 1.055
        %v5276 = vmul.f32 %v4252, 1.055
        %v5277 = vmul.f32 %v4253, 1.055
        %v5278 = vmul.f32 %v4254, 1.055
        %v5279 = vmul.f32 %v4255, 1.055
        %v5280 = vmul.f32 %v4256, 1.055
        %v5281 = vmul.f32 %v4257, 1.055
        %v5282 = vmul.f32 %v4258, 1.055
        %v5283 = vmul.f32 %v4259, 1.055
        %v5284 = vmul.f32 %v4260, 1.055
        %v5285 = vmul.f32 %v4261, 1.055
        %v5286 = vmul.f32 %v4262, 1.055
        %v5287 = vmul.f32 %v4263, 1.055
        %v5288 = vmul.f32 %v4264, 1.055
        %v5289 = vmul.f32 %v4265, 1.055
        %v5290 = vmul.f32 %v4266, 1.055
        %v5291 = vmul.f32 %v4267, 1.055
        %v5292 = vmul.f32 %v4268, 1.055
        %v5293 = vmul.f32 %v4269, 1.055
        %v5294 = vmul.f32 %v4270, 1.055
        %v5295 = vmul.f32 %v4271, 1.055
        %v5296 = vmul.f32 %v4272, 1.055
        %v5297 = vmul.f32 %v4273, 1.055
        %v5298 = vmul.f32 %v4274, 1.055
        %v5299 = vmul.f32 %v4275, 1.055
        %v5300 = vmul.f32 %v4276, 1.055
        %v5301 = vmul.f32 %v4277, 1.055
        %v5302 = vmul.f32 %v4278, 1.055
        %v5303 = vmul.f32 %v4279, 1.055
        %v5304 = vmul.f32 %v4280, 1.055
        %v5305 = vmul.f32 %v4281, 1.055
        %v5306 = vmul.f32 %v4282, 1.055
        %v5307 = vmul.f32 %v4283, 1.055
        %v5308 = vmul.f32 %v4284, 1.055
        %v5309 = vmul.f32 %v4285, 1.055
        %v5310 = vmul.f32 %v4286, 1.055
        %v5311 = vmul.f32 %v4287, 1.055
        %v5312 = vmul.f32 %v4288, 1.055
        %v5313 = vmul.f32 %v4289, 1.055
        %v5314 = vmul.f32 %v4290, 1.055
        %v5315 = vmul.f32 %v4291, 1.055
        %v5316 = vmul.f32 %v4292, 1.055
        %v5317 = vmul.f32 %v4293, 1.055
        %v5318 = vmul.f32 %v4294, 1.055
        %v5319 = vmul.f32 %v4295, 1.055
        %v5320 = vmul.f32 %v4296, 1.055
        %v5321 = vmul.f32 %v4297, 1.055
        %v5322 = vmul.f32 %v4298, 1.055
        %v5323 = vmul.f32 %v4299, 1.055
        %v5324 = vmul.f32 %v4300, 1.055
        %v5325 = vmul.f32 %v4301, 1.055
        %v5326 = vmul.f32 %v4302, 1.055
        %v5327 = vmul.f32 %v4303, 1.055
        %v5328 = vmul.f32 %v4304, 1.055
        %v5329 = vmul.f32 %v4305, 1.055
        %v5330 = vmul.f32 %v4306, 1.055
        %v5331 = vmul.f32 %v4307, 1.055
        %v5332 = vmul.f32 %v4308, 1.055
        %v5333 = vmul.f32 %v4309, 1.055
        %v5334 = vmul.f32 %v4310, 1.055
        %v5335 = vmul.f32 %v4311, 1.055
        %v5336 = vmul.f32 %v4312, 1.055
        %v5337 = vmul.f32 %v4313, 1.055
        %v5338 = vmul.f32 %v4314, 1.055
        %v5339 = vmul.f32 %v4315, 1.055
        %v5340 = vmul.f32 %v4316, 1.055
        %v5341 = vmul.f32 %v4317, 1.055
        %v5342 = vmul.f32 %v4318, 1.055
        %v5343 = vmul.f32 %v4319, 1.055
        %v5344 = vmul.f32 %v4320, 1.055
        %v5345 = vmul.f32 %v4321, 1.055
        %v5346 = vmul.f32 %v4322, 1.055
        %v5347 = vmul.f32 %v4323, 1.055
        %v5348 = vmul.f32 %v4324, 1.055
        %v5349 = vmul.f32 %v4325, 1.055
        %v5350 = vmul.f32 %v4326, 1.055
        %v5351 = vmul.f32 %v4327, 1.055
        %v5352 = vmul.f32 %v4328, 1.055
        %v5353 = vmul.f32 %v4329, 1.055
        %v5354 = vmul.f32 %v4330, 1.055
        %v5355 = vmul.f32 %v4331, 1.055
        %v5356 = vmul.f32 %v4332, 1.055
        %v5357 = vmul.f32 %v4333, 1.055
        %v5358 = vmul.f32 %v4334, 1.055
        %v5359 = vmul.f32 %v4335, 1.055
        %v5360 = vmul.f32 %v4336, 1.055
        %v5361 = vmul.f32 %v4337, 1.055
        %v5362 = vmul.f32 %v4338, 1.055
        %v5363 = vmul.f32 %v4339, 1.055
        %v5364 = vmul.f32 %v4340, 1.055
        %v5365 = vmul.f32 %v4341, 1.055
        %v5366 = vmul.f32 %v4342, 1.055
        %v5367 = vmul.f32 %v4343, 1.055
        %v5368 = vmul.f32 %v4344, 1.055
        %v5369 = vmul.f32 %v4345, 1.055
        %v5370 = vmul.f32 %v4346, 1.055
        %v5371 = vmul.f32 %v4347, 1.055
        %v5372 = vmul.f32 %v4348, 1.055
        %v5373 = vmul.f32 %v4349, 1.055
        %v5374 = vmul.f32 %v4350, 1.055
        %v5375 = vmul.f32 %v4351, 1.055
        %v5376 = vmul.f32 %v4352, 1.055
        %v5377 = vmul.f32 %v4353, 1.055
        %v5378 = vmul.f32 %v4354, 1.055
        %v5379 = vmul.f32 %v4355, 1.055
        %v5380 = vmul.f32 %v4356, 1.055
        %v5381 = vmul.f32 %v4357, 1.055
        %v5382 = vmul.f32 %v4358, 1.055
        %v5383 = vmul.f32 %v4359, 1.055
        %v5384 = vmul.f32 %v4360, 1.055
        %v5385 = vmul.f32 %v4361, 1.055
        %v5386 = vmul.f32 %v4362, 1.055
        %v5387 = vmul.f32 %v4363, 1.055
        %v5388 = vmul.f32 %v4364, 1.055
        %v5389 = vmul.f32 %v4365, 1.055
        %v5390 = vmul.f32 %v4366, 1.055
        %v5391 = vmul.f32 %v4367, 1.055
        %v5392 = vmul.f32 %v4368, 1.055
        %v5393 = vmul.f32 %v4369, 1.055
        %v5394 = vmul.f32 %v4370, 1.055
        %v5395 = vmul.f32 %v4371, 1.055
        %v5396 = vmul.f32 %v4372, 1.055
        %v5397 = vmul.f32 %v4373, 1.055
        %v5398 = vmul.f32 %v4374, 1.055
        %v5399 = vmul.f32 %v4375, 1.055
        %v5400 = vmul.f32 %v4376, 1.055
        %v5401 = vmul.f32 %v4377, 1.055
        %v5402 = vmul.f32 %v4378, 1.055
        %v5403 = vmul.f32 %v4379, 1.055
        %v5404 = vmul.f32 %v4380, 1.055
        %v5405 = vmul.f32 %v4381, 1.055
        %v5406 = vmul.f32 %v4382, 1.055
        %v5407 = vmul.f32 %v4383, 1.055
        %v5408 = vmul.f32 %v4384, 1.055
        %v5409 = vmul.f32 %v4385, 1.055
        %v5410 = vmul.f32 %v4386, 1.055
        %v5411 = vmul.f32 %v4387, 1.055
        %v5412 = vmul.f32 %v4388, 1.055
        %v5413 = vmul.f32 %v4389, 1.055
        %v5414 = vmul.f32 %v4390, 1.055
        %v5415 = vmul.f32 %v4391, 1.055
        %v5416 = vmul.f32 %v4392, 1.055
        %v5417 = vmul.f32 %v4393, 1.055
        %v5418 = vmul.f32 %v4394, 1.055
        %v5419 = vmul.f32 %v4395, 1.055
        %v5420 = vmul.f32 %v4396, 1.055
        %v5421 = vmul.f32 %v4397, 1.055
        %v5422 = vmul.f32 %v4398, 1.055
        %v5423 = vmul.f32 %v4399, 1.055
        %v5424 = vmul.f32 %v4400, 1.055
        %v5425 = vmul.f32 %v4401, 1.055
        %v5426 = vmul.f32 %v4402, 1.055
        %v5427 = vmul.f32 %v4403, 1.055
        %v5428 = vmul.f32 %v4404, 1.055
        %v5429 = vmul.f32 %v4405, 1.055
        %v5430 = vmul.f32 %v4406, 1.055
        %v5431 = vmul.f32 %v4407, 1.055
        %v5432 = vmul.f32 %v4408, 1.055
        %v5433 = vmul.f32 %v4409, 1.055
        %v5434 = vmul.f32 %v4410, 1.055
        %v5435 = vmul.f32 %v4411, 1.055
        %v5436 = vmul.f32 %v4412, 1.055
        %v5437 = vmul.f32 %v4413, 1.055
        %v5438 = vmul.f32 %v4414, 1.055
        %v5439 = vmul.f32 %v4415, 1.055
        %v5440 = vmul.f32 %v4416, 1.055
        %v5441 = vmul.f32 %v4417, 1.055
        %v5442 = vmul.f32 %v4418, 1.055
        %v5443 = vmul.f32 %v4419, 1.055
        %v5444 = vmul.f32 %v4420, 1.055
        %v5445 = vmul.f32 %v4421, 1.055
        %v5446 = vmul.f32 %v4422, 1.055
        %v5447 = vmul.f32 %v4423, 1.055
        %v5448 = vmul.f32 %v4424, 1.055
        %v5449 = vmul.f32 %v4425, 1.055
        %v5450 = vmul.f32 %v4426, 1.055
        %v5451 = vmul.f32 %v4427, 1.055
        %v5452 = vmul.f32 %v4428, 1.055
        %v5453 = vmul.f32 %v4429, 1.055
        %v5454 = vmul.f32 %v4430, 1.055
        %v5455 = vmul.f32 %v4431, 1.055
        %v5456 = vmul.f32 %v4432, 1.055
        %v5457 = vmul.f32 %v4433, 1.055
        %v5458 = vmul.f32 %v4434, 1.055
        %v5459 = vmul.f32 %v4435, 1.055
        %v5460 = vmul.f32 %v4436, 1.055
        %v5461 = vmul.f32 %v4437, 1.055
        %v5462 = vmul.f32 %v4438, 1.055
        %v5463 = vmul.f32 %v4439, 1.055
        %v5464 = vmul.f32 %v4440, 1.055
        %v5465 = vmul.f32 %v4441, 1.055
        %v5466 = vmul.f32 %v4442, 1.055
        %v5467 = vmul.f32 %v4443, 1.055
        %v5468 = vmul.f32 %v4444, 1.055
        %v5469 = vmul.f32 %v4445, 1.055
        %v5470 = vmul.f32 %v4446, 1.055
        %v5471 = vmul.f32 %v4447, 1.055
        %v5472 = vmul.f32 %v4448, 1.055
        %v5473 = vmul.f32 %v4449, 1.055
        %v5474 = vmul.f32 %v4450, 1.055
        %v5475 = vmul.f32 %v4451, 1.055
        %v5476 = vmul.f32 %v4452, 1.055
        %v5477 = vmul.f32 %v4453, 1.055
        %v5478 = vmul.f32 %v4454, 1.055
        %v5479 = vmul.f32 %v4455, 1.055
        %v5480 = vmul.f32 %v4456, 1.055
        %v5481 = vmul.f32 %v4457, 1.055
        %v5482 = vmul.f32 %v4458, 1.055
        %v5483 = vmul.f32 %v4459, 1.055
        %v5484 = vmul.f32 %v4460, 1.055
        %v5485 = vmul.f32 %v4461, 1.055
        %v5486 = vmul.f32 %v4462, 1.055
        %v5487 = vmul.f32 %v4463, 1.055
        %v5488 = vmul.f32 %v4464, 1.055
        %v5489 = vmul.f32 %v4465, 1.055
        %v5490 = vmul.f32 %v4466, 1.055
        %v5491 = vmul.f32 %v4467, 1.055
        %v5492 = vmul.f32 %v4468, 1.055
        %v5493 = vmul.f32 %v4469, 1.055
        %v5494 = vmul.f32 %v4470, 1.055
        %v5495 = vmul.f32 %v4471, 1.055
        %v5496 = vmul.f32 %v4472, 1.055
        %v5497 = vmul.f32 %v4473, 1.055
        %v5498 = vmul.f32 %v4474, 1.055
        %v5499 = vmul.f32 %v4475, 1.055
        %v5500 = vmul.f32 %v4476, 1.055
        %v5501 = vmul.f32 %v4477, 1.055
        %v5502 = vmul.f32 %v4478, 1.055
        %v5503 = vmul.f32 %v4479, 1.055
        %v5504 = vmul.f32 %v4480, 1.055
        %v5505 = vmul.f32 %v4481, 1.055
        %v5506 = vmul.f32 %v4482, 1.055
        %v5507 = vmul.f32 %v4483, 1.055
        %v5508 = vmul.f32 %v4484, 1.055
        %v5509 = vmul.f32 %v4485, 1.055
        %v5510 = vmul.f32 %v4486, 1.055
        %v5511 = vmul.f32 %v4487, 1.055
        %v5512 = vmul.f32 %v4488, 1.055
        %v5513 = vmul.f32 %v4489, 1.055
        %v5514 = vmul.f32 %v4490, 1.055
        %v5515 = vmul.f32 %v4491, 1.055
        %v5516 = vmul.f32 %v4492, 1.055
        %v5517 = vmul.f32 %v4493, 1.055
        %v5518 = vmul.f32 %v4494, 1.055
        %v5519 = vmul.f32 %v4495, 1.055
        %v5520 = vmul.f32 %v4496, 1.055
        %v5521 = vmul.f32 %v4497, 1.055
        %v5522 = vmul.f32 %v4498, 1.055
        %v5523 = vmul.f32 %v4499, 1.055
        %v5524 = vmul.f32 %v4500, 1.055
        %v5525 = vmul.f32 %v4501, 1.055
        %v5526 = vmul.f32 %v4502, 1.055
        %v5527 = vmul.f32 %v4503, 1.055
        %v5528 = vmul.f32 %v4504, 1.055
        %v5529 = vmul.f32 %v4505, 1.055
        %v5530 = vmul.f32 %v4506, 1.055
        %v5531 = vmul.f32 %v4507, 1.055
        %v5532 = vmul.f32 %v4508, 1.055
        %v5533 = vmul.f32 %v4509, 1.055
        %v5534 = vmul.f32 %v4510, 1.055
        %v5535 = vmul.f32 %v4511, 1.055
        %v5536 = vmul.f32 %v4512, 1.055
        %v5537 = vmul.f32 %v4513, 1.055
        %v5538 = vmul.f32 %v4514, 1.055
        %v5539 = vmul.f32 %v4515, 1.055
        %v5540 = vmul.f32 %v4516, 1.055
        %v5541 = vmul.f32 %v4517, 1.055
        %v5542 = vmul.f32 %v4518, 1.055
        %v5543 = vmul.f32 %v4519, 1.055
        %v5544 = vmul.f32 %v4520, 1.055
        %v5545 = vmul.f32 %v4521, 1.055
        %v5546 = vmul.f32 %v4522, 1.055
        %v5547 = vmul.f32 %v4523, 1.055
        %v5548 = vmul.f32 %v4524, 1.055
        %v5549 = vmul.f32 %v4525, 1.055
        %v5550 = vmul.f32 %v4526, 1.055
        %v5551 = vmul.f32 %v4527, 1.055
        %v5552 = vmul.f32 %v4528, 1.055
        %v5553 = vmul.f32 %v4529, 1.055
        %v5554 = vmul.f32 %v4530, 1.055
        %v5555 = vmul.f32 %v4531, 1.055
        %v5556 = vmul.f32 %v4532, 1.055
        %v5557 = vmul.f32 %v4533, 1.055
        %v5558 = vmul.f32 %v4534, 1.055
        %v5559 = vmul.f32 %v4535, 1.055
        %v5560 = vmul.f32 %v4536, 1.055
        %v5561 = vmul.f32 %v4537, 1.055
        %v5562 = vmul.f32 %v4538, 1.055
        %v5563 = vmul.f32 %v4539, 1.055
        %v5564 = vmul.f32 %v4540, 1.055
        %v5565 = vmul.f32 %v4541, 1.055
        %v5566 = vmul.f32 %v4542, 1.055
        %v5567 = vmul.f32 %v4543, 1.055
        %v5568 = vmul.f32 %v4544, 1.055
        %v5569 = vmul.f32 %v4545, 1.055
        %v5570 = vmul.f32 %v4546, 1.055
        %v5571 = vmul.f32 %v4547, 1.055
        %v5572 = vmul.f32 %v4548, 1.055
        %v5573 = vmul.f32 %v4549, 1.055
        %v5574 = vmul.f32 %v4550, 1.055
        %v5575 = vmul.f32 %v4551, 1.055
        %v5576 = vmul.f32 %v4552, 1.055
        %v5577 = vmul.f32 %v4553, 1.055
        %v5578 = vmul.f32 %v4554, 1.055
        %v5579 = vmul.f32 %v4555, 1.055
        %v5580 = vmul.f32 %v4556, 1.055
        %v5581 = vmul.f32 %v4557, 1.055
        %v5582 = vmul.f32 %v4558, 1.055
        %v5583 = vmul.f32 %v4559, 1.055
        %v5584 = vmul.f32 %v4560, 1.055
        %v5585 = vmul.f32 %v4561, 1.055
        %v5586 = vmul.f32 %v4562, 1.055
        %v5587 = vmul.f32 %v4563, 1.055
        %v5588 = vmul.f32 %v4564, 1.055
        %v5589 = vmul.f32 %v4565, 1.055
        %v5590 = vmul.f32 %v4566, 1.055
        %v5591 = vmul.f32 %v4567, 1.055
        %v5592 = vmul.f32 %v4568, 1.055
        %v5593 = vmul.f32 %v4569, 1.055
        %v5594 = vmul.f32 %v4570, 1.055
        %v5595 = vmul.f32 %v4571, 1.055
        %v5596 = vmul.f32 %v4572, 1.055
        %v5597 = vmul.f32 %v4573, 1.055
        %v5598 = vmul.f32 %v4574, 1.055
        %v5599 = vmul.f32 %v4575, 1.055
        %v5600 = vmul.f32 %v4576, 1.055
        %v5601 = vmul.f32 %v4577, 1.055
        %v5602 = vmul.f32 %v4578, 1.055
        %v5603 = vmul.f32 %v4579, 1.055
        %v5604 = vmul.f32 %v4580, 1.055
        %v5605 = vmul.f32 %v4581, 1.055
        %v5606 = vmul.f32 %v4582, 1.055
        %v5607 = vmul.f32 %v4583, 1.055
        %v5608 = vmul.f32 %v4584, 1.055
        %v5609 = vmul.f32 %v4585, 1.055
        %v5610 = vmul.f32 %v4586, 1.055
        %v5611 = vmul.f32 %v4587, 1.055
        %v5612 = vmul.f32 %v4588, 1.055
        %v5613 = vmul.f32 %v4589, 1.055
        %v5614 = vmul.f32 %v4590, 1.055
        %v5615 = vmul.f32 %v4591, 1.055
        %v5616 = vmul.f32 %v4592, 1.055
        %v5617 = vmul.f32 %v4593, 1.055
        %v5618 = vmul.f32 %v4594, 1.055
        %v5619 = vmul.f32 %v4595, 1.055
        %v5620 = vmul.f32 %v4596, 1.055
        %v5621 = vmul.f32 %v4597, 1.055
        %v5622 = vmul.f32 %v4598, 1.055
        %v5623 = vmul.f32 %v4599, 1.055
        %v5624 = vmul.f32 %v4600, 1.055
        %v5625 = vmul.f32 %v4601, 1.055
        %v5626 = vmul.f32 %v4602, 1.055
        %v5627 = vmul.f32 %v4603, 1.055
        %v5628 = vmul.f32 %v4604, 1.055
        %v5629 = vmul.f32 %v4605, 1.055
        %v5630 = vmul.f32 %v4606, 1.055
        %v5631 = vmul.f32 %v4607, 1.055
        %v5632 = vmul.f32 %v4608, 1.055
        %v5633 = vmul.f32 %v4609, 1.055
        %v5634 = vmul.f32 %v4610, 1.055
        %v5635 = vmul.f32 %v4611, 1.055
        %v5636 = vmul.f32 %v4612, 1.055
        %v5637 = vmul.f32 %v4613, 1.055
        %v5638 = vmul.f32 %v4614, 1.055
        %v5639 = vmul.f32 %v4615, 1.055
        %v5640 = vmul.f32 %v4616, 1.055
        %v5641 = vmul.f32 %v4617, 1.055
        %v5642 = vmul.f32 %v4618, 1.055
        %v5643 = vmul.f32 %v4619, 1.055
        %v5644 = vmul.f32 %v4620, 1.055
        %v5645 = vmul.f32 %v4621, 1.055
        %v5646 = vmul.f32 %v4622, 1.055
        %v5647 = vmul.f32 %v4623, 1.055
        %v5648 = vmul.f32 %v4624, 1.055
        %v5649 = vmul.f32 %v4625, 1.055
        %v5650 = vmul.f32 %v4626, 1.055
        %v5651 = vmul.f32 %v4627, 1.055
        %v5652 = vmul.f32 %v4628, 1.055
        %v5653 = vmul.f32 %v4629, 1.055
        %v5654 = vmul.f32 %v4630, 1.055
        %v5655 = vmul.f32 %v4631, 1.055
        %v5656 = vmul.f32 %v4632, 1.055
        %v5657 = vmul.f32 %v4633, 1.055
        %v5658 = vmul.f32 %v4634, 1.055
        %v5659 = vmul.f32 %v4635, 1.055
        %v5660 = vmul.f32 %v4636, 1.055
        %v5661 = vmul.f32 %v4637, 1.055
        %v5662 = vmul.f32 %v4638, 1.055
        %v5663 = vmul.f32 %v4639, 1.055
        %v5664 = vmul.f32 %v4640, 1.055
        %v5665 = vmul.f32 %v4641, 1.055
        %v5666 = vmul.f32 %v4642, 1.055
        %v5667 = vmul.f32 %v4643, 1.055
        %v5668 = vmul.f32 %v4644, 1.055
        %v5669 = vmul.f32 %v4645, 1.055
        %v5670 = vmul.f32 %v4646, 1.055
        %v5671 = vmul.f32 %v4647, 1.055
        %v5672 = vmul.f32 %v4648, 1.055
        %v5673 = vmul.f32 %v4649, 1.055
        %v5674 = vmul.f32 %v4650, 1.055
        %v5675 = vmul.f32 %v4651, 1.055
        %v5676 = vmul.f32 %v4652, 1.055
        %v5677 = vmul.f32 %v4653, 1.055
        %v5678 = vmul.f32 %v4654, 1.055
        %v5679 = vmul.f32 %v4655, 1.055
        %v5680 = vmul.f32 %v4656, 1.055
        %v5681 = vmul.f32 %v4657, 1.055
        %v5682 = vmul.f32 %v4658, 1.055
        %v5683 = vmul.f32 %v4659, 1.055
        %v5684 = vmul.f32 %v4660, 1.055
        %v5685 = vmul.f32 %v4661, 1.055
        %v5686 = vmul.f32 %v4662, 1.055
        %v5687 = vmul.f32 %v4663, 1.055
        %v5688 = vmul.f32 %v4664, 1.055
        %v5689 = vmul.f32 %v4665, 1.055
        %v5690 = vmul.f32 %v4666, 1.055
        %v5691 = vmul.f32 %v4667, 1.055
        %v5692 = vmul.f32 %v4668, 1.055
        %v5693 = vmul.f32 %v4669, 1.055
        %v5694 = vmul.f32 %v4670, 1.055
        %v5695 = vmul.f32 %v4671, 1.055
        %v5696 = vmul.f32 %v4672, 1.055
        %v5697 = vmul.f32 %v4673, 1.055
        %v5698 = vmul.f32 %v4674, 1.055
        %v5699 = vmul.f32 %v4675, 1.055
        %v5700 = vmul.f32 %v4676, 1.055
        %v5701 = vmul.f32 %v4677, 1.055
        %v5702 = vmul.f32 %v4678, 1.055
        %v5703 = vmul.f32 %v4679, 1.055
        %v5704 = vmul.f32 %v4680, 1.055
        %v5705 = vmul.f32 %v4681, 1.055
        %v5706 = vmul.f32 %v4682, 1.055
        %v5707 = vmul.f32 %v4683, 1.055
        %v5708 = vmul.f32 %v4684, 1.055
        %v5709 = vmul.f32 %v4685, 1.055
        %v5710 = vmul.f32 %v4686, 1.055
        %v5711 = vmul.f32 %v4687, 1.055
        %v5712 = vmul.f32 %v4688, 1.055
        %v5713 = vmul.f32 %v4689, 1.055
        %v5714 = vmul.f32 %v4690, 1.055
        %v5715 = vmul.f32 %v4691, 1.055
        %v5716 = vmul.f32 %v4692, 1.055
        %v5717 = vmul.f32 %v4693, 1.055
        %v5718 = vmul.f32 %v4694, 1.055
        %v5719 = vmul.f32 %v4695, 1.055
        %v5720 = vmul.f32 %v4696, 1.055
        %v5721 = vmul.f32 %v4697, 1.055
        %v5722 = vmul.f32 %v4698, 1.055
        %v5723 = vmul.f32 %v4699, 1.055
        %v5724 = vmul.f32 %v4700, 1.055
        %v5725 = vmul.f32 %v4701, 1.055
        %v5726 = vmul.f32 %v4702, 1.055
        %v5727 = vmul.f32 %v4703, 1.055
        %v5728 = vmul.f32 %v4704, 1.055
        %v5729 = vmul.f32 %v4705, 1.055
        %v5730 = vmul.f32 %v4706, 1.055
        %v5731 = vmul.f32 %v4707, 1.055
        %v5732 = vmul.f32 %v4708, 1.055
        %v5733 = vmul.f32 %v4709, 1.055
        %v5734 = vmul.f32 %v4710, 1.055
        %v5735 = vmul.f32 %v4711, 1.055
        %v5736 = vmul.f32 %v4712, 1.055
        %v5737 = vmul.f32 %v4713, 1.055
        %v5738 = vmul.f32 %v4714, 1.055
        %v5739 = vmul.f32 %v4715, 1.055
        %v5740 = vmul.f32 %v4716, 1.055
        %v5741 = vmul.f32 %v4717, 1.055
        %v5742 = vmul.f32 %v4718, 1.055
        %v5743 = vmul.f32 %v4719, 1.055
        %v5744 = vmul.f32 %v4720, 1.055
        %v5745 = vmul.f32 %v4721, 1.055
        %v5746 = vmul.f32 %v4722, 1.055
        %v5747 = vmul.f32 %v4723, 1.055
        %v5748 = vmul.f32 %v4724, 1.055
        %v5749 = vmul.f32 %v4725, 1.055
        %v5750 = vmul.f32 %v4726, 1.055
        %v5751 = vmul.f32 %v4727, 1.055
        %v5752 = vmul.f32 %v4728, 1.055
        %v5753 = vmul.f32 %v4729, 1.055
        %v5754 = vmul.f32 %v4730, 1.055
        %v5755 = vmul.f32 %v4731, 1.055
        %v5756 = vmul.f32 %v4732, 1.055
        %v5757 = vmul.f32 %v4733, 1.055
        %v5758 = vmul.f32 %v4734, 1.055
        %v5759 = vmul.f32 %v4735, 1.055
        %v5760 = vmul.f32 %v4736, 1.055
        %v5761 = vmul.f32 %v4737, 1.055
        %v5762 = vmul.f32 %v4738, 1.055
        %v5763 = vmul.f32 %v4739, 1.055
        %v5764 = vmul.f32 %v4740, 1.055
        %v5765 = vmul.f32 %v4741, 1.055
        %v5766 = vmul.f32 %v4742, 1.055
        %v5767 = vmul.f32 %v4743, 1.055
        %v5768 = vmul.f32 %v4744, 1.055
        %v5769 = vmul.f32 %v4745, 1.055
        %v5770 = vmul.f32 %v4746, 1.055
        %v5771 = vmul.f32 %v4747, 1.055
        %v5772 = vmul.f32 %v4748, 1.055
        %v5773 = vmul.f32 %v4749, 1.055
        %v5774 = vmul.f32 %v4750, 1.055
        %v5775 = vmul.f32 %v4751, 1.055
        %v5776 = vmul.f32 %v4752, 1.055
        %v5777 = vmul.f32 %v4753, 1.055
        %v5778 = vmul.f32 %v4754, 1.055
        %v5779 = vmul.f32 %v4755, 1.055
        %v5780 = vmul.f32 %v4756, 1.055
        %v5781 = vmul.f32 %v4757, 1.055
        %v5782 = vmul.f32 %v4758, 1.055
        %v5783 = vmul.f32 %v4759, 1.055
        %v5784 = vmul.f32 %v4760, 1.055
        %v5785 = vmul.f32 %v4761, 1.055
        %v5786 = vmul.f32 %v4762, 1.055
        %v5787 = vmul.f32 %v4763, 1.055
        %v5788 = vmul.f32 %v4764, 1.055
        %v5789 = vmul.f32 %v4765, 1.055
        %v5790 = vmul.f32 %v4766, 1.055
        %v5791 = vmul.f32 %v4767, 1.055
        %v5792 = vmul.f32 %v4768, 1.055
        %v5793 = vmul.f32 %v4769, 1.055
        %v5794 = vmul.f32 %v4770, 1.055
        %v5795 = vmul.f32 %v4771, 1.055
        %v5796 = vmul.f32 %v4772, 1.055
        %v5797 = vmul.f32 %v4773, 1.055
        %v5798 = vmul.f32 %v4774, 1.055
        %v5799 = vmul.f32 %v4775, 1.055
        %v5800 = vmul.f32 %v4776, 1.055
        %v5801 = vmul.f32 %v4777, 1.055
        %v5802 = vmul.f32 %v4778, 1.055
        %v5803 = vmul.f32 %v4779, 1.055
        %v5804 = vmul.f32 %v4780, 1.055
        %v5805 = vmul.f32 %v4781, 1.055
        %v5806 = vmul.f32 %v4782, 1.055
        %v5807 = vmul.f32 %v4783, 1.055
        %v5808 = vmul.f32 %v4784, 1.055
        %v5809 = vmul.f32 %v4785, 1.055
        %v5810 = vmul.f32 %v4786, 1.055
        %v5811 = vmul.f32 %v4787, 1.055
        %v5812 = vmul.f32 %v4788, 1.055
        %v5813 = vmul.f32 %v4789, 1.055
        %v5814 = vmul.f32 %v4790, 1.055
        %v5815 = vmul.f32 %v4791, 1.055
        %v5816 = vmul.f32 %v4792, 1.055
        %v5817 = vmul.f32 %v4793, 1.055
        %v5818 = vmul.f32 %v4794, 1.055
        %v5819 = vmul.f32 %v4795, 1.055
        %v5820 = vmul.f32 %v4796, 1.055
        %v5821 = vmul.f32 %v4797, 1.055
        %v5822 = vmul.f32 %v4798, 1.055
        %v5823 = vmul.f32 %v4799, 1.055
        %v5824 = vmul.f32 %v4800, 1.055
        %v5825 = vmul.f32 %v4801, 1.055
        %v5826 = vmul.f32 %v4802, 1.055
        %v5827 = vmul.f32 %v4803, 1.055
        %v5828 = vmul.f32 %v4804, 1.055
        %v5829 = vmul.f32 %v4805, 1.055
        %v5830 = vmul.f32 %v4806, 1.055
        %v5831 = vmul.f32 %v4807, 1.055
        %v5832 = vmul.f32 %v4808, 1.055
        %v5833 = vmul.f32 %v4809, 1.055
        %v5834 = vmul.f32 %v4810, 1.055
        %v5835 = vmul.f32 %v4811, 1.055
        %v5836 = vmul.f32 %v4812, 1.055
        %v5837 = vmul.f32 %v4813, 1.055
        %v5838 = vmul.f32 %v4814, 1.055
        %v5839 = vmul.f32 %v4815, 1.055
        %v5840 = vmul.f32 %v4816, 1.055
        %v5841 = vmul.f32 %v4817, 1.055
        %v5842 = vmul.f32 %v4818, 1.055
        %v5843 = vmul.f32 %v4819, 1.055
        %v5844 = vmul.f32 %v4820, 1.055
        %v5845 = vmul.f32 %v4821, 1.055
        %v5846 = vmul.f32 %v4822, 1.055
        %v5847 = vmul.f32 %v4823, 1.055
        %v5848 = vmul.f32 %v4824, 1.055
        %v5849 = vmul.f32 %v4825, 1.055
        %v5850 = vmul.f32 %v4826, 1.055
        %v5851 = vmul.f32 %v4827, 1.055
        %v5852 = vmul.f32 %v4828, 1.055
        %v5853 = vmul.f32 %v4829, 1.055
        %v5854 = vmul.f32 %v4830, 1.055
        %v5855 = vmul.f32 %v4831, 1.055
        %v5856 = vmul.f32 %v4832, 1.055
        %v5857 = vmul.f32 %v4833, 1.055
        %v5858 = vmul.f32 %v4834, 1.055
        %v5859 = vmul.f32 %v4835, 1.055
        %v5860 = vmul.f32 %v4836, 1.055
        %v5861 = vmul.f32 %v4837, 1.055
        %v5862 = vmul.f32 %v4838, 1.055
        %v5863 = vmul.f32 %v4839, 1.055
        %v5864 = vmul.f32 %v4840, 1.055
        %v5865 = vmul.f32 %v4841, 1.055
        %v5866 = vmul.f32 %v4842, 1.055
        %v5867 = vmul.f32 %v4843, 1.055
        %v5868 = vmul.f32 %v4844, 1.055
        %v5869 = vmul.f32 %v4845, 1.055
        %v5870 = vmul.f32 %v4846, 1.055
        %v5871 = vmul.f32 %v4847, 1.055
        %v5872 = vmul.f32 %v4848, 1.055
        %v5873 = vmul.f32 %v4849, 1.055
        %v5874 = vmul.f32 %v4850, 1.055
        %v5875 = vmul.f32 %v4851, 1.055
        %v5876 = vmul.f32 %v4852, 1.055
        %v5877 = vmul.f32 %v4853, 1.055
        %v5878 = vmul.f32 %v4854, 1.055
        %v5879 = vmul.f32 %v4855, 1.055
        %v5880 = vmul.f32 %v4856, 1.055
        %v5881 = vmul.f32 %v4857, 1.055
        %v5882 = vmul.f32 %v4858, 1.055
        %v5883 = vmul.f32 %v4859, 1.055
        %v5884 = vmul.f32 %v4860, 1.055
        %v5885 = vmul.f32 %v4861, 1.055
        %v5886 = vmul.f32 %v4862, 1.055
        %v5887 = vmul.f32 %v4863, 1.055
        %v5888 = vmul.f32 %v4864, 1.055
        %v5889 = vmul.f32 %v4865, 1.055
        %v5890 = vmul.f32 %v4866, 1.055
        %v5891 = vmul.f32 %v4867, 1.055
        %v5892 = vmul.f32 %v4868, 1.055
        %v5893 = vmul.f32 %v4869, 1.055
        %v5894 = vmul.f32 %v4870, 1.055
        %v5895 = vmul.f32 %v4871, 1.055
        %v5896 = vmul.f32 %v4872, 1.055
        %v5897 = vmul.f32 %v4873, 1.055
        %v5898 = vmul.f32 %v4874, 1.055
        %v5899 = vmul.f32 %v4875, 1.055
        %v5900 = vmul.f32 %v4876, 1.055
        %v5901 = vmul.f32 %v4877, 1.055
        %v5902 = vmul.f32 %v4878, 1.055
        %v5903 = vmul.f32 %v4879, 1.055
        %v5904 = vmul.f32 %v4880, 1.055
        %v5905 = vmul.f32 %v4881, 1.055
        %v5906 = vmul.f32 %v4882, 1.055
        %v5907 = vmul.f32 %v4883, 1.055
        %v5908 = vmul.f32 %v4884, 1.055
        %v5909 = vmul.f32 %v4885, 1.055
        %v5910 = vmul.f32 %v4886, 1.055
        %v5911 = vmul.f32 %v4887, 1.055
        %v5912 = vmul.f32 %v4888, 1.055
        %v5913 = vmul.f32 %v4889, 1.055
        %v5914 = vmul.f32 %v4890, 1.055
        %v5915 = vmul.f32 %v4891, 1.055
        %v5916 = vmul.f32 %v4892, 1.055
        %v5917 = vmul.f32 %v4893, 1.055
        %v5918 = vmul.f32 %v4894, 1.055
        %v5919 = vmul.f32 %v4895, 1.055
        %v5920 = vmul.f32 %v4896, 1.055
        %v5921 = vmul.f32 %v4897, 1.055
        %v5922 = vmul.f32 %v4898, 1.055
        %v5923 = vmul.f32 %v4899, 1.055
        %v5924 = vmul.f32 %v4900, 1.055
        %v5925 = vmul.f32 %v4901, 1.055
        %v5926 = vmul.f32 %v4902, 1.055
        %v5927 = vmul.f32 %v4903, 1.055
        %v5928 = vmul.f32 %v4904, 1.055
        %v5929 = vmul.f32 %v4905, 1.055
        %v5930 = vmul.f32 %v4906, 1.055
        %v5931 = vmul.f32 %v4907, 1.055
        %v5932 = vmul.f32 %v4908, 1.055
        %v5933 = vmul.f32 %v4909, 1.055
        %v5934 = vmul.f32 %v4910, 1.055
        %v5935 = vmul.f32 %v4911, 1.055
        %v5936 = vmul.f32 %v4912, 1.055
        %v5937 = vmul.f32 %v4913, 1.055
        %v5938 = vmul.f32 %v4914, 1.055
        %v5939 = vmul.f32 %v4915, 1.055
        %v5940 = vmul.f32 %v4916, 1.055
        %v5941 = vmul.f32 %v4917, 1.055
        %v5942 = vmul.f32 %v4918, 1.055
        %v5943 = vmul.f32 %v4919, 1.055
        %v5944 = vmul.f32 %v4920, 1.055
        %v5945 = vmul.f32 %v4921, 1.055
        %v5946 = vmul.f32 %v4922, 1.055
        %v5947 = vmul.f32 %v4923, 1.055
        %v5948 = vmul.f32 %v4924, 1.055
        %v5949 = vmul.f32 %v4925, 1.055
        %v5950 = vmul.f32 %v4926, 1.055
        %v5951 = vmul.f32 %v4927, 1.055
        %v5952 = vmul.f32 %v4928, 1.055
        %v5953 = vmul.f32 %v4929, 1.055
        %v5954 = vmul.f32 %v4930, 1.055
        %v5955 = vmul.f32 %v4931, 1.055
        %v5956 = vmul.f32 %v4932, 1.055
        %v5957 = vmul.f32 %v4933, 1.055
        %v5958 = vmul.f32 %v4934, 1.055
        %v5959 = vmul.f32 %v4935, 1.055
        %v5960 = vmul.f32 %v4936, 1.055
        %v5961 = vmul.f32 %v4937, 1.055
        %v5962 = vmul.f32 %v4938, 1.055
        %v5963 = vmul.f32 %v4939, 1.055
        %v5964 = vmul.f32 %v4940, 1.055
        %v5965 = vmul.f32 %v4941, 1.055
        %v5966 = vmul.f32 %v4942, 1.055
        %v5967 = vmul.f32 %v4943, 1.055
        %v5968 = vmul.f32 %v4944, 1.055
        %v5969 = vmul.f32 %v4945, 1.055
        %v5970 = vmul.f32 %v4946, 1.055
        %v5971 = vmul.f32 %v4947, 1.055
        %v5972 = vmul.f32 %v4948, 1.055
        %v5973 = vmul.f32 %v4949, 1.055
        %v5974 = vmul.f32 %v4950, 1.055
        %v5975 = vmul.f32 %v4951, 1.055
        %v5976 = vmul.f32 %v4952, 1.055
        %v5977 = vmul.f32 %v4953, 1.055
        %v5978 = vmul.f32 %v4954, 1.055
        %v5979 = vmul.f32 %v4955, 1.055
        %v5980 = vmul.f32 %v4956, 1.055
        %v5981 = vmul.f32 %v4957, 1.055
        %v5982 = vmul.f32 %v4958, 1.055
        %v5983 = vmul.f32 %v4959, 1.055
        %v5984 = vmul.f32 %v4960, 1.055
        %v5985 = vmul.f32 %v4961, 1.055
        %v5986 = vmul.f32 %v4962, 1.055
        %v5987 = vmul.f32 %v4963, 1.055
        %v5988 = vmul.f32 %v4964, 1.055
        %v5989 = vmul.f32 %v4965, 1.055
        %v5990 = vmul.f32 %v4966, 1.055
        %v5991 = vmul.f32 %v4967, 1.055
        %v5992 = vmul.f32 %v4968, 1.055
        %v5993 = vmul.f32 %v4969, 1.055
        %v5994 = vmul.f32 %v4970, 1.055
        %v5995 = vmul.f32 %v4971, 1.055
        %v5996 = vmul.f32 %v4972, 1.055
        %v5997 = vmul.f32 %v4973, 1.055
        %v5998 = vmul.f32 %v4974, 1.055
        %v5999 = vmul.f32 %v4975, 1.055
        %v6000 = vmul.f32 %v4976, 1.055
        %v6001 = vmul.f32 %v4977, 1.055
        %v6002 = vmul.f32 %v4978, 1.055
        %v6003 = vmul.f32 %v4979, 1.055
        %v6004 = vmul.f32 %v4980, 1.055
        %v6005 = vmul.f32 %v4981, 1.055
        %v6006 = vmul.f32 %v4982, 1.055
        %v6007 = vmul.f32 %v4983, 1.055
        %v6008 = vmul.f32 %v4984, 1.055
        %v6009 = vmul.f32 %v4985, 1.055
        %v6010 = vmul.f32 %v4986, 1.055
        %v6011 = vmul.f32 %v4987, 1.055
        %v6012 = vmul.f32 %v4988, 1.055
        %v6013 = vmul.f32 %v4989, 1.055
        %v6014 = vmul.f32 %v4990, 1.055
        %v6015 = vmul.f32 %v4991, 1.055
        %v6016 = vmul.f32 %v4992, 1.055
        %v6017 = vmul.f32 %v4993, 1.055
        %v6018 = vmul.f32 %v4994, 1.055
        %v6019 = vmul.f32 %v4995, 1.055
        %v6020 = vmul.f32 %v4996, 1.055
        %v6021 = vmul.f32 %v4997, 1.055
        %v6022 = vmul.f32 %v4998, 1.055
        %v6023 = vmul.f32 %v4999, 1.055
        %v6024 = vmul.f32 %v5000, 1.055
        %v6025 = vmul.f32 %v5001, 1.055
        %v6026 = vmul.f32 %v5002, 1.055
        %v6027 = vmul.f32 %v5003, 1.055
        %v6028 = vmul.f32 %v5004, 1.055
        %v6029 = vmul.f32 %v5005, 1.055
        %v6030 = vmul.f32 %v5006, 1.055
        %v6031 = vmul.f32 %v5007, 1.055
        %v6032 = vmul.f32 %v5008, 1.055
        %v6033 = vmul.f32 %v5009, 1.055
        %v6034 = vmul.f32 %v5010, 1.055
        %v6035 = vmul.f32 %v5011, 1.055
        %v6036 = vmul.f32 %v5012, 1.055
        %v6037 = vmul.f32 %v5013, 1.055
        %v6038 = vmul.f32 %v5014, 1.055
        %v6039 = vmul.f32 %v5015, 1.055
        %v6040 = vmul.f32 %v5016, 1.055
        %v6041 = vmul.f32 %v5017, 1.055
        %v6042 = vmul.f32 %v5018, 1.055
        %v6043 = vmul.f32 %v5019, 1.055
        %v6044 = vmul.f32 %v5020, 1.055
        %v6045 = vmul.f32 %v5021, 1.055
        %v6046 = vmul.f32 %v5022, 1.055
        %v6047 = vmul.f32 %v5023, 1.055
        %v6048 = vmul.f32 %v5024, 1.055
        %v6049 = vmul.f32 %v5025, 1.055
        %v6050 = vmul.f32 %v5026, 1.055
        %v6051 = vmul.f32 %v5027, 1.055
        %v6052 = vmul.f32 %v5028, 1.055
        %v6053 = vmul.f32 %v5029, 1.055
        %v6054 = vmul.f32 %v5030, 1.055
        %v6055 = vmul.f32 %v5031, 1.055
        %v6056 = vmul.f32 %v5032, 1.055
        %v6057 = vmul.f32 %v5033, 1.055
        %v6058 = vmul.f32 %v5034, 1.055
        %v6059 = vmul.f32 %v5035, 1.055
        %v6060 = vmul.f32 %v5036, 1.055
        %v6061 = vmul.f32 %v5037, 1.055
        %v6062 = vmul.f32 %v5038, 1.055
        %v6063 = vmul.f32 %v5039, 1.055
        %v6064 = vmul.f32 %v5040, 1.055
        %v6065 = vmul.f32 %v5041, 1.055
        %v6066 = vmul.f32 %v5042, 1.055
        %v6067 = vmul.f32 %v5043, 1.055
        %v6068 = vmul.f32 %v5044, 1.055
        %v6069 = vmul.f32 %v5045, 1.055
        %v6070 = vmul.f32 %v5046, 1.055
        %v6071 = vmul.f32 %v5047, 1.055
        %v6072 = vmul.f32 %v5048, 1.055
        %v6073 = vmul.f32 %v5049, 1.055
        %v6074 = vmul.f32 %v5050, 1.055
        %v6075 = vmul.f32 %v5051, 1.055
        %v6076 = vmul.f32 %v5052, 1.055
        %v6077 = vmul.f32 %v5053, 1.055
        %v6078 = vmul.f32 %v5054, 1.055
        %v6079 = vmul.f32 %v5055, 1.055
        %v6080 = vmul.f32 %v5056, 1.055
        %v6081 = vmul.f32 %v5057, 1.055
        %v6082 = vmul.f32 %v5058, 1.055
        %v6083 = vmul.f32 %v5059, 1.055
        %v6084 = vmul.f32 %v5060, 1.055
        %v6085 = vmul.f32 %v5061, 1.055
        %v6086 = vmul.f32 %v5062, 1.055
        %v6087 = vmul.f32 %v5063, 1.055
        %v6088 = vmul.f32 %v5064, 1.055
        %v6089 = vmul.f32 %v5065, 1.055
        %v6090 = vmul.f32 %v5066, 1.055
        %v6091 = vmul.f32 %v5067, 1.055
        %v6092 = vmul.f32 %v5068, 1.055
        %v6093 = vmul.f32 %v5069, 1.055
        %v6094 = vmul.f32 %v5070, 1.055
        %v6095 = vmul.f32 %v5071, 1.055
        %v6096 = vmul.f32 %v5072, 1.055
        %v6097 = vmul.f32 %v5073, 1.055
        %v6098 = vmul.f32 %v5074, 1.055
        %v6099 = vmul.f32 %v5075, 1.055
        %v6100 = vmul.f32 %v5076, 1.055
        %v6101 = vmul.f32 %v5077, 1.055
        %v6102 = vmul.f32 %v5078, 1.055
        %v6103 = vmul.f32 %v5079, 1.055
        %v6104 = vmul.f32 %v5080, 1.055
        %v6105 = vmul.f32 %v5081, 1.055
        %v6106 = vmul.f32 %v5082, 1.055
        %v6107 = vmul.f32 %v5083, 1.055
        %v6108 = vmul.f32 %v5084, 1.055
        %v6109 = vmul.f32 %v5085, 1.055
        %v6110 = vmul.f32 %v5086, 1.055
        %v6111 = vmul.f32 %v5087, 1.055
        %v6112 = vmul.f32 %v5088, 1.055
        %v6113 = vmul.f32 %v5089, 1.055
        %v6114 = vmul.f32 %v5090, 1.055
        %v6115 = vmul.f32 %v5091, 1.055
        %v6116 = vmul.f32 %v5092, 1.055
        %v6117 = vmul.f32 %v5093, 1.055
        %v6118 = vmul.f32 %v5094, 1.055
        %v6119 = vmul.f32 %v5095, 1.055
        %v6120 = vmul.f32 %v5096, 1.055
        %v6121 = vmul.f32 %v5097, 1.055
        %v6122 = vmul.f32 %v5098, 1.055
        %v6123 = vmul.f32 %v5099, 1.055
        %v6124 = vmul.f32 %v5100, 1.055
        %v6125 = vmul.f32 %v5101, 1.055
        %v6126 = vmul.f32 %v5102, 1.055
        %v6127 = vmul.f32 %v5103, 1.055
        %v6128 = vmul.f32 %v5104, 1.055
        %v6129 = vmul.f32 %v5105, 1.055
        %v6130 = vmul.f32 %v5106, 1.055
        %v6131 = vmul.f32 %v5107, 1.055
        %v6132 = vmul.f32 %v5108, 1.055
        %v6133 = vmul.f32 %v5109, 1.055
        %v6134 = vmul.f32 %v5110, 1.055
        %v6135 = vmul.f32 %v5111, 1.055
        %v6136 = vmul.f32 %v5112, 1.055
        %v6137 = vmul.f32 %v5113, 1.055
        %v6138 = vmul.f32 %v5114, 1.055
        %v6139 = vmul.f32 %v5115, 1.055
        %v6140 = vmul.f32 %v5116, 1.055
        %v6141 = vmul.f32 %v5117, 1.055
        %v6142 = vmul.f32 %v5118, 1.055
        %v6143 = vmul.f32 %v5119, 1.055
        %v6144 = vmul.f32 %v5120, 1.055
        %v6145 = vmul.f32 %v5121, 1.055
        %v6146 = vmul.f32 %v5122, 1.055
        %v6147 = vmul.f32 %v5123, 1.055
        %v6148 = vmul.f32 %v5124, 1.055
        %v6149 = vmul.f32 %v5125, 1.055
        %v6150 = vmul.f32 %v5126, 1.055
        %v6151 = vmul.f32 %v5127, 1.055
        %v6152 = vmul.f32 %v5128, 1.055
        %v6153 = vmul.f32 %v5129, 1.055
        %v6154 = vmul.f32 %v5130, 1.055
        %v6155 = vmul.f32 %v5131, 1.055
        %v6156 = vmul.f32 %v5132, 1.055
        %v6157 = vmul.f32 %v5133, 1.055
        %v6158 = vmul.f32 %v5134, 1.055
        %v6159 = vmul.f32 %v5135, 1.055
        %v6160 = vmul.f32 %v5136, 1.055
        %v6161 = vmul.f32 %v5137, 1.055
        %v6162 = vmul.f32 %v5138, 1.055
        %v6163 = vmul.f32 %v5139, 1.055
        %v6164 = vmul.f32 %v5140, 1.055
        %v6165 = vmul.f32 %v5141, 1.055
        %v6166 = vmul.f32 %v5142, 1.055
        %v6167 = vmul.f32 %v5143, 1.055
        %v6168 = vmul.f32 %v5144, 1.055
        %v6169 = vmul.f32 %v5145, 1.055
        %v6170 = vmul.f32 %v5146, 1.055
        %v6171 = vmul.f32 %v5147, 1.055
        %v6172 = vmul.f32 %v5148, 1.055
        %v6173 = vmul.f32 %v5149, 1.055
        %v6174 = vmul.f32 %v5150, 1.055
        %v6175 = vmul.f32 %v5151, 1.055
        %v6176 = vmul.f32 %v5152, 1.055
        %v6177 = vmul.f32 %v5153, 1.055
        %v6178 = vmul.f32 %v5154, 1.055
        %v6179 = vmul.f32 %v5155, 1.055
        %v6180 = vmul.f32 %v5156, 1.055
        %v6181 = vmul.f32 %v5157, 1.055
        %v6182 = vmul.f32 %v5158, 1.055
        %v6183 = vmul.f32 %v5159, 1.055
        %v6184 = vmul.f32 %v5160, 1.055
        %v6185 = vmul.f32 %v5161, 1.055
        %v6186 = vmul.f32 %v5162, 1.055
        %v6187 = vmul.f32 %v5163, 1.055
        %v6188 = vmul.f32 %v5164, 1.055
        %v6189 = vmul.f32 %v5165, 1.055
        %v6190 = vmul.f32 %v5166, 1.055
        %v6191 = vmul.f32 %v5167, 1.055
        %v6192 = vmul.f32 %v5168, 1.055
        %v6193 = vmul.f32 %v5169, 1.055
        %v6194 = vmul.f32 %v5170, 1.055
        %v6195 = vmul.f32 %v5171, 1.055
        %v6196 = vmul.f32 %v5172, 1.055
        %v6197 = vmul.f32 %v5173, 1.055
        %v6198 = vmul.f32 %v5174, 1.055
        %v6199 = vmul.f32 %v5175, 1.055
        %v6200 = vmul.f32 %v5176, 1.055
        %v6201 = vmul.f32 %v5177, 1.055
        %v6202 = vmul.f32 %v5178, 1.055
        %v6203 = vmul.f32 %v5179, 1.055
        %v6204 = vmul.f32 %v5180, 1.055
        %v6205 = vmul.f32 %v5181, 1.055
        %v6206 = vmul.f32 %v5182, 1.055
        %v6207 = vmul.f32 %v5183, 1.055
        %v6208 = vmul.f32 %v5184, 1.055
        %v6209 = vmul.f32 %v5185, 1.055
        %v6210 = vmul.f32 %v5186, 1.055
        %v6211 = vmul.f32 %v5187, 1.055
        %v6212 = vmul.f32 %v5188, 1.055
        %v6213 = vmul.f32 %v5189, 1.055
        %v6214 = vmul.f32 %v5190, 1.055
        %v6215 = vmul.f32 %v5191, 1.055
        %v6216 = vmul.f32 %v5192, 1.055
        %v6217 = vmul.f32 %v5193, 1.055
        %v6218 = vmul.f32 %v5194, 1.055
        %v6219 = vmul.f32 %v5195, 1.055
        %v6220 = vmul.f32 %v5196, 1.055
        %v6221 = vmul.f32 %v5197, 1.055
        %v6222 = vmul.f32 %v5198, 1.055
        %v6223 = vmul.f32 %v5199, 1.055
        %v6224 = vmul.f32 %v5200, 1.055
        %v6225 = vmul.f32 %v5201, 1.055
        %v6226 = vmul.f32 %v5202, 1.055
        %v6227 = vmul.f32 %v5203, 1.055
        %v6228 = vmul.f32 %v5204, 1.055
        %v6229 = vmul.f32 %v5205, 1.055
        %v6230 = vmul.f32 %v5206, 1.055
        %v6231 = vmul.f32 %v5207, 1.055
        %v6232 = vmul.f32 %v5208, 1.055
        %v6233 = vmul.f32 %v5209, 1.055
        %v6234 = vmul.f32 %v5210, 1.055
        %v6235 = vmul.f32 %v5211, 1.055
        %v6236 = vmul.f32 %v5212, 1.055
        %v6237 = vmul.f32 %v5213, 1.055
        %v6238 = vmul.f32 %v5214, 1.055
        %v6239 = vmul.f32 %v5215, 1.055
        %v6240 = vmul.f32 %v5216, 1.055
        %v6241 = vmul.f32 %v5217, 1.055
        %v6242 = vmul.f32 %v5218, 1.055
        %v6243 = vmul.f32 %v5219, 1.055
        %v6244 = vmul.f32 %v5220, 1.055
        %v6245 = vmul.f32 %v5221, 1.055
        %v6246 = vmul.f32 %v5222, 1.055
        %v6247 = vmul.f32 %v5223, 1.055
        %v6248 = vmul.f32 %v5224, 1.055
        %v6249 = vmul.f32 %v5225, 1.055
        %v6250 = vmul.f32 %v5226, 1.055
        %v6251 = vmul.f32 %v5227, 1.055
        %v6252 = vmul.f32 %v5228, 1.055
        %v6253 = vmul.f32 %v5229, 1.055
        %v6254 = vmul.f32 %v5230, 1.055
        %v6255 = vmul.f32 %v5231, 1.055
        %v6256 = vmul.f32 %v5232, 1.055
        %v6257 = vmul.f32 %v5233, 1.055
        %v6258 = vmul.f32 %v5234, 1.055
        %v6259 = vmul.f32 %v5235, 1.055
        %v6260 = vmul.f32 %v5236, 1.055
        %v6261 = vmul.f32 %v5237, 1.055
        %v6262 = vmul.f32 %v5238, 1.055
        %v6263 = vmul.f32 %v5239, 1.055
        %v6264 = vmul.f32 %v5240, 1.055
        %v6265 = vmul.f32 %v5241, 1.055
        %v6266 = vmul.f32 %v5242, 1.055
        %v6267 = vmul.f32 %v5243, 1.055
        %v6268 = vmul.f32 %v5244, 1.055
        %v6269 = vmul.f32 %v5245, 1.055
        %v6270 = vmul.f32 %v5246, 1.055
        %v6271 = vmul.f32 %v5247, 1.055
        %v6272 = vmul.f32 %v5248, 1.055
        %v6273 = vmul.f32 %v5249, 1.055
        %v6274 = vmul.f32 %v5250, 1.055
        %v6275 = vmul.f32 %v5251, 1.055
        %v6276 = vmul.f32 %v5252, 1.055
        %v6277 = vmul.f32 %v5253, 1.055
        %v6278 = vmul.f32 %v5254, 1.055
        %v6279 = vmul.f32 %v5255, 1.055
        %v6280 = vmul.f32 %v5256, 1.055
        %v6281 = vmul.f32 %v5257, 1.055
        %v6282 = vmul.f32 %v5258, 1.055
        %v6283 = vmul.f32 %v5259, 1.055
        %v6284 = vmul.f32 %v5260, 1.055
        %v6285 = vmul.f32 %v5261, 1.055
        %v6286 = vmul.f32 %v5262, 1.055
        %v6287 = vmul.f32 %v5263, 1.055
        %v6288 = vmul.f32 %v5264, 1.055
        %v6289 = vmul.f32 %v5265, 1.055
        %v6290 = vmul.f32 %v5266, 1.055
        %v6291 = vmul.f32 %v5267, 1.055
        %v6292 = vmul.f32 %v5268, 1.055
        %v6293 = vmul.f32 %v5269, 1.055
        %v6294 = vmul.f32 %v5270, 1.055
        %v6295 = vmul.f32 %v5271, 1.055
        %v6296 = vmul.f32 %v5272, 1.055
        %v6297 = vmul.f32 %v5273, 1.055
        %v6298 = vsub.f32 %v5274, 0.055
        %v6299 = vsub.f32 %v5275, 0.055
        %v6300 = vsub.f32 %v5276, 0.055
        %v6301 = vsub.f32 %v5277, 0.055
        %v6302 = vsub.f32 %v5278, 0.055
        %v6303 = vsub.f32 %v5279, 0.055
        %v6304 = vsub.f32 %v5280, 0.055
        %v6305 = vsub.f32 %v5281, 0.055
        %v6306 = vsub.f32 %v5282, 0.055
        %v6307 = vsub.f32 %v5283, 0.055
        %v6308 = vsub.f32 %v5284, 0.055
        %v6309 = vsub.f32 %v5285, 0.055
        %v6310 = vsub.f32 %v5286, 0.055
        %v6311 = vsub.f32 %v5287, 0.055
        %v6312 = vsub.f32 %v5288, 0.055
        %v6313 = vsub.f32 %v5289, 0.055
        %v6314 = vsub.f32 %v5290, 0.055
        %v6315 = vsub.f32 %v5291, 0.055
        %v6316 = vsub.f32 %v5292, 0.055
        %v6317 = vsub.f32 %v5293, 0.055
        %v6318 = vsub.f32 %v5294, 0.055
        %v6319 = vsub.f32 %v5295, 0.055
        %v6320 = vsub.f32 %v5296, 0.055
        %v6321 = vsub.f32 %v5297, 0.055
        %v6322 = vsub.f32 %v5298, 0.055
        %v6323 = vsub.f32 %v5299, 0.055
        %v6324 = vsub.f32 %v5300, 0.055
        %v6325 = vsub.f32 %v5301, 0.055
        %v6326 = vsub.f32 %v5302, 0.055
        %v6327 = vsub.f32 %v5303, 0.055
        %v6328 = vsub.f32 %v5304, 0.055
        %v6329 = vsub.f32 %v5305, 0.055
        %v6330 = vsub.f32 %v5306, 0.055
        %v6331 = vsub.f32 %v5307, 0.055
        %v6332 = vsub.f32 %v5308, 0.055
        %v6333 = vsub.f32 %v5309, 0.055
        %v6334 = vsub.f32 %v5310, 0.055
        %v6335 = vsub.f32 %v5311, 0.055
        %v6336 = vsub.f32 %v5312, 0.055
        %v6337 = vsub.f32 %v5313, 0.055
        %v6338 = vsub.f32 %v5314, 0.055
        %v6339 = vsub.f32 %v5315, 0.055
        %v6340 = vsub.f32 %v5316, 0.055
        %v6341 = vsub.f32 %v5317, 0.055
        %v6342 = vsub.f32 %v5318, 0.055
        %v6343 = vsub.f32 %v5319, 0.055
        %v6344 = vsub.f32 %v5320, 0.055
        %v6345 = vsub.f32 %v5321, 0.055
        %v6346 = vsub.f32 %v5322, 0.055
        %v6347 = vsub.f32 %v5323, 0.055
        %v6348 = vsub.f32 %v5324, 0.055
        %v6349 = vsub.f32 %v5325, 0.055
        %v6350 = vsub.f32 %v5326, 0.055
        %v6351 = vsub.f32 %v5327, 0.055
        %v6352 = vsub.f32 %v5328, 0.055
        %v6353 = vsub.f32 %v5329, 0.055
        %v6354 = vsub.f32 %v5330, 0.055
        %v6355 = vsub.f32 %v5331, 0.055
        %v6356 = vsub.f32 %v5332, 0.055
        %v6357 = vsub.f32 %v5333, 0.055
        %v6358 = vsub.f32 %v5334, 0.055
        %v6359 = vsub.f32 %v5335, 0.055
        %v6360 = vsub.f32 %v5336, 0.055
        %v6361 = vsub.f32 %v5337, 0.055
        %v6362 = vsub.f32 %v5338, 0.055
        %v6363 = vsub.f32 %v5339, 0.055
        %v6364 = vsub.f32 %v5340, 0.055
        %v6365 = vsub.f32 %v5341, 0.055
        %v6366 = vsub.f32 %v5342, 0.055
        %v6367 = vsub.f32 %v5343, 0.055
        %v6368 = vsub.f32 %v5344, 0.055
        %v6369 = vsub.f32 %v5345, 0.055
        %v6370 = vsub.f32 %v5346, 0.055
        %v6371 = vsub.f32 %v5347, 0.055
        %v6372 = vsub.f32 %v5348, 0.055
        %v6373 = vsub.f32 %v5349, 0.055
        %v6374 = vsub.f32 %v5350, 0.055
        %v6375 = vsub.f32 %v5351, 0.055
        %v6376 = vsub.f32 %v5352, 0.055
        %v6377 = vsub.f32 %v5353, 0.055
        %v6378 = vsub.f32 %v5354, 0.055
        %v6379 = vsub.f32 %v5355, 0.055
        %v6380 = vsub.f32 %v5356, 0.055
        %v6381 = vsub.f32 %v5357, 0.055
        %v6382 = vsub.f32 %v5358, 0.055
        %v6383 = vsub.f32 %v5359, 0.055
        %v6384 = vsub.f32 %v5360, 0.055
        %v6385 = vsub.f32 %v5361, 0.055
        %v6386 = vsub.f32 %v5362, 0.055
        %v6387 = vsub.f32 %v5363, 0.055
        %v6388 = vsub.f32 %v5364, 0.055
        %v6389 = vsub.f32 %v5365, 0.055
        %v6390 = vsub.f32 %v5366, 0.055
        %v6391 = vsub.f32 %v5367, 0.055
        %v6392 = vsub.f32 %v5368, 0.055
        %v6393 = vsub.f32 %v5369, 0.055
        %v6394 = vsub.f32 %v5370, 0.055
        %v6395 = vsub.f32 %v5371, 0.055
        %v6396 = vsub.f32 %v5372, 0.055
        %v6397 = vsub.f32 %v5373, 0.055
        %v6398 = vsub.f32 %v5374, 0.055
        %v6399 = vsub.f32 %v5375, 0.055
        %v6400 = vsub.f32 %v5376, 0.055
        %v6401 = vsub.f32 %v5377, 0.055
        %v6402 = vsub.f32 %v5378, 0.055
        %v6403 = vsub.f32 %v5379, 0.055
        %v6404 = vsub.f32 %v5380, 0.055
        %v6405 = vsub.f32 %v5381, 0.055
        %v6406 = vsub.f32 %v5382, 0.055
        %v6407 = vsub.f32 %v5383, 0.055
        %v6408 = vsub.f32 %v5384, 0.055
        %v6409 = vsub.f32 %v5385, 0.055
        %v6410 = vsub.f32 %v5386, 0.055
        %v6411 = vsub.f32 %v5387, 0.055
        %v6412 = vsub.f32 %v5388, 0.055
        %v6413 = vsub.f32 %v5389, 0.055
        %v6414 = vsub.f32 %v5390, 0.055
        %v6415 = vsub.f32 %v5391, 0.055
        %v6416 = vsub.f32 %v5392, 0.055
        %v6417 = vsub.f32 %v5393, 0.055
        %v6418 = vsub.f32 %v5394, 0.055
        %v6419 = vsub.f32 %v5395, 0.055
        %v6420 = vsub.f32 %v5396, 0.055
        %v6421 = vsub.f32 %v5397, 0.055
        %v6422 = vsub.f32 %v5398, 0.055
        %v6423 = vsub.f32 %v5399, 0.055
        %v6424 = vsub.f32 %v5400, 0.055
        %v6425 = vsub.f32 %v5401, 0.055
        %v6426 = vsub.f32 %v5402, 0.055
        %v6427 = vsub.f32 %v5403, 0.055
        %v6428 = vsub.f32 %v5404, 0.055
        %v6429 = vsub.f32 %v5405, 0.055
        %v6430 = vsub.f32 %v5406, 0.055
        %v6431 = vsub.f32 %v5407, 0.055
        %v6432 = vsub.f32 %v5408, 0.055
        %v6433 = vsub.f32 %v5409, 0.055
        %v6434 = vsub.f32 %v5410, 0.055
        %v6435 = vsub.f32 %v5411, 0.055
        %v6436 = vsub.f32 %v5412, 0.055
        %v6437 = vsub.f32 %v5413, 0.055
        %v6438 = vsub.f32 %v5414, 0.055
        %v6439 = vsub.f32 %v5415, 0.055
        %v6440 = vsub.f32 %v5416, 0.055
        %v6441 = vsub.f32 %v5417, 0.055
        %v6442 = vsub.f32 %v5418, 0.055
        %v6443 = vsub.f32 %v5419, 0.055
        %v6444 = vsub.f32 %v5420, 0.055
        %v6445 = vsub.f32 %v5421, 0.055
        %v6446 = vsub.f32 %v5422, 0.055
        %v6447 = vsub.f32 %v5423, 0.055
        %v6448 = vsub.f32 %v5424, 0.055
        %v6449 = vsub.f32 %v5425, 0.055
        %v6450 = vsub.f32 %v5426, 0.055
        %v6451 = vsub.f32 %v5427, 0.055
        %v6452 = vsub.f32 %v5428, 0.055
        %v6453 = vsub.f32 %v5429, 0.055
        %v6454 = vsub.f32 %v5430, 0.055
        %v6455 = vsub.f32 %v5431, 0.055
        %v6456 = vsub.f32 %v5432, 0.055
        %v6457 = vsub.f32 %v5433, 0.055
        %v6458 = vsub.f32 %v5434, 0.055
        %v6459 = vsub.f32 %v5435, 0.055
        %v6460 = vsub.f32 %v5436, 0.055
        %v6461 = vsub.f32 %v5437, 0.055
        %v6462 = vsub.f32 %v5438, 0.055
        %v6463 = vsub.f32 %v5439, 0.055
        %v6464 = vsub.f32 %v5440, 0.055
        %v6465 = vsub.f32 %v5441, 0.055
        %v6466 = vsub.f32 %v5442, 0.055
        %v6467 = vsub.f32 %v5443, 0.055
        %v6468 = vsub.f32 %v5444, 0.055
        %v6469 = vsub.f32 %v5445, 0.055
        %v6470 = vsub.f32 %v5446, 0.055
        %v6471 = vsub.f32 %v5447, 0.055
        %v6472 = vsub.f32 %v5448, 0.055
        %v6473 = vsub.f32 %v5449, 0.055
        %v6474 = vsub.f32 %v5450, 0.055
        %v6475 = vsub.f32 %v5451, 0.055
        %v6476 = vsub.f32 %v5452, 0.055
        %v6477 = vsub.f32 %v5453, 0.055
        %v6478 = vsub.f32 %v5454, 0.055
        %v6479 = vsub.f32 %v5455, 0.055
        %v6480 = vsub.f32 %v5456, 0.055
        %v6481 = vsub.f32 %v5457, 0.055
        %v6482 = vsub.f32 %v5458, 0.055
        %v6483 = vsub.f32 %v5459, 0.055
        %v6484 = vsub.f32 %v5460, 0.055
        %v6485 = vsub.f32 %v5461, 0.055
        %v6486 = vsub.f32 %v5462, 0.055
        %v6487 = vsub.f32 %v5463, 0.055
        %v6488 = vsub.f32 %v5464, 0.055
        %v6489 = vsub.f32 %v5465, 0.055
        %v6490 = vsub.f32 %v5466, 0.055
        %v6491 = vsub.f32 %v5467, 0.055
        %v6492 = vsub.f32 %v5468, 0.055
        %v6493 = vsub.f32 %v5469, 0.055
        %v6494 = vsub.f32 %v5470, 0.055
        %v6495 = vsub.f32 %v5471, 0.055
        %v6496 = vsub.f32 %v5472, 0.055
        %v6497 = vsub.f32 %v5473, 0.055
        %v6498 = vsub.f32 %v5474, 0.055
        %v6499 = vsub.f32 %v5475, 0.055
        %v6500 = vsub.f32 %v5476, 0.055
        %v6501 = vsub.f32 %v5477, 0.055
        %v6502 = vsub.f32 %v5478, 0.055
        %v6503 = vsub.f32 %v5479, 0.055
        %v6504 = vsub.f32 %v5480, 0.055
        %v6505 = vsub.f32 %v5481, 0.055
        %v6506 = vsub.f32 %v5482, 0.055
        %v6507 = vsub.f32 %v5483, 0.055
        %v6508 = vsub.f32 %v5484, 0.055
        %v6509 = vsub.f32 %v5485, 0.055
        %v6510 = vsub.f32 %v5486, 0.055
        %v6511 = vsub.f32 %v5487, 0.055
        %v6512 = vsub.f32 %v5488, 0.055
        %v6513 = vsub.f32 %v5489, 0.055
        %v6514 = vsub.f32 %v5490, 0.055
        %v6515 = vsub.f32 %v5491, 0.055
        %v6516 = vsub.f32 %v5492, 0.055
        %v6517 = vsub.f32 %v5493, 0.055
        %v6518 = vsub.f32 %v5494, 0.055
        %v6519 = vsub.f32 %v5495, 0.055
        %v6520 = vsub.f32 %v5496, 0.055
        %v6521 = vsub.f32 %v5497, 0.055
        %v6522 = vsub.f32 %v5498, 0.055
        %v6523 = vsub.f32 %v5499, 0.055
        %v6524 = vsub.f32 %v5500, 0.055
        %v6525 = vsub.f32 %v5501, 0.055
        %v6526 = vsub.f32 %v5502, 0.055
        %v6527 = vsub.f32 %v5503, 0.055
        %v6528 = vsub.f32 %v5504, 0.055
        %v6529 = vsub.f32 %v5505, 0.055
        %v6530 = vsub.f32 %v5506, 0.055
        %v6531 = vsub.f32 %v5507, 0.055
        %v6532 = vsub.f32 %v5508, 0.055
        %v6533 = vsub.f32 %v5509, 0.055
        %v6534 = vsub.f32 %v5510, 0.055
        %v6535 = vsub.f32 %v5511, 0.055
        %v6536 = vsub.f32 %v5512, 0.055
        %v6537 = vsub.f32 %v5513, 0.055
        %v6538 = vsub.f32 %v5514, 0.055
        %v6539 = vsub.f32 %v5515, 0.055
        %v6540 = vsub.f32 %v5516, 0.055
        %v6541 = vsub.f32 %v5517, 0.055
        %v6542 = vsub.f32 %v5518, 0.055
        %v6543 = vsub.f32 %v5519, 0.055
        %v6544 = vsub.f32 %v5520, 0.055
        %v6545 = vsub.f32 %v5521, 0.055
        %v6546 = vsub.f32 %v5522, 0.055
        %v6547 = vsub.f32 %v5523, 0.055
        %v6548 = vsub.f32 %v5524, 0.055
        %v6549 = vsub.f32 %v5525, 0.055
        %v6550 = vsub.f32 %v5526, 0.055
        %v6551 = vsub.f32 %v5527, 0.055
        %v6552 = vsub.f32 %v5528, 0.055
        %v6553 = vsub.f32 %v5529, 0.055
        %v6554 = vsub.f32 %v5530, 0.055
        %v6555 = vsub.f32 %v5531, 0.055
        %v6556 = vsub.f32 %v5532, 0.055
        %v6557 = vsub.f32 %v5533, 0.055
        %v6558 = vsub.f32 %v5534, 0.055
        %v6559 = vsub.f32 %v5535, 0.055
        %v6560 = vsub.f32 %v5536, 0.055
        %v6561 = vsub.f32 %v5537, 0.055
        %v6562 = vsub.f32 %v5538, 0.055
        %v6563 = vsub.f32 %v5539, 0.055
        %v6564 = vsub.f32 %v5540, 0.055
        %v6565 = vsub.f32 %v5541, 0.055
        %v6566 = vsub.f32 %v5542, 0.055
        %v6567 = vsub.f32 %v5543, 0.055
        %v6568 = vsub.f32 %v5544, 0.055
        %v6569 = vsub.f32 %v5545, 0.055
        %v6570 = vsub.f32 %v5546, 0.055
        %v6571 = vsub.f32 %v5547, 0.055
        %v6572 = vsub.f32 %v5548, 0.055
        %v6573 = vsub.f32 %v5549, 0.055
        %v6574 = vsub.f32 %v5550, 0.055
        %v6575 = vsub.f32 %v5551, 0.055
        %v6576 = vsub.f32 %v5552, 0.055
        %v6577 = vsub.f32 %v5553, 0.055
        %v6578 = vsub.f32 %v5554, 0.055
        %v6579 = vsub.f32 %v5555, 0.055
        %v6580 = vsub.f32 %v5556, 0.055
        %v6581 = vsub.f32 %v5557, 0.055
        %v6582 = vsub.f32 %v5558, 0.055
        %v6583 = vsub.f32 %v5559, 0.055
        %v6584 = vsub.f32 %v5560, 0.055
        %v6585 = vsub.f32 %v5561, 0.055
        %v6586 = vsub.f32 %v5562, 0.055
        %v6587 = vsub.f32 %v5563, 0.055
        %v6588 = vsub.f32 %v5564, 0.055
        %v6589 = vsub.f32 %v5565, 0.055
        %v6590 = vsub.f32 %v5566, 0.055
        %v6591 = vsub.f32 %v5567, 0.055
        %v6592 = vsub.f32 %v5568, 0.055
        %v6593 = vsub.f32 %v5569, 0.055
        %v6594 = vsub.f32 %v5570, 0.055
        %v6595 = vsub.f32 %v5571, 0.055
        %v6596 = vsub.f32 %v5572, 0.055
        %v6597 = vsub.f32 %v5573, 0.055
        %v6598 = vsub.f32 %v5574, 0.055
        %v6599 = vsub.f32 %v5575, 0.055
        %v6600 = vsub.f32 %v5576, 0.055
        %v6601 = vsub.f32 %v5577, 0.055
        %v6602 = vsub.f32 %v5578, 0.055
        %v6603 = vsub.f32 %v5579, 0.055
        %v6604 = vsub.f32 %v5580, 0.055
        %v6605 = vsub.f32 %v5581, 0.055
        %v6606 = vsub.f32 %v5582, 0.055
        %v6607 = vsub.f32 %v5583, 0.055
        %v6608 = vsub.f32 %v5584, 0.055
        %v6609 = vsub.f32 %v5585, 0.055
        %v6610 = vsub.f32 %v5586, 0.055
        %v6611 = vsub.f32 %v5587, 0.055
        %v6612 = vsub.f32 %v5588, 0.055
        %v6613 = vsub.f32 %v5589, 0.055
        %v6614 = vsub.f32 %v5590, 0.055
        %v6615 = vsub.f32 %v5591, 0.055
        %v6616 = vsub.f32 %v5592, 0.055
        %v6617 = vsub.f32 %v5593, 0.055
        %v6618 = vsub.f32 %v5594, 0.055
        %v6619 = vsub.f32 %v5595, 0.055
        %v6620 = vsub.f32 %v5596, 0.055
        %v6621 = vsub.f32 %v5597, 0.055
        %v6622 = vsub.f32 %v5598, 0.055
        %v6623 = vsub.f32 %v5599, 0.055
        %v6624 = vsub.f32 %v5600, 0.055
        %v6625 = vsub.f32 %v5601, 0.055
        %v6626 = vsub.f32 %v5602, 0.055
        %v6627 = vsub.f32 %v5603, 0.055
        %v6628 = vsub.f32 %v5604, 0.055
        %v6629 = vsub.f32 %v5605, 0.055
        %v6630 = vsub.f32 %v5606, 0.055
        %v6631 = vsub.f32 %v5607, 0.055
        %v6632 = vsub.f32 %v5608, 0.055
        %v6633 = vsub.f32 %v5609, 0.055
        %v6634 = vsub.f32 %v5610, 0.055
        %v6635 = vsub.f32 %v5611, 0.055
        %v6636 = vsub.f32 %v5612, 0.055
        %v6637 = vsub.f32 %v5613, 0.055
        %v6638 = vsub.f32 %v5614, 0.055
        %v6639 = vsub.f32 %v5615, 0.055
        %v6640 = vsub.f32 %v5616, 0.055
        %v6641 = vsub.f32 %v5617, 0.055
        %v6642 = vsub.f32 %v5618, 0.055
        %v6643 = vsub.f32 %v5619, 0.055
        %v6644 = vsub.f32 %v5620, 0.055
        %v6645 = vsub.f32 %v5621, 0.055
        %v6646 = vsub.f32 %v5622, 0.055
        %v6647 = vsub.f32 %v5623, 0.055
        %v6648 = vsub.f32 %v5624, 0.055
        %v6649 = vsub.f32 %v5625, 0.055
        %v6650 = vsub.f32 %v5626, 0.055
        %v6651 = vsub.f32 %v5627, 0.055
        %v6652 = vsub.f32 %v5628, 0.055
        %v6653 = vsub.f32 %v5629, 0.055
        %v6654 = vsub.f32 %v5630, 0.055
        %v6655 = vsub.f32 %v5631, 0.055
        %v6656 = vsub.f32 %v5632, 0.055
        %v6657 = vsub.f32 %v5633, 0.055
        %v6658 = vsub.f32 %v5634, 0.055
        %v6659 = vsub.f32 %v5635, 0.055
        %v6660 = vsub.f32 %v5636, 0.055
        %v6661 = vsub.f32 %v5637, 0.055
        %v6662 = vsub.f32 %v5638, 0.055
        %v6663 = vsub.f32 %v5639, 0.055
        %v6664 = vsub.f32 %v5640, 0.055
        %v6665 = vsub.f32 %v5641, 0.055
        %v6666 = vsub.f32 %v5642, 0.055
        %v6667 = vsub.f32 %v5643, 0.055
        %v6668 = vsub.f32 %v5644, 0.055
        %v6669 = vsub.f32 %v5645, 0.055
        %v6670 = vsub.f32 %v5646, 0.055
        %v6671 = vsub.f32 %v5647, 0.055
        %v6672 = vsub.f32 %v5648, 0.055
        %v6673 = vsub.f32 %v5649, 0.055
        %v6674 = vsub.f32 %v5650, 0.055
        %v6675 = vsub.f32 %v5651, 0.055
        %v6676 = vsub.f32 %v5652, 0.055
        %v6677 = vsub.f32 %v5653, 0.055
        %v6678 = vsub.f32 %v5654, 0.055
        %v6679 = vsub.f32 %v5655, 0.055
        %v6680 = vsub.f32 %v5656, 0.055
        %v6681 = vsub.f32 %v5657, 0.055
        %v6682 = vsub.f32 %v5658, 0.055
        %v6683 = vsub.f32 %v5659, 0.055
        %v6684 = vsub.f32 %v5660, 0.055
        %v6685 = vsub.f32 %v5661, 0.055
        %v6686 = vsub.f32 %v5662, 0.055
        %v6687 = vsub.f32 %v5663, 0.055
        %v6688 = vsub.f32 %v5664, 0.055
        %v6689 = vsub.f32 %v5665, 0.055
        %v6690 = vsub.f32 %v5666, 0.055
        %v6691 = vsub.f32 %v5667, 0.055
        %v6692 = vsub.f32 %v5668, 0.055
        %v6693 = vsub.f32 %v5669, 0.055
        %v6694 = vsub.f32 %v5670, 0.055
        %v6695 = vsub.f32 %v5671, 0.055
        %v6696 = vsub.f32 %v5672, 0.055
        %v6697 = vsub.f32 %v5673, 0.055
        %v6698 = vsub.f32 %v5674, 0.055
        %v6699 = vsub.f32 %v5675, 0.055
        %v6700 = vsub.f32 %v5676, 0.055
        %v6701 = vsub.f32 %v5677, 0.055
        %v6702 = vsub.f32 %v5678, 0.055
        %v6703 = vsub.f32 %v5679, 0.055
        %v6704 = vsub.f32 %v5680, 0.055
        %v6705 = vsub.f32 %v5681, 0.055
        %v6706 = vsub.f32 %v5682, 0.055
        %v6707 = vsub.f32 %v5683, 0.055
        %v6708 = vsub.f32 %v5684, 0.055
        %v6709 = vsub.f32 %v5685, 0.055
        %v6710 = vsub.f32 %v5686, 0.055
        %v6711 = vsub.f32 %v5687, 0.055
        %v6712 = vsub.f32 %v5688, 0.055
        %v6713 = vsub.f32 %v5689, 0.055
        %v6714 = vsub.f32 %v5690, 0.055
        %v6715 = vsub.f32 %v5691, 0.055
        %v6716 = vsub.f32 %v5692, 0.055
        %v6717 = vsub.f32 %v5693, 0.055
        %v6718 = vsub.f32 %v5694, 0.055
        %v6719 = vsub.f32 %v5695, 0.055
        %v6720 = vsub.f32 %v5696, 0.055
        %v6721 = vsub.f32 %v5697, 0.055
        %v6722 = vsub.f32 %v5698, 0.055
        %v6723 = vsub.f32 %v5699, 0.055
        %v6724 = vsub.f32 %v5700, 0.055
        %v6725 = vsub.f32 %v5701, 0.055
        %v6726 = vsub.f32 %v5702, 0.055
        %v6727 = vsub.f32 %v5703, 0.055
        %v6728 = vsub.f32 %v5704, 0.055
        %v6729 = vsub.f32 %v5705, 0.055
        %v6730 = vsub.f32 %v5706, 0.055
        %v6731 = vsub.f32 %v5707, 0.055
        %v6732 = vsub.f32 %v5708, 0.055
        %v6733 = vsub.f32 %v5709, 0.055
        %v6734 = vsub.f32 %v5710, 0.055
        %v6735 = vsub.f32 %v5711, 0.055
        %v6736 = vsub.f32 %v5712, 0.055
        %v6737 = vsub.f32 %v5713, 0.055
        %v6738 = vsub.f32 %v5714, 0.055
        %v6739 = vsub.f32 %v5715, 0.055
        %v6740 = vsub.f32 %v5716, 0.055
        %v6741 = vsub.f32 %v5717, 0.055
        %v6742 = vsub.f32 %v5718, 0.055
        %v6743 = vsub.f32 %v5719, 0.055
        %v6744 = vsub.f32 %v5720, 0.055
        %v6745 = vsub.f32 %v5721, 0.055
        %v6746 = vsub.f32 %v5722, 0.055
        %v6747 = vsub.f32 %v5723, 0.055
        %v6748 = vsub.f32 %v5724, 0.055
        %v6749 = vsub.f32 %v5725, 0.055
        %v6750 = vsub.f32 %v5726, 0.055
        %v6751 = vsub.f32 %v5727, 0.055
        %v6752 = vsub.f32 %v5728, 0.055
        %v6753 = vsub.f32 %v5729, 0.055
        %v6754 = vsub.f32 %v5730, 0.055
        %v6755 = vsub.f32 %v5731, 0.055
        %v6756 = vsub.f32 %v5732, 0.055
        %v6757 = vsub.f32 %v5733, 0.055
        %v6758 = vsub.f32 %v5734, 0.055
        %v6759 = vsub.f32 %v5735, 0.055
        %v6760 = vsub.f32 %v5736, 0.055
        %v6761 = vsub.f32 %v5737, 0.055
        %v6762 = vsub.f32 %v5738, 0.055
        %v6763 = vsub.f32 %v5739, 0.055
        %v6764 = vsub.f32 %v5740, 0.055
        %v6765 = vsub.f32 %v5741, 0.055
        %v6766 = vsub.f32 %v5742, 0.055
        %v6767 = vsub.f32 %v5743, 0.055
        %v6768 = vsub.f32 %v5744, 0.055
        %v6769 = vsub.f32 %v5745, 0.055
        %v6770 = vsub.f32 %v5746, 0.055
        %v6771 = vsub.f32 %v5747, 0.055
        %v6772 = vsub.f32 %v5748, 0.055
        %v6773 = vsub.f32 %v5749, 0.055
        %v6774 = vsub.f32 %v5750, 0.055
        %v6775 = vsub.f32 %v5751, 0.055
        %v6776 = vsub.f32 %v5752, 0.055
        %v6777 = vsub.f32 %v5753, 0.055
        %v6778 = vsub.f32 %v5754, 0.055
        %v6779 = vsub.f32 %v5755, 0.055
        %v6780 = vsub.f32 %v5756, 0.055
        %v6781 = vsub.f32 %v5757, 0.055
        %v6782 = vsub.f32 %v5758, 0.055
        %v6783 = vsub.f32 %v5759, 0.055
        %v6784 = vsub.f32 %v5760, 0.055
        %v6785 = vsub.f32 %v5761, 0.055
        %v6786 = vsub.f32 %v5762, 0.055
        %v6787 = vsub.f32 %v5763, 0.055
        %v6788 = vsub.f32 %v5764, 0.055
        %v6789 = vsub.f32 %v5765, 0.055
        %v6790 = vsub.f32 %v5766, 0.055
        %v6791 = vsub.f32 %v5767, 0.055
        %v6792 = vsub.f32 %v5768, 0.055
        %v6793 = vsub.f32 %v5769, 0.055
        %v6794 = vsub.f32 %v5770, 0.055
        %v6795 = vsub.f32 %v5771, 0.055
        %v6796 = vsub.f32 %v5772, 0.055
        %v6797 = vsub.f32 %v5773, 0.055
        %v6798 = vsub.f32 %v5774, 0.055
        %v6799 = vsub.f32 %v5775, 0.055
        %v6800 = vsub.f32 %v5776, 0.055
        %v6801 = vsub.f32 %v5777, 0.055
        %v6802 = vsub.f32 %v5778, 0.055
        %v6803 = vsub.f32 %v5779, 0.055
        %v6804 = vsub.f32 %v5780, 0.055
        %v6805 = vsub.f32 %v5781, 0.055
        %v6806 = vsub.f32 %v5782, 0.055
        %v6807 = vsub.f32 %v5783, 0.055
        %v6808 = vsub.f32 %v5784, 0.055
        %v6809 = vsub.f32 %v5785, 0.055
        %v6810 = vsub.f32 %v5786, 0.055
        %v6811 = vsub.f32 %v5787, 0.055
        %v6812 = vsub.f32 %v5788, 0.055
        %v6813 = vsub.f32 %v5789, 0.055
        %v6814 = vsub.f32 %v5790, 0.055
        %v6815 = vsub.f32 %v5791, 0.055
        %v6816 = vsub.f32 %v5792, 0.055
        %v6817 = vsub.f32 %v5793, 0.055
        %v6818 = vsub.f32 %v5794, 0.055
        %v6819 = vsub.f32 %v5795, 0.055
        %v6820 = vsub.f32 %v5796, 0.055
        %v6821 = vsub.f32 %v5797, 0.055
        %v6822 = vsub.f32 %v5798, 0.055
        %v6823 = vsub.f32 %v5799, 0.055
        %v6824 = vsub.f32 %v5800, 0.055
        %v6825 = vsub.f32 %v5801, 0.055
        %v6826 = vsub.f32 %v5802, 0.055
        %v6827 = vsub.f32 %v5803, 0.055
        %v6828 = vsub.f32 %v5804, 0.055
        %v6829 = vsub.f32 %v5805, 0.055
        %v6830 = vsub.f32 %v5806, 0.055
        %v6831 = vsub.f32 %v5807, 0.055
        %v6832 = vsub.f32 %v5808, 0.055
        %v6833 = vsub.f32 %v5809, 0.055
        %v6834 = vsub.f32 %v5810, 0.055
        %v6835 = vsub.f32 %v5811, 0.055
        %v6836 = vsub.f32 %v5812, 0.055
        %v6837 = vsub.f32 %v5813, 0.055
        %v6838 = vsub.f32 %v5814, 0.055
        %v6839 = vsub.f32 %v5815, 0.055
        %v6840 = vsub.f32 %v5816, 0.055
        %v6841 = vsub.f32 %v5817, 0.055
        %v6842 = vsub.f32 %v5818, 0.055
        %v6843 = vsub.f32 %v5819, 0.055
        %v6844 = vsub.f32 %v5820, 0.055
        %v6845 = vsub.f32 %v5821, 0.055
        %v6846 = vsub.f32 %v5822, 0.055
        %v6847 = vsub.f32 %v5823, 0.055
        %v6848 = vsub.f32 %v5824, 0.055
        %v6849 = vsub.f32 %v5825, 0.055
        %v6850 = vsub.f32 %v5826, 0.055
        %v6851 = vsub.f32 %v5827, 0.055
        %v6852 = vsub.f32 %v5828, 0.055
        %v6853 = vsub.f32 %v5829, 0.055
        %v6854 = vsub.f32 %v5830, 0.055
        %v6855 = vsub.f32 %v5831, 0.055
        %v6856 = vsub.f32 %v5832, 0.055
        %v6857 = vsub.f32 %v5833, 0.055
        %v6858 = vsub.f32 %v5834, 0.055
        %v6859 = vsub.f32 %v5835, 0.055
        %v6860 = vsub.f32 %v5836, 0.055
        %v6861 = vsub.f32 %v5837, 0.055
        %v6862 = vsub.f32 %v5838, 0.055
        %v6863 = vsub.f32 %v5839, 0.055
        %v6864 = vsub.f32 %v5840, 0.055
        %v6865 = vsub.f32 %v5841, 0.055
        %v6866 = vsub.f32 %v5842, 0.055
        %v6867 = vsub.f32 %v5843, 0.055
        %v6868 = vsub.f32 %v5844, 0.055
        %v6869 = vsub.f32 %v5845, 0.055
        %v6870 = vsub.f32 %v5846, 0.055
        %v6871 = vsub.f32 %v5847, 0.055
        %v6872 = vsub.f32 %v5848, 0.055
        %v6873 = vsub.f32 %v5849, 0.055
        %v6874 = vsub.f32 %v5850, 0.055
        %v6875 = vsub.f32 %v5851, 0.055
        %v6876 = vsub.f32 %v5852, 0.055
        %v6877 = vsub.f32 %v5853, 0.055
        %v6878 = vsub.f32 %v5854, 0.055
        %v6879 = vsub.f32 %v5855, 0.055
        %v6880 = vsub.f32 %v5856, 0.055
        %v6881 = vsub.f32 %v5857, 0.055
        %v6882 = vsub.f32 %v5858, 0.055
        %v6883 = vsub.f32 %v5859, 0.055
        %v6884 = vsub.f32 %v5860, 0.055
        %v6885 = vsub.f32 %v5861, 0.055
        %v6886 = vsub.f32 %v5862, 0.055
        %v6887 = vsub.f32 %v5863, 0.055
        %v6888 = vsub.f32 %v5864, 0.055
        %v6889 = vsub.f32 %v5865, 0.055
        %v6890 = vsub.f32 %v5866, 0.055
        %v6891 = vsub.f32 %v5867, 0.055
        %v6892 = vsub.f32 %v5868, 0.055
        %v6893 = vsub.f32 %v5869, 0.055
        %v6894 = vsub.f32 %v5870, 0.055
        %v6895 = vsub.f32 %v5871, 0.055
        %v6896 = vsub.f32 %v5872, 0.055
        %v6897 = vsub.f32 %v5873, 0.055
        %v6898 = vsub.f32 %v5874, 0.055
        %v6899 = vsub.f32 %v5875, 0.055
        %v6900 = vsub.f32 %v5876, 0.055
        %v6901 = vsub.f32 %v5877, 0.055
        %v6902 = vsub.f32 %v5878, 0.055
        %v6903 = vsub.f32 %v5879, 0.055
        %v6904 = vsub.f32 %v5880, 0.055
        %v6905 = vsub.f32 %v5881, 0.055
        %v6906 = vsub.f32 %v5882, 0.055
        %v6907 = vsub.f32 %v5883, 0.055
        %v6908 = vsub.f32 %v5884, 0.055
        %v6909 = vsub.f32 %v5885, 0.055
        %v6910 = vsub.f32 %v5886, 0.055
        %v6911 = vsub.f32 %v5887, 0.055
        %v6912 = vsub.f32 %v5888, 0.055
        %v6913 = vsub.f32 %v5889, 0.055
        %v6914 = vsub.f32 %v5890, 0.055
        %v6915 = vsub.f32 %v5891, 0.055
        %v6916 = vsub.f32 %v5892, 0.055
        %v6917 = vsub.f32 %v5893, 0.055
        %v6918 = vsub.f32 %v5894, 0.055
        %v6919 = vsub.f32 %v5895, 0.055
        %v6920 = vsub.f32 %v5896, 0.055
        %v6921 = vsub.f32 %v5897, 0.055
        %v6922 = vsub.f32 %v5898, 0.055
        %v6923 = vsub.f32 %v5899, 0.055
        %v6924 = vsub.f32 %v5900, 0.055
        %v6925 = vsub.f32 %v5901, 0.055
        %v6926 = vsub.f32 %v5902, 0.055
        %v6927 = vsub.f32 %v5903, 0.055
        %v6928 = vsub.f32 %v5904, 0.055
        %v6929 = vsub.f32 %v5905, 0.055
        %v6930 = vsub.f32 %v5906, 0.055
        %v6931 = vsub.f32 %v5907, 0.055
        %v6932 = vsub.f32 %v5908, 0.055
        %v6933 = vsub.f32 %v5909, 0.055
        %v6934 = vsub.f32 %v5910, 0.055
        %v6935 = vsub.f32 %v5911, 0.055
        %v6936 = vsub.f32 %v5912, 0.055
        %v6937 = vsub.f32 %v5913, 0.055
        %v6938 = vsub.f32 %v5914, 0.055
        %v6939 = vsub.f32 %v5915, 0.055
        %v6940 = vsub.f32 %v5916, 0.055
        %v6941 = vsub.f32 %v5917, 0.055
        %v6942 = vsub.f32 %v5918, 0.055
        %v6943 = vsub.f32 %v5919, 0.055
        %v6944 = vsub.f32 %v5920, 0.055
        %v6945 = vsub.f32 %v5921, 0.055
        %v6946 = vsub.f32 %v5922, 0.055
        %v6947 = vsub.f32 %v5923, 0.055
        %v6948 = vsub.f32 %v5924, 0.055
        %v6949 = vsub.f32 %v5925, 0.055
        %v6950 = vsub.f32 %v5926, 0.055
        %v6951 = vsub.f32 %v5927, 0.055
        %v6952 = vsub.f32 %v5928, 0.055
        %v6953 = vsub.f32 %v5929, 0.055
        %v6954 = vsub.f32 %v5930, 0.055
        %v6955 = vsub.f32 %v5931, 0.055
        %v6956 = vsub.f32 %v5932, 0.055
        %v6957 = vsub.f32 %v5933, 0.055
        %v6958 = vsub.f32 %v5934, 0.055
        %v6959 = vsub.f32 %v5935, 0.055
        %v6960 = vsub.f32 %v5936, 0.055
        %v6961 = vsub.f32 %v5937, 0.055
        %v6962 = vsub.f32 %v5938, 0.055
        %v6963 = vsub.f32 %v5939, 0.055
        %v6964 = vsub.f32 %v5940, 0.055
        %v6965 = vsub.f32 %v5941, 0.055
        %v6966 = vsub.f32 %v5942, 0.055
        %v6967 = vsub.f32 %v5943, 0.055
        %v6968 = vsub.f32 %v5944, 0.055
        %v6969 = vsub.f32 %v5945, 0.055
        %v6970 = vsub.f32 %v5946, 0.055
        %v6971 = vsub.f32 %v5947, 0.055
        %v6972 = vsub.f32 %v5948, 0.055
        %v6973 = vsub.f32 %v5949, 0.055
        %v6974 = vsub.f32 %v5950, 0.055
        %v6975 = vsub.f32 %v5951, 0.055
        %v6976 = vsub.f32 %v5952, 0.055
        %v6977 = vsub.f32 %v5953, 0.055
        %v6978 = vsub.f32 %v5954, 0.055
        %v6979 = vsub.f32 %v5955, 0.055
        %v6980 = vsub.f32 %v5956, 0.055
        %v6981 = vsub.f32 %v5957, 0.055
        %v6982 = vsub.f32 %v5958, 0.055
        %v6983 = vsub.f32 %v5959, 0.055
        %v6984 = vsub.f32 %v5960, 0.055
        %v6985 = vsub.f32 %v5961, 0.055
        %v6986 = vsub.f32 %v5962, 0.055
        %v6987 = vsub.f32 %v5963, 0.055
        %v6988 = vsub.f32 %v5964, 0.055
        %v6989 = vsub.f32 %v5965, 0.055
        %v6990 = vsub.f32 %v5966, 0.055
        %v6991 = vsub.f32 %v5967, 0.055
        %v6992 = vsub.f32 %v5968, 0.055
        %v6993 = vsub.f32 %v5969, 0.055
        %v6994 = vsub.f32 %v5970, 0.055
        %v6995 = vsub.f32 %v5971, 0.055
        %v6996 = vsub.f32 %v5972, 0.055
        %v6997 = vsub.f32 %v5973, 0.055
        %v6998 = vsub.f32 %v5974, 0.055
        %v6999 = vsub.f32 %v5975, 0.055
        %v7000 = vsub.f32 %v5976, 0.055
        %v7001 = vsub.f32 %v5977, 0.055
        %v7002 = vsub.f32 %v5978, 0.055
        %v7003 = vsub.f32 %v5979, 0.055
        %v7004 = vsub.f32 %v5980, 0.055
        %v7005 = vsub.f32 %v5981, 0.055
        %v7006 = vsub.f32 %v5982, 0.055
        %v7007 = vsub.f32 %v5983, 0.055
        %v7008 = vsub.f32 %v5984, 0.055
        %v7009 = vsub.f32 %v5985, 0.055
        %v7010 = vsub.f32 %v5986, 0.055
        %v7011 = vsub.f32 %v5987, 0.055
        %v7012 = vsub.f32 %v5988, 0.055
        %v7013 = vsub.f32 %v5989, 0.055
        %v7014 = vsub.f32 %v5990, 0.055
        %v7015 = vsub.f32 %v5991, 0.055
        %v7016 = vsub.f32 %v5992, 0.055
        %v7017 = vsub.f32 %v5993, 0.055
        %v7018 = vsub.f32 %v5994, 0.055
        %v7019 = vsub.f32 %v5995, 0.055
        %v7020 = vsub.f32 %v5996, 0.055
        %v7021 = vsub.f32 %v5997, 0.055
        %v7022 = vsub.f32 %v5998, 0.055
        %v7023 = vsub.f32 %v5999, 0.055
        %v7024 = vsub.f32 %v6000, 0.055
        %v7025 = vsub.f32 %v6001, 0.055
        %v7026 = vsub.f32 %v6002, 0.055
        %v7027 = vsub.f32 %v6003, 0.055
        %v7028 = vsub.f32 %v6004, 0.055
        %v7029 = vsub.f32 %v6005, 0.055
        %v7030 = vsub.f32 %v6006, 0.055
        %v7031 = vsub.f32 %v6007, 0.055
        %v7032 = vsub.f32 %v6008, 0.055
        %v7033 = vsub.f32 %v6009, 0.055
        %v7034 = vsub.f32 %v6010, 0.055
        %v7035 = vsub.f32 %v6011, 0.055
        %v7036 = vsub.f32 %v6012, 0.055
        %v7037 = vsub.f32 %v6013, 0.055
        %v7038 = vsub.f32 %v6014, 0.055
        %v7039 = vsub.f32 %v6015, 0.055
        %v7040 = vsub.f32 %v6016, 0.055
        %v7041 = vsub.f32 %v6017, 0.055
        %v7042 = vsub.f32 %v6018, 0.055
        %v7043 = vsub.f32 %v6019, 0.055
        %v7044 = vsub.f32 %v6020, 0.055
        %v7045 = vsub.f32 %v6021, 0.055
        %v7046 = vsub.f32 %v6022, 0.055
        %v7047 = vsub.f32 %v6023, 0.055
        %v7048 = vsub.f32 %v6024, 0.055
        %v7049 = vsub.f32 %v6025, 0.055
        %v7050 = vsub.f32 %v6026, 0.055
        %v7051 = vsub.f32 %v6027, 0.055
        %v7052 = vsub.f32 %v6028, 0.055
        %v7053 = vsub.f32 %v6029, 0.055
        %v7054 = vsub.f32 %v6030, 0.055
        %v7055 = vsub.f32 %v6031, 0.055
        %v7056 = vsub.f32 %v6032, 0.055
        %v7057 = vsub.f32 %v6033, 0.055
        %v7058 = vsub.f32 %v6034, 0.055
        %v7059 = vsub.f32 %v6035, 0.055
        %v7060 = vsub.f32 %v6036, 0.055
        %v7061 = vsub.f32 %v6037, 0.055
        %v7062 = vsub.f32 %v6038, 0.055
        %v7063 = vsub.f32 %v6039, 0.055
        %v7064 = vsub.f32 %v6040, 0.055
        %v7065 = vsub.f32 %v6041, 0.055
        %v7066 = vsub.f32 %v6042, 0.055
        %v7067 = vsub.f32 %v6043, 0.055
        %v7068 = vsub.f32 %v6044, 0.055
        %v7069 = vsub.f32 %v6045, 0.055
        %v7070 = vsub.f32 %v6046, 0.055
        %v7071 = vsub.f32 %v6047, 0.055
        %v7072 = vsub.f32 %v6048, 0.055
        %v7073 = vsub.f32 %v6049, 0.055
        %v7074 = vsub.f32 %v6050, 0.055
        %v7075 = vsub.f32 %v6051, 0.055
        %v7076 = vsub.f32 %v6052, 0.055
        %v7077 = vsub.f32 %v6053, 0.055
        %v7078 = vsub.f32 %v6054, 0.055
        %v7079 = vsub.f32 %v6055, 0.055
        %v7080 = vsub.f32 %v6056, 0.055
        %v7081 = vsub.f32 %v6057, 0.055
        %v7082 = vsub.f32 %v6058, 0.055
        %v7083 = vsub.f32 %v6059, 0.055
        %v7084 = vsub.f32 %v6060, 0.055
        %v7085 = vsub.f32 %v6061, 0.055
        %v7086 = vsub.f32 %v6062, 0.055
        %v7087 = vsub.f32 %v6063, 0.055
        %v7088 = vsub.f32 %v6064, 0.055
        %v7089 = vsub.f32 %v6065, 0.055
        %v7090 = vsub.f32 %v6066, 0.055
        %v7091 = vsub.f32 %v6067, 0.055
        %v7092 = vsub.f32 %v6068, 0.055
        %v7093 = vsub.f32 %v6069, 0.055
        %v7094 = vsub.f32 %v6070, 0.055
        %v7095 = vsub.f32 %v6071, 0.055
        %v7096 = vsub.f32 %v6072, 0.055
        %v7097 = vsub.f32 %v6073, 0.055
        %v7098 = vsub.f32 %v6074, 0.055
        %v7099 = vsub.f32 %v6075, 0.055
        %v7100 = vsub.f32 %v6076, 0.055
        %v7101 = vsub.f32 %v6077, 0.055
        %v7102 = vsub.f32 %v6078, 0.055
        %v7103 = vsub.f32 %v6079, 0.055
        %v7104 = vsub.f32 %v6080, 0.055
        %v7105 = vsub.f32 %v6081, 0.055
        %v7106 = vsub.f32 %v6082, 0.055
        %v7107 = vsub.f32 %v6083, 0.055
        %v7108 = vsub.f32 %v6084, 0.055
        %v7109 = vsub.f32 %v6085, 0.055
        %v7110 = vsub.f32 %v6086, 0.055
        %v7111 = vsub.f32 %v6087, 0.055
        %v7112 = vsub.f32 %v6088, 0.055
        %v7113 = vsub.f32 %v6089, 0.055
        %v7114 = vsub.f32 %v6090, 0.055
        %v7115 = vsub.f32 %v6091, 0.055
        %v7116 = vsub.f32 %v6092, 0.055
        %v7117 = vsub.f32 %v6093, 0.055
        %v7118 = vsub.f32 %v6094, 0.055
        %v7119 = vsub.f32 %v6095, 0.055
        %v7120 = vsub.f32 %v6096, 0.055
        %v7121 = vsub.f32 %v6097, 0.055
        %v7122 = vsub.f32 %v6098, 0.055
        %v7123 = vsub.f32 %v6099, 0.055
        %v7124 = vsub.f32 %v6100, 0.055
        %v7125 = vsub.f32 %v6101, 0.055
        %v7126 = vsub.f32 %v6102, 0.055
        %v7127 = vsub.f32 %v6103, 0.055
        %v7128 = vsub.f32 %v6104, 0.055
        %v7129 = vsub.f32 %v6105, 0.055
        %v7130 = vsub.f32 %v6106, 0.055
        %v7131 = vsub.f32 %v6107, 0.055
        %v7132 = vsub.f32 %v6108, 0.055
        %v7133 = vsub.f32 %v6109, 0.055
        %v7134 = vsub.f32 %v6110, 0.055
        %v7135 = vsub.f32 %v6111, 0.055
        %v7136 = vsub.f32 %v6112, 0.055
        %v7137 = vsub.f32 %v6113, 0.055
        %v7138 = vsub.f32 %v6114, 0.055
        %v7139 = vsub.f32 %v6115, 0.055
        %v7140 = vsub.f32 %v6116, 0.055
        %v7141 = vsub.f32 %v6117, 0.055
        %v7142 = vsub.f32 %v6118, 0.055
        %v7143 = vsub.f32 %v6119, 0.055
        %v7144 = vsub.f32 %v6120, 0.055
        %v7145 = vsub.f32 %v6121, 0.055
        %v7146 = vsub.f32 %v6122, 0.055
        %v7147 = vsub.f32 %v6123, 0.055
        %v7148 = vsub.f32 %v6124, 0.055
        %v7149 = vsub.f32 %v6125, 0.055
        %v7150 = vsub.f32 %v6126, 0.055
        %v7151 = vsub.f32 %v6127, 0.055
        %v7152 = vsub.f32 %v6128, 0.055
        %v7153 = vsub.f32 %v6129, 0.055
        %v7154 = vsub.f32 %v6130, 0.055
        %v7155 = vsub.f32 %v6131, 0.055
        %v7156 = vsub.f32 %v6132, 0.055
        %v7157 = vsub.f32 %v6133, 0.055
        %v7158 = vsub.f32 %v6134, 0.055
        %v7159 = vsub.f32 %v6135, 0.055
        %v7160 = vsub.f32 %v6136, 0.055
        %v7161 = vsub.f32 %v6137, 0.055
        %v7162 = vsub.f32 %v6138, 0.055
        %v7163 = vsub.f32 %v6139, 0.055
        %v7164 = vsub.f32 %v6140, 0.055
        %v7165 = vsub.f32 %v6141, 0.055
        %v7166 = vsub.f32 %v6142, 0.055
        %v7167 = vsub.f32 %v6143, 0.055
        %v7168 = vsub.f32 %v6144, 0.055
        %v7169 = vsub.f32 %v6145, 0.055
        %v7170 = vsub.f32 %v6146, 0.055
        %v7171 = vsub.f32 %v6147, 0.055
        %v7172 = vsub.f32 %v6148, 0.055
        %v7173 = vsub.f32 %v6149, 0.055
        %v7174 = vsub.f32 %v6150, 0.055
        %v7175 = vsub.f32 %v6151, 0.055
        %v7176 = vsub.f32 %v6152, 0.055
        %v7177 = vsub.f32 %v6153, 0.055
        %v7178 = vsub.f32 %v6154, 0.055
        %v7179 = vsub.f32 %v6155, 0.055
        %v7180 = vsub.f32 %v6156, 0.055
        %v7181 = vsub.f32 %v6157, 0.055
        %v7182 = vsub.f32 %v6158, 0.055
        %v7183 = vsub.f32 %v6159, 0.055
        %v7184 = vsub.f32 %v6160, 0.055
        %v7185 = vsub.f32 %v6161, 0.055
        %v7186 = vsub.f32 %v6162, 0.055
        %v7187 = vsub.f32 %v6163, 0.055
        %v7188 = vsub.f32 %v6164, 0.055
        %v7189 = vsub.f32 %v6165, 0.055
        %v7190 = vsub.f32 %v6166, 0.055
        %v7191 = vsub.f32 %v6167, 0.055
        %v7192 = vsub.f32 %v6168, 0.055
        %v7193 = vsub.f32 %v6169, 0.055
        %v7194 = vsub.f32 %v6170, 0.055
        %v7195 = vsub.f32 %v6171, 0.055
        %v7196 = vsub.f32 %v6172, 0.055
        %v7197 = vsub.f32 %v6173, 0.055
        %v7198 = vsub.f32 %v6174, 0.055
        %v7199 = vsub.f32 %v6175, 0.055
        %v7200 = vsub.f32 %v6176, 0.055
        %v7201 = vsub.f32 %v6177, 0.055
        %v7202 = vsub.f32 %v6178, 0.055
        %v7203 = vsub.f32 %v6179, 0.055
        %v7204 = vsub.f32 %v6180, 0.055
        %v7205 = vsub.f32 %v6181, 0.055
        %v7206 = vsub.f32 %v6182, 0.055
        %v7207 = vsub.f32 %v6183, 0.055
        %v7208 = vsub.f32 %v6184, 0.055
        %v7209 = vsub.f32 %v6185, 0.055
        %v7210 = vsub.f32 %v6186, 0.055
        %v7211 = vsub.f32 %v6187, 0.055
        %v7212 = vsub.f32 %v6188, 0.055
        %v7213 = vsub.f32 %v6189, 0.055
        %v7214 = vsub.f32 %v6190, 0.055
        %v7215 = vsub.f32 %v6191, 0.055
        %v7216 = vsub.f32 %v6192, 0.055
        %v7217 = vsub.f32 %v6193, 0.055
        %v7218 = vsub.f32 %v6194, 0.055
        %v7219 = vsub.f32 %v6195, 0.055
        %v7220 = vsub.f32 %v6196, 0.055
        %v7221 = vsub.f32 %v6197, 0.055
        %v7222 = vsub.f32 %v6198, 0.055
        %v7223 = vsub.f32 %v6199, 0.055
        %v7224 = vsub.f32 %v6200, 0.055
        %v7225 = vsub.f32 %v6201, 0.055
        %v7226 = vsub.f32 %v6202, 0.055
        %v7227 = vsub.f32 %v6203, 0.055
        %v7228 = vsub.f32 %v6204, 0.055
        %v7229 = vsub.f32 %v6205, 0.055
        %v7230 = vsub.f32 %v6206, 0.055
        %v7231 = vsub.f32 %v6207, 0.055
        %v7232 = vsub.f32 %v6208, 0.055
        %v7233 = vsub.f32 %v6209, 0.055
        %v7234 = vsub.f32 %v6210, 0.055
        %v7235 = vsub.f32 %v6211, 0.055
        %v7236 = vsub.f32 %v6212, 0.055
        %v7237 = vsub.f32 %v6213, 0.055
        %v7238 = vsub.f32 %v6214, 0.055
        %v7239 = vsub.f32 %v6215, 0.055
        %v7240 = vsub.f32 %v6216, 0.055
        %v7241 = vsub.f32 %v6217, 0.055
        %v7242 = vsub.f32 %v6218, 0.055
        %v7243 = vsub.f32 %v6219, 0.055
        %v7244 = vsub.f32 %v6220, 0.055
        %v7245 = vsub.f32 %v6221, 0.055
        %v7246 = vsub.f32 %v6222, 0.055
        %v7247 = vsub.f32 %v6223, 0.055
        %v7248 = vsub.f32 %v6224, 0.055
        %v7249 = vsub.f32 %v6225, 0.055
        %v7250 = vsub.f32 %v6226, 0.055
        %v7251 = vsub.f32 %v6227, 0.055
        %v7252 = vsub.f32 %v6228, 0.055
        %v7253 = vsub.f32 %v6229, 0.055
        %v7254 = vsub.f32 %v6230, 0.055
        %v7255 = vsub.f32 %v6231, 0.055
        %v7256 = vsub.f32 %v6232, 0.055
        %v7257 = vsub.f32 %v6233, 0.055
        %v7258 = vsub.f32 %v6234, 0.055
        %v7259 = vsub.f32 %v6235, 0.055
        %v7260 = vsub.f32 %v6236, 0.055
        %v7261 = vsub.f32 %v6237, 0.055
        %v7262 = vsub.f32 %v6238, 0.055
        %v7263 = vsub.f32 %v6239, 0.055
        %v7264 = vsub.f32 %v6240, 0.055
        %v7265 = vsub.f32 %v6241, 0.055
        %v7266 = vsub.f32 %v6242, 0.055
        %v7267 = vsub.f32 %v6243, 0.055
        %v7268 = vsub.f32 %v6244, 0.055
        %v7269 = vsub.f32 %v6245, 0.055
        %v7270 = vsub.f32 %v6246, 0.055
        %v7271 = vsub.f32 %v6247, 0.055
        %v7272 = vsub.f32 %v6248, 0.055
        %v7273 = vsub.f32 %v6249, 0.055
        %v7274 = vsub.f32 %v6250, 0.055
        %v7275 = vsub.f32 %v6251, 0.055
        %v7276 = vsub.f32 %v6252, 0.055
        %v7277 = vsub.f32 %v6253, 0.055
        %v7278 = vsub.f32 %v6254, 0.055
        %v7279 = vsub.f32 %v6255, 0.055
        %v7280 = vsub.f32 %v6256, 0.055
        %v7281 = vsub.f32 %v6257, 0.055
        %v7282 = vsub.f32 %v6258, 0.055
        %v7283 = vsub.f32 %v6259, 0.055
        %v7284 = vsub.f32 %v6260, 0.055
        %v7285 = vsub.f32 %v6261, 0.055
        %v7286 = vsub.f32 %v6262, 0.055
        %v7287 = vsub.f32 %v6263, 0.055
        %v7288 = vsub.f32 %v6264, 0.055
        %v7289 = vsub.f32 %v6265, 0.055
        %v7290 = vsub.f32 %v6266, 0.055
        %v7291 = vsub.f32 %v6267, 0.055
        %v7292 = vsub.f32 %v6268, 0.055
        %v7293 = vsub.f32 %v6269, 0.055
        %v7294 = vsub.f32 %v6270, 0.055
        %v7295 = vsub.f32 %v6271, 0.055
        %v7296 = vsub.f32 %v6272, 0.055
        %v7297 = vsub.f32 %v6273, 0.055
        %v7298 = vsub.f32 %v6274, 0.055
        %v7299 = vsub.f32 %v6275, 0.055
        %v7300 = vsub.f32 %v6276, 0.055
        %v7301 = vsub.f32 %v6277, 0.055
        %v7302 = vsub.f32 %v6278, 0.055
        %v7303 = vsub.f32 %v6279, 0.055
        %v7304 = vsub.f32 %v6280, 0.055
        %v7305 = vsub.f32 %v6281, 0.055
        %v7306 = vsub.f32 %v6282, 0.055
        %v7307 = vsub.f32 %v6283, 0.055
        %v7308 = vsub.f32 %v6284, 0.055
        %v7309 = vsub.f32 %v6285, 0.055
        %v7310 = vsub.f32 %v6286, 0.055
        %v7311 = vsub.f32 %v6287, 0.055
        %v7312 = vsub.f32 %v6288, 0.055
        %v7313 = vsub.f32 %v6289, 0.055
        %v7314 = vsub.f32 %v6290, 0.055
        %v7315 = vsub.f32 %v6291, 0.055
        %v7316 = vsub.f32 %v6292, 0.055
        %v7317 = vsub.f32 %v6293, 0.055
        %v7318 = vsub.f32 %v6294, 0.055
        %v7319 = vsub.f32 %v6295, 0.055
        %v7320 = vsub.f32 %v6296, 0.055
        %v7321 = vsub.f32 %v6297, 0.055
        %v7322 = vsel %vm1178, %v2202, %v6298
        %v7323 = vsel %vm1179, %v2203, %v6299
        %v7324 = vsel %vm1180, %v2204, %v6300
        %v7325 = vsel %vm1181, %v2205, %v6301
        %v7326 = vsel %vm1182, %v2206, %v6302
        %v7327 = vsel %vm1183, %v2207, %v6303
        %v7328 = vsel %vm1184, %v2208, %v6304
        %v7329 = vsel %vm1185, %v2209, %v6305
        %v7330 = vsel %vm1186, %v2210, %v6306
        %v7331 = vsel %vm1187, %v2211, %v6307
        %v7332 = vsel %vm1188, %v2212, %v6308
        %v7333 = vsel %vm1189, %v2213, %v6309
        %v7334 = vsel %vm1190, %v2214, %v6310
        %v7335 = vsel %vm1191, %v2215, %v6311
        %v7336 = vsel %vm1192, %v2216, %v6312
        %v7337 = vsel %vm1193, %v2217, %v6313
        %v7338 = vsel %vm1194, %v2218, %v6314
        %v7339 = vsel %vm1195, %v2219, %v6315
        %v7340 = vsel %vm1196, %v2220, %v6316
        %v7341 = vsel %vm1197, %v2221, %v6317
        %v7342 = vsel %vm1198, %v2222, %v6318
        %v7343 = vsel %vm1199, %v2223, %v6319
        %v7344 = vsel %vm1200, %v2224, %v6320
        %v7345 = vsel %vm1201, %v2225, %v6321
        %v7346 = vsel %vm1202, %v2226, %v6322
        %v7347 = vsel %vm1203, %v2227, %v6323
        %v7348 = vsel %vm1204, %v2228, %v6324
        %v7349 = vsel %vm1205, %v2229, %v6325
        %v7350 = vsel %vm1206, %v2230, %v6326
        %v7351 = vsel %vm1207, %v2231, %v6327
        %v7352 = vsel %vm1208, %v2232, %v6328
        %v7353 = vsel %vm1209, %v2233, %v6329
        %v7354 = vsel %vm1210, %v2234, %v6330
        %v7355 = vsel %vm1211, %v2235, %v6331
        %v7356 = vsel %vm1212, %v2236, %v6332
        %v7357 = vsel %vm1213, %v2237, %v6333
        %v7358 = vsel %vm1214, %v2238, %v6334
        %v7359 = vsel %vm1215, %v2239, %v6335
        %v7360 = vsel %vm1216, %v2240, %v6336
        %v7361 = vsel %vm1217, %v2241, %v6337
        %v7362 = vsel %vm1218, %v2242, %v6338
        %v7363 = vsel %vm1219, %v2243, %v6339
        %v7364 = vsel %vm1220, %v2244, %v6340
        %v7365 = vsel %vm1221, %v2245, %v6341
        %v7366 = vsel %vm1222, %v2246, %v6342
        %v7367 = vsel %vm1223, %v2247, %v6343
        %v7368 = vsel %vm1224, %v2248, %v6344
        %v7369 = vsel %vm1225, %v2249, %v6345
        %v7370 = vsel %vm1226, %v2250, %v6346
        %v7371 = vsel %vm1227, %v2251, %v6347
        %v7372 = vsel %vm1228, %v2252, %v6348
        %v7373 = vsel %vm1229, %v2253, %v6349
        %v7374 = vsel %vm1230, %v2254, %v6350
        %v7375 = vsel %vm1231, %v2255, %v6351
        %v7376 = vsel %vm1232, %v2256, %v6352
        %v7377 = vsel %vm1233, %v2257, %v6353
        %v7378 = vsel %vm1234, %v2258, %v6354
        %v7379 = vsel %vm1235, %v2259, %v6355
        %v7380 = vsel %vm1236, %v2260, %v6356
        %v7381 = vsel %vm1237, %v2261, %v6357
        %v7382 = vsel %vm1238, %v2262, %v6358
        %v7383 = vsel %vm1239, %v2263, %v6359
        %v7384 = vsel %vm1240, %v2264, %v6360
        %v7385 = vsel %vm1241, %v2265, %v6361
        %v7386 = vsel %vm1242, %v2266, %v6362
        %v7387 = vsel %vm1243, %v2267, %v6363
        %v7388 = vsel %vm1244, %v2268, %v6364
        %v7389 = vsel %vm1245, %v2269, %v6365
        %v7390 = vsel %vm1246, %v2270, %v6366
        %v7391 = vsel %vm1247, %v2271, %v6367
        %v7392 = vsel %vm1248, %v2272, %v6368
        %v7393 = vsel %vm1249, %v2273, %v6369
        %v7394 = vsel %vm1250, %v2274, %v6370
        %v7395 = vsel %vm1251, %v2275, %v6371
        %v7396 = vsel %vm1252, %v2276, %v6372
        %v7397 = vsel %vm1253, %v2277, %v6373
        %v7398 = vsel %vm1254, %v2278, %v6374
        %v7399 = vsel %vm1255, %v2279, %v6375
        %v7400 = vsel %vm1256, %v2280, %v6376
        %v7401 = vsel %vm1257, %v2281, %v6377
        %v7402 = vsel %vm1258, %v2282, %v6378
        %v7403 = vsel %vm1259, %v2283, %v6379
        %v7404 = vsel %vm1260, %v2284, %v6380
        %v7405 = vsel %vm1261, %v2285, %v6381
        %v7406 = vsel %vm1262, %v2286, %v6382
        %v7407 = vsel %vm1263, %v2287, %v6383
        %v7408 = vsel %vm1264, %v2288, %v6384
        %v7409 = vsel %vm1265, %v2289, %v6385
        %v7410 = vsel %vm1266, %v2290, %v6386
        %v7411 = vsel %vm1267, %v2291, %v6387
        %v7412 = vsel %vm1268, %v2292, %v6388
        %v7413 = vsel %vm1269, %v2293, %v6389
        %v7414 = vsel %vm1270, %v2294, %v6390
        %v7415 = vsel %vm1271, %v2295, %v6391
        %v7416 = vsel %vm1272, %v2296, %v6392
        %v7417 = vsel %vm1273, %v2297, %v6393
        %v7418 = vsel %vm1274, %v2298, %v6394
        %v7419 = vsel %vm1275, %v2299, %v6395
        %v7420 = vsel %vm1276, %v2300, %v6396
        %v7421 = vsel %vm1277, %v2301, %v6397
        %v7422 = vsel %vm1278, %v2302, %v6398
        %v7423 = vsel %vm1279, %v2303, %v6399
        %v7424 = vsel %vm1280, %v2304, %v6400
        %v7425 = vsel %vm1281, %v2305, %v6401
        %v7426 = vsel %vm1282, %v2306, %v6402
        %v7427 = vsel %vm1283, %v2307, %v6403
        %v7428 = vsel %vm1284, %v2308, %v6404
        %v7429 = vsel %vm1285, %v2309, %v6405
        %v7430 = vsel %vm1286, %v2310, %v6406
        %v7431 = vsel %vm1287, %v2311, %v6407
        %v7432 = vsel %vm1288, %v2312, %v6408
        %v7433 = vsel %vm1289, %v2313, %v6409
        %v7434 = vsel %vm1290, %v2314, %v6410
        %v7435 = vsel %vm1291, %v2315, %v6411
        %v7436 = vsel %vm1292, %v2316, %v6412
        %v7437 = vsel %vm1293, %v2317, %v6413
        %v7438 = vsel %vm1294, %v2318, %v6414
        %v7439 = vsel %vm1295, %v2319, %v6415
        %v7440 = vsel %vm1296, %v2320, %v6416
        %v7441 = vsel %vm1297, %v2321, %v6417
        %v7442 = vsel %vm1298, %v2322, %v6418
        %v7443 = vsel %vm1299, %v2323, %v6419
        %v7444 = vsel %vm1300, %v2324, %v6420
        %v7445 = vsel %vm1301, %v2325, %v6421
        %v7446 = vsel %vm1302, %v2326, %v6422
        %v7447 = vsel %vm1303, %v2327, %v6423
        %v7448 = vsel %vm1304, %v2328, %v6424
        %v7449 = vsel %vm1305, %v2329, %v6425
        %v7450 = vsel %vm1306, %v2330, %v6426
        %v7451 = vsel %vm1307, %v2331, %v6427
        %v7452 = vsel %vm1308, %v2332, %v6428
        %v7453 = vsel %vm1309, %v2333, %v6429
        %v7454 = vsel %vm1310, %v2334, %v6430
        %v7455 = vsel %vm1311, %v2335, %v6431
        %v7456 = vsel %vm1312, %v2336, %v6432
        %v7457 = vsel %vm1313, %v2337, %v6433
        %v7458 = vsel %vm1314, %v2338, %v6434
        %v7459 = vsel %vm1315, %v2339, %v6435
        %v7460 = vsel %vm1316, %v2340, %v6436
        %v7461 = vsel %vm1317, %v2341, %v6437
        %v7462 = vsel %vm1318, %v2342, %v6438
        %v7463 = vsel %vm1319, %v2343, %v6439
        %v7464 = vsel %vm1320, %v2344, %v6440
        %v7465 = vsel %vm1321, %v2345, %v6441
        %v7466 = vsel %vm1322, %v2346, %v6442
        %v7467 = vsel %vm1323, %v2347, %v6443
        %v7468 = vsel %vm1324, %v2348, %v6444
        %v7469 = vsel %vm1325, %v2349, %v6445
        %v7470 = vsel %vm1326, %v2350, %v6446
        %v7471 = vsel %vm1327, %v2351, %v6447
        %v7472 = vsel %vm1328, %v2352, %v6448
        %v7473 = vsel %vm1329, %v2353, %v6449
        %v7474 = vsel %vm1330, %v2354, %v6450
        %v7475 = vsel %vm1331, %v2355, %v6451
        %v7476 = vsel %vm1332, %v2356, %v6452
        %v7477 = vsel %vm1333, %v2357, %v6453
        %v7478 = vsel %vm1334, %v2358, %v6454
        %v7479 = vsel %vm1335, %v2359, %v6455
        %v7480 = vsel %vm1336, %v2360, %v6456
        %v7481 = vsel %vm1337, %v2361, %v6457
        %v7482 = vsel %vm1338, %v2362, %v6458
        %v7483 = vsel %vm1339, %v2363, %v6459
        %v7484 = vsel %vm1340, %v2364, %v6460
        %v7485 = vsel %vm1341, %v2365, %v6461
        %v7486 = vsel %vm1342, %v2366, %v6462
        %v7487 = vsel %vm1343, %v2367, %v6463
        %v7488 = vsel %vm1344, %v2368, %v6464
        %v7489 = vsel %vm1345, %v2369, %v6465
        %v7490 = vsel %vm1346, %v2370, %v6466
        %v7491 = vsel %vm1347, %v2371, %v6467
        %v7492 = vsel %vm1348, %v2372, %v6468
        %v7493 = vsel %vm1349, %v2373, %v6469
        %v7494 = vsel %vm1350, %v2374, %v6470
        %v7495 = vsel %vm1351, %v2375, %v6471
        %v7496 = vsel %vm1352, %v2376, %v6472
        %v7497 = vsel %vm1353, %v2377, %v6473
        %v7498 = vsel %vm1354, %v2378, %v6474
        %v7499 = vsel %vm1355, %v2379, %v6475
        %v7500 = vsel %vm1356, %v2380, %v6476
        %v7501 = vsel %vm1357, %v2381, %v6477
        %v7502 = vsel %vm1358, %v2382, %v6478
        %v7503 = vsel %vm1359, %v2383, %v6479
        %v7504 = vsel %vm1360, %v2384, %v6480
        %v7505 = vsel %vm1361, %v2385, %v6481
        %v7506 = vsel %vm1362, %v2386, %v6482
        %v7507 = vsel %vm1363, %v2387, %v6483
        %v7508 = vsel %vm1364, %v2388, %v6484
        %v7509 = vsel %vm1365, %v2389, %v6485
        %v7510 = vsel %vm1366, %v2390, %v6486
        %v7511 = vsel %vm1367, %v2391, %v6487
        %v7512 = vsel %vm1368, %v2392, %v6488
        %v7513 = vsel %vm1369, %v2393, %v6489
        %v7514 = vsel %vm1370, %v2394, %v6490
        %v7515 = vsel %vm1371, %v2395, %v6491
        %v7516 = vsel %vm1372, %v2396, %v6492
        %v7517 = vsel %vm1373, %v2397, %v6493
        %v7518 = vsel %vm1374, %v2398, %v6494
        %v7519 = vsel %vm1375, %v2399, %v6495
        %v7520 = vsel %vm1376, %v2400, %v6496
        %v7521 = vsel %vm1377, %v2401, %v6497
        %v7522 = vsel %vm1378, %v2402, %v6498
        %v7523 = vsel %vm1379, %v2403, %v6499
        %v7524 = vsel %vm1380, %v2404, %v6500
        %v7525 = vsel %vm1381, %v2405, %v6501
        %v7526 = vsel %vm1382, %v2406, %v6502
        %v7527 = vsel %vm1383, %v2407, %v6503
        %v7528 = vsel %vm1384, %v2408, %v6504
        %v7529 = vsel %vm1385, %v2409, %v6505
        %v7530 = vsel %vm1386, %v2410, %v6506
        %v7531 = vsel %vm1387, %v2411, %v6507
        %v7532 = vsel %vm1388, %v2412, %v6508
        %v7533 = vsel %vm1389, %v2413, %v6509
        %v7534 = vsel %vm1390, %v2414, %v6510
        %v7535 = vsel %vm1391, %v2415, %v6511
        %v7536 = vsel %vm1392, %v2416, %v6512
        %v7537 = vsel %vm1393, %v2417, %v6513
        %v7538 = vsel %vm1394, %v2418, %v6514
        %v7539 = vsel %vm1395, %v2419, %v6515
        %v7540 = vsel %vm1396, %v2420, %v6516
        %v7541 = vsel %vm1397, %v2421, %v6517
        %v7542 = vsel %vm1398, %v2422, %v6518
        %v7543 = vsel %vm1399, %v2423, %v6519
        %v7544 = vsel %vm1400, %v2424, %v6520
        %v7545 = vsel %vm1401, %v2425, %v6521
        %v7546 = vsel %vm1402, %v2426, %v6522
        %v7547 = vsel %vm1403, %v2427, %v6523
        %v7548 = vsel %vm1404, %v2428, %v6524
        %v7549 = vsel %vm1405, %v2429, %v6525
        %v7550 = vsel %vm1406, %v2430, %v6526
        %v7551 = vsel %vm1407, %v2431, %v6527
        %v7552 = vsel %vm1408, %v2432, %v6528
        %v7553 = vsel %vm1409, %v2433, %v6529
        %v7554 = vsel %vm1410, %v2434, %v6530
        %v7555 = vsel %vm1411, %v2435, %v6531
        %v7556 = vsel %vm1412, %v2436, %v6532
        %v7557 = vsel %vm1413, %v2437, %v6533
        %v7558 = vsel %vm1414, %v2438, %v6534
        %v7559 = vsel %vm1415, %v2439, %v6535
        %v7560 = vsel %vm1416, %v2440, %v6536
        %v7561 = vsel %vm1417, %v2441, %v6537
        %v7562 = vsel %vm1418, %v2442, %v6538
        %v7563 = vsel %vm1419, %v2443, %v6539
        %v7564 = vsel %vm1420, %v2444, %v6540
        %v7565 = vsel %vm1421, %v2445, %v6541
        %v7566 = vsel %vm1422, %v2446, %v6542
        %v7567 = vsel %vm1423, %v2447, %v6543
        %v7568 = vsel %vm1424, %v2448, %v6544
        %v7569 = vsel %vm1425, %v2449, %v6545
        %v7570 = vsel %vm1426, %v2450, %v6546
        %v7571 = vsel %vm1427, %v2451, %v6547
        %v7572 = vsel %vm1428, %v2452, %v6548
        %v7573 = vsel %vm1429, %v2453, %v6549
        %v7574 = vsel %vm1430, %v2454, %v6550
        %v7575 = vsel %vm1431, %v2455, %v6551
        %v7576 = vsel %vm1432, %v2456, %v6552
        %v7577 = vsel %vm1433, %v2457, %v6553
        %v7578 = vsel %vm1434, %v2458, %v6554
        %v7579 = vsel %vm1435, %v2459, %v6555
        %v7580 = vsel %vm1436, %v2460, %v6556
        %v7581 = vsel %vm1437, %v2461, %v6557
        %v7582 = vsel %vm1438, %v2462, %v6558
        %v7583 = vsel %vm1439, %v2463, %v6559
        %v7584 = vsel %vm1440, %v2464, %v6560
        %v7585 = vsel %vm1441, %v2465, %v6561
        %v7586 = vsel %vm1442, %v2466, %v6562
        %v7587 = vsel %vm1443, %v2467, %v6563
        %v7588 = vsel %vm1444, %v2468, %v6564
        %v7589 = vsel %vm1445, %v2469, %v6565
        %v7590 = vsel %vm1446, %v2470, %v6566
        %v7591 = vsel %vm1447, %v2471, %v6567
        %v7592 = vsel %vm1448, %v2472, %v6568
        %v7593 = vsel %vm1449, %v2473, %v6569
        %v7594 = vsel %vm1450, %v2474, %v6570
        %v7595 = vsel %vm1451, %v2475, %v6571
        %v7596 = vsel %vm1452, %v2476, %v6572
        %v7597 = vsel %vm1453, %v2477, %v6573
        %v7598 = vsel %vm1454, %v2478, %v6574
        %v7599 = vsel %vm1455, %v2479, %v6575
        %v7600 = vsel %vm1456, %v2480, %v6576
        %v7601 = vsel %vm1457, %v2481, %v6577
        %v7602 = vsel %vm1458, %v2482, %v6578
        %v7603 = vsel %vm1459, %v2483, %v6579
        %v7604 = vsel %vm1460, %v2484, %v6580
        %v7605 = vsel %vm1461, %v2485, %v6581
        %v7606 = vsel %vm1462, %v2486, %v6582
        %v7607 = vsel %vm1463, %v2487, %v6583
        %v7608 = vsel %vm1464, %v2488, %v6584
        %v7609 = vsel %vm1465, %v2489, %v6585
        %v7610 = vsel %vm1466, %v2490, %v6586
        %v7611 = vsel %vm1467, %v2491, %v6587
        %v7612 = vsel %vm1468, %v2492, %v6588
        %v7613 = vsel %vm1469, %v2493, %v6589
        %v7614 = vsel %vm1470, %v2494, %v6590
        %v7615 = vsel %vm1471, %v2495, %v6591
        %v7616 = vsel %vm1472, %v2496, %v6592
        %v7617 = vsel %vm1473, %v2497, %v6593
        %v7618 = vsel %vm1474, %v2498, %v6594
        %v7619 = vsel %vm1475, %v2499, %v6595
        %v7620 = vsel %vm1476, %v2500, %v6596
        %v7621 = vsel %vm1477, %v2501, %v6597
        %v7622 = vsel %vm1478, %v2502, %v6598
        %v7623 = vsel %vm1479, %v2503, %v6599
        %v7624 = vsel %vm1480, %v2504, %v6600
        %v7625 = vsel %vm1481, %v2505, %v6601
        %v7626 = vsel %vm1482, %v2506, %v6602
        %v7627 = vsel %vm1483, %v2507, %v6603
        %v7628 = vsel %vm1484, %v2508, %v6604
        %v7629 = vsel %vm1485, %v2509, %v6605
        %v7630 = vsel %vm1486, %v2510, %v6606
        %v7631 = vsel %vm1487, %v2511, %v6607
        %v7632 = vsel %vm1488, %v2512, %v6608
        %v7633 = vsel %vm1489, %v2513, %v6609
        %v7634 = vsel %vm1490, %v2514, %v6610
        %v7635 = vsel %vm1491, %v2515, %v6611
        %v7636 = vsel %vm1492, %v2516, %v6612
        %v7637 = vsel %vm1493, %v2517, %v6613
        %v7638 = vsel %vm1494, %v2518, %v6614
        %v7639 = vsel %vm1495, %v2519, %v6615
        %v7640 = vsel %vm1496, %v2520, %v6616
        %v7641 = vsel %vm1497, %v2521, %v6617
        %v7642 = vsel %vm1498, %v2522, %v6618
        %v7643 = vsel %vm1499, %v2523, %v6619
        %v7644 = vsel %vm1500, %v2524, %v6620
        %v7645 = vsel %vm1501, %v2525, %v6621
        %v7646 = vsel %vm1502, %v2526, %v6622
        %v7647 = vsel %vm1503, %v2527, %v6623
        %v7648 = vsel %vm1504, %v2528, %v6624
        %v7649 = vsel %vm1505, %v2529, %v6625
        %v7650 = vsel %vm1506, %v2530, %v6626
        %v7651 = vsel %vm1507, %v2531, %v6627
        %v7652 = vsel %vm1508, %v2532, %v6628
        %v7653 = vsel %vm1509, %v2533, %v6629
        %v7654 = vsel %vm1510, %v2534, %v6630
        %v7655 = vsel %vm1511, %v2535, %v6631
        %v7656 = vsel %vm1512, %v2536, %v6632
        %v7657 = vsel %vm1513, %v2537, %v6633
        %v7658 = vsel %vm1514, %v2538, %v6634
        %v7659 = vsel %vm1515, %v2539, %v6635
        %v7660 = vsel %vm1516, %v2540, %v6636
        %v7661 = vsel %vm1517, %v2541, %v6637
        %v7662 = vsel %vm1518, %v2542, %v6638
        %v7663 = vsel %vm1519, %v2543, %v6639
        %v7664 = vsel %vm1520, %v2544, %v6640
        %v7665 = vsel %vm1521, %v2545, %v6641
        %v7666 = vsel %vm1522, %v2546, %v6642
        %v7667 = vsel %vm1523, %v2547, %v6643
        %v7668 = vsel %vm1524, %v2548, %v6644
        %v7669 = vsel %vm1525, %v2549, %v6645
        %v7670 = vsel %vm1526, %v2550, %v6646
        %v7671 = vsel %vm1527, %v2551, %v6647
        %v7672 = vsel %vm1528, %v2552, %v6648
        %v7673 = vsel %vm1529, %v2553, %v6649
        %v7674 = vsel %vm1530, %v2554, %v6650
        %v7675 = vsel %vm1531, %v2555, %v6651
        %v7676 = vsel %vm1532, %v2556, %v6652
        %v7677 = vsel %vm1533, %v2557, %v6653
        %v7678 = vsel %vm1534, %v2558, %v6654
        %v7679 = vsel %vm1535, %v2559, %v6655
        %v7680 = vsel %vm1536, %v2560, %v6656
        %v7681 = vsel %vm1537, %v2561, %v6657
        %v7682 = vsel %vm1538, %v2562, %v6658
        %v7683 = vsel %vm1539, %v2563, %v6659
        %v7684 = vsel %vm1540, %v2564, %v6660
        %v7685 = vsel %vm1541, %v2565, %v6661
        %v7686 = vsel %vm1542, %v2566, %v6662
        %v7687 = vsel %vm1543, %v2567, %v6663
        %v7688 = vsel %vm1544, %v2568, %v6664
        %v7689 = vsel %vm1545, %v2569, %v6665
        %v7690 = vsel %vm1546, %v2570, %v6666
        %v7691 = vsel %vm1547, %v2571, %v6667
        %v7692 = vsel %vm1548, %v2572, %v6668
        %v7693 = vsel %vm1549, %v2573, %v6669
        %v7694 = vsel %vm1550, %v2574, %v6670
        %v7695 = vsel %vm1551, %v2575, %v6671
        %v7696 = vsel %vm1552, %v2576, %v6672
        %v7697 = vsel %vm1553, %v2577, %v6673
        %v7698 = vsel %vm1554, %v2578, %v6674
        %v7699 = vsel %vm1555, %v2579, %v6675
        %v7700 = vsel %vm1556, %v2580, %v6676
        %v7701 = vsel %vm1557, %v2581, %v6677
        %v7702 = vsel %vm1558, %v2582, %v6678
        %v7703 = vsel %vm1559, %v2583, %v6679
        %v7704 = vsel %vm1560, %v2584, %v6680
        %v7705 = vsel %vm1561, %v2585, %v6681
        %v7706 = vsel %vm1562, %v2586, %v6682
        %v7707 = vsel %vm1563, %v2587, %v6683
        %v7708 = vsel %vm1564, %v2588, %v6684
        %v7709 = vsel %vm1565, %v2589, %v6685
        %v7710 = vsel %vm1566, %v2590, %v6686
        %v7711 = vsel %vm1567, %v2591, %v6687
        %v7712 = vsel %vm1568, %v2592, %v6688
        %v7713 = vsel %vm1569, %v2593, %v6689
        %v7714 = vsel %vm1570, %v2594, %v6690
        %v7715 = vsel %vm1571, %v2595, %v6691
        %v7716 = vsel %vm1572, %v2596, %v6692
        %v7717 = vsel %vm1573, %v2597, %v6693
        %v7718 = vsel %vm1574, %v2598, %v6694
        %v7719 = vsel %vm1575, %v2599, %v6695
        %v7720 = vsel %vm1576, %v2600, %v6696
        %v7721 = vsel %vm1577, %v2601, %v6697
        %v7722 = vsel %vm1578, %v2602, %v6698
        %v7723 = vsel %vm1579, %v2603, %v6699
        %v7724 = vsel %vm1580, %v2604, %v6700
        %v7725 = vsel %vm1581, %v2605, %v6701
        %v7726 = vsel %vm1582, %v2606, %v6702
        %v7727 = vsel %vm1583, %v2607, %v6703
        %v7728 = vsel %vm1584, %v2608, %v6704
        %v7729 = vsel %vm1585, %v2609, %v6705
        %v7730 = vsel %vm1586, %v2610, %v6706
        %v7731 = vsel %vm1587, %v2611, %v6707
        %v7732 = vsel %vm1588, %v2612, %v6708
        %v7733 = vsel %vm1589, %v2613, %v6709
        %v7734 = vsel %vm1590, %v2614, %v6710
        %v7735 = vsel %vm1591, %v2615, %v6711
        %v7736 = vsel %vm1592, %v2616, %v6712
        %v7737 = vsel %vm1593, %v2617, %v6713
        %v7738 = vsel %vm1594, %v2618, %v6714
        %v7739 = vsel %vm1595, %v2619, %v6715
        %v7740 = vsel %vm1596, %v2620, %v6716
        %v7741 = vsel %vm1597, %v2621, %v6717
        %v7742 = vsel %vm1598, %v2622, %v6718
        %v7743 = vsel %vm1599, %v2623, %v6719
        %v7744 = vsel %vm1600, %v2624, %v6720
        %v7745 = vsel %vm1601, %v2625, %v6721
        %v7746 = vsel %vm1602, %v2626, %v6722
        %v7747 = vsel %vm1603, %v2627, %v6723
        %v7748 = vsel %vm1604, %v2628, %v6724
        %v7749 = vsel %vm1605, %v2629, %v6725
        %v7750 = vsel %vm1606, %v2630, %v6726
        %v7751 = vsel %vm1607, %v2631, %v6727
        %v7752 = vsel %vm1608, %v2632, %v6728
        %v7753 = vsel %vm1609, %v2633, %v6729
        %v7754 = vsel %vm1610, %v2634, %v6730
        %v7755 = vsel %vm1611, %v2635, %v6731
        %v7756 = vsel %vm1612, %v2636, %v6732
        %v7757 = vsel %vm1613, %v2637, %v6733
        %v7758 = vsel %vm1614, %v2638, %v6734
        %v7759 = vsel %vm1615, %v2639, %v6735
        %v7760 = vsel %vm1616, %v2640, %v6736
        %v7761 = vsel %vm1617, %v2641, %v6737
        %v7762 = vsel %vm1618, %v2642, %v6738
        %v7763 = vsel %vm1619, %v2643, %v6739
        %v7764 = vsel %vm1620, %v2644, %v6740
        %v7765 = vsel %vm1621, %v2645, %v6741
        %v7766 = vsel %vm1622, %v2646, %v6742
        %v7767 = vsel %vm1623, %v2647, %v6743
        %v7768 = vsel %vm1624, %v2648, %v6744
        %v7769 = vsel %vm1625, %v2649, %v6745
        %v7770 = vsel %vm1626, %v2650, %v6746
        %v7771 = vsel %vm1627, %v2651, %v6747
        %v7772 = vsel %vm1628, %v2652, %v6748
        %v7773 = vsel %vm1629, %v2653, %v6749
        %v7774 = vsel %vm1630, %v2654, %v6750
        %v7775 = vsel %vm1631, %v2655, %v6751
        %v7776 = vsel %vm1632, %v2656, %v6752
        %v7777 = vsel %vm1633, %v2657, %v6753
        %v7778 = vsel %vm1634, %v2658, %v6754
        %v7779 = vsel %vm1635, %v2659, %v6755
        %v7780 = vsel %vm1636, %v2660, %v6756
        %v7781 = vsel %vm1637, %v2661, %v6757
        %v7782 = vsel %vm1638, %v2662, %v6758
        %v7783 = vsel %vm1639, %v2663, %v6759
        %v7784 = vsel %vm1640, %v2664, %v6760
        %v7785 = vsel %vm1641, %v2665, %v6761
        %v7786 = vsel %vm1642, %v2666, %v6762
        %v7787 = vsel %vm1643, %v2667, %v6763
        %v7788 = vsel %vm1644, %v2668, %v6764
        %v7789 = vsel %vm1645, %v2669, %v6765
        %v7790 = vsel %vm1646, %v2670, %v6766
        %v7791 = vsel %vm1647, %v2671, %v6767
        %v7792 = vsel %vm1648, %v2672, %v6768
        %v7793 = vsel %vm1649, %v2673, %v6769
        %v7794 = vsel %vm1650, %v2674, %v6770
        %v7795 = vsel %vm1651, %v2675, %v6771
        %v7796 = vsel %vm1652, %v2676, %v6772
        %v7797 = vsel %vm1653, %v2677, %v6773
        %v7798 = vsel %vm1654, %v2678, %v6774
        %v7799 = vsel %vm1655, %v2679, %v6775
        %v7800 = vsel %vm1656, %v2680, %v6776
        %v7801 = vsel %vm1657, %v2681, %v6777
        %v7802 = vsel %vm1658, %v2682, %v6778
        %v7803 = vsel %vm1659, %v2683, %v6779
        %v7804 = vsel %vm1660, %v2684, %v6780
        %v7805 = vsel %vm1661, %v2685, %v6781
        %v7806 = vsel %vm1662, %v2686, %v6782
        %v7807 = vsel %vm1663, %v2687, %v6783
        %v7808 = vsel %vm1664, %v2688, %v6784
        %v7809 = vsel %vm1665, %v2689, %v6785
        %v7810 = vsel %vm1666, %v2690, %v6786
        %v7811 = vsel %vm1667, %v2691, %v6787
        %v7812 = vsel %vm1668, %v2692, %v6788
        %v7813 = vsel %vm1669, %v2693, %v6789
        %v7814 = vsel %vm1670, %v2694, %v6790
        %v7815 = vsel %vm1671, %v2695, %v6791
        %v7816 = vsel %vm1672, %v2696, %v6792
        %v7817 = vsel %vm1673, %v2697, %v6793
        %v7818 = vsel %vm1674, %v2698, %v6794
        %v7819 = vsel %vm1675, %v2699, %v6795
        %v7820 = vsel %vm1676, %v2700, %v6796
        %v7821 = vsel %vm1677, %v2701, %v6797
        %v7822 = vsel %vm1678, %v2702, %v6798
        %v7823 = vsel %vm1679, %v2703, %v6799
        %v7824 = vsel %vm1680, %v2704, %v6800
        %v7825 = vsel %vm1681, %v2705, %v6801
        %v7826 = vsel %vm1682, %v2706, %v6802
        %v7827 = vsel %vm1683, %v2707, %v6803
        %v7828 = vsel %vm1684, %v2708, %v6804
        %v7829 = vsel %vm1685, %v2709, %v6805
        %v7830 = vsel %vm1686, %v2710, %v6806
        %v7831 = vsel %vm1687, %v2711, %v6807
        %v7832 = vsel %vm1688, %v2712, %v6808
        %v7833 = vsel %vm1689, %v2713, %v6809
        %v7834 = vsel %vm1690, %v2714, %v6810
        %v7835 = vsel %vm1691, %v2715, %v6811
        %v7836 = vsel %vm1692, %v2716, %v6812
        %v7837 = vsel %vm1693, %v2717, %v6813
        %v7838 = vsel %vm1694, %v2718, %v6814
        %v7839 = vsel %vm1695, %v2719, %v6815
        %v7840 = vsel %vm1696, %v2720, %v6816
        %v7841 = vsel %vm1697, %v2721, %v6817
        %v7842 = vsel %vm1698, %v2722, %v6818
        %v7843 = vsel %vm1699, %v2723, %v6819
        %v7844 = vsel %vm1700, %v2724, %v6820
        %v7845 = vsel %vm1701, %v2725, %v6821
        %v7846 = vsel %vm1702, %v2726, %v6822
        %v7847 = vsel %vm1703, %v2727, %v6823
        %v7848 = vsel %vm1704, %v2728, %v6824
        %v7849 = vsel %vm1705, %v2729, %v6825
        %v7850 = vsel %vm1706, %v2730, %v6826
        %v7851 = vsel %vm1707, %v2731, %v6827
        %v7852 = vsel %vm1708, %v2732, %v6828
        %v7853 = vsel %vm1709, %v2733, %v6829
        %v7854 = vsel %vm1710, %v2734, %v6830
        %v7855 = vsel %vm1711, %v2735, %v6831
        %v7856 = vsel %vm1712, %v2736, %v6832
        %v7857 = vsel %vm1713, %v2737, %v6833
        %v7858 = vsel %vm1714, %v2738, %v6834
        %v7859 = vsel %vm1715, %v2739, %v6835
        %v7860 = vsel %vm1716, %v2740, %v6836
        %v7861 = vsel %vm1717, %v2741, %v6837
        %v7862 = vsel %vm1718, %v2742, %v6838
        %v7863 = vsel %vm1719, %v2743, %v6839
        %v7864 = vsel %vm1720, %v2744, %v6840
        %v7865 = vsel %vm1721, %v2745, %v6841
        %v7866 = vsel %vm1722, %v2746, %v6842
        %v7867 = vsel %vm1723, %v2747, %v6843
        %v7868 = vsel %vm1724, %v2748, %v6844
        %v7869 = vsel %vm1725, %v2749, %v6845
        %v7870 = vsel %vm1726, %v2750, %v6846
        %v7871 = vsel %vm1727, %v2751, %v6847
        %v7872 = vsel %vm1728, %v2752, %v6848
        %v7873 = vsel %vm1729, %v2753, %v6849
        %v7874 = vsel %vm1730, %v2754, %v6850
        %v7875 = vsel %vm1731, %v2755, %v6851
        %v7876 = vsel %vm1732, %v2756, %v6852
        %v7877 = vsel %vm1733, %v2757, %v6853
        %v7878 = vsel %vm1734, %v2758, %v6854
        %v7879 = vsel %vm1735, %v2759, %v6855
        %v7880 = vsel %vm1736, %v2760, %v6856
        %v7881 = vsel %vm1737, %v2761, %v6857
        %v7882 = vsel %vm1738, %v2762, %v6858
        %v7883 = vsel %vm1739, %v2763, %v6859
        %v7884 = vsel %vm1740, %v2764, %v6860
        %v7885 = vsel %vm1741, %v2765, %v6861
        %v7886 = vsel %vm1742, %v2766, %v6862
        %v7887 = vsel %vm1743, %v2767, %v6863
        %v7888 = vsel %vm1744, %v2768, %v6864
        %v7889 = vsel %vm1745, %v2769, %v6865
        %v7890 = vsel %vm1746, %v2770, %v6866
        %v7891 = vsel %vm1747, %v2771, %v6867
        %v7892 = vsel %vm1748, %v2772, %v6868
        %v7893 = vsel %vm1749, %v2773, %v6869
        %v7894 = vsel %vm1750, %v2774, %v6870
        %v7895 = vsel %vm1751, %v2775, %v6871
        %v7896 = vsel %vm1752, %v2776, %v6872
        %v7897 = vsel %vm1753, %v2777, %v6873
        %v7898 = vsel %vm1754, %v2778, %v6874
        %v7899 = vsel %vm1755, %v2779, %v6875
        %v7900 = vsel %vm1756, %v2780, %v6876
        %v7901 = vsel %vm1757, %v2781, %v6877
        %v7902 = vsel %vm1758, %v2782, %v6878
        %v7903 = vsel %vm1759, %v2783, %v6879
        %v7904 = vsel %vm1760, %v2784, %v6880
        %v7905 = vsel %vm1761, %v2785, %v6881
        %v7906 = vsel %vm1762, %v2786, %v6882
        %v7907 = vsel %vm1763, %v2787, %v6883
        %v7908 = vsel %vm1764, %v2788, %v6884
        %v7909 = vsel %vm1765, %v2789, %v6885
        %v7910 = vsel %vm1766, %v2790, %v6886
        %v7911 = vsel %vm1767, %v2791, %v6887
        %v7912 = vsel %vm1768, %v2792, %v6888
        %v7913 = vsel %vm1769, %v2793, %v6889
        %v7914 = vsel %vm1770, %v2794, %v6890
        %v7915 = vsel %vm1771, %v2795, %v6891
        %v7916 = vsel %vm1772, %v2796, %v6892
        %v7917 = vsel %vm1773, %v2797, %v6893
        %v7918 = vsel %vm1774, %v2798, %v6894
        %v7919 = vsel %vm1775, %v2799, %v6895
        %v7920 = vsel %vm1776, %v2800, %v6896
        %v7921 = vsel %vm1777, %v2801, %v6897
        %v7922 = vsel %vm1778, %v2802, %v6898
        %v7923 = vsel %vm1779, %v2803, %v6899
        %v7924 = vsel %vm1780, %v2804, %v6900
        %v7925 = vsel %vm1781, %v2805, %v6901
        %v7926 = vsel %vm1782, %v2806, %v6902
        %v7927 = vsel %vm1783, %v2807, %v6903
        %v7928 = vsel %vm1784, %v2808, %v6904
        %v7929 = vsel %vm1785, %v2809, %v6905
        %v7930 = vsel %vm1786, %v2810, %v6906
        %v7931 = vsel %vm1787, %v2811, %v6907
        %v7932 = vsel %vm1788, %v2812, %v6908
        %v7933 = vsel %vm1789, %v2813, %v6909
        %v7934 = vsel %vm1790, %v2814, %v6910
        %v7935 = vsel %vm1791, %v2815, %v6911
        %v7936 = vsel %vm1792, %v2816, %v6912
        %v7937 = vsel %vm1793, %v2817, %v6913
        %v7938 = vsel %vm1794, %v2818, %v6914
        %v7939 = vsel %vm1795, %v2819, %v6915
        %v7940 = vsel %vm1796, %v2820, %v6916
        %v7941 = vsel %vm1797, %v2821, %v6917
        %v7942 = vsel %vm1798, %v2822, %v6918
        %v7943 = vsel %vm1799, %v2823, %v6919
        %v7944 = vsel %vm1800, %v2824, %v6920
        %v7945 = vsel %vm1801, %v2825, %v6921
        %v7946 = vsel %vm1802, %v2826, %v6922
        %v7947 = vsel %vm1803, %v2827, %v6923
        %v7948 = vsel %vm1804, %v2828, %v6924
        %v7949 = vsel %vm1805, %v2829, %v6925
        %v7950 = vsel %vm1806, %v2830, %v6926
        %v7951 = vsel %vm1807, %v2831, %v6927
        %v7952 = vsel %vm1808, %v2832, %v6928
        %v7953 = vsel %vm1809, %v2833, %v6929
        %v7954 = vsel %vm1810, %v2834, %v6930
        %v7955 = vsel %vm1811, %v2835, %v6931
        %v7956 = vsel %vm1812, %v2836, %v6932
        %v7957 = vsel %vm1813, %v2837, %v6933
        %v7958 = vsel %vm1814, %v2838, %v6934
        %v7959 = vsel %vm1815, %v2839, %v6935
        %v7960 = vsel %vm1816, %v2840, %v6936
        %v7961 = vsel %vm1817, %v2841, %v6937
        %v7962 = vsel %vm1818, %v2842, %v6938
        %v7963 = vsel %vm1819, %v2843, %v6939
        %v7964 = vsel %vm1820, %v2844, %v6940
        %v7965 = vsel %vm1821, %v2845, %v6941
        %v7966 = vsel %vm1822, %v2846, %v6942
        %v7967 = vsel %vm1823, %v2847, %v6943
        %v7968 = vsel %vm1824, %v2848, %v6944
        %v7969 = vsel %vm1825, %v2849, %v6945
        %v7970 = vsel %vm1826, %v2850, %v6946
        %v7971 = vsel %vm1827, %v2851, %v6947
        %v7972 = vsel %vm1828, %v2852, %v6948
        %v7973 = vsel %vm1829, %v2853, %v6949
        %v7974 = vsel %vm1830, %v2854, %v6950
        %v7975 = vsel %vm1831, %v2855, %v6951
        %v7976 = vsel %vm1832, %v2856, %v6952
        %v7977 = vsel %vm1833, %v2857, %v6953
        %v7978 = vsel %vm1834, %v2858, %v6954
        %v7979 = vsel %vm1835, %v2859, %v6955
        %v7980 = vsel %vm1836, %v2860, %v6956
        %v7981 = vsel %vm1837, %v2861, %v6957
        %v7982 = vsel %vm1838, %v2862, %v6958
        %v7983 = vsel %vm1839, %v2863, %v6959
        %v7984 = vsel %vm1840, %v2864, %v6960
        %v7985 = vsel %vm1841, %v2865, %v6961
        %v7986 = vsel %vm1842, %v2866, %v6962
        %v7987 = vsel %vm1843, %v2867, %v6963
        %v7988 = vsel %vm1844, %v2868, %v6964
        %v7989 = vsel %vm1845, %v2869, %v6965
        %v7990 = vsel %vm1846, %v2870, %v6966
        %v7991 = vsel %vm1847, %v2871, %v6967
        %v7992 = vsel %vm1848, %v2872, %v6968
        %v7993 = vsel %vm1849, %v2873, %v6969
        %v7994 = vsel %vm1850, %v2874, %v6970
        %v7995 = vsel %vm1851, %v2875, %v6971
        %v7996 = vsel %vm1852, %v2876, %v6972
        %v7997 = vsel %vm1853, %v2877, %v6973
        %v7998 = vsel %vm1854, %v2878, %v6974
        %v7999 = vsel %vm1855, %v2879, %v6975
        %v8000 = vsel %vm1856, %v2880, %v6976
        %v8001 = vsel %vm1857, %v2881, %v6977
        %v8002 = vsel %vm1858, %v2882, %v6978
        %v8003 = vsel %vm1859, %v2883, %v6979
        %v8004 = vsel %vm1860, %v2884, %v6980
        %v8005 = vsel %vm1861, %v2885, %v6981
        %v8006 = vsel %vm1862, %v2886, %v6982
        %v8007 = vsel %vm1863, %v2887, %v6983
        %v8008 = vsel %vm1864, %v2888, %v6984
        %v8009 = vsel %vm1865, %v2889, %v6985
        %v8010 = vsel %vm1866, %v2890, %v6986
        %v8011 = vsel %vm1867, %v2891, %v6987
        %v8012 = vsel %vm1868, %v2892, %v6988
        %v8013 = vsel %vm1869, %v2893, %v6989
        %v8014 = vsel %vm1870, %v2894, %v6990
        %v8015 = vsel %vm1871, %v2895, %v6991
        %v8016 = vsel %vm1872, %v2896, %v6992
        %v8017 = vsel %vm1873, %v2897, %v6993
        %v8018 = vsel %vm1874, %v2898, %v6994
        %v8019 = vsel %vm1875, %v2899, %v6995
        %v8020 = vsel %vm1876, %v2900, %v6996
        %v8021 = vsel %vm1877, %v2901, %v6997
        %v8022 = vsel %vm1878, %v2902, %v6998
        %v8023 = vsel %vm1879, %v2903, %v6999
        %v8024 = vsel %vm1880, %v2904, %v7000
        %v8025 = vsel %vm1881, %v2905, %v7001
        %v8026 = vsel %vm1882, %v2906, %v7002
        %v8027 = vsel %vm1883, %v2907, %v7003
        %v8028 = vsel %vm1884, %v2908, %v7004
        %v8029 = vsel %vm1885, %v2909, %v7005
        %v8030 = vsel %vm1886, %v2910, %v7006
        %v8031 = vsel %vm1887, %v2911, %v7007
        %v8032 = vsel %vm1888, %v2912, %v7008
        %v8033 = vsel %vm1889, %v2913, %v7009
        %v8034 = vsel %vm1890, %v2914, %v7010
        %v8035 = vsel %vm1891, %v2915, %v7011
        %v8036 = vsel %vm1892, %v2916, %v7012
        %v8037 = vsel %vm1893, %v2917, %v7013
        %v8038 = vsel %vm1894, %v2918, %v7014
        %v8039 = vsel %vm1895, %v2919, %v7015
        %v8040 = vsel %vm1896, %v2920, %v7016
        %v8041 = vsel %vm1897, %v2921, %v7017
        %v8042 = vsel %vm1898, %v2922, %v7018
        %v8043 = vsel %vm1899, %v2923, %v7019
        %v8044 = vsel %vm1900, %v2924, %v7020
        %v8045 = vsel %vm1901, %v2925, %v7021
        %v8046 = vsel %vm1902, %v2926, %v7022
        %v8047 = vsel %vm1903, %v2927, %v7023
        %v8048 = vsel %vm1904, %v2928, %v7024
        %v8049 = vsel %vm1905, %v2929, %v7025
        %v8050 = vsel %vm1906, %v2930, %v7026
        %v8051 = vsel %vm1907, %v2931, %v7027
        %v8052 = vsel %vm1908, %v2932, %v7028
        %v8053 = vsel %vm1909, %v2933, %v7029
        %v8054 = vsel %vm1910, %v2934, %v7030
        %v8055 = vsel %vm1911, %v2935, %v7031
        %v8056 = vsel %vm1912, %v2936, %v7032
        %v8057 = vsel %vm1913, %v2937, %v7033
        %v8058 = vsel %vm1914, %v2938, %v7034
        %v8059 = vsel %vm1915, %v2939, %v7035
        %v8060 = vsel %vm1916, %v2940, %v7036
        %v8061 = vsel %vm1917, %v2941, %v7037
        %v8062 = vsel %vm1918, %v2942, %v7038
        %v8063 = vsel %vm1919, %v2943, %v7039
        %v8064 = vsel %vm1920, %v2944, %v7040
        %v8065 = vsel %vm1921, %v2945, %v7041
        %v8066 = vsel %vm1922, %v2946, %v7042
        %v8067 = vsel %vm1923, %v2947, %v7043
        %v8068 = vsel %vm1924, %v2948, %v7044
        %v8069 = vsel %vm1925, %v2949, %v7045
        %v8070 = vsel %vm1926, %v2950, %v7046
        %v8071 = vsel %vm1927, %v2951, %v7047
        %v8072 = vsel %vm1928, %v2952, %v7048
        %v8073 = vsel %vm1929, %v2953, %v7049
        %v8074 = vsel %vm1930, %v2954, %v7050
        %v8075 = vsel %vm1931, %v2955, %v7051
        %v8076 = vsel %vm1932, %v2956, %v7052
        %v8077 = vsel %vm1933, %v2957, %v7053
        %v8078 = vsel %vm1934, %v2958, %v7054
        %v8079 = vsel %vm1935, %v2959, %v7055
        %v8080 = vsel %vm1936, %v2960, %v7056
        %v8081 = vsel %vm1937, %v2961, %v7057
        %v8082 = vsel %vm1938, %v2962, %v7058
        %v8083 = vsel %vm1939, %v2963, %v7059
        %v8084 = vsel %vm1940, %v2964, %v7060
        %v8085 = vsel %vm1941, %v2965, %v7061
        %v8086 = vsel %vm1942, %v2966, %v7062
        %v8087 = vsel %vm1943, %v2967, %v7063
        %v8088 = vsel %vm1944, %v2968, %v7064
        %v8089 = vsel %vm1945, %v2969, %v7065
        %v8090 = vsel %vm1946, %v2970, %v7066
        %v8091 = vsel %vm1947, %v2971, %v7067
        %v8092 = vsel %vm1948, %v2972, %v7068
        %v8093 = vsel %vm1949, %v2973, %v7069
        %v8094 = vsel %vm1950, %v2974, %v7070
        %v8095 = vsel %vm1951, %v2975, %v7071
        %v8096 = vsel %vm1952, %v2976, %v7072
        %v8097 = vsel %vm1953, %v2977, %v7073
        %v8098 = vsel %vm1954, %v2978, %v7074
        %v8099 = vsel %vm1955, %v2979, %v7075
        %v8100 = vsel %vm1956, %v2980, %v7076
        %v8101 = vsel %vm1957, %v2981, %v7077
        %v8102 = vsel %vm1958, %v2982, %v7078
        %v8103 = vsel %vm1959, %v2983, %v7079
        %v8104 = vsel %vm1960, %v2984, %v7080
        %v8105 = vsel %vm1961, %v2985, %v7081
        %v8106 = vsel %vm1962, %v2986, %v7082
        %v8107 = vsel %vm1963, %v2987, %v7083
        %v8108 = vsel %vm1964, %v2988, %v7084
        %v8109 = vsel %vm1965, %v2989, %v7085
        %v8110 = vsel %vm1966, %v2990, %v7086
        %v8111 = vsel %vm1967, %v2991, %v7087
        %v8112 = vsel %vm1968, %v2992, %v7088
        %v8113 = vsel %vm1969, %v2993, %v7089
        %v8114 = vsel %vm1970, %v2994, %v7090
        %v8115 = vsel %vm1971, %v2995, %v7091
        %v8116 = vsel %vm1972, %v2996, %v7092
        %v8117 = vsel %vm1973, %v2997, %v7093
        %v8118 = vsel %vm1974, %v2998, %v7094
        %v8119 = vsel %vm1975, %v2999, %v7095
        %v8120 = vsel %vm1976, %v3000, %v7096
        %v8121 = vsel %vm1977, %v3001, %v7097
        %v8122 = vsel %vm1978, %v3002, %v7098
        %v8123 = vsel %vm1979, %v3003, %v7099
        %v8124 = vsel %vm1980, %v3004, %v7100
        %v8125 = vsel %vm1981, %v3005, %v7101
        %v8126 = vsel %vm1982, %v3006, %v7102
        %v8127 = vsel %vm1983, %v3007, %v7103
        %v8128 = vsel %vm1984, %v3008, %v7104
        %v8129 = vsel %vm1985, %v3009, %v7105
        %v8130 = vsel %vm1986, %v3010, %v7106
        %v8131 = vsel %vm1987, %v3011, %v7107
        %v8132 = vsel %vm1988, %v3012, %v7108
        %v8133 = vsel %vm1989, %v3013, %v7109
        %v8134 = vsel %vm1990, %v3014, %v7110
        %v8135 = vsel %vm1991, %v3015, %v7111
        %v8136 = vsel %vm1992, %v3016, %v7112
        %v8137 = vsel %vm1993, %v3017, %v7113
        %v8138 = vsel %vm1994, %v3018, %v7114
        %v8139 = vsel %vm1995, %v3019, %v7115
        %v8140 = vsel %vm1996, %v3020, %v7116
        %v8141 = vsel %vm1997, %v3021, %v7117
        %v8142 = vsel %vm1998, %v3022, %v7118
        %v8143 = vsel %vm1999, %v3023, %v7119
        %v8144 = vsel %vm2000, %v3024, %v7120
        %v8145 = vsel %vm2001, %v3025, %v7121
        %v8146 = vsel %vm2002, %v3026, %v7122
        %v8147 = vsel %vm2003, %v3027, %v7123
        %v8148 = vsel %vm2004, %v3028, %v7124
        %v8149 = vsel %vm2005, %v3029, %v7125
        %v8150 = vsel %vm2006, %v3030, %v7126
        %v8151 = vsel %vm2007, %v3031, %v7127
        %v8152 = vsel %vm2008, %v3032, %v7128
        %v8153 = vsel %vm2009, %v3033, %v7129
        %v8154 = vsel %vm2010, %v3034, %v7130
        %v8155 = vsel %vm2011, %v3035, %v7131
        %v8156 = vsel %vm2012, %v3036, %v7132
        %v8157 = vsel %vm2013, %v3037, %v7133
        %v8158 = vsel %vm2014, %v3038, %v7134
        %v8159 = vsel %vm2015, %v3039, %v7135
        %v8160 = vsel %vm2016, %v3040, %v7136
        %v8161 = vsel %vm2017, %v3041, %v7137
        %v8162 = vsel %vm2018, %v3042, %v7138
        %v8163 = vsel %vm2019, %v3043, %v7139
        %v8164 = vsel %vm2020, %v3044, %v7140
        %v8165 = vsel %vm2021, %v3045, %v7141
        %v8166 = vsel %vm2022, %v3046, %v7142
        %v8167 = vsel %vm2023, %v3047, %v7143
        %v8168 = vsel %vm2024, %v3048, %v7144
        %v8169 = vsel %vm2025, %v3049, %v7145
        %v8170 = vsel %vm2026, %v3050, %v7146
        %v8171 = vsel %vm2027, %v3051, %v7147
        %v8172 = vsel %vm2028, %v3052, %v7148
        %v8173 = vsel %vm2029, %v3053, %v7149
        %v8174 = vsel %vm2030, %v3054, %v7150
        %v8175 = vsel %vm2031, %v3055, %v7151
        %v8176 = vsel %vm2032, %v3056, %v7152
        %v8177 = vsel %vm2033, %v3057, %v7153
        %v8178 = vsel %vm2034, %v3058, %v7154
        %v8179 = vsel %vm2035, %v3059, %v7155
        %v8180 = vsel %vm2036, %v3060, %v7156
        %v8181 = vsel %vm2037, %v3061, %v7157
        %v8182 = vsel %vm2038, %v3062, %v7158
        %v8183 = vsel %vm2039, %v3063, %v7159
        %v8184 = vsel %vm2040, %v3064, %v7160
        %v8185 = vsel %vm2041, %v3065, %v7161
        %v8186 = vsel %vm2042, %v3066, %v7162
        %v8187 = vsel %vm2043, %v3067, %v7163
        %v8188 = vsel %vm2044, %v3068, %v7164
        %v8189 = vsel %vm2045, %v3069, %v7165
        %v8190 = vsel %vm2046, %v3070, %v7166
        %v8191 = vsel %vm2047, %v3071, %v7167
        %v8192 = vsel %vm2048, %v3072, %v7168
        %v8193 = vsel %vm2049, %v3073, %v7169
        %v8194 = vsel %vm2050, %v3074, %v7170
        %v8195 = vsel %vm2051, %v3075, %v7171
        %v8196 = vsel %vm2052, %v3076, %v7172
        %v8197 = vsel %vm2053, %v3077, %v7173
        %v8198 = vsel %vm2054, %v3078, %v7174
        %v8199 = vsel %vm2055, %v3079, %v7175
        %v8200 = vsel %vm2056, %v3080, %v7176
        %v8201 = vsel %vm2057, %v3081, %v7177
        %v8202 = vsel %vm2058, %v3082, %v7178
        %v8203 = vsel %vm2059, %v3083, %v7179
        %v8204 = vsel %vm2060, %v3084, %v7180
        %v8205 = vsel %vm2061, %v3085, %v7181
        %v8206 = vsel %vm2062, %v3086, %v7182
        %v8207 = vsel %vm2063, %v3087, %v7183
        %v8208 = vsel %vm2064, %v3088, %v7184
        %v8209 = vsel %vm2065, %v3089, %v7185
        %v8210 = vsel %vm2066, %v3090, %v7186
        %v8211 = vsel %vm2067, %v3091, %v7187
        %v8212 = vsel %vm2068, %v3092, %v7188
        %v8213 = vsel %vm2069, %v3093, %v7189
        %v8214 = vsel %vm2070, %v3094, %v7190
        %v8215 = vsel %vm2071, %v3095, %v7191
        %v8216 = vsel %vm2072, %v3096, %v7192
        %v8217 = vsel %vm2073, %v3097, %v7193
        %v8218 = vsel %vm2074, %v3098, %v7194
        %v8219 = vsel %vm2075, %v3099, %v7195
        %v8220 = vsel %vm2076, %v3100, %v7196
        %v8221 = vsel %vm2077, %v3101, %v7197
        %v8222 = vsel %vm2078, %v3102, %v7198
        %v8223 = vsel %vm2079, %v3103, %v7199
        %v8224 = vsel %vm2080, %v3104, %v7200
        %v8225 = vsel %vm2081, %v3105, %v7201
        %v8226 = vsel %vm2082, %v3106, %v7202
        %v8227 = vsel %vm2083, %v3107, %v7203
        %v8228 = vsel %vm2084, %v3108, %v7204
        %v8229 = vsel %vm2085, %v3109, %v7205
        %v8230 = vsel %vm2086, %v3110, %v7206
        %v8231 = vsel %vm2087, %v3111, %v7207
        %v8232 = vsel %vm2088, %v3112, %v7208
        %v8233 = vsel %vm2089, %v3113, %v7209
        %v8234 = vsel %vm2090, %v3114, %v7210
        %v8235 = vsel %vm2091, %v3115, %v7211
        %v8236 = vsel %vm2092, %v3116, %v7212
        %v8237 = vsel %vm2093, %v3117, %v7213
        %v8238 = vsel %vm2094, %v3118, %v7214
        %v8239 = vsel %vm2095, %v3119, %v7215
        %v8240 = vsel %vm2096, %v3120, %v7216
        %v8241 = vsel %vm2097, %v3121, %v7217
        %v8242 = vsel %vm2098, %v3122, %v7218
        %v8243 = vsel %vm2099, %v3123, %v7219
        %v8244 = vsel %vm2100, %v3124, %v7220
        %v8245 = vsel %vm2101, %v3125, %v7221
        %v8246 = vsel %vm2102, %v3126, %v7222
        %v8247 = vsel %vm2103, %v3127, %v7223
        %v8248 = vsel %vm2104, %v3128, %v7224
        %v8249 = vsel %vm2105, %v3129, %v7225
        %v8250 = vsel %vm2106, %v3130, %v7226
        %v8251 = vsel %vm2107, %v3131, %v7227
        %v8252 = vsel %vm2108, %v3132, %v7228
        %v8253 = vsel %vm2109, %v3133, %v7229
        %v8254 = vsel %vm2110, %v3134, %v7230
        %v8255 = vsel %vm2111, %v3135, %v7231
        %v8256 = vsel %vm2112, %v3136, %v7232
        %v8257 = vsel %vm2113, %v3137, %v7233
        %v8258 = vsel %vm2114, %v3138, %v7234
        %v8259 = vsel %vm2115, %v3139, %v7235
        %v8260 = vsel %vm2116, %v3140, %v7236
        %v8261 = vsel %vm2117, %v3141, %v7237
        %v8262 = vsel %vm2118, %v3142, %v7238
        %v8263 = vsel %vm2119, %v3143, %v7239
        %v8264 = vsel %vm2120, %v3144, %v7240
        %v8265 = vsel %vm2121, %v3145, %v7241
        %v8266 = vsel %vm2122, %v3146, %v7242
        %v8267 = vsel %vm2123, %v3147, %v7243
        %v8268 = vsel %vm2124, %v3148, %v7244
        %v8269 = vsel %vm2125, %v3149, %v7245
        %v8270 = vsel %vm2126, %v3150, %v7246
        %v8271 = vsel %vm2127, %v3151, %v7247
        %v8272 = vsel %vm2128, %v3152, %v7248
        %v8273 = vsel %vm2129, %v3153, %v7249
        %v8274 = vsel %vm2130, %v3154, %v7250
        %v8275 = vsel %vm2131, %v3155, %v7251
        %v8276 = vsel %vm2132, %v3156, %v7252
        %v8277 = vsel %vm2133, %v3157, %v7253
        %v8278 = vsel %vm2134, %v3158, %v7254
        %v8279 = vsel %vm2135, %v3159, %v7255
        %v8280 = vsel %vm2136, %v3160, %v7256
        %v8281 = vsel %vm2137, %v3161, %v7257
        %v8282 = vsel %vm2138, %v3162, %v7258
        %v8283 = vsel %vm2139, %v3163, %v7259
        %v8284 = vsel %vm2140, %v3164, %v7260
        %v8285 = vsel %vm2141, %v3165, %v7261
        %v8286 = vsel %vm2142, %v3166, %v7262
        %v8287 = vsel %vm2143, %v3167, %v7263
        %v8288 = vsel %vm2144, %v3168, %v7264
        %v8289 = vsel %vm2145, %v3169, %v7265
        %v8290 = vsel %vm2146, %v3170, %v7266
        %v8291 = vsel %vm2147, %v3171, %v7267
        %v8292 = vsel %vm2148, %v3172, %v7268
        %v8293 = vsel %vm2149, %v3173, %v7269
        %v8294 = vsel %vm2150, %v3174, %v7270
        %v8295 = vsel %vm2151, %v3175, %v7271
        %v8296 = vsel %vm2152, %v3176, %v7272
        %v8297 = vsel %vm2153, %v3177, %v7273
        %v8298 = vsel %vm2154, %v3178, %v7274
        %v8299 = vsel %vm2155, %v3179, %v7275
        %v8300 = vsel %vm2156, %v3180, %v7276
        %v8301 = vsel %vm2157, %v3181, %v7277
        %v8302 = vsel %vm2158, %v3182, %v7278
        %v8303 = vsel %vm2159, %v3183, %v7279
        %v8304 = vsel %vm2160, %v3184, %v7280
        %v8305 = vsel %vm2161, %v3185, %v7281
        %v8306 = vsel %vm2162, %v3186, %v7282
        %v8307 = vsel %vm2163, %v3187, %v7283
        %v8308 = vsel %vm2164, %v3188, %v7284
        %v8309 = vsel %vm2165, %v3189, %v7285
        %v8310 = vsel %vm2166, %v3190, %v7286
        %v8311 = vsel %vm2167, %v3191, %v7287
        %v8312 = vsel %vm2168, %v3192, %v7288
        %v8313 = vsel %vm2169, %v3193, %v7289
        %v8314 = vsel %vm2170, %v3194, %v7290
        %v8315 = vsel %vm2171, %v3195, %v7291
        %v8316 = vsel %vm2172, %v3196, %v7292
        %v8317 = vsel %vm2173, %v3197, %v7293
        %v8318 = vsel %vm2174, %v3198, %v7294
        %v8319 = vsel %vm2175, %v3199, %v7295
        %v8320 = vsel %vm2176, %v3200, %v7296
        %v8321 = vsel %vm2177, %v3201, %v7297
        %v8322 = vsel %vm2178, %v3202, %v7298
        %v8323 = vsel %vm2179, %v3203, %v7299
        %v8324 = vsel %vm2180, %v3204, %v7300
        %v8325 = vsel %vm2181, %v3205, %v7301
        %v8326 = vsel %vm2182, %v3206, %v7302
        %v8327 = vsel %vm2183, %v3207, %v7303
        %v8328 = vsel %vm2184, %v3208, %v7304
        %v8329 = vsel %vm2185, %v3209, %v7305
        %v8330 = vsel %vm2186, %v3210, %v7306
        %v8331 = vsel %vm2187, %v3211, %v7307
        %v8332 = vsel %vm2188, %v3212, %v7308
        %v8333 = vsel %vm2189, %v3213, %v7309
        %v8334 = vsel %vm2190, %v3214, %v7310
        %v8335 = vsel %vm2191, %v3215, %v7311
        %v8336 = vsel %vm2192, %v3216, %v7312
        %v8337 = vsel %vm2193, %v3217, %v7313
        %v8338 = vsel %vm2194, %v3218, %v7314
        %v8339 = vsel %vm2195, %v3219, %v7315
        %v8340 = vsel %vm2196, %v3220, %v7316
        %v8341 = vsel %vm2197, %v3221, %v7317
        %v8342 = vsel %vm2198, %v3222, %v7318
        %v8343 = vsel %vm2199, %v3223, %v7319
        %v8344 = vsel %vm2200, %v3224, %v7320
        %v8345 = vsel %vm2201, %v3225, %v7321
        %8346 = vst [vmem:[%s143] sm:$0xff] %v7322
        %8347 = vst [vmem:[%s143 + $0x8] sm:$0xff] %v7323
        %8348 = vst [vmem:[%s143 + $0x10] sm:$0xff] %v7324
        %8349 = vst [vmem:[%s143 + $0x18] sm:$0xff] %v7325
        %8350 = vst [vmem:[%s143 + $0x20] sm:$0xff] %v7326
        %8351 = vst [vmem:[%s143 + $0x28] sm:$0xff] %v7327
        %8352 = vst [vmem:[%s143 + $0x30] sm:$0xff] %v7328
        %8353 = vst [vmem:[%s143 + $0x38] sm:$0xff] %v7329
        %8354 = vst [vmem:[%s143 + $0x40] sm:$0xff] %v7330
        %8355 = vst [vmem:[%s143 + $0x48] sm:$0xff] %v7331
        %8356 = vst [vmem:[%s143 + $0x50] sm:$0xff] %v7332
        %8357 = vst [vmem:[%s143 + $0x58] sm:$0xff] %v7333
        %8358 = vst [vmem:[%s143 + $0x60] sm:$0xff] %v7334
        %8359 = vst [vmem:[%s143 + $0x68] sm:$0xff] %v7335
        %8360 = vst [vmem:[%s143 + $0x70] sm:$0xff] %v7336
        %8361 = vst [vmem:[%s143 + $0x78] sm:$0xff] %v7337
        %8362 = vst [vmem:[%s143 + $0x80] sm:$0xff] %v7338
        %8363 = vst [vmem:[%s143 + $0x88] sm:$0xff] %v7339
        %8364 = vst [vmem:[%s143 + $0x90] sm:$0xff] %v7340
        %8365 = vst [vmem:[%s143 + $0x98] sm:$0xff] %v7341
        %8366 = vst [vmem:[%s143 + $0xa0] sm:$0xff] %v7342
        %8367 = vst [vmem:[%s143 + $0xa8] sm:$0xff] %v7343
        %8368 = vst [vmem:[%s143 + $0xb0] sm:$0xff] %v7344
        %8369 = vst [vmem:[%s143 + $0xb8] sm:$0xff] %v7345
        %8370 = vst [vmem:[%s143 + $0xc0] sm:$0xff] %v7346
        %8371 = vst [vmem:[%s143 + $0xc8] sm:$0xff] %v7347
        %8372 = vst [vmem:[%s143 + $0xd0] sm:$0xff] %v7348
        %8373 = vst [vmem:[%s143 + $0xd8] sm:$0xff] %v7349
        %8374 = vst [vmem:[%s143 + $0xe0] sm:$0xff] %v7350
        %8375 = vst [vmem:[%s143 + $0xe8] sm:$0xff] %v7351
        %8376 = vst [vmem:[%s143 + $0xf0] sm:$0xff] %v7352
        %8377 = vst [vmem:[%s143 + $0xf8] sm:$0xff] %v7353
        %8378 = vst [vmem:[%s143 + $0x100] sm:$0xff] %v7354
        %8379 = vst [vmem:[%s143 + $0x108] sm:$0xff] %v7355
        %8380 = vst [vmem:[%s143 + $0x110] sm:$0xff] %v7356
        %8381 = vst [vmem:[%s143 + $0x118] sm:$0xff] %v7357
        %8382 = vst [vmem:[%s143 + $0x120] sm:$0xff] %v7358
        %8383 = vst [vmem:[%s143 + $0x128] sm:$0xff] %v7359
        %8384 = vst [vmem:[%s143 + $0x130] sm:$0xff] %v7360
        %8385 = vst [vmem:[%s143 + $0x138] sm:$0xff] %v7361
        %8386 = vst [vmem:[%s143 + $0x140] sm:$0xff] %v7362
        %8387 = vst [vmem:[%s143 + $0x148] sm:$0xff] %v7363
        %8388 = vst [vmem:[%s143 + $0x150] sm:$0xff] %v7364
        %8389 = vst [vmem:[%s143 + $0x158] sm:$0xff] %v7365
        %8390 = vst [vmem:[%s143 + $0x160] sm:$0xff] %v7366
        %8391 = vst [vmem:[%s143 + $0x168] sm:$0xff] %v7367
        %8392 = vst [vmem:[%s143 + $0x170] sm:$0xff] %v7368
        %8393 = vst [vmem:[%s143 + $0x178] sm:$0xff] %v7369
        %8394 = vst [vmem:[%s143 + $0x180] sm:$0xff] %v7370
        %8395 = vst [vmem:[%s143 + $0x188] sm:$0xff] %v7371
        %8396 = vst [vmem:[%s143 + $0x190] sm:$0xff] %v7372
        %8397 = vst [vmem:[%s143 + $0x198] sm:$0xff] %v7373
        %8398 = vst [vmem:[%s143 + $0x1a0] sm:$0xff] %v7374
        %8399 = vst [vmem:[%s143 + $0x1a8] sm:$0xff] %v7375
        %8400 = vst [vmem:[%s143 + $0x1b0] sm:$0xff] %v7376
        %8401 = vst [vmem:[%s143 + $0x1b8] sm:$0xff] %v7377
        %8402 = vst [vmem:[%s143 + $0x1c0] sm:$0xff] %v7378
        %8403 = vst [vmem:[%s143 + $0x1c8] sm:$0xff] %v7379
        %8404 = vst [vmem:[%s143 + $0x1d0] sm:$0xff] %v7380
        %8405 = vst [vmem:[%s143 + $0x1d8] sm:$0xff] %v7381
        %8406 = vst [vmem:[%s143 + $0x1e0] sm:$0xff] %v7382
        %8407 = vst [vmem:[%s143 + $0x1e8] sm:$0xff] %v7383
        %8408 = vst [vmem:[%s143 + $0x1f0] sm:$0xff] %v7384
        %8409 = vst [vmem:[%s143 + $0x1f8] sm:$0xff] %v7385
        %8410 = vst [vmem:[%s143 + $0x200] sm:$0xff] %v7386
        %8411 = vst [vmem:[%s143 + $0x208] sm:$0xff] %v7387
        %8412 = vst [vmem:[%s143 + $0x210] sm:$0xff] %v7388
        %8413 = vst [vmem:[%s143 + $0x218] sm:$0xff] %v7389
        %8414 = vst [vmem:[%s143 + $0x220] sm:$0xff] %v7390
        %8415 = vst [vmem:[%s143 + $0x228] sm:$0xff] %v7391
        %8416 = vst [vmem:[%s143 + $0x230] sm:$0xff] %v7392
        %8417 = vst [vmem:[%s143 + $0x238] sm:$0xff] %v7393
        %8418 = vst [vmem:[%s143 + $0x240] sm:$0xff] %v7394
        %8419 = vst [vmem:[%s143 + $0x248] sm:$0xff] %v7395
        %8420 = vst [vmem:[%s143 + $0x250] sm:$0xff] %v7396
        %8421 = vst [vmem:[%s143 + $0x258] sm:$0xff] %v7397
        %8422 = vst [vmem:[%s143 + $0x260] sm:$0xff] %v7398
        %8423 = vst [vmem:[%s143 + $0x268] sm:$0xff] %v7399
        %8424 = vst [vmem:[%s143 + $0x270] sm:$0xff] %v7400
        %8425 = vst [vmem:[%s143 + $0x278] sm:$0xff] %v7401
        %8426 = vst [vmem:[%s143 + $0x280] sm:$0xff] %v7402
        %8427 = vst [vmem:[%s143 + $0x288] sm:$0xff] %v7403
        %8428 = vst [vmem:[%s143 + $0x290] sm:$0xff] %v7404
        %8429 = vst [vmem:[%s143 + $0x298] sm:$0xff] %v7405
        %8430 = vst [vmem:[%s143 + $0x2a0] sm:$0xff] %v7406
        %8431 = vst [vmem:[%s143 + $0x2a8] sm:$0xff] %v7407
        %8432 = vst [vmem:[%s143 + $0x2b0] sm:$0xff] %v7408
        %8433 = vst [vmem:[%s143 + $0x2b8] sm:$0xff] %v7409
        %8434 = vst [vmem:[%s143 + $0x2c0] sm:$0xff] %v7410
        %8435 = vst [vmem:[%s143 + $0x2c8] sm:$0xff] %v7411
        %8436 = vst [vmem:[%s143 + $0x2d0] sm:$0xff] %v7412
        %8437 = vst [vmem:[%s143 + $0x2d8] sm:$0xff] %v7413
        %8438 = vst [vmem:[%s143 + $0x2e0] sm:$0xff] %v7414
        %8439 = vst [vmem:[%s143 + $0x2e8] sm:$0xff] %v7415
        %8440 = vst [vmem:[%s143 + $0x2f0] sm:$0xff] %v7416
        %8441 = vst [vmem:[%s143 + $0x2f8] sm:$0xff] %v7417
        %8442 = vst [vmem:[%s143 + $0x300] sm:$0xff] %v7418
        %8443 = vst [vmem:[%s143 + $0x308] sm:$0xff] %v7419
        %8444 = vst [vmem:[%s143 + $0x310] sm:$0xff] %v7420
        %8445 = vst [vmem:[%s143 + $0x318] sm:$0xff] %v7421
        %8446 = vst [vmem:[%s143 + $0x320] sm:$0xff] %v7422
        %8447 = vst [vmem:[%s143 + $0x328] sm:$0xff] %v7423
        %8448 = vst [vmem:[%s143 + $0x330] sm:$0xff] %v7424
        %8449 = vst [vmem:[%s143 + $0x338] sm:$0xff] %v7425
        %8450 = vst [vmem:[%s143 + $0x340] sm:$0xff] %v7426
        %8451 = vst [vmem:[%s143 + $0x348] sm:$0xff] %v7427
        %8452 = vst [vmem:[%s143 + $0x350] sm:$0xff] %v7428
        %8453 = vst [vmem:[%s143 + $0x358] sm:$0xff] %v7429
        %8454 = vst [vmem:[%s143 + $0x360] sm:$0xff] %v7430
        %8455 = vst [vmem:[%s143 + $0x368] sm:$0xff] %v7431
        %8456 = vst [vmem:[%s143 + $0x370] sm:$0xff] %v7432
        %8457 = vst [vmem:[%s143 + $0x378] sm:$0xff] %v7433
        %8458 = vst [vmem:[%s143 + $0x380] sm:$0xff] %v7434
        %8459 = vst [vmem:[%s143 + $0x388] sm:$0xff] %v7435
        %8460 = vst [vmem:[%s143 + $0x390] sm:$0xff] %v7436
        %8461 = vst [vmem:[%s143 + $0x398] sm:$0xff] %v7437
        %8462 = vst [vmem:[%s143 + $0x3a0] sm:$0xff] %v7438
        %8463 = vst [vmem:[%s143 + $0x3a8] sm:$0xff] %v7439
        %8464 = vst [vmem:[%s143 + $0x3b0] sm:$0xff] %v7440
        %8465 = vst [vmem:[%s143 + $0x3b8] sm:$0xff] %v7441
        %8466 = vst [vmem:[%s143 + $0x3c0] sm:$0xff] %v7442
        %8467 = vst [vmem:[%s143 + $0x3c8] sm:$0xff] %v7443
        %8468 = vst [vmem:[%s143 + $0x3d0] sm:$0xff] %v7444
        %8469 = vst [vmem:[%s143 + $0x3d8] sm:$0xff] %v7445
        %8470 = vst [vmem:[%s143 + $0x3e0] sm:$0xff] %v7446
        %8471 = vst [vmem:[%s143 + $0x3e8] sm:$0xff] %v7447
        %8472 = vst [vmem:[%s143 + $0x3f0] sm:$0xff] %v7448
        %8473 = vst [vmem:[%s143 + $0x3f8] sm:$0xff] %v7449
        %8474 = vst [vmem:[%s143 + $0x400] sm:$0xff] %v7450
        %8475 = vst [vmem:[%s143 + $0x408] sm:$0xff] %v7451
        %8476 = vst [vmem:[%s143 + $0x410] sm:$0xff] %v7452
        %8477 = vst [vmem:[%s143 + $0x418] sm:$0xff] %v7453
        %8478 = vst [vmem:[%s143 + $0x420] sm:$0xff] %v7454
        %8479 = vst [vmem:[%s143 + $0x428] sm:$0xff] %v7455
        %8480 = vst [vmem:[%s143 + $0x430] sm:$0xff] %v7456
        %8481 = vst [vmem:[%s143 + $0x438] sm:$0xff] %v7457
        %8482 = vst [vmem:[%s143 + $0x440] sm:$0xff] %v7458
        %8483 = vst [vmem:[%s143 + $0x448] sm:$0xff] %v7459
        %8484 = vst [vmem:[%s143 + $0x450] sm:$0xff] %v7460
        %8485 = vst [vmem:[%s143 + $0x458] sm:$0xff] %v7461
        %8486 = vst [vmem:[%s143 + $0x460] sm:$0xff] %v7462
        %8487 = vst [vmem:[%s143 + $0x468] sm:$0xff] %v7463
        %8488 = vst [vmem:[%s143 + $0x470] sm:$0xff] %v7464
        %8489 = vst [vmem:[%s143 + $0x478] sm:$0xff] %v7465
        %8490 = vst [vmem:[%s143 + $0x480] sm:$0xff] %v7466
        %8491 = vst [vmem:[%s143 + $0x488] sm:$0xff] %v7467
        %8492 = vst [vmem:[%s143 + $0x490] sm:$0xff] %v7468
        %8493 = vst [vmem:[%s143 + $0x498] sm:$0xff] %v7469
        %8494 = vst [vmem:[%s143 + $0x4a0] sm:$0xff] %v7470
        %8495 = vst [vmem:[%s143 + $0x4a8] sm:$0xff] %v7471
        %8496 = vst [vmem:[%s143 + $0x4b0] sm:$0xff] %v7472
        %8497 = vst [vmem:[%s143 + $0x4b8] sm:$0xff] %v7473
        %8498 = vst [vmem:[%s143 + $0x4c0] sm:$0xff] %v7474
        %8499 = vst [vmem:[%s143 + $0x4c8] sm:$0xff] %v7475
        %8500 = vst [vmem:[%s143 + $0x4d0] sm:$0xff] %v7476
        %8501 = vst [vmem:[%s143 + $0x4d8] sm:$0xff] %v7477
        %8502 = vst [vmem:[%s143 + $0x4e0] sm:$0xff] %v7478
        %8503 = vst [vmem:[%s143 + $0x4e8] sm:$0xff] %v7479
        %8504 = vst [vmem:[%s143 + $0x4f0] sm:$0xff] %v7480
        %8505 = vst [vmem:[%s143 + $0x4f8] sm:$0xff] %v7481
        %8506 = vst [vmem:[%s143 + $0x500] sm:$0xff] %v7482
        %8507 = vst [vmem:[%s143 + $0x508] sm:$0xff] %v7483
        %8508 = vst [vmem:[%s143 + $0x510] sm:$0xff] %v7484
        %8509 = vst [vmem:[%s143 + $0x518] sm:$0xff] %v7485
        %8510 = vst [vmem:[%s143 + $0x520] sm:$0xff] %v7486
        %8511 = vst [vmem:[%s143 + $0x528] sm:$0xff] %v7487
        %8512 = vst [vmem:[%s143 + $0x530] sm:$0xff] %v7488
        %8513 = vst [vmem:[%s143 + $0x538] sm:$0xff] %v7489
        %8514 = vst [vmem:[%s143 + $0x540] sm:$0xff] %v7490
        %8515 = vst [vmem:[%s143 + $0x548] sm:$0xff] %v7491
        %8516 = vst [vmem:[%s143 + $0x550] sm:$0xff] %v7492
        %8517 = vst [vmem:[%s143 + $0x558] sm:$0xff] %v7493
        %8518 = vst [vmem:[%s143 + $0x560] sm:$0xff] %v7494
        %8519 = vst [vmem:[%s143 + $0x568] sm:$0xff] %v7495
        %8520 = vst [vmem:[%s143 + $0x570] sm:$0xff] %v7496
        %8521 = vst [vmem:[%s143 + $0x578] sm:$0xff] %v7497
        %8522 = vst [vmem:[%s143 + $0x580] sm:$0xff] %v7498
        %8523 = vst [vmem:[%s143 + $0x588] sm:$0xff] %v7499
        %8524 = vst [vmem:[%s143 + $0x590] sm:$0xff] %v7500
        %8525 = vst [vmem:[%s143 + $0x598] sm:$0xff] %v7501
        %8526 = vst [vmem:[%s143 + $0x5a0] sm:$0xff] %v7502
        %8527 = vst [vmem:[%s143 + $0x5a8] sm:$0xff] %v7503
        %8528 = vst [vmem:[%s143 + $0x5b0] sm:$0xff] %v7504
        %8529 = vst [vmem:[%s143 + $0x5b8] sm:$0xff] %v7505
        %8530 = vst [vmem:[%s143 + $0x5c0] sm:$0xff] %v7506
        %8531 = vst [vmem:[%s143 + $0x5c8] sm:$0xff] %v7507
        %8532 = vst [vmem:[%s143 + $0x5d0] sm:$0xff] %v7508
        %8533 = vst [vmem:[%s143 + $0x5d8] sm:$0xff] %v7509
        %8534 = vst [vmem:[%s143 + $0x5e0] sm:$0xff] %v7510
        %8535 = vst [vmem:[%s143 + $0x5e8] sm:$0xff] %v7511
        %8536 = vst [vmem:[%s143 + $0x5f0] sm:$0xff] %v7512
        %8537 = vst [vmem:[%s143 + $0x5f8] sm:$0xff] %v7513
        %8538 = vst [vmem:[%s143 + $0x600] sm:$0xff] %v7514
        %8539 = vst [vmem:[%s143 + $0x608] sm:$0xff] %v7515
        %8540 = vst [vmem:[%s143 + $0x610] sm:$0xff] %v7516
        %8541 = vst [vmem:[%s143 + $0x618] sm:$0xff] %v7517
        %8542 = vst [vmem:[%s143 + $0x620] sm:$0xff] %v7518
        %8543 = vst [vmem:[%s143 + $0x628] sm:$0xff] %v7519
        %8544 = vst [vmem:[%s143 + $0x630] sm:$0xff] %v7520
        %8545 = vst [vmem:[%s143 + $0x638] sm:$0xff] %v7521
        %8546 = vst [vmem:[%s143 + $0x640] sm:$0xff] %v7522
        %8547 = vst [vmem:[%s143 + $0x648] sm:$0xff] %v7523
        %8548 = vst [vmem:[%s143 + $0x650] sm:$0xff] %v7524
        %8549 = vst [vmem:[%s143 + $0x658] sm:$0xff] %v7525
        %8550 = vst [vmem:[%s143 + $0x660] sm:$0xff] %v7526
        %8551 = vst [vmem:[%s143 + $0x668] sm:$0xff] %v7527
        %8552 = vst [vmem:[%s143 + $0x670] sm:$0xff] %v7528
        %8553 = vst [vmem:[%s143 + $0x678] sm:$0xff] %v7529
        %8554 = vst [vmem:[%s143 + $0x680] sm:$0xff] %v7530
        %8555 = vst [vmem:[%s143 + $0x688] sm:$0xff] %v7531
        %8556 = vst [vmem:[%s143 + $0x690] sm:$0xff] %v7532
        %8557 = vst [vmem:[%s143 + $0x698] sm:$0xff] %v7533
        %8558 = vst [vmem:[%s143 + $0x6a0] sm:$0xff] %v7534
        %8559 = vst [vmem:[%s143 + $0x6a8] sm:$0xff] %v7535
        %8560 = vst [vmem:[%s143 + $0x6b0] sm:$0xff] %v7536
        %8561 = vst [vmem:[%s143 + $0x6b8] sm:$0xff] %v7537
        %8562 = vst [vmem:[%s143 + $0x6c0] sm:$0xff] %v7538
        %8563 = vst [vmem:[%s143 + $0x6c8] sm:$0xff] %v7539
        %8564 = vst [vmem:[%s143 + $0x6d0] sm:$0xff] %v7540
        %8565 = vst [vmem:[%s143 + $0x6d8] sm:$0xff] %v7541
        %8566 = vst [vmem:[%s143 + $0x6e0] sm:$0xff] %v7542
        %8567 = vst [vmem:[%s143 + $0x6e8] sm:$0xff] %v7543
        %8568 = vst [vmem:[%s143 + $0x6f0] sm:$0xff] %v7544
        %8569 = vst [vmem:[%s143 + $0x6f8] sm:$0xff] %v7545
        %8570 = vst [vmem:[%s143 + $0x700] sm:$0xff] %v7546
        %8571 = vst [vmem:[%s143 + $0x708] sm:$0xff] %v7547
        %8572 = vst [vmem:[%s143 + $0x710] sm:$0xff] %v7548
        %8573 = vst [vmem:[%s143 + $0x718] sm:$0xff] %v7549
        %8574 = vst [vmem:[%s143 + $0x720] sm:$0xff] %v7550
        %8575 = vst [vmem:[%s143 + $0x728] sm:$0xff] %v7551
        %8576 = vst [vmem:[%s143 + $0x730] sm:$0xff] %v7552
        %8577 = vst [vmem:[%s143 + $0x738] sm:$0xff] %v7553
        %8578 = vst [vmem:[%s143 + $0x740] sm:$0xff] %v7554
        %8579 = vst [vmem:[%s143 + $0x748] sm:$0xff] %v7555
        %8580 = vst [vmem:[%s143 + $0x750] sm:$0xff] %v7556
        %8581 = vst [vmem:[%s143 + $0x758] sm:$0xff] %v7557
        %8582 = vst [vmem:[%s143 + $0x760] sm:$0xff] %v7558
        %8583 = vst [vmem:[%s143 + $0x768] sm:$0xff] %v7559
        %8584 = vst [vmem:[%s143 + $0x770] sm:$0xff] %v7560
        %8585 = vst [vmem:[%s143 + $0x778] sm:$0xff] %v7561
        %8586 = vst [vmem:[%s143 + $0x780] sm:$0xff] %v7562
        %8587 = vst [vmem:[%s143 + $0x788] sm:$0xff] %v7563
        %8588 = vst [vmem:[%s143 + $0x790] sm:$0xff] %v7564
        %8589 = vst [vmem:[%s143 + $0x798] sm:$0xff] %v7565
        %8590 = vst [vmem:[%s143 + $0x7a0] sm:$0xff] %v7566
        %8591 = vst [vmem:[%s143 + $0x7a8] sm:$0xff] %v7567
        %8592 = vst [vmem:[%s143 + $0x7b0] sm:$0xff] %v7568
        %8593 = vst [vmem:[%s143 + $0x7b8] sm:$0xff] %v7569
        %8594 = vst [vmem:[%s143 + $0x7c0] sm:$0xff] %v7570
        %8595 = vst [vmem:[%s143 + $0x7c8] sm:$0xff] %v7571
        %8596 = vst [vmem:[%s143 + $0x7d0] sm:$0xff] %v7572
        %8597 = vst [vmem:[%s143 + $0x7d8] sm:$0xff] %v7573
        %8598 = vst [vmem:[%s143 + $0x7e0] sm:$0xff] %v7574
        %8599 = vst [vmem:[%s143 + $0x7e8] sm:$0xff] %v7575
        %8600 = vst [vmem:[%s143 + $0x7f0] sm:$0xff] %v7576
        %8601 = vst [vmem:[%s143 + $0x7f8] sm:$0xff] %v7577
        %8602 = vst [vmem:[%s143 + $0x800] sm:$0xff] %v7578
        %8603 = vst [vmem:[%s143 + $0x808] sm:$0xff] %v7579
        %8604 = vst [vmem:[%s143 + $0x810] sm:$0xff] %v7580
        %8605 = vst [vmem:[%s143 + $0x818] sm:$0xff] %v7581
        %8606 = vst [vmem:[%s143 + $0x820] sm:$0xff] %v7582
        %8607 = vst [vmem:[%s143 + $0x828] sm:$0xff] %v7583
        %8608 = vst [vmem:[%s143 + $0x830] sm:$0xff] %v7584
        %8609 = vst [vmem:[%s143 + $0x838] sm:$0xff] %v7585
        %8610 = vst [vmem:[%s143 + $0x840] sm:$0xff] %v7586
        %8611 = vst [vmem:[%s143 + $0x848] sm:$0xff] %v7587
        %8612 = vst [vmem:[%s143 + $0x850] sm:$0xff] %v7588
        %8613 = vst [vmem:[%s143 + $0x858] sm:$0xff] %v7589
        %8614 = vst [vmem:[%s143 + $0x860] sm:$0xff] %v7590
        %8615 = vst [vmem:[%s143 + $0x868] sm:$0xff] %v7591
        %8616 = vst [vmem:[%s143 + $0x870] sm:$0xff] %v7592
        %8617 = vst [vmem:[%s143 + $0x878] sm:$0xff] %v7593
        %8618 = vst [vmem:[%s143 + $0x880] sm:$0xff] %v7594
        %8619 = vst [vmem:[%s143 + $0x888] sm:$0xff] %v7595
        %8620 = vst [vmem:[%s143 + $0x890] sm:$0xff] %v7596
        %8621 = vst [vmem:[%s143 + $0x898] sm:$0xff] %v7597
        %8622 = vst [vmem:[%s143 + $0x8a0] sm:$0xff] %v7598
        %8623 = vst [vmem:[%s143 + $0x8a8] sm:$0xff] %v7599
        %8624 = vst [vmem:[%s143 + $0x8b0] sm:$0xff] %v7600
        %8625 = vst [vmem:[%s143 + $0x8b8] sm:$0xff] %v7601
        %8626 = vst [vmem:[%s143 + $0x8c0] sm:$0xff] %v7602
        %8627 = vst [vmem:[%s143 + $0x8c8] sm:$0xff] %v7603
        %8628 = vst [vmem:[%s143 + $0x8d0] sm:$0xff] %v7604
        %8629 = vst [vmem:[%s143 + $0x8d8] sm:$0xff] %v7605
        %8630 = vst [vmem:[%s143 + $0x8e0] sm:$0xff] %v7606
        %8631 = vst [vmem:[%s143 + $0x8e8] sm:$0xff] %v7607
        %8632 = vst [vmem:[%s143 + $0x8f0] sm:$0xff] %v7608
        %8633 = vst [vmem:[%s143 + $0x8f8] sm:$0xff] %v7609
        %8634 = vst [vmem:[%s143 + $0x900] sm:$0xff] %v7610
        %8635 = vst [vmem:[%s143 + $0x908] sm:$0xff] %v7611
        %8636 = vst [vmem:[%s143 + $0x910] sm:$0xff] %v7612
        %8637 = vst [vmem:[%s143 + $0x918] sm:$0xff] %v7613
        %8638 = vst [vmem:[%s143 + $0x920] sm:$0xff] %v7614
        %8639 = vst [vmem:[%s143 + $0x928] sm:$0xff] %v7615
        %8640 = vst [vmem:[%s143 + $0x930] sm:$0xff] %v7616
        %8641 = vst [vmem:[%s143 + $0x938] sm:$0xff] %v7617
        %8642 = vst [vmem:[%s143 + $0x940] sm:$0xff] %v7618
        %8643 = vst [vmem:[%s143 + $0x948] sm:$0xff] %v7619
        %8644 = vst [vmem:[%s143 + $0x950] sm:$0xff] %v7620
        %8645 = vst [vmem:[%s143 + $0x958] sm:$0xff] %v7621
        %8646 = vst [vmem:[%s143 + $0x960] sm:$0xff] %v7622
        %8647 = vst [vmem:[%s143 + $0x968] sm:$0xff] %v7623
        %8648 = vst [vmem:[%s143 + $0x970] sm:$0xff] %v7624
        %8649 = vst [vmem:[%s143 + $0x978] sm:$0xff] %v7625
        %8650 = vst [vmem:[%s143 + $0x980] sm:$0xff] %v7626
        %8651 = vst [vmem:[%s143 + $0x988] sm:$0xff] %v7627
        %8652 = vst [vmem:[%s143 + $0x990] sm:$0xff] %v7628
        %8653 = vst [vmem:[%s143 + $0x998] sm:$0xff] %v7629
        %8654 = vst [vmem:[%s143 + $0x9a0] sm:$0xff] %v7630
        %8655 = vst [vmem:[%s143 + $0x9a8] sm:$0xff] %v7631
        %8656 = vst [vmem:[%s143 + $0x9b0] sm:$0xff] %v7632
        %8657 = vst [vmem:[%s143 + $0x9b8] sm:$0xff] %v7633
        %8658 = vst [vmem:[%s143 + $0x9c0] sm:$0xff] %v7634
        %8659 = vst [vmem:[%s143 + $0x9c8] sm:$0xff] %v7635
        %8660 = vst [vmem:[%s143 + $0x9d0] sm:$0xff] %v7636
        %8661 = vst [vmem:[%s143 + $0x9d8] sm:$0xff] %v7637
        %8662 = vst [vmem:[%s143 + $0x9e0] sm:$0xff] %v7638
        %8663 = vst [vmem:[%s143 + $0x9e8] sm:$0xff] %v7639
        %8664 = vst [vmem:[%s143 + $0x9f0] sm:$0xff] %v7640
        %8665 = vst [vmem:[%s143 + $0x9f8] sm:$0xff] %v7641
        %8666 = vst [vmem:[%s143 + $0xa00] sm:$0xff] %v7642
        %8667 = vst [vmem:[%s143 + $0xa08] sm:$0xff] %v7643
        %8668 = vst [vmem:[%s143 + $0xa10] sm:$0xff] %v7644
        %8669 = vst [vmem:[%s143 + $0xa18] sm:$0xff] %v7645
        %8670 = vst [vmem:[%s143 + $0xa20] sm:$0xff] %v7646
        %8671 = vst [vmem:[%s143 + $0xa28] sm:$0xff] %v7647
        %8672 = vst [vmem:[%s143 + $0xa30] sm:$0xff] %v7648
        %8673 = vst [vmem:[%s143 + $0xa38] sm:$0xff] %v7649
        %8674 = vst [vmem:[%s143 + $0xa40] sm:$0xff] %v7650
        %8675 = vst [vmem:[%s143 + $0xa48] sm:$0xff] %v7651
        %8676 = vst [vmem:[%s143 + $0xa50] sm:$0xff] %v7652
        %8677 = vst [vmem:[%s143 + $0xa58] sm:$0xff] %v7653
        %8678 = vst [vmem:[%s143 + $0xa60] sm:$0xff] %v7654
        %8679 = vst [vmem:[%s143 + $0xa68] sm:$0xff] %v7655
        %8680 = vst [vmem:[%s143 + $0xa70] sm:$0xff] %v7656
        %8681 = vst [vmem:[%s143 + $0xa78] sm:$0xff] %v7657
        %8682 = vst [vmem:[%s143 + $0xa80] sm:$0xff] %v7658
        %8683 = vst [vmem:[%s143 + $0xa88] sm:$0xff] %v7659
        %8684 = vst [vmem:[%s143 + $0xa90] sm:$0xff] %v7660
        %8685 = vst [vmem:[%s143 + $0xa98] sm:$0xff] %v7661
        %8686 = vst [vmem:[%s143 + $0xaa0] sm:$0xff] %v7662
        %8687 = vst [vmem:[%s143 + $0xaa8] sm:$0xff] %v7663
        %8688 = vst [vmem:[%s143 + $0xab0] sm:$0xff] %v7664
        %8689 = vst [vmem:[%s143 + $0xab8] sm:$0xff] %v7665
        %8690 = vst [vmem:[%s143 + $0xac0] sm:$0xff] %v7666
        %8691 = vst [vmem:[%s143 + $0xac8] sm:$0xff] %v7667
        %8692 = vst [vmem:[%s143 + $0xad0] sm:$0xff] %v7668
        %8693 = vst [vmem:[%s143 + $0xad8] sm:$0xff] %v7669
        %8694 = vst [vmem:[%s143 + $0xae0] sm:$0xff] %v7670
        %8695 = vst [vmem:[%s143 + $0xae8] sm:$0xff] %v7671
        %8696 = vst [vmem:[%s143 + $0xaf0] sm:$0xff] %v7672
        %8697 = vst [vmem:[%s143 + $0xaf8] sm:$0xff] %v7673
        %8698 = vst [vmem:[%s143 + $0xb00] sm:$0xff] %v7674
        %8699 = vst [vmem:[%s143 + $0xb08] sm:$0xff] %v7675
        %8700 = vst [vmem:[%s143 + $0xb10] sm:$0xff] %v7676
        %8701 = vst [vmem:[%s143 + $0xb18] sm:$0xff] %v7677
        %8702 = vst [vmem:[%s143 + $0xb20] sm:$0xff] %v7678
        %8703 = vst [vmem:[%s143 + $0xb28] sm:$0xff] %v7679
        %8704 = vst [vmem:[%s143 + $0xb30] sm:$0xff] %v7680
        %8705 = vst [vmem:[%s143 + $0xb38] sm:$0xff] %v7681
        %8706 = vst [vmem:[%s143 + $0xb40] sm:$0xff] %v7682
        %8707 = vst [vmem:[%s143 + $0xb48] sm:$0xff] %v7683
        %8708 = vst [vmem:[%s143 + $0xb50] sm:$0xff] %v7684
        %8709 = vst [vmem:[%s143 + $0xb58] sm:$0xff] %v7685
        %8710 = vst [vmem:[%s143 + $0xb60] sm:$0xff] %v7686
        %8711 = vst [vmem:[%s143 + $0xb68] sm:$0xff] %v7687
        %8712 = vst [vmem:[%s143 + $0xb70] sm:$0xff] %v7688
        %8713 = vst [vmem:[%s143 + $0xb78] sm:$0xff] %v7689
        %8714 = vst [vmem:[%s143 + $0xb80] sm:$0xff] %v7690
        %8715 = vst [vmem:[%s143 + $0xb88] sm:$0xff] %v7691
        %8716 = vst [vmem:[%s143 + $0xb90] sm:$0xff] %v7692
        %8717 = vst [vmem:[%s143 + $0xb98] sm:$0xff] %v7693
        %8718 = vst [vmem:[%s143 + $0xba0] sm:$0xff] %v7694
        %8719 = vst [vmem:[%s143 + $0xba8] sm:$0xff] %v7695
        %8720 = vst [vmem:[%s143 + $0xbb0] sm:$0xff] %v7696
        %8721 = vst [vmem:[%s143 + $0xbb8] sm:$0xff] %v7697
        %8722 = vst [vmem:[%s143 + $0xbc0] sm:$0xff] %v7698
        %8723 = vst [vmem:[%s143 + $0xbc8] sm:$0xff] %v7699
        %8724 = vst [vmem:[%s143 + $0xbd0] sm:$0xff] %v7700
        %8725 = vst [vmem:[%s143 + $0xbd8] sm:$0xff] %v7701
        %8726 = vst [vmem:[%s143 + $0xbe0] sm:$0xff] %v7702
        %8727 = vst [vmem:[%s143 + $0xbe8] sm:$0xff] %v7703
        %8728 = vst [vmem:[%s143 + $0xbf0] sm:$0xff] %v7704
        %8729 = vst [vmem:[%s143 + $0xbf8] sm:$0xff] %v7705
        %8730 = vst [vmem:[%s143 + $0xc00] sm:$0xff] %v7706
        %8731 = vst [vmem:[%s143 + $0xc08] sm:$0xff] %v7707
        %8732 = vst [vmem:[%s143 + $0xc10] sm:$0xff] %v7708
        %8733 = vst [vmem:[%s143 + $0xc18] sm:$0xff] %v7709
        %8734 = vst [vmem:[%s143 + $0xc20] sm:$0xff] %v7710
        %8735 = vst [vmem:[%s143 + $0xc28] sm:$0xff] %v7711
        %8736 = vst [vmem:[%s143 + $0xc30] sm:$0xff] %v7712
        %8737 = vst [vmem:[%s143 + $0xc38] sm:$0xff] %v7713
        %8738 = vst [vmem:[%s143 + $0xc40] sm:$0xff] %v7714
        %8739 = vst [vmem:[%s143 + $0xc48] sm:$0xff] %v7715
        %8740 = vst [vmem:[%s143 + $0xc50] sm:$0xff] %v7716
        %8741 = vst [vmem:[%s143 + $0xc58] sm:$0xff] %v7717
        %8742 = vst [vmem:[%s143 + $0xc60] sm:$0xff] %v7718
        %8743 = vst [vmem:[%s143 + $0xc68] sm:$0xff] %v7719
        %8744 = vst [vmem:[%s143 + $0xc70] sm:$0xff] %v7720
        %8745 = vst [vmem:[%s143 + $0xc78] sm:$0xff] %v7721
        %8746 = vst [vmem:[%s143 + $0xc80] sm:$0xff] %v7722
        %8747 = vst [vmem:[%s143 + $0xc88] sm:$0xff] %v7723
        %8748 = vst [vmem:[%s143 + $0xc90] sm:$0xff] %v7724
        %8749 = vst [vmem:[%s143 + $0xc98] sm:$0xff] %v7725
        %8750 = vst [vmem:[%s143 + $0xca0] sm:$0xff] %v7726
        %8751 = vst [vmem:[%s143 + $0xca8] sm:$0xff] %v7727
        %8752 = vst [vmem:[%s143 + $0xcb0] sm:$0xff] %v7728
        %8753 = vst [vmem:[%s143 + $0xcb8] sm:$0xff] %v7729
        %8754 = vst [vmem:[%s143 + $0xcc0] sm:$0xff] %v7730
        %8755 = vst [vmem:[%s143 + $0xcc8] sm:$0xff] %v7731
        %8756 = vst [vmem:[%s143 + $0xcd0] sm:$0xff] %v7732
        %8757 = vst [vmem:[%s143 + $0xcd8] sm:$0xff] %v7733
        %8758 = vst [vmem:[%s143 + $0xce0] sm:$0xff] %v7734
        %8759 = vst [vmem:[%s143 + $0xce8] sm:$0xff] %v7735
        %8760 = vst [vmem:[%s143 + $0xcf0] sm:$0xff] %v7736
        %8761 = vst [vmem:[%s143 + $0xcf8] sm:$0xff] %v7737
        %8762 = vst [vmem:[%s143 + $0xd00] sm:$0xff] %v7738
        %8763 = vst [vmem:[%s143 + $0xd08] sm:$0xff] %v7739
        %8764 = vst [vmem:[%s143 + $0xd10] sm:$0xff] %v7740
        %8765 = vst [vmem:[%s143 + $0xd18] sm:$0xff] %v7741
        %8766 = vst [vmem:[%s143 + $0xd20] sm:$0xff] %v7742
        %8767 = vst [vmem:[%s143 + $0xd28] sm:$0xff] %v7743
        %8768 = vst [vmem:[%s143 + $0xd30] sm:$0xff] %v7744
        %8769 = vst [vmem:[%s143 + $0xd38] sm:$0xff] %v7745
        %8770 = vst [vmem:[%s143 + $0xd40] sm:$0xff] %v7746
        %8771 = vst [vmem:[%s143 + $0xd48] sm:$0xff] %v7747
        %8772 = vst [vmem:[%s143 + $0xd50] sm:$0xff] %v7748
        %8773 = vst [vmem:[%s143 + $0xd58] sm:$0xff] %v7749
        %8774 = vst [vmem:[%s143 + $0xd60] sm:$0xff] %v7750
        %8775 = vst [vmem:[%s143 + $0xd68] sm:$0xff] %v7751
        %8776 = vst [vmem:[%s143 + $0xd70] sm:$0xff] %v7752
        %8777 = vst [vmem:[%s143 + $0xd78] sm:$0xff] %v7753
        %8778 = vst [vmem:[%s143 + $0xd80] sm:$0xff] %v7754
        %8779 = vst [vmem:[%s143 + $0xd88] sm:$0xff] %v7755
        %8780 = vst [vmem:[%s143 + $0xd90] sm:$0xff] %v7756
        %8781 = vst [vmem:[%s143 + $0xd98] sm:$0xff] %v7757
        %8782 = vst [vmem:[%s143 + $0xda0] sm:$0xff] %v7758
        %8783 = vst [vmem:[%s143 + $0xda8] sm:$0xff] %v7759
        %8784 = vst [vmem:[%s143 + $0xdb0] sm:$0xff] %v7760
        %8785 = vst [vmem:[%s143 + $0xdb8] sm:$0xff] %v7761
        %8786 = vst [vmem:[%s143 + $0xdc0] sm:$0xff] %v7762
        %8787 = vst [vmem:[%s143 + $0xdc8] sm:$0xff] %v7763
        %8788 = vst [vmem:[%s143 + $0xdd0] sm:$0xff] %v7764
        %8789 = vst [vmem:[%s143 + $0xdd8] sm:$0xff] %v7765
        %8790 = vst [vmem:[%s143 + $0xde0] sm:$0xff] %v7766
        %8791 = vst [vmem:[%s143 + $0xde8] sm:$0xff] %v7767
        %8792 = vst [vmem:[%s143 + $0xdf0] sm:$0xff] %v7768
        %8793 = vst [vmem:[%s143 + $0xdf8] sm:$0xff] %v7769
        %8794 = vst [vmem:[%s143 + $0xe00] sm:$0xff] %v7770
        %8795 = vst [vmem:[%s143 + $0xe08] sm:$0xff] %v7771
        %8796 = vst [vmem:[%s143 + $0xe10] sm:$0xff] %v7772
        %8797 = vst [vmem:[%s143 + $0xe18] sm:$0xff] %v7773
        %8798 = vst [vmem:[%s143 + $0xe20] sm:$0xff] %v7774
        %8799 = vst [vmem:[%s143 + $0xe28] sm:$0xff] %v7775
        %8800 = vst [vmem:[%s143 + $0xe30] sm:$0xff] %v7776
        %8801 = vst [vmem:[%s143 + $0xe38] sm:$0xff] %v7777
        %8802 = vst [vmem:[%s143 + $0xe40] sm:$0xff] %v7778
        %8803 = vst [vmem:[%s143 + $0xe48] sm:$0xff] %v7779
        %8804 = vst [vmem:[%s143 + $0xe50] sm:$0xff] %v7780
        %8805 = vst [vmem:[%s143 + $0xe58] sm:$0xff] %v7781
        %8806 = vst [vmem:[%s143 + $0xe60] sm:$0xff] %v7782
        %8807 = vst [vmem:[%s143 + $0xe68] sm:$0xff] %v7783
        %8808 = vst [vmem:[%s143 + $0xe70] sm:$0xff] %v7784
        %8809 = vst [vmem:[%s143 + $0xe78] sm:$0xff] %v7785
        %8810 = vst [vmem:[%s143 + $0xe80] sm:$0xff] %v7786
        %8811 = vst [vmem:[%s143 + $0xe88] sm:$0xff] %v7787
        %8812 = vst [vmem:[%s143 + $0xe90] sm:$0xff] %v7788
        %8813 = vst [vmem:[%s143 + $0xe98] sm:$0xff] %v7789
        %8814 = vst [vmem:[%s143 + $0xea0] sm:$0xff] %v7790
        %8815 = vst [vmem:[%s143 + $0xea8] sm:$0xff] %v7791
        %8816 = vst [vmem:[%s143 + $0xeb0] sm:$0xff] %v7792
        %8817 = vst [vmem:[%s143 + $0xeb8] sm:$0xff] %v7793
        %8818 = vst [vmem:[%s143 + $0xec0] sm:$0xff] %v7794
        %8819 = vst [vmem:[%s143 + $0xec8] sm:$0xff] %v7795
        %8820 = vst [vmem:[%s143 + $0xed0] sm:$0xff] %v7796
        %8821 = vst [vmem:[%s143 + $0xed8] sm:$0xff] %v7797
        %8822 = vst [vmem:[%s143 + $0xee0] sm:$0xff] %v7798
        %8823 = vst [vmem:[%s143 + $0xee8] sm:$0xff] %v7799
        %8824 = vst [vmem:[%s143 + $0xef0] sm:$0xff] %v7800
        %8825 = vst [vmem:[%s143 + $0xef8] sm:$0xff] %v7801
        %8826 = vst [vmem:[%s143 + $0xf00] sm:$0xff] %v7802
        %8827 = vst [vmem:[%s143 + $0xf08] sm:$0xff] %v7803
        %8828 = vst [vmem:[%s143 + $0xf10] sm:$0xff] %v7804
        %8829 = vst [vmem:[%s143 + $0xf18] sm:$0xff] %v7805
        %8830 = vst [vmem:[%s143 + $0xf20] sm:$0xff] %v7806
        %8831 = vst [vmem:[%s143 + $0xf28] sm:$0xff] %v7807
        %8832 = vst [vmem:[%s143 + $0xf30] sm:$0xff] %v7808
        %8833 = vst [vmem:[%s143 + $0xf38] sm:$0xff] %v7809
        %8834 = vst [vmem:[%s143 + $0xf40] sm:$0xff] %v7810
        %8835 = vst [vmem:[%s143 + $0xf48] sm:$0xff] %v7811
        %8836 = vst [vmem:[%s143 + $0xf50] sm:$0xff] %v7812
        %8837 = vst [vmem:[%s143 + $0xf58] sm:$0xff] %v7813
        %8838 = vst [vmem:[%s143 + $0xf60] sm:$0xff] %v7814
        %8839 = vst [vmem:[%s143 + $0xf68] sm:$0xff] %v7815
        %8840 = vst [vmem:[%s143 + $0xf70] sm:$0xff] %v7816
        %8841 = vst [vmem:[%s143 + $0xf78] sm:$0xff] %v7817
        %8842 = vst [vmem:[%s143 + $0xf80] sm:$0xff] %v7818
        %8843 = vst [vmem:[%s143 + $0xf88] sm:$0xff] %v7819
        %8844 = vst [vmem:[%s143 + $0xf90] sm:$0xff] %v7820
        %8845 = vst [vmem:[%s143 + $0xf98] sm:$0xff] %v7821
        %8846 = vst [vmem:[%s143 + $0xfa0] sm:$0xff] %v7822
        %8847 = vst [vmem:[%s143 + $0xfa8] sm:$0xff] %v7823
        %8848 = vst [vmem:[%s143 + $0xfb0] sm:$0xff] %v7824
        %8849 = vst [vmem:[%s143 + $0xfb8] sm:$0xff] %v7825
        %8850 = vst [vmem:[%s143 + $0xfc0] sm:$0xff] %v7826
        %8851 = vst [vmem:[%s143 + $0xfc8] sm:$0xff] %v7827
        %8852 = vst [vmem:[%s143 + $0xfd0] sm:$0xff] %v7828
        %8853 = vst [vmem:[%s143 + $0xfd8] sm:$0xff] %v7829
        %8854 = vst [vmem:[%s143 + $0xfe0] sm:$0xff] %v7830
        %8855 = vst [vmem:[%s143 + $0xfe8] sm:$0xff] %v7831
        %8856 = vst [vmem:[%s143 + $0xff0] sm:$0xff] %v7832
        %8857 = vst [vmem:[%s143 + $0xff8] sm:$0xff] %v7833
        %8858 = vst [vmem:[%s143 + $0x1000] sm:$0xff] %v7834
        %8859 = vst [vmem:[%s143 + $0x1008] sm:$0xff] %v7835
        %8860 = vst [vmem:[%s143 + $0x1010] sm:$0xff] %v7836
        %8861 = vst [vmem:[%s143 + $0x1018] sm:$0xff] %v7837
        %8862 = vst [vmem:[%s143 + $0x1020] sm:$0xff] %v7838
        %8863 = vst [vmem:[%s143 + $0x1028] sm:$0xff] %v7839
        %8864 = vst [vmem:[%s143 + $0x1030] sm:$0xff] %v7840
        %8865 = vst [vmem:[%s143 + $0x1038] sm:$0xff] %v7841
        %8866 = vst [vmem:[%s143 + $0x1040] sm:$0xff] %v7842
        %8867 = vst [vmem:[%s143 + $0x1048] sm:$0xff] %v7843
        %8868 = vst [vmem:[%s143 + $0x1050] sm:$0xff] %v7844
        %8869 = vst [vmem:[%s143 + $0x1058] sm:$0xff] %v7845
        %8870 = vst [vmem:[%s143 + $0x1060] sm:$0xff] %v7846
        %8871 = vst [vmem:[%s143 + $0x1068] sm:$0xff] %v7847
        %8872 = vst [vmem:[%s143 + $0x1070] sm:$0xff] %v7848
        %8873 = vst [vmem:[%s143 + $0x1078] sm:$0xff] %v7849
        %8874 = vst [vmem:[%s143 + $0x1080] sm:$0xff] %v7850
        %8875 = vst [vmem:[%s143 + $0x1088] sm:$0xff] %v7851
        %8876 = vst [vmem:[%s143 + $0x1090] sm:$0xff] %v7852
        %8877 = vst [vmem:[%s143 + $0x1098] sm:$0xff] %v7853
        %8878 = vst [vmem:[%s143 + $0x10a0] sm:$0xff] %v7854
        %8879 = vst [vmem:[%s143 + $0x10a8] sm:$0xff] %v7855
        %8880 = vst [vmem:[%s143 + $0x10b0] sm:$0xff] %v7856
        %8881 = vst [vmem:[%s143 + $0x10b8] sm:$0xff] %v7857
        %8882 = vst [vmem:[%s143 + $0x10c0] sm:$0xff] %v7858
        %8883 = vst [vmem:[%s143 + $0x10c8] sm:$0xff] %v7859
        %8884 = vst [vmem:[%s143 + $0x10d0] sm:$0xff] %v7860
        %8885 = vst [vmem:[%s143 + $0x10d8] sm:$0xff] %v7861
        %8886 = vst [vmem:[%s143 + $0x10e0] sm:$0xff] %v7862
        %8887 = vst [vmem:[%s143 + $0x10e8] sm:$0xff] %v7863
        %8888 = vst [vmem:[%s143 + $0x10f0] sm:$0xff] %v7864
        %8889 = vst [vmem:[%s143 + $0x10f8] sm:$0xff] %v7865
        %8890 = vst [vmem:[%s143 + $0x1100] sm:$0xff] %v7866
        %8891 = vst [vmem:[%s143 + $0x1108] sm:$0xff] %v7867
        %8892 = vst [vmem:[%s143 + $0x1110] sm:$0xff] %v7868
        %8893 = vst [vmem:[%s143 + $0x1118] sm:$0xff] %v7869
        %8894 = vst [vmem:[%s143 + $0x1120] sm:$0xff] %v7870
        %8895 = vst [vmem:[%s143 + $0x1128] sm:$0xff] %v7871
        %8896 = vst [vmem:[%s143 + $0x1130] sm:$0xff] %v7872
        %8897 = vst [vmem:[%s143 + $0x1138] sm:$0xff] %v7873
        %8898 = vst [vmem:[%s143 + $0x1140] sm:$0xff] %v7874
        %8899 = vst [vmem:[%s143 + $0x1148] sm:$0xff] %v7875
        %8900 = vst [vmem:[%s143 + $0x1150] sm:$0xff] %v7876
        %8901 = vst [vmem:[%s143 + $0x1158] sm:$0xff] %v7877
        %8902 = vst [vmem:[%s143 + $0x1160] sm:$0xff] %v7878
        %8903 = vst [vmem:[%s143 + $0x1168] sm:$0xff] %v7879
        %8904 = vst [vmem:[%s143 + $0x1170] sm:$0xff] %v7880
        %8905 = vst [vmem:[%s143 + $0x1178] sm:$0xff] %v7881
        %8906 = vst [vmem:[%s143 + $0x1180] sm:$0xff] %v7882
        %8907 = vst [vmem:[%s143 + $0x1188] sm:$0xff] %v7883
        %8908 = vst [vmem:[%s143 + $0x1190] sm:$0xff] %v7884
        %8909 = vst [vmem:[%s143 + $0x1198] sm:$0xff] %v7885
        %8910 = vst [vmem:[%s143 + $0x11a0] sm:$0xff] %v7886
        %8911 = vst [vmem:[%s143 + $0x11a8] sm:$0xff] %v7887
        %8912 = vst [vmem:[%s143 + $0x11b0] sm:$0xff] %v7888
        %8913 = vst [vmem:[%s143 + $0x11b8] sm:$0xff] %v7889
        %8914 = vst [vmem:[%s143 + $0x11c0] sm:$0xff] %v7890
        %8915 = vst [vmem:[%s143 + $0x11c8] sm:$0xff] %v7891
        %8916 = vst [vmem:[%s143 + $0x11d0] sm:$0xff] %v7892
        %8917 = vst [vmem:[%s143 + $0x11d8] sm:$0xff] %v7893
        %8918 = vst [vmem:[%s143 + $0x11e0] sm:$0xff] %v7894
        %8919 = vst [vmem:[%s143 + $0x11e8] sm:$0xff] %v7895
        %8920 = vst [vmem:[%s143 + $0x11f0] sm:$0xff] %v7896
        %8921 = vst [vmem:[%s143 + $0x11f8] sm:$0xff] %v7897
        %8922 = vst [vmem:[%s143 + $0x1200] sm:$0xff] %v7898
        %8923 = vst [vmem:[%s143 + $0x1208] sm:$0xff] %v7899
        %8924 = vst [vmem:[%s143 + $0x1210] sm:$0xff] %v7900
        %8925 = vst [vmem:[%s143 + $0x1218] sm:$0xff] %v7901
        %8926 = vst [vmem:[%s143 + $0x1220] sm:$0xff] %v7902
        %8927 = vst [vmem:[%s143 + $0x1228] sm:$0xff] %v7903
        %8928 = vst [vmem:[%s143 + $0x1230] sm:$0xff] %v7904
        %8929 = vst [vmem:[%s143 + $0x1238] sm:$0xff] %v7905
        %8930 = vst [vmem:[%s143 + $0x1240] sm:$0xff] %v7906
        %8931 = vst [vmem:[%s143 + $0x1248] sm:$0xff] %v7907
        %8932 = vst [vmem:[%s143 + $0x1250] sm:$0xff] %v7908
        %8933 = vst [vmem:[%s143 + $0x1258] sm:$0xff] %v7909
        %8934 = vst [vmem:[%s143 + $0x1260] sm:$0xff] %v7910
        %8935 = vst [vmem:[%s143 + $0x1268] sm:$0xff] %v7911
        %8936 = vst [vmem:[%s143 + $0x1270] sm:$0xff] %v7912
        %8937 = vst [vmem:[%s143 + $0x1278] sm:$0xff] %v7913
        %8938 = vst [vmem:[%s143 + $0x1280] sm:$0xff] %v7914
        %8939 = vst [vmem:[%s143 + $0x1288] sm:$0xff] %v7915
        %8940 = vst [vmem:[%s143 + $0x1290] sm:$0xff] %v7916
        %8941 = vst [vmem:[%s143 + $0x1298] sm:$0xff] %v7917
        %8942 = vst [vmem:[%s143 + $0x12a0] sm:$0xff] %v7918
        %8943 = vst [vmem:[%s143 + $0x12a8] sm:$0xff] %v7919
        %8944 = vst [vmem:[%s143 + $0x12b0] sm:$0xff] %v7920
        %8945 = vst [vmem:[%s143 + $0x12b8] sm:$0xff] %v7921
        %8946 = vst [vmem:[%s143 + $0x12c0] sm:$0xff] %v7922
        %8947 = vst [vmem:[%s143 + $0x12c8] sm:$0xff] %v7923
        %8948 = vst [vmem:[%s143 + $0x12d0] sm:$0xff] %v7924
        %8949 = vst [vmem:[%s143 + $0x12d8] sm:$0xff] %v7925
        %8950 = vst [vmem:[%s143 + $0x12e0] sm:$0xff] %v7926
        %8951 = vst [vmem:[%s143 + $0x12e8] sm:$0xff] %v7927
        %8952 = vst [vmem:[%s143 + $0x12f0] sm:$0xff] %v7928
        %8953 = vst [vmem:[%s143 + $0x12f8] sm:$0xff] %v7929
        %8954 = vst [vmem:[%s143 + $0x1300] sm:$0xff] %v7930
        %8955 = vst [vmem:[%s143 + $0x1308] sm:$0xff] %v7931
        %8956 = vst [vmem:[%s143 + $0x1310] sm:$0xff] %v7932
        %8957 = vst [vmem:[%s143 + $0x1318] sm:$0xff] %v7933
        %8958 = vst [vmem:[%s143 + $0x1320] sm:$0xff] %v7934
        %8959 = vst [vmem:[%s143 + $0x1328] sm:$0xff] %v7935
        %8960 = vst [vmem:[%s143 + $0x1330] sm:$0xff] %v7936
        %8961 = vst [vmem:[%s143 + $0x1338] sm:$0xff] %v7937
        %8962 = vst [vmem:[%s143 + $0x1340] sm:$0xff] %v7938
        %8963 = vst [vmem:[%s143 + $0x1348] sm:$0xff] %v7939
        %8964 = vst [vmem:[%s143 + $0x1350] sm:$0xff] %v7940
        %8965 = vst [vmem:[%s143 + $0x1358] sm:$0xff] %v7941
        %8966 = vst [vmem:[%s143 + $0x1360] sm:$0xff] %v7942
        %8967 = vst [vmem:[%s143 + $0x1368] sm:$0xff] %v7943
        %8968 = vst [vmem:[%s143 + $0x1370] sm:$0xff] %v7944
        %8969 = vst [vmem:[%s143 + $0x1378] sm:$0xff] %v7945
        %8970 = vst [vmem:[%s143 + $0x1380] sm:$0xff] %v7946
        %8971 = vst [vmem:[%s143 + $0x1388] sm:$0xff] %v7947
        %8972 = vst [vmem:[%s143 + $0x1390] sm:$0xff] %v7948
        %8973 = vst [vmem:[%s143 + $0x1398] sm:$0xff] %v7949
        %8974 = vst [vmem:[%s143 + $0x13a0] sm:$0xff] %v7950
        %8975 = vst [vmem:[%s143 + $0x13a8] sm:$0xff] %v7951
        %8976 = vst [vmem:[%s143 + $0x13b0] sm:$0xff] %v7952
        %8977 = vst [vmem:[%s143 + $0x13b8] sm:$0xff] %v7953
        %8978 = vst [vmem:[%s143 + $0x13c0] sm:$0xff] %v7954
        %8979 = vst [vmem:[%s143 + $0x13c8] sm:$0xff] %v7955
        %8980 = vst [vmem:[%s143 + $0x13d0] sm:$0xff] %v7956
        %8981 = vst [vmem:[%s143 + $0x13d8] sm:$0xff] %v7957
        %8982 = vst [vmem:[%s143 + $0x13e0] sm:$0xff] %v7958
        %8983 = vst [vmem:[%s143 + $0x13e8] sm:$0xff] %v7959
        %8984 = vst [vmem:[%s143 + $0x13f0] sm:$0xff] %v7960
        %8985 = vst [vmem:[%s143 + $0x13f8] sm:$0xff] %v7961
        %8986 = vst [vmem:[%s143 + $0x1400] sm:$0xff] %v7962
        %8987 = vst [vmem:[%s143 + $0x1408] sm:$0xff] %v7963
        %8988 = vst [vmem:[%s143 + $0x1410] sm:$0xff] %v7964
        %8989 = vst [vmem:[%s143 + $0x1418] sm:$0xff] %v7965
        %8990 = vst [vmem:[%s143 + $0x1420] sm:$0xff] %v7966
        %8991 = vst [vmem:[%s143 + $0x1428] sm:$0xff] %v7967
        %8992 = vst [vmem:[%s143 + $0x1430] sm:$0xff] %v7968
        %8993 = vst [vmem:[%s143 + $0x1438] sm:$0xff] %v7969
        %8994 = vst [vmem:[%s143 + $0x1440] sm:$0xff] %v7970
        %8995 = vst [vmem:[%s143 + $0x1448] sm:$0xff] %v7971
        %8996 = vst [vmem:[%s143 + $0x1450] sm:$0xff] %v7972
        %8997 = vst [vmem:[%s143 + $0x1458] sm:$0xff] %v7973
        %8998 = vst [vmem:[%s143 + $0x1460] sm:$0xff] %v7974
        %8999 = vst [vmem:[%s143 + $0x1468] sm:$0xff] %v7975
        %9000 = vst [vmem:[%s143 + $0x1470] sm:$0xff] %v7976
        %9001 = vst [vmem:[%s143 + $0x1478] sm:$0xff] %v7977
        %9002 = vst [vmem:[%s143 + $0x1480] sm:$0xff] %v7978
        %9003 = vst [vmem:[%s143 + $0x1488] sm:$0xff] %v7979
        %9004 = vst [vmem:[%s143 + $0x1490] sm:$0xff] %v7980
        %9005 = vst [vmem:[%s143 + $0x1498] sm:$0xff] %v7981
        %9006 = vst [vmem:[%s143 + $0x14a0] sm:$0xff] %v7982
        %9007 = vst [vmem:[%s143 + $0x14a8] sm:$0xff] %v7983
        %9008 = vst [vmem:[%s143 + $0x14b0] sm:$0xff] %v7984
        %9009 = vst [vmem:[%s143 + $0x14b8] sm:$0xff] %v7985
        %9010 = vst [vmem:[%s143 + $0x14c0] sm:$0xff] %v7986
        %9011 = vst [vmem:[%s143 + $0x14c8] sm:$0xff] %v7987
        %9012 = vst [vmem:[%s143 + $0x14d0] sm:$0xff] %v7988
        %9013 = vst [vmem:[%s143 + $0x14d8] sm:$0xff] %v7989
        %9014 = vst [vmem:[%s143 + $0x14e0] sm:$0xff] %v7990
        %9015 = vst [vmem:[%s143 + $0x14e8] sm:$0xff] %v7991
        %9016 = vst [vmem:[%s143 + $0x14f0] sm:$0xff] %v7992
        %9017 = vst [vmem:[%s143 + $0x14f8] sm:$0xff] %v7993
        %9018 = vst [vmem:[%s143 + $0x1500] sm:$0xff] %v7994
        %9019 = vst [vmem:[%s143 + $0x1508] sm:$0xff] %v7995
        %9020 = vst [vmem:[%s143 + $0x1510] sm:$0xff] %v7996
        %9021 = vst [vmem:[%s143 + $0x1518] sm:$0xff] %v7997
        %9022 = vst [vmem:[%s143 + $0x1520] sm:$0xff] %v7998
        %9023 = vst [vmem:[%s143 + $0x1528] sm:$0xff] %v7999
        %9024 = vst [vmem:[%s143 + $0x1530] sm:$0xff] %v8000
        %9025 = vst [vmem:[%s143 + $0x1538] sm:$0xff] %v8001
        %9026 = vst [vmem:[%s143 + $0x1540] sm:$0xff] %v8002
        %9027 = vst [vmem:[%s143 + $0x1548] sm:$0xff] %v8003
        %9028 = vst [vmem:[%s143 + $0x1550] sm:$0xff] %v8004
        %9029 = vst [vmem:[%s143 + $0x1558] sm:$0xff] %v8005
        %9030 = vst [vmem:[%s143 + $0x1560] sm:$0xff] %v8006
        %9031 = vst [vmem:[%s143 + $0x1568] sm:$0xff] %v8007
        %9032 = vst [vmem:[%s143 + $0x1570] sm:$0xff] %v8008
        %9033 = vst [vmem:[%s143 + $0x1578] sm:$0xff] %v8009
        %9034 = vst [vmem:[%s143 + $0x1580] sm:$0xff] %v8010
        %9035 = vst [vmem:[%s143 + $0x1588] sm:$0xff] %v8011
        %9036 = vst [vmem:[%s143 + $0x1590] sm:$0xff] %v8012
        %9037 = vst [vmem:[%s143 + $0x1598] sm:$0xff] %v8013
        %9038 = vst [vmem:[%s143 + $0x15a0] sm:$0xff] %v8014
        %9039 = vst [vmem:[%s143 + $0x15a8] sm:$0xff] %v8015
        %9040 = vst [vmem:[%s143 + $0x15b0] sm:$0xff] %v8016
        %9041 = vst [vmem:[%s143 + $0x15b8] sm:$0xff] %v8017
        %9042 = vst [vmem:[%s143 + $0x15c0] sm:$0xff] %v8018
        %9043 = vst [vmem:[%s143 + $0x15c8] sm:$0xff] %v8019
        %9044 = vst [vmem:[%s143 + $0x15d0] sm:$0xff] %v8020
        %9045 = vst [vmem:[%s143 + $0x15d8] sm:$0xff] %v8021
        %9046 = vst [vmem:[%s143 + $0x15e0] sm:$0xff] %v8022
        %9047 = vst [vmem:[%s143 + $0x15e8] sm:$0xff] %v8023
        %9048 = vst [vmem:[%s143 + $0x15f0] sm:$0xff] %v8024
        %9049 = vst [vmem:[%s143 + $0x15f8] sm:$0xff] %v8025
        %9050 = vst [vmem:[%s143 + $0x1600] sm:$0xff] %v8026
        %9051 = vst [vmem:[%s143 + $0x1608] sm:$0xff] %v8027
        %9052 = vst [vmem:[%s143 + $0x1610] sm:$0xff] %v8028
        %9053 = vst [vmem:[%s143 + $0x1618] sm:$0xff] %v8029
        %9054 = vst [vmem:[%s143 + $0x1620] sm:$0xff] %v8030
        %9055 = vst [vmem:[%s143 + $0x1628] sm:$0xff] %v8031
        %9056 = vst [vmem:[%s143 + $0x1630] sm:$0xff] %v8032
        %9057 = vst [vmem:[%s143 + $0x1638] sm:$0xff] %v8033
        %9058 = vst [vmem:[%s143 + $0x1640] sm:$0xff] %v8034
        %9059 = vst [vmem:[%s143 + $0x1648] sm:$0xff] %v8035
        %9060 = vst [vmem:[%s143 + $0x1650] sm:$0xff] %v8036
        %9061 = vst [vmem:[%s143 + $0x1658] sm:$0xff] %v8037
        %9062 = vst [vmem:[%s143 + $0x1660] sm:$0xff] %v8038
        %9063 = vst [vmem:[%s143 + $0x1668] sm:$0xff] %v8039
        %9064 = vst [vmem:[%s143 + $0x1670] sm:$0xff] %v8040
        %9065 = vst [vmem:[%s143 + $0x1678] sm:$0xff] %v8041
        %9066 = vst [vmem:[%s143 + $0x1680] sm:$0xff] %v8042
        %9067 = vst [vmem:[%s143 + $0x1688] sm:$0xff] %v8043
        %9068 = vst [vmem:[%s143 + $0x1690] sm:$0xff] %v8044
        %9069 = vst [vmem:[%s143 + $0x1698] sm:$0xff] %v8045
        %9070 = vst [vmem:[%s143 + $0x16a0] sm:$0xff] %v8046
        %9071 = vst [vmem:[%s143 + $0x16a8] sm:$0xff] %v8047
        %9072 = vst [vmem:[%s143 + $0x16b0] sm:$0xff] %v8048
        %9073 = vst [vmem:[%s143 + $0x16b8] sm:$0xff] %v8049
        %9074 = vst [vmem:[%s143 + $0x16c0] sm:$0xff] %v8050
        %9075 = vst [vmem:[%s143 + $0x16c8] sm:$0xff] %v8051
        %9076 = vst [vmem:[%s143 + $0x16d0] sm:$0xff] %v8052
        %9077 = vst [vmem:[%s143 + $0x16d8] sm:$0xff] %v8053
        %9078 = vst [vmem:[%s143 + $0x16e0] sm:$0xff] %v8054
        %9079 = vst [vmem:[%s143 + $0x16e8] sm:$0xff] %v8055
        %9080 = vst [vmem:[%s143 + $0x16f0] sm:$0xff] %v8056
        %9081 = vst [vmem:[%s143 + $0x16f8] sm:$0xff] %v8057
        %9082 = vst [vmem:[%s143 + $0x1700] sm:$0xff] %v8058
        %9083 = vst [vmem:[%s143 + $0x1708] sm:$0xff] %v8059
        %9084 = vst [vmem:[%s143 + $0x1710] sm:$0xff] %v8060
        %9085 = vst [vmem:[%s143 + $0x1718] sm:$0xff] %v8061
        %9086 = vst [vmem:[%s143 + $0x1720] sm:$0xff] %v8062
        %9087 = vst [vmem:[%s143 + $0x1728] sm:$0xff] %v8063
        %9088 = vst [vmem:[%s143 + $0x1730] sm:$0xff] %v8064
        %9089 = vst [vmem:[%s143 + $0x1738] sm:$0xff] %v8065
        %9090 = vst [vmem:[%s143 + $0x1740] sm:$0xff] %v8066
        %9091 = vst [vmem:[%s143 + $0x1748] sm:$0xff] %v8067
        %9092 = vst [vmem:[%s143 + $0x1750] sm:$0xff] %v8068
        %9093 = vst [vmem:[%s143 + $0x1758] sm:$0xff] %v8069
        %9094 = vst [vmem:[%s143 + $0x1760] sm:$0xff] %v8070
        %9095 = vst [vmem:[%s143 + $0x1768] sm:$0xff] %v8071
        %9096 = vst [vmem:[%s143 + $0x1770] sm:$0xff] %v8072
        %9097 = vst [vmem:[%s143 + $0x1778] sm:$0xff] %v8073
        %9098 = vst [vmem:[%s143 + $0x1780] sm:$0xff] %v8074
        %9099 = vst [vmem:[%s143 + $0x1788] sm:$0xff] %v8075
        %9100 = vst [vmem:[%s143 + $0x1790] sm:$0xff] %v8076
        %9101 = vst [vmem:[%s143 + $0x1798] sm:$0xff] %v8077
        %9102 = vst [vmem:[%s143 + $0x17a0] sm:$0xff] %v8078
        %9103 = vst [vmem:[%s143 + $0x17a8] sm:$0xff] %v8079
        %9104 = vst [vmem:[%s143 + $0x17b0] sm:$0xff] %v8080
        %9105 = vst [vmem:[%s143 + $0x17b8] sm:$0xff] %v8081
        %9106 = vst [vmem:[%s143 + $0x17c0] sm:$0xff] %v8082
        %9107 = vst [vmem:[%s143 + $0x17c8] sm:$0xff] %v8083
        %9108 = vst [vmem:[%s143 + $0x17d0] sm:$0xff] %v8084
        %9109 = vst [vmem:[%s143 + $0x17d8] sm:$0xff] %v8085
        %9110 = vst [vmem:[%s143 + $0x17e0] sm:$0xff] %v8086
        %9111 = vst [vmem:[%s143 + $0x17e8] sm:$0xff] %v8087
        %9112 = vst [vmem:[%s143 + $0x17f0] sm:$0xff] %v8088
        %9113 = vst [vmem:[%s143 + $0x17f8] sm:$0xff] %v8089
        %9114 = vst [vmem:[%s143 + $0x1800] sm:$0xff] %v8090
        %9115 = vst [vmem:[%s143 + $0x1808] sm:$0xff] %v8091
        %9116 = vst [vmem:[%s143 + $0x1810] sm:$0xff] %v8092
        %9117 = vst [vmem:[%s143 + $0x1818] sm:$0xff] %v8093
        %9118 = vst [vmem:[%s143 + $0x1820] sm:$0xff] %v8094
        %9119 = vst [vmem:[%s143 + $0x1828] sm:$0xff] %v8095
        %9120 = vst [vmem:[%s143 + $0x1830] sm:$0xff] %v8096
        %9121 = vst [vmem:[%s143 + $0x1838] sm:$0xff] %v8097
        %9122 = vst [vmem:[%s143 + $0x1840] sm:$0xff] %v8098
        %9123 = vst [vmem:[%s143 + $0x1848] sm:$0xff] %v8099
        %9124 = vst [vmem:[%s143 + $0x1850] sm:$0xff] %v8100
        %9125 = vst [vmem:[%s143 + $0x1858] sm:$0xff] %v8101
        %9126 = vst [vmem:[%s143 + $0x1860] sm:$0xff] %v8102
        %9127 = vst [vmem:[%s143 + $0x1868] sm:$0xff] %v8103
        %9128 = vst [vmem:[%s143 + $0x1870] sm:$0xff] %v8104
        %9129 = vst [vmem:[%s143 + $0x1878] sm:$0xff] %v8105
        %9130 = vst [vmem:[%s143 + $0x1880] sm:$0xff] %v8106
        %9131 = vst [vmem:[%s143 + $0x1888] sm:$0xff] %v8107
        %9132 = vst [vmem:[%s143 + $0x1890] sm:$0xff] %v8108
        %9133 = vst [vmem:[%s143 + $0x1898] sm:$0xff] %v8109
        %9134 = vst [vmem:[%s143 + $0x18a0] sm:$0xff] %v8110
        %9135 = vst [vmem:[%s143 + $0x18a8] sm:$0xff] %v8111
        %9136 = vst [vmem:[%s143 + $0x18b0] sm:$0xff] %v8112
        %9137 = vst [vmem:[%s143 + $0x18b8] sm:$0xff] %v8113
        %9138 = vst [vmem:[%s143 + $0x18c0] sm:$0xff] %v8114
        %9139 = vst [vmem:[%s143 + $0x18c8] sm:$0xff] %v8115
        %9140 = vst [vmem:[%s143 + $0x18d0] sm:$0xff] %v8116
        %9141 = vst [vmem:[%s143 + $0x18d8] sm:$0xff] %v8117
        %9142 = vst [vmem:[%s143 + $0x18e0] sm:$0xff] %v8118
        %9143 = vst [vmem:[%s143 + $0x18e8] sm:$0xff] %v8119
        %9144 = vst [vmem:[%s143 + $0x18f0] sm:$0xff] %v8120
        %9145 = vst [vmem:[%s143 + $0x18f8] sm:$0xff] %v8121
        %9146 = vst [vmem:[%s143 + $0x1900] sm:$0xff] %v8122
        %9147 = vst [vmem:[%s143 + $0x1908] sm:$0xff] %v8123
        %9148 = vst [vmem:[%s143 + $0x1910] sm:$0xff] %v8124
        %9149 = vst [vmem:[%s143 + $0x1918] sm:$0xff] %v8125
        %9150 = vst [vmem:[%s143 + $0x1920] sm:$0xff] %v8126
        %9151 = vst [vmem:[%s143 + $0x1928] sm:$0xff] %v8127
        %9152 = vst [vmem:[%s143 + $0x1930] sm:$0xff] %v8128
        %9153 = vst [vmem:[%s143 + $0x1938] sm:$0xff] %v8129
        %9154 = vst [vmem:[%s143 + $0x1940] sm:$0xff] %v8130
        %9155 = vst [vmem:[%s143 + $0x1948] sm:$0xff] %v8131
        %9156 = vst [vmem:[%s143 + $0x1950] sm:$0xff] %v8132
        %9157 = vst [vmem:[%s143 + $0x1958] sm:$0xff] %v8133
        %9158 = vst [vmem:[%s143 + $0x1960] sm:$0xff] %v8134
        %9159 = vst [vmem:[%s143 + $0x1968] sm:$0xff] %v8135
        %9160 = vst [vmem:[%s143 + $0x1970] sm:$0xff] %v8136
        %9161 = vst [vmem:[%s143 + $0x1978] sm:$0xff] %v8137
        %9162 = vst [vmem:[%s143 + $0x1980] sm:$0xff] %v8138
        %9163 = vst [vmem:[%s143 + $0x1988] sm:$0xff] %v8139
        %9164 = vst [vmem:[%s143 + $0x1990] sm:$0xff] %v8140
        %9165 = vst [vmem:[%s143 + $0x1998] sm:$0xff] %v8141
        %9166 = vst [vmem:[%s143 + $0x19a0] sm:$0xff] %v8142
        %9167 = vst [vmem:[%s143 + $0x19a8] sm:$0xff] %v8143
        %9168 = vst [vmem:[%s143 + $0x19b0] sm:$0xff] %v8144
        %9169 = vst [vmem:[%s143 + $0x19b8] sm:$0xff] %v8145
        %9170 = vst [vmem:[%s143 + $0x19c0] sm:$0xff] %v8146
        %9171 = vst [vmem:[%s143 + $0x19c8] sm:$0xff] %v8147
        %9172 = vst [vmem:[%s143 + $0x19d0] sm:$0xff] %v8148
        %9173 = vst [vmem:[%s143 + $0x19d8] sm:$0xff] %v8149
        %9174 = vst [vmem:[%s143 + $0x19e0] sm:$0xff] %v8150
        %9175 = vst [vmem:[%s143 + $0x19e8] sm:$0xff] %v8151
        %9176 = vst [vmem:[%s143 + $0x19f0] sm:$0xff] %v8152
        %9177 = vst [vmem:[%s143 + $0x19f8] sm:$0xff] %v8153
        %9178 = vst [vmem:[%s143 + $0x1a00] sm:$0xff] %v8154
        %9179 = vst [vmem:[%s143 + $0x1a08] sm:$0xff] %v8155
        %9180 = vst [vmem:[%s143 + $0x1a10] sm:$0xff] %v8156
        %9181 = vst [vmem:[%s143 + $0x1a18] sm:$0xff] %v8157
        %9182 = vst [vmem:[%s143 + $0x1a20] sm:$0xff] %v8158
        %9183 = vst [vmem:[%s143 + $0x1a28] sm:$0xff] %v8159
        %9184 = vst [vmem:[%s143 + $0x1a30] sm:$0xff] %v8160
        %9185 = vst [vmem:[%s143 + $0x1a38] sm:$0xff] %v8161
        %9186 = vst [vmem:[%s143 + $0x1a40] sm:$0xff] %v8162
        %9187 = vst [vmem:[%s143 + $0x1a48] sm:$0xff] %v8163
        %9188 = vst [vmem:[%s143 + $0x1a50] sm:$0xff] %v8164
        %9189 = vst [vmem:[%s143 + $0x1a58] sm:$0xff] %v8165
        %9190 = vst [vmem:[%s143 + $0x1a60] sm:$0xff] %v8166
        %9191 = vst [vmem:[%s143 + $0x1a68] sm:$0xff] %v8167
        %9192 = vst [vmem:[%s143 + $0x1a70] sm:$0xff] %v8168
        %9193 = vst [vmem:[%s143 + $0x1a78] sm:$0xff] %v8169
        %9194 = vst [vmem:[%s143 + $0x1a80] sm:$0xff] %v8170
        %9195 = vst [vmem:[%s143 + $0x1a88] sm:$0xff] %v8171
        %9196 = vst [vmem:[%s143 + $0x1a90] sm:$0xff] %v8172
        %9197 = vst [vmem:[%s143 + $0x1a98] sm:$0xff] %v8173
        %9198 = vst [vmem:[%s143 + $0x1aa0] sm:$0xff] %v8174
        %9199 = vst [vmem:[%s143 + $0x1aa8] sm:$0xff] %v8175
        %9200 = vst [vmem:[%s143 + $0x1ab0] sm:$0xff] %v8176
        %9201 = vst [vmem:[%s143 + $0x1ab8] sm:$0xff] %v8177
        %9202 = vst [vmem:[%s143 + $0x1ac0] sm:$0xff] %v8178
        %9203 = vst [vmem:[%s143 + $0x1ac8] sm:$0xff] %v8179
        %9204 = vst [vmem:[%s143 + $0x1ad0] sm:$0xff] %v8180
        %9205 = vst [vmem:[%s143 + $0x1ad8] sm:$0xff] %v8181
        %9206 = vst [vmem:[%s143 + $0x1ae0] sm:$0xff] %v8182
        %9207 = vst [vmem:[%s143 + $0x1ae8] sm:$0xff] %v8183
        %9208 = vst [vmem:[%s143 + $0x1af0] sm:$0xff] %v8184
        %9209 = vst [vmem:[%s143 + $0x1af8] sm:$0xff] %v8185
        %9210 = vst [vmem:[%s143 + $0x1b00] sm:$0xff] %v8186
        %9211 = vst [vmem:[%s143 + $0x1b08] sm:$0xff] %v8187
        %9212 = vst [vmem:[%s143 + $0x1b10] sm:$0xff] %v8188
        %9213 = vst [vmem:[%s143 + $0x1b18] sm:$0xff] %v8189
        %9214 = vst [vmem:[%s143 + $0x1b20] sm:$0xff] %v8190
        %9215 = vst [vmem:[%s143 + $0x1b28] sm:$0xff] %v8191
        %9216 = vst [vmem:[%s143 + $0x1b30] sm:$0xff] %v8192
        %9217 = vst [vmem:[%s143 + $0x1b38] sm:$0xff] %v8193
        %9218 = vst [vmem:[%s143 + $0x1b40] sm:$0xff] %v8194
        %9219 = vst [vmem:[%s143 + $0x1b48] sm:$0xff] %v8195
        %9220 = vst [vmem:[%s143 + $0x1b50] sm:$0xff] %v8196
        %9221 = vst [vmem:[%s143 + $0x1b58] sm:$0xff] %v8197
        %9222 = vst [vmem:[%s143 + $0x1b60] sm:$0xff] %v8198
        %9223 = vst [vmem:[%s143 + $0x1b68] sm:$0xff] %v8199
        %9224 = vst [vmem:[%s143 + $0x1b70] sm:$0xff] %v8200
        %9225 = vst [vmem:[%s143 + $0x1b78] sm:$0xff] %v8201
        %9226 = vst [vmem:[%s143 + $0x1b80] sm:$0xff] %v8202
        %9227 = vst [vmem:[%s143 + $0x1b88] sm:$0xff] %v8203
        %9228 = vst [vmem:[%s143 + $0x1b90] sm:$0xff] %v8204
        %9229 = vst [vmem:[%s143 + $0x1b98] sm:$0xff] %v8205
        %9230 = vst [vmem:[%s143 + $0x1ba0] sm:$0xff] %v8206
        %9231 = vst [vmem:[%s143 + $0x1ba8] sm:$0xff] %v8207
        %9232 = vst [vmem:[%s143 + $0x1bb0] sm:$0xff] %v8208
        %9233 = vst [vmem:[%s143 + $0x1bb8] sm:$0xff] %v8209
        %9234 = vst [vmem:[%s143 + $0x1bc0] sm:$0xff] %v8210
        %9235 = vst [vmem:[%s143 + $0x1bc8] sm:$0xff] %v8211
        %9236 = vst [vmem:[%s143 + $0x1bd0] sm:$0xff] %v8212
        %9237 = vst [vmem:[%s143 + $0x1bd8] sm:$0xff] %v8213
        %9238 = vst [vmem:[%s143 + $0x1be0] sm:$0xff] %v8214
        %9239 = vst [vmem:[%s143 + $0x1be8] sm:$0xff] %v8215
        %9240 = vst [vmem:[%s143 + $0x1bf0] sm:$0xff] %v8216
        %9241 = vst [vmem:[%s143 + $0x1bf8] sm:$0xff] %v8217
        %9242 = vst [vmem:[%s143 + $0x1c00] sm:$0xff] %v8218
        %9243 = vst [vmem:[%s143 + $0x1c08] sm:$0xff] %v8219
        %9244 = vst [vmem:[%s143 + $0x1c10] sm:$0xff] %v8220
        %9245 = vst [vmem:[%s143 + $0x1c18] sm:$0xff] %v8221
        %9246 = vst [vmem:[%s143 + $0x1c20] sm:$0xff] %v8222
        %9247 = vst [vmem:[%s143 + $0x1c28] sm:$0xff] %v8223
        %9248 = vst [vmem:[%s143 + $0x1c30] sm:$0xff] %v8224
        %9249 = vst [vmem:[%s143 + $0x1c38] sm:$0xff] %v8225
        %9250 = vst [vmem:[%s143 + $0x1c40] sm:$0xff] %v8226
        %9251 = vst [vmem:[%s143 + $0x1c48] sm:$0xff] %v8227
        %9252 = vst [vmem:[%s143 + $0x1c50] sm:$0xff] %v8228
        %9253 = vst [vmem:[%s143 + $0x1c58] sm:$0xff] %v8229
        %9254 = vst [vmem:[%s143 + $0x1c60] sm:$0xff] %v8230
        %9255 = vst [vmem:[%s143 + $0x1c68] sm:$0xff] %v8231
        %9256 = vst [vmem:[%s143 + $0x1c70] sm:$0xff] %v8232
        %9257 = vst [vmem:[%s143 + $0x1c78] sm:$0xff] %v8233
        %9258 = vst [vmem:[%s143 + $0x1c80] sm:$0xff] %v8234
        %9259 = vst [vmem:[%s143 + $0x1c88] sm:$0xff] %v8235
        %9260 = vst [vmem:[%s143 + $0x1c90] sm:$0xff] %v8236
        %9261 = vst [vmem:[%s143 + $0x1c98] sm:$0xff] %v8237
        %9262 = vst [vmem:[%s143 + $0x1ca0] sm:$0xff] %v8238
        %9263 = vst [vmem:[%s143 + $0x1ca8] sm:$0xff] %v8239
        %9264 = vst [vmem:[%s143 + $0x1cb0] sm:$0xff] %v8240
        %9265 = vst [vmem:[%s143 + $0x1cb8] sm:$0xff] %v8241
        %9266 = vst [vmem:[%s143 + $0x1cc0] sm:$0xff] %v8242
        %9267 = vst [vmem:[%s143 + $0x1cc8] sm:$0xff] %v8243
        %9268 = vst [vmem:[%s143 + $0x1cd0] sm:$0xff] %v8244
        %9269 = vst [vmem:[%s143 + $0x1cd8] sm:$0xff] %v8245
        %9270 = vst [vmem:[%s143 + $0x1ce0] sm:$0xff] %v8246
        %9271 = vst [vmem:[%s143 + $0x1ce8] sm:$0xff] %v8247
        %9272 = vst [vmem:[%s143 + $0x1cf0] sm:$0xff] %v8248
        %9273 = vst [vmem:[%s143 + $0x1cf8] sm:$0xff] %v8249
        %9274 = vst [vmem:[%s143 + $0x1d00] sm:$0xff] %v8250
        %9275 = vst [vmem:[%s143 + $0x1d08] sm:$0xff] %v8251
        %9276 = vst [vmem:[%s143 + $0x1d10] sm:$0xff] %v8252
        %9277 = vst [vmem:[%s143 + $0x1d18] sm:$0xff] %v8253
        %9278 = vst [vmem:[%s143 + $0x1d20] sm:$0xff] %v8254
        %9279 = vst [vmem:[%s143 + $0x1d28] sm:$0xff] %v8255
        %9280 = vst [vmem:[%s143 + $0x1d30] sm:$0xff] %v8256
        %9281 = vst [vmem:[%s143 + $0x1d38] sm:$0xff] %v8257
        %9282 = vst [vmem:[%s143 + $0x1d40] sm:$0xff] %v8258
        %9283 = vst [vmem:[%s143 + $0x1d48] sm:$0xff] %v8259
        %9284 = vst [vmem:[%s143 + $0x1d50] sm:$0xff] %v8260
        %9285 = vst [vmem:[%s143 + $0x1d58] sm:$0xff] %v8261
        %9286 = vst [vmem:[%s143 + $0x1d60] sm:$0xff] %v8262
        %9287 = vst [vmem:[%s143 + $0x1d68] sm:$0xff] %v8263
        %9288 = vst [vmem:[%s143 + $0x1d70] sm:$0xff] %v8264
        %9289 = vst [vmem:[%s143 + $0x1d78] sm:$0xff] %v8265
        %9290 = vst [vmem:[%s143 + $0x1d80] sm:$0xff] %v8266
        %9291 = vst [vmem:[%s143 + $0x1d88] sm:$0xff] %v8267
        %9292 = vst [vmem:[%s143 + $0x1d90] sm:$0xff] %v8268
        %9293 = vst [vmem:[%s143 + $0x1d98] sm:$0xff] %v8269
        %9294 = vst [vmem:[%s143 + $0x1da0] sm:$0xff] %v8270
        %9295 = vst [vmem:[%s143 + $0x1da8] sm:$0xff] %v8271
        %9296 = vst [vmem:[%s143 + $0x1db0] sm:$0xff] %v8272
        %9297 = vst [vmem:[%s143 + $0x1db8] sm:$0xff] %v8273
        %9298 = vst [vmem:[%s143 + $0x1dc0] sm:$0xff] %v8274
        %9299 = vst [vmem:[%s143 + $0x1dc8] sm:$0xff] %v8275
        %9300 = vst [vmem:[%s143 + $0x1dd0] sm:$0xff] %v8276
        %9301 = vst [vmem:[%s143 + $0x1dd8] sm:$0xff] %v8277
        %9302 = vst [vmem:[%s143 + $0x1de0] sm:$0xff] %v8278
        %9303 = vst [vmem:[%s143 + $0x1de8] sm:$0xff] %v8279
        %9304 = vst [vmem:[%s143 + $0x1df0] sm:$0xff] %v8280
        %9305 = vst [vmem:[%s143 + $0x1df8] sm:$0xff] %v8281
        %9306 = vst [vmem:[%s143 + $0x1e00] sm:$0xff] %v8282
        %9307 = vst [vmem:[%s143 + $0x1e08] sm:$0xff] %v8283
        %9308 = vst [vmem:[%s143 + $0x1e10] sm:$0xff] %v8284
        %9309 = vst [vmem:[%s143 + $0x1e18] sm:$0xff] %v8285
        %9310 = vst [vmem:[%s143 + $0x1e20] sm:$0xff] %v8286
        %9311 = vst [vmem:[%s143 + $0x1e28] sm:$0xff] %v8287
        %9312 = vst [vmem:[%s143 + $0x1e30] sm:$0xff] %v8288
        %9313 = vst [vmem:[%s143 + $0x1e38] sm:$0xff] %v8289
        %9314 = vst [vmem:[%s143 + $0x1e40] sm:$0xff] %v8290
        %9315 = vst [vmem:[%s143 + $0x1e48] sm:$0xff] %v8291
        %9316 = vst [vmem:[%s143 + $0x1e50] sm:$0xff] %v8292
        %9317 = vst [vmem:[%s143 + $0x1e58] sm:$0xff] %v8293
        %9318 = vst [vmem:[%s143 + $0x1e60] sm:$0xff] %v8294
        %9319 = vst [vmem:[%s143 + $0x1e68] sm:$0xff] %v8295
        %9320 = vst [vmem:[%s143 + $0x1e70] sm:$0xff] %v8296
        %9321 = vst [vmem:[%s143 + $0x1e78] sm:$0xff] %v8297
        %9322 = vst [vmem:[%s143 + $0x1e80] sm:$0xff] %v8298
        %9323 = vst [vmem:[%s143 + $0x1e88] sm:$0xff] %v8299
        %9324 = vst [vmem:[%s143 + $0x1e90] sm:$0xff] %v8300
        %9325 = vst [vmem:[%s143 + $0x1e98] sm:$0xff] %v8301
        %9326 = vst [vmem:[%s143 + $0x1ea0] sm:$0xff] %v8302
        %9327 = vst [vmem:[%s143 + $0x1ea8] sm:$0xff] %v8303
        %9328 = vst [vmem:[%s143 + $0x1eb0] sm:$0xff] %v8304
        %9329 = vst [vmem:[%s143 + $0x1eb8] sm:$0xff] %v8305
        %9330 = vst [vmem:[%s143 + $0x1ec0] sm:$0xff] %v8306
        %9331 = vst [vmem:[%s143 + $0x1ec8] sm:$0xff] %v8307
        %9332 = vst [vmem:[%s143 + $0x1ed0] sm:$0xff] %v8308
        %9333 = vst [vmem:[%s143 + $0x1ed8] sm:$0xff] %v8309
        %9334 = vst [vmem:[%s143 + $0x1ee0] sm:$0xff] %v8310
        %9335 = vst [vmem:[%s143 + $0x1ee8] sm:$0xff] %v8311
        %9336 = vst [vmem:[%s143 + $0x1ef0] sm:$0xff] %v8312
        %9337 = vst [vmem:[%s143 + $0x1ef8] sm:$0xff] %v8313
        %9338 = vst [vmem:[%s143 + $0x1f00] sm:$0xff] %v8314
        %9339 = vst [vmem:[%s143 + $0x1f08] sm:$0xff] %v8315
        %9340 = vst [vmem:[%s143 + $0x1f10] sm:$0xff] %v8316
        %9341 = vst [vmem:[%s143 + $0x1f18] sm:$0xff] %v8317
        %9342 = vst [vmem:[%s143 + $0x1f20] sm:$0xff] %v8318
        %9343 = vst [vmem:[%s143 + $0x1f28] sm:$0xff] %v8319
        %9344 = vst [vmem:[%s143 + $0x1f30] sm:$0xff] %v8320
        %9345 = vst [vmem:[%s143 + $0x1f38] sm:$0xff] %v8321
        %9346 = vst [vmem:[%s143 + $0x1f40] sm:$0xff] %v8322
        %9347 = vst [vmem:[%s143 + $0x1f48] sm:$0xff] %v8323
        %9348 = vst [vmem:[%s143 + $0x1f50] sm:$0xff] %v8324
        %9349 = vst [vmem:[%s143 + $0x1f58] sm:$0xff] %v8325
        %9350 = vst [vmem:[%s143 + $0x1f60] sm:$0xff] %v8326
        %9351 = vst [vmem:[%s143 + $0x1f68] sm:$0xff] %v8327
        %9352 = vst [vmem:[%s143 + $0x1f70] sm:$0xff] %v8328
        %9353 = vst [vmem:[%s143 + $0x1f78] sm:$0xff] %v8329
        %9354 = vst [vmem:[%s143 + $0x1f80] sm:$0xff] %v8330
        %9355 = vst [vmem:[%s143 + $0x1f88] sm:$0xff] %v8331
        %9356 = vst [vmem:[%s143 + $0x1f90] sm:$0xff] %v8332
        %9357 = vst [vmem:[%s143 + $0x1f98] sm:$0xff] %v8333
        %9358 = vst [vmem:[%s143 + $0x1fa0] sm:$0xff] %v8334
        %9359 = vst [vmem:[%s143 + $0x1fa8] sm:$0xff] %v8335
        %9360 = vst [vmem:[%s143 + $0x1fb0] sm:$0xff] %v8336
        %9361 = vst [vmem:[%s143 + $0x1fb8] sm:$0xff] %v8337
        %9362 = vst [vmem:[%s143 + $0x1fc0] sm:$0xff] %v8338
        %9363 = vst [vmem:[%s143 + $0x1fc8] sm:$0xff] %v8339
        %9364 = vst [vmem:[%s143 + $0x1fd0] sm:$0xff] %v8340
        %9365 = vst [vmem:[%s143 + $0x1fd8] sm:$0xff] %v8341
        %9366 = vst [vmem:[%s143 + $0x1fe0] sm:$0xff] %v8342
        %9367 = vst [vmem:[%s143 + $0x1fe8] sm:$0xff] %v8343
        %9368 = vst [vmem:[%s143 + $0x1ff0] sm:$0xff] %v8344
        %9369 = vst [vmem:[%s143 + $0x1ff8] sm:$0xff] %v8345
        %s9370 = sand.u32 %s52, 1
        %s9371 = scalar_lea.sflag [#allocation4], %s9370
        %s9372 = sand.u32 %s52, 1
        %s9373 = smul.addr %s9372, 8192
        %s9374 = scalar_lea.vmem [#allocation5], %s9373
        // Predicated region
        $region29: #{tpu_custom_call.1} parent=23 // pred_check
          %p9375 = pneg %p62
        $region30: #{tpu_custom_call.1} parent=23 // pred_check_branch
          %9377 = sbr.rel (%p9375) target = $region32
        $region31: #{tpu_custom_call.1} parent=23 // pred_region
          %s9378 = smul.u32 1024, %s18
          %s9379 = ssub.s32 1250, %s9378
          %p9380 = scmp.lt.s32.totalorder %s9379, 1024
          %s9381 = scalar_select %p9380, %s9379, 1024
          %s9382 = smul.u32 8, %s9381
          %s9383 = ssub.s32 8192, %s9382
          %s9384 = sshll.u32 %s9383, 4
          %9385 = vsyncadd %s9371, %s9384
          %p9386 = scmp.ne.s32.totalorder 0, %s9382
          %s9387 = smul.addr %s9378, 8
          %s9388 = scalar_lea.hbm %s1, %s9387
          %s9389 = smul.u32 8, %s9381
          %s9390 = sshll.u32 %s9374, 4
          %s9391 = int_to_ptr.vmem [resolvable:$true] %s9390
          %s9392 = sshll.u32 %s9388, 4
          %s9393 = int_to_ptr.hbm [resolvable:$true] %s9392
          %s9394 = sshll.u32 %s9389, 4
          %9398 = dma.vmem_to_hbm [thread:$0]  (%p9386), %s9391, %s9394, %s9393, %s9371, 128, 128, 8
        $region32: #{tpu_custom_call.1} parent=23 // pred_fallthru
          _
      $region24: #{tpu_custom_call.1} parent=5 // pred_fallthru
        _
      %p9399 = scmp.le.s32.totalorder 2, %s13
      // Predicated region
      $region33: #{tpu_custom_call.1} parent=5 // pred_check
        %p9400 = pneg %p9399
      $region34: #{tpu_custom_call.1} parent=5 // pred_check_branch
        %9402 = sbr.rel (%p9400) target = $region36
      $region35: #{tpu_custom_call.1} parent=5 // pred_region
        %s9403 = ssub.s32 %s13, 2
        // Predicated region
        $region37: #{tpu_custom_call.1} parent=35 // pred_check
          %p9404 = pneg %p68
        $region38: #{tpu_custom_call.1} parent=35 // pred_check_branch
          %9406 = sbr.rel (%p9404) target = $region40
        $region39: #{tpu_custom_call.1} parent=35 // pred_region
          %s9407 = sand.u32 %s53, 1
          %s9408 = scalar_lea.sflag [#allocation4], %s9407
          %s9409 = sand.u32 %s53, 1
          %s9410 = smul.addr %s9409, 8192
          %s9411 = scalar_lea.vmem [#allocation5], %s9410
          %9413 = dma.done %s9408, 131072
        $region40: #{tpu_custom_call.1} parent=35 // pred_fallthru
          _
      $region36: #{tpu_custom_call.1} parent=5 // pred_fallthru
        _
    $region6: #{tpu_custom_call.1} parent=1 // loop_footer
      %s17 = sadd.s32 1, %s13
    $region7: #{tpu_custom_call.1} parent=1 // loop_footer_branch
      %12 = sbr.rel target = $region3
    $region8: #{tpu_custom_call.1} parent=1 // loop_exit
      _
    %9414 = vsyncpa [#allocation3], 1
    %s9415 = scalar_lea.sflag [#allocation3], 1
    %9416 = vsyncpa %s9415, 1
    %9417 = vsyncpa [#allocation4], 1
    %s9418 = scalar_lea.sflag [#allocation4], 1
    %9419 = vsyncpa %s9418, 1

</llo_original>
